<compile_context>
chip_gen: v6e
topology: v6e:2x2x1
jax: 0.10.0
libtpu: 0.0.40
codegen_flags: <defaults>
</compile_context>

<pallas_src>
import numpy as np
import jax
import jax.numpy as jnp
from jax.experimental import pallas as pl
from jax.experimental.pallas import tpu as pltpu  # noqa: F401  (TPU backend)


# ----------------------------------------------------------------------------
# Pallas kernels
# ----------------------------------------------------------------------------
def _linear_bn_lrelu_kernel(z_ref, w_ref, b_ref, g_ref, bb_ref, o_ref):
    """o = LeakyReLU_0.2( BN1d_train( z @ W + b ) ), BN per column over batch."""
    f32 = jnp.float32
    y = jnp.dot(z_ref[...], w_ref[...], preferred_element_type=f32) + b_ref[...]
    mean = jnp.mean(y, axis=0, keepdims=True)
    var = jnp.mean(y * y, axis=0, keepdims=True) - mean * mean     # E[y^2]-mean^2
    yn = (y - mean) * jax.lax.rsqrt(var + 1e-5) * g_ref[...] + bb_ref[...]
    o_ref[...] = jnp.where(yn > 0, yn, 0.2 * yn)


def _decoder_tail_kernel(x_ref, sh1_ref, k1_ref, pn1_ref, g1_ref, bb1_ref,
                         bw_ref, bh_ref, sh2_ref, k2_ref, pn2_ref, g2_ref, bb2_ref,
                         k3_ref, o_ref):
    """conv1+BN+LReLU -> bilinear x2 -> conv2+BN+LReLU -> conv3 -> sigmoid.

    Activations use the flattened channels-last layout A[(b,i), (j,c)].
      * 3x3 'same' conv:   y = sum_t (SH[t] @ x) @ K[t],  t = dy+1
      * BN2d (training):   per-channel stats over (b,i,j), obtained with the
        averaging matmuls  (AVG_rows @ y) @ PN  (PN groups columns by channel).
      * bilinear x2:       x_up = BH @ (x @ BW)   (align_corners=True matrices).
    """
    f32 = jnp.float32

    def conv3(x, sh_ref, k_ref):
        acc = None
        for t in range(3):
            sx = jnp.dot(sh_ref[t], x, preferred_element_type=f32)
            term = jnp.dot(sx, k_ref[t], preferred_element_type=f32)
            acc = term if acc is None else acc + term
        return acc

    def bn_lrelu(y, pn_ref, g_ref, b_ref):
        rows = y.shape[0]
        avg = jnp.full((rows, rows), 1.0 / rows, f32)
        mean = jnp.dot(jnp.dot(avg, y, preferred_element_type=f32),
                       pn_ref[...], preferred_element_type=f32)
        ex2 = jnp.dot(jnp.dot(avg, y * y, preferred_element_type=f32),
                      pn_ref[...], preferred_element_type=f32)
        var = ex2 - mean * mean                                    # biased variance
        yn = (y - mean) * jax.lax.rsqrt(var + 1e-5)
        yn = yn * g_ref[...] + b_ref[...]
        return jnp.where(yn > 0, yn, 0.2 * yn)

    x1 = x_ref[...]                                                # [B*14, 14*32]
    y1 = bn_lrelu(conv3(x1, sh1_ref, k1_ref), pn1_ref, g1_ref, bb1_ref)  # [B*14, 14*16]
    up = jnp.dot(y1, bw_ref[...], preferred_element_type=f32)      # [B*14, 28*16]
    x2 = jnp.dot(bh_ref[...], up, preferred_element_type=f32)      # [B*28, 28*16]
    y2 = bn_lrelu(conv3(x2, sh2_ref, k2_ref), pn2_ref, g2_ref, bb2_ref)  # [B*28, 28*8]
    y3 = conv3(y2, sh2_ref, k3_ref)                                # [B*28, 128] (28 valid)
    o_ref[...] = jax.nn.sigmoid(y3)


# ----------------------------------------------------------------------------
# Host-side (trace-time) constant / weight repacking helpers
# ----------------------------------------------------------------------------
def shift_rows(n, d):
    """S[i, k] = 1 iff k == i + d  (so (S @ X)[i] = X[i+d], zero when OOB)."""
    s = np.zeros((n, n), np.float32)
    for i in range(n):
        k = i + d
        if 0 <= k < n:
            s[i, k] = 1.0
    return s


def hshift_stack(batch, h):
    """[3, batch*h, batch*h] row-shift matrices for dy = -1, 0, +1 (per-batch blocks)."""
    eye_b = np.eye(batch, dtype=np.float32)
    return np.stack([np.kron(eye_b, shift_rows(h, dy)) for dy in (-1, 0, 1)], axis=0)


def bilinear_matrix(n_in, n_out):
    """align_corners=True bilinear interpolation matrix [n_out, n_in]."""
    i = np.arange(n_out)
    src = i * (n_in - 1) / (n_out - 1)
    lo = np.minimum(np.floor(src).astype(np.int64), n_in - 2)
    frac = src - lo
    a = np.zeros((n_out, n_in), np.float32)
    a[np.arange(n_out), lo] = 1.0 - frac
    a[np.arange(n_out), lo + 1] = frac
    return a


def convT_tap_matrices(wt, width, pad_cols_to=None):
    """ConvTranspose2d weight [Cin, Cout, 3, 3] (stride=1, pad=1) -> row-tap matmul
    matrices K[a] of shape [width*Cin, width*Cout(+pad)], a = dy+1, such that
        y2d = sum_a (SH[a] @ x2d) @ K[a]
    implements the equivalent 3x3 'same' conv on the [(b,i),(j,c)] layout."""
    cin, cout = wt.shape[0], wt.shape[1]
    # same-conv weight: Wc[a, d, ci, co] = wt[ci, co, 2-a, 2-d]
    wc = jnp.flip(wt.astype(jnp.float32), axis=(2, 3)).transpose(2, 3, 0, 1)
    taps = []
    for a in range(3):
        k = jnp.zeros((width * cin, width * cout), jnp.float32)
        for d in range(3):
            dx = d - 1
            jw = jnp.asarray(shift_rows(width, -dx))   # jw[j', j] = 1 iff j' == j + dx
            k = k + jnp.kron(jw, wc[a, d])
        taps.append(k)
    kmat = jnp.stack(taps, axis=0)                     # [3, width*Cin, width*Cout]
    if pad_cols_to is not None and pad_cols_to > width * cout:
        kmat = jnp.pad(kmat, ((0, 0), (0, 0), (0, pad_cols_to - width * cout)))
    return kmat


# ----------------------------------------------------------------------------
# Forward pass
# ----------------------------------------------------------------------------
def px_z_forward(params, z):
    B = z.shape[0]
    C0, H0, W0 = 32, 14, 14          # after Reshape
    C1 = 16                          # after conv1
    H1, W1 = 28, 28                  # after bilinear x2 upsample
    C2 = 8                           # after conv2
    OUT_LANES = 128                  # lane-dense final store (28 valid columns)

    # -- trace-time, shape-only numpy constants ------------------------------
    # feature permutation: PyTorch Reshape order (c,i,j) -> channels-last (i,j,c)
    i_idx, j_idx, c_idx = np.meshgrid(
        np.arange(H0), np.arange(W0), np.arange(C0), indexing="ij")
    perm = (c_idx * (H0 * W0) + i_idx * W0 + j_idx).reshape(-1)          # len 6272

    sh1 = jnp.asarray(hshift_stack(B, H0))                               # [3, B*14, B*14]
    sh2 = jnp.asarray(hshift_stack(B, H1))                               # [3, B*28, B*28]

    a_up = bilinear_matrix(H0, H1)                                       # [28, 14]
    bw = jnp.asarray(np.kron(a_up.T, np.eye(C1, dtype=np.float32)))      # [14*16, 28*16]
    bh = jnp.asarray(np.kron(np.eye(B, dtype=np.float32), a_up))         # [B*28, B*14]

    pn1 = jnp.asarray(np.kron(np.ones((W0, W0), np.float32) / W0,
                              np.eye(C1, dtype=np.float32)))             # [224, 224]
    pn2 = jnp.asarray(np.kron(np.ones((W1, W1), np.float32) / W1,
                              np.eye(C2, dtype=np.float32)))             # [224, 224]

    # -- weight repacking (weights only, no activation HBM traffic) ----------
    w_lin = params["lin_w"][:, perm].astype(jnp.float32)
    b_lin = params["lin_b"][perm].astype(jnp.float32)[None, :]
    g_bn1 = params["bn1_g"][perm].astype(jnp.float32)[None, :]
    be_bn1 = params["bn1_b"][perm].astype(jnp.float32)[None, :]

    k1 = convT_tap_matrices(params["ct1_w"], W0)                         # [3, 448, 224]
    k2 = convT_tap_matrices(params["ct2_w"], W1)                         # [3, 448, 224]
    k3 = convT_tap_matrices(params["ct3_w"], W1, pad_cols_to=OUT_LANES)  # [3, 224, 128]

    g1b = jnp.tile(params["bn2_g"].astype(jnp.float32), W0)[None, :]     # [1, 224]
    bb1 = jnp.tile(params["bn2_b"].astype(jnp.float32), W0)[None, :]
    g2b = jnp.tile(params["bn3_g"].astype(jnp.float32), W1)[None, :]     # [1, 224]
    bb2 = jnp.tile(params["bn3_b"].astype(jnp.float32), W1)[None, :]

    # -- kernel 1: Linear + BN1d + LeakyReLU (single step, lane-dense N=6272) -
    h = pl.pallas_call(
        _linear_bn_lrelu_kernel,
        out_shape=jax.ShapeDtypeStruct((B, H0 * W0 * C0), jnp.float32),
    )(z.astype(jnp.float32), w_lin, b_lin, g_bn1, be_bn1)

    # free contiguous reshape to the [(b,i),(j,c)] conv layout
    x1 = h.reshape(B * H0, W0 * C0)                                      # [B*14, 448]

    # -- kernel 2: conv1+BN+LReLU -> bilinear x2 -> conv2+BN+LReLU -> conv3+sigmoid
    o = pl.pallas_call(
        _decoder_tail_kernel,
        out_shape=jax.ShapeDtypeStruct((B * H1, OUT_LANES), jnp.float32),
    )(x1, sh1, k1, pn1, g1b, bb1, bw, bh, sh2, k2, pn2, g2b, bb2, k3)

    # valid columns are the first W1 = 28; rows are (b, i)
    return o[:, :W1].reshape(B, H1, W1)[:, None, :, :]                   # [B, 1, 28, 28]


# ----------------------------------------------------------------------------
# Parameter construction (matches the PyTorch module's shapes; convs bias=False)
# ----------------------------------------------------------------------------
def init_params(key, dim_z=64):
    ks = jax.random.split(key, 5)
    p = {}
    p["lin_w"] = jax.random.normal(ks[0], (dim_z, 6272), jnp.float32) * 0.05
    p["lin_b"] = jax.random.normal(ks[1], (6272,), jnp.float32) * 0.05
    p["bn1_g"] = jnp.ones((6272,), jnp.float32)
    p["bn1_b"] = jnp.zeros((6272,), jnp.float32)
    p["ct1_w"] = jax.random.normal(ks[2], (32, 16, 3, 3), jnp.float32) * 0.05
    p["bn2_g"] = jnp.ones((16,), jnp.float32)
    p["bn2_b"] = jnp.zeros((16,), jnp.float32)
    p["ct2_w"] = jax.random.normal(ks[3], (16, 8, 3, 3), jnp.float32) * 0.05
    p["bn3_g"] = jnp.ones((8,), jnp.float32)
    p["bn3_b"] = jnp.zeros((8,), jnp.float32)
    p["ct3_w"] = jax.random.normal(ks[4], (8, 1, 3, 3), jnp.float32) * 0.05
    return p


if __name__ == "__main__":
    key = jax.random.PRNGKey(0)
    kp, kz = jax.random.split(key)
    params = init_params(kp, dim_z=64)
    z = jax.random.normal(kz, (4, 64), jnp.float32)

    out = jax.jit(px_z_forward)(params, z)
    out = jax.block_until_ready(out)

    assert out.shape == (4, 1, 28, 28), out.shape
    assert out.dtype == jnp.float32
    assert bool(jnp.all(jnp.isfinite(out)))
    assert bool(jnp.all((out >= 0.0) & (out <= 1.0)))  # sigmoid range
    print("KERNEL_OK")
</pallas_src>

<mosaic_0001>
module attributes {stable_mosaic.version = 11 : i64} {
  func.func @_linear_bn_lrelu_kernel(%arg0: memref<4x64xf32, #tpu.memory_space<vmem>>, %arg1: memref<64x6272xf32, #tpu.memory_space<vmem>>, %arg2: memref<1x6272xf32, #tpu.memory_space<vmem>>, %arg3: memref<1x6272xf32, #tpu.memory_space<vmem>>, %arg4: memref<1x6272xf32, #tpu.memory_space<vmem>>, %arg5: memref<4x6272xf32, #tpu.memory_space<vmem>>) attributes {dimension_semantics = [], scalar_prefetch = 0 : i64, scratch_operands = 0 : i64, tpu.core_type = #tpu.core_type<tc>} {
    %c0 = arith.constant 0 : index
    %c0_0 = arith.constant 0 : index
    %0 = vector.load %arg0[%c0, %c0_0] : memref<4x64xf32, #tpu.memory_space<vmem>>, vector<4x64xf32>
    %c0_1 = arith.constant 0 : index
    %c0_2 = arith.constant 0 : index
    %1 = vector.load %arg1[%c0_1, %c0_2] : memref<64x6272xf32, #tpu.memory_space<vmem>>, vector<64x6272xf32>
    %cst = arith.constant dense<0.000000e+00> : vector<4x6272xf32>
    %2 = tpu.matmul %0, %1, %cst {dimension_numbers = #tpu.dot_dimension_numbers<[1], [0], [0], [1], [0, 0, 1, 1], [], []>} : vector<4x64xf32>, vector<64x6272xf32>, vector<4x6272xf32> -> vector<4x6272xf32>
    %c0_3 = arith.constant 0 : index
    %c0_4 = arith.constant 0 : index
    %3 = vector.load %arg2[%c0_3, %c0_4] : memref<1x6272xf32, #tpu.memory_space<vmem>>, vector<1x6272xf32>
    %4 = vector.broadcast %3 : vector<1x6272xf32> to vector<4x6272xf32>
    %5 = arith.addf %2, %4 : vector<4x6272xf32>
    %cst_5 = arith.constant dense<0.000000e+00> : vector<6272xf32>
    %6 = vector.multi_reduction <add>, %5, %cst_5 [0] : vector<4x6272xf32> to vector<6272xf32>
    %7 = vector.shape_cast %6 : vector<6272xf32> to vector<1x6272xf32>
    %cst_6 = arith.constant 4.000000e+00 : f32
    %8 = vector.broadcast %cst_6 : f32 to vector<1x6272xf32>
    %9 = arith.divf %7, %8 : vector<1x6272xf32>
    %10 = arith.mulf %5, %5 : vector<4x6272xf32>
    %cst_7 = arith.constant dense<0.000000e+00> : vector<6272xf32>
    %11 = vector.multi_reduction <add>, %10, %cst_7 [0] : vector<4x6272xf32> to vector<6272xf32>
    %12 = vector.shape_cast %11 : vector<6272xf32> to vector<1x6272xf32>
    %cst_8 = arith.constant 4.000000e+00 : f32
    %13 = vector.broadcast %cst_8 : f32 to vector<1x6272xf32>
    %14 = arith.divf %12, %13 : vector<1x6272xf32>
    %15 = arith.mulf %9, %9 : vector<1x6272xf32>
    %16 = arith.subf %14, %15 : vector<1x6272xf32>
    %17 = vector.broadcast %9 : vector<1x6272xf32> to vector<4x6272xf32>
    %18 = arith.subf %5, %17 : vector<4x6272xf32>
    %cst_9 = arith.constant 9.99999974E-6 : f32
    %19 = vector.broadcast %cst_9 : f32 to vector<1x6272xf32>
    %20 = arith.addf %16, %19 : vector<1x6272xf32>
    %21 = math.rsqrt %20 : vector<1x6272xf32>
    %22 = vector.broadcast %21 : vector<1x6272xf32> to vector<4x6272xf32>
    %23 = arith.mulf %18, %22 : vector<4x6272xf32>
    %c0_10 = arith.constant 0 : index
    %c0_11 = arith.constant 0 : index
    %24 = vector.load %arg3[%c0_10, %c0_11] : memref<1x6272xf32, #tpu.memory_space<vmem>>, vector<1x6272xf32>
    %25 = vector.broadcast %24 : vector<1x6272xf32> to vector<4x6272xf32>
    %26 = arith.mulf %23, %25 : vector<4x6272xf32>
    %c0_12 = arith.constant 0 : index
    %c0_13 = arith.constant 0 : index
    %27 = vector.load %arg4[%c0_12, %c0_13] : memref<1x6272xf32, #tpu.memory_space<vmem>>, vector<1x6272xf32>
    %28 = vector.broadcast %27 : vector<1x6272xf32> to vector<4x6272xf32>
    %29 = arith.addf %26, %28 : vector<4x6272xf32>
    %cst_14 = arith.constant 0.000000e+00 : f32
    %30 = vector.broadcast %cst_14 : f32 to vector<4x6272xf32>
    %31 = arith.cmpf ogt, %29, %30 : vector<4x6272xf32>
    %cst_15 = arith.constant 2.000000e-01 : f32
    %32 = vector.broadcast %cst_15 : f32 to vector<4x6272xf32>
    %33 = arith.mulf %32, %29 : vector<4x6272xf32>
    %34 = arith.select %31, %29, %33 : vector<4x6272xi1>, vector<4x6272xf32>
    %c0_16 = arith.constant 0 : index
    %c0_17 = arith.constant 0 : index
    %35 = vector.load %arg5[%c0_16, %c0_17] : memref<4x6272xf32, #tpu.memory_space<vmem>>, vector<4x6272xf32>
    tpu.vector_store %arg5[%c0_16, %c0_17], %34 {strides = array<i32>} : memref<4x6272xf32, #tpu.memory_space<vmem>>, vector<4x6272xf32>,
    return
  }
}

module attributes {stable_mosaic.version = 11 : i64} {
  func.func @_decoder_tail_kernel(%arg0: memref<56x448xf32, #tpu.memory_space<vmem>>, %arg1: memref<3x56x56xf32, #tpu.memory_space<vmem>>, %arg2: memref<3x448x224xf32, #tpu.memory_space<vmem>>, %arg3: memref<224x224xf32, #tpu.memory_space<vmem>>, %arg4: memref<1x224xf32, #tpu.memory_space<vmem>>, %arg5: memref<1x224xf32, #tpu.memory_space<vmem>>, %arg6: memref<224x448xf32, #tpu.memory_space<vmem>>, %arg7: memref<112x56xf32, #tpu.memory_space<vmem>>, %arg8: memref<3x112x112xf32, #tpu.memory_space<vmem>>, %arg9: memref<3x448x224xf32, #tpu.memory_space<vmem>>, %arg10: memref<224x224xf32, #tpu.memory_space<vmem>>, %arg11: memref<1x224xf32, #tpu.memory_space<vmem>>, %arg12: memref<1x224xf32, #tpu.memory_space<vmem>>, %arg13: memref<3x224x128xf32, #tpu.memory_space<vmem>>, %arg14: memref<112x128xf32, #tpu.memory_space<vmem>>) attributes {dimension_semantics = [], scalar_prefetch = 0 : i64, scratch_operands = 0 : i64, tpu.core_type = #tpu.core_type<tc>} {
    %c0 = arith.constant 0 : index
    %c0_0 = arith.constant 0 : index
    %0 = vector.load %arg0[%c0, %c0_0] : memref<56x448xf32, #tpu.memory_space<vmem>>, vector<56x448xf32>
    %c0_1 = arith.constant 0 : index
    %c0_2 = arith.constant 0 : index
    %c0_3 = arith.constant 0 : index
    %1 = vector.load %arg1[%c0_1, %c0_2, %c0_3] : memref<3x56x56xf32, #tpu.memory_space<vmem>>, vector<1x56x56xf32>
    %2 = vector.shape_cast %1 : vector<1x56x56xf32> to vector<56x56xf32>
    %cst = arith.constant dense<0.000000e+00> : vector<56x448xf32>
    %3 = tpu.matmul %2, %0, %cst {dimension_numbers = #tpu.dot_dimension_numbers<[1], [0], [0], [1], [0, 0, 1, 1], [], []>} : vector<56x56xf32>, vector<56x448xf32>, vector<56x448xf32> -> vector<56x448xf32>
    %c0_4 = arith.constant 0 : index
    %c0_5 = arith.constant 0 : index
    %c0_6 = arith.constant 0 : index
    %4 = vector.load %arg2[%c0_4, %c0_5, %c0_6] : memref<3x448x224xf32, #tpu.memory_space<vmem>>, vector<1x448x224xf32>
    %5 = vector.shape_cast %4 : vector<1x448x224xf32> to vector<448x224xf32>
    %cst_7 = arith.constant dense<0.000000e+00> : vector<56x224xf32>
    %6 = tpu.matmul %3, %5, %cst_7 {dimension_numbers = #tpu.dot_dimension_numbers<[1], [0], [0], [1], [0, 0, 1, 1], [], []>} : vector<56x448xf32>, vector<448x224xf32>, vector<56x224xf32> -> vector<56x224xf32>
    %c1 = arith.constant 1 : index
    %c0_8 = arith.constant 0 : index
    %c0_9 = arith.constant 0 : index
    %7 = vector.load %arg1[%c1, %c0_8, %c0_9] : memref<3x56x56xf32, #tpu.memory_space<vmem>>, vector<1x56x56xf32>
    %8 = vector.shape_cast %7 : vector<1x56x56xf32> to vector<56x56xf32>
    %cst_10 = arith.constant dense<0.000000e+00> : vector<56x448xf32>
    %9 = tpu.matmul %8, %0, %cst_10 {dimension_numbers = #tpu.dot_dimension_numbers<[1], [0], [0], [1], [0, 0, 1, 1], [], []>} : vector<56x56xf32>, vector<56x448xf32>, vector<56x448xf32> -> vector<56x448xf32>
    %c1_11 = arith.constant 1 : index
    %c0_12 = arith.constant 0 : index
    %c0_13 = arith.constant 0 : index
    %10 = vector.load %arg2[%c1_11, %c0_12, %c0_13] : memref<3x448x224xf32, #tpu.memory_space<vmem>>, vector<1x448x224xf32>
    %11 = vector.shape_cast %10 : vector<1x448x224xf32> to vector<448x224xf32>
    %cst_14 = arith.constant dense<0.000000e+00> : vector<56x224xf32>
    %12 = tpu.matmul %9, %11, %cst_14 {dimension_numbers = #tpu.dot_dimension_numbers<[1], [0], [0], [1], [0, 0, 1, 1], [], []>} : vector<56x448xf32>, vector<448x224xf32>, vector<56x224xf32> -> vector<56x224xf32>
    %13 = arith.addf %6, %12 : vector<56x224xf32>
    %c2 = arith.constant 2 : index
    %c0_15 = arith.constant 0 : index
    %c0_16 = arith.constant 0 : index
    %14 = vector.load %arg1[%c2, %c0_15, %c0_16] : memref<3x56x56xf32, #tpu.memory_space<vmem>>, vector<1x56x56xf32>
    %15 = vector.shape_cast %14 : vector<1x56x56xf32> to vector<56x56xf32>
    %cst_17 = arith.constant dense<0.000000e+00> : vector<56x448xf32>
    %16 = tpu.matmul %15, %0, %cst_17 {dimension_numbers = #tpu.dot_dimension_numbers<[1], [0], [0], [1], [0, 0, 1, 1], [], []>} : vector<56x56xf32>, vector<56x448xf32>, vector<56x448xf32> -> vector<56x448xf32>
    %c2_18 = arith.constant 2 : index
    %c0_19 = arith.constant 0 : index
    %c0_20 = arith.constant 0 : index
    %17 = vector.load %arg2[%c2_18, %c0_19, %c0_20] : memref<3x448x224xf32, #tpu.memory_space<vmem>>, vector<1x448x224xf32>
    %18 = vector.shape_cast %17 : vector<1x448x224xf32> to vector<448x224xf32>
    %cst_21 = arith.constant dense<0.000000e+00> : vector<56x224xf32>
    %19 = tpu.matmul %16, %18, %cst_21 {dimension_numbers = #tpu.dot_dimension_numbers<[1], [0], [0], [1], [0, 0, 1, 1], [], []>} : vector<56x448xf32>, vector<448x224xf32>, vector<56x224xf32> -> vector<56x224xf32>
    %20 = arith.addf %13, %19 : vector<56x224xf32>
    %cst_22 = arith.constant 0.0178571437 : f32
    %21 = vector.broadcast %cst_22 : f32 to vector<56x56xf32>
    %cst_23 = arith.constant dense<0.000000e+00> : vector<56x224xf32>
    %22 = tpu.matmul %21, %20, %cst_23 {dimension_numbers = #tpu.dot_dimension_numbers<[1], [0], [0], [1], [0, 0, 1, 1], [], []>} : vector<56x56xf32>, vector<56x224xf32>, vector<56x224xf32> -> vector<56x224xf32>
    %c0_24 = arith.constant 0 : index
    %c0_25 = arith.constant 0 : index
    %23 = vector.load %arg3[%c0_24, %c0_25] : memref<224x224xf32, #tpu.memory_space<vmem>>, vector<224x224xf32>
    %cst_26 = arith.constant dense<0.000000e+00> : vector<56x224xf32>
    %24 = tpu.matmul %22, %23, %cst_26 {dimension_numbers = #tpu.dot_dimension_numbers<[1], [0], [0], [1], [0, 0, 1, 1], [], []>} : vector<56x224xf32>, vector<224x224xf32>, vector<56x224xf32> -> vector<56x224xf32>
    %25 = arith.mulf %20, %20 : vector<56x224xf32>
    %cst_27 = arith.constant dense<0.000000e+00> : vector<56x224xf32>
    %26 = tpu.matmul %21, %25, %cst_27 {dimension_numbers = #tpu.dot_dimension_numbers<[1], [0], [0], [1], [0, 0, 1, 1], [], []>} : vector<56x56xf32>, vector<56x224xf32>, vector<56x224xf32> -> vector<56x224xf32>
    %c0_28 = arith.constant 0 : index
    %c0_29 = arith.constant 0 : index
    %27 = vector.load %arg3[%c0_28, %c0_29] : memref<224x224xf32, #tpu.memory_space<vmem>>, vector<224x224xf32>
    %cst_30 = arith.constant dense<0.000000e+00> : vector<56x224xf32>
    %28 = tpu.matmul %26, %27, %cst_30 {dimension_numbers = #tpu.dot_dimension_numbers<[1], [0], [0], [1], [0, 0, 1, 1], [], []>} : vector<56x224xf32>, vector<224x224xf32>, vector<56x224xf32> -> vector<56x224xf32>
    %29 = arith.mulf %24, %24 : vector<56x224xf32>
    %30 = arith.subf %28, %29 : vector<56x224xf32>
    %31 = arith.subf %20, %24 : vector<56x224xf32>
    %cst_31 = arith.constant 9.99999974E-6 : f32
    %32 = vector.broadcast %cst_31 : f32 to vector<56x224xf32>
    %33 = arith.addf %30, %32 : vector<56x224xf32>
    %34 = math.rsqrt %33 : vector<56x224xf32>
    %35 = arith.mulf %31, %34 : vector<56x224xf32>
    %c0_32 = arith.constant 0 : index
    %c0_33 = arith.constant 0 : index
    %36 = vector.load %arg4[%c0_32, %c0_33] : memref<1x224xf32, #tpu.memory_space<vmem>>, vector<1x224xf32>
    %37 = vector.broadcast %36 : vector<1x224xf32> to vector<56x224xf32>
    %38 = arith.mulf %35, %37 : vector<56x224xf32>
    %c0_34 = arith.constant 0 : index
    %c0_35 = arith.constant 0 : index
    %39 = vector.load %arg5[%c0_34, %c0_35] : memref<1x224xf32, #tpu.memory_space<vmem>>, vector<1x224xf32>
    %40 = vector.broadcast %39 : vector<1x224xf32> to vector<56x224xf32>
    %41 = arith.addf %38, %40 : vector<56x224xf32>
    %cst_36 = arith.constant 0.000000e+00 : f32
    %42 = vector.broadcast %cst_36 : f32 to vector<56x224xf32>
    %43 = arith.cmpf ogt, %41, %42 : vector<56x224xf32>
    %cst_37 = arith.constant 2.000000e-01 : f32
    %44 = vector.broadcast %cst_37 : f32 to vector<56x224xf32>
    %45 = arith.mulf %44, %41 : vector<56x224xf32>
    %46 = arith.select %43, %41, %45 : vector<56x224xi1>, vector<56x224xf32>
    %c0_38 = arith.constant 0 : index
    %c0_39 = arith.constant 0 : index
    %47 = vector.load %arg6[%c0_38, %c0_39] : memref<224x448xf32, #tpu.memory_space<vmem>>, vector<224x448xf32>
    %cst_40 = arith.constant dense<0.000000e+00> : vector<56x448xf32>
    %48 = tpu.matmul %46, %47, %cst_40 {dimension_numbers = #tpu.dot_dimension_numbers<[1], [0], [0], [1], [0, 0, 1, 1], [], []>} : vector<56x224xf32>, vector<224x448xf32>, vector<56x448xf32> -> vector<56x448xf32>
    %c0_41 = arith.constant 0 : index
    %c0_42 = arith.constant 0 : index
    %49 = vector.load %arg7[%c0_41, %c0_42] : memref<112x56xf32, #tpu.memory_space<vmem>>, vector<112x56xf32>
    %cst_43 = arith.constant dense<0.000000e+00> : vector<112x448xf32>
    %50 = tpu.matmul %49, %48, %cst_43 {dimension_numbers = #tpu.dot_dimension_numbers<[1], [0], [0], [1], [0, 0, 1, 1], [], []>} : vector<112x56xf32>, vector<56x448xf32>, vector<112x448xf32> -> vector<112x448xf32>
    %c0_44 = arith.constant 0 : index
    %c0_45 = arith.constant 0 : index
    %c0_46 = arith.constant 0 : index
    %51 = vector.load %arg8[%c0_44, %c0_45, %c0_46] : memref<3x112x112xf32, #tpu.memory_space<vmem>>, vector<1x112x112xf32>
    %52 = vector.shape_cast %51 : vector<1x112x112xf32> to vector<112x112xf32>
    %cst_47 = arith.constant dense<0.000000e+00> : vector<112x448xf32>
    %53 = tpu.matmul %52, %50, %cst_47 {dimension_numbers = #tpu.dot_dimension_numbers<[1], [0], [0], [1], [0, 0, 1, 1], [], []>} : vector<112x112xf32>, vector<112x448xf32>, vector<112x448xf32> -> vector<112x448xf32>
    %c0_48 = arith.constant 0 : index
    %c0_49 = arith.constant 0 : index
    %c0_50 = arith.constant 0 : index
    %54 = vector.load %arg9[%c0_48, %c0_49, %c0_50] : memref<3x448x224xf32, #tpu.memory_space<vmem>>, vector<1x448x224xf32>
    %55 = vector.shape_cast %54 : vector<1x448x224xf32> to vector<448x224xf32>
    %cst_51 = arith.constant dense<0.000000e+00> : vector<112x224xf32>
    %56 = tpu.matmul %53, %55, %cst_51 {dimension_numbers = #tpu.dot_dimension_numbers<[1], [0], [0], [1], [0, 0, 1, 1], [], []>} : vector<112x448xf32>, vector<448x224xf32>, vector<112x224xf32> -> vector<112x224xf32>
    %c1_52 = arith.constant 1 : index
    %c0_53 = arith.constant 0 : index
    %c0_54 = arith.constant 0 : index
    %57 = vector.load %arg8[%c1_52, %c0_53, %c0_54] : memref<3x112x112xf32, #tpu.memory_space<vmem>>, vector<1x112x112xf32>
    %58 = vector.shape_cast %57 : vector<1x112x112xf32> to vector<112x112xf32>
    %cst_55 = arith.constant dense<0.000000e+00> : vector<112x448xf32>
    %59 = tpu.matmul %58, %50, %cst_55 {dimension_numbers = #tpu.dot_dimension_numbers<[1], [0], [0], [1], [0, 0, 1, 1], [], []>} : vector<112x112xf32>, vector<112x448xf32>, vector<112x448xf32> -> vector<112x448xf32>
    %c1_56 = arith.constant 1 : index
    %c0_57 = arith.constant 0 : index
    %c0_58 = arith.constant 0 : index
    %60 = vector.load %arg9[%c1_56, %c0_57, %c0_58] : memref<3x448x224xf32, #tpu.memory_space<vmem>>, vector<1x448x224xf32>
    %61 = vector.shape_cast %60 : vector<1x448x224xf32> to vector<448x224xf32>
    %cst_59 = arith.constant dense<0.000000e+00> : vector<112x224xf32>
    %62 = tpu.matmul %59, %61, %cst_59 {dimension_numbers = #tpu.dot_dimension_numbers<[1], [0], [0], [1], [0, 0, 1, 1], [], []>} : vector<112x448xf32>, vector<448x224xf32>, vector<112x224xf32> -> vector<112x224xf32>
    %63 = arith.addf %56, %62 : vector<112x224xf32>
    %c2_60 = arith.constant 2 : index
    %c0_61 = arith.constant 0 : index
    %c0_62 = arith.constant 0 : index
    %64 = vector.load %arg8[%c2_60, %c0_61, %c0_62] : memref<3x112x112xf32, #tpu.memory_space<vmem>>, vector<1x112x112xf32>
    %65 = vector.shape_cast %64 : vector<1x112x112xf32> to vector<112x112xf32>
    %cst_63 = arith.constant dense<0.000000e+00> : vector<112x448xf32>
    %66 = tpu.matmul %65, %50, %cst_63 {dimension_numbers = #tpu.dot_dimension_numbers<[1], [0], [0], [1], [0, 0, 1, 1], [], []>} : vector<112x112xf32>, vector<112x448xf32>, vector<112x448xf32> -> vector<112x448xf32>
    %c2_64 = arith.constant 2 : index
    %c0_65 = arith.constant 0 : index
    %c0_66 = arith.constant 0 : index
    %67 = vector.load %arg9[%c2_64, %c0_65, %c0_66] : memref<3x448x224xf32, #tpu.memory_space<vmem>>, vector<1x448x224xf32>
    %68 = vector.shape_cast %67 : vector<1x448x224xf32> to vector<448x224xf32>
    %cst_67 = arith.constant dense<0.000000e+00> : vector<112x224xf32>
    %69 = tpu.matmul %66, %68, %cst_67 {dimension_numbers = #tpu.dot_dimension_numbers<[1], [0], [0], [1], [0, 0, 1, 1], [], []>} : vector<112x448xf32>, vector<448x224xf32>, vector<112x224xf32> -> vector<112x224xf32>
    %70 = arith.addf %63, %69 : vector<112x224xf32>
    %cst_68 = arith.constant 0.00892857183 : f32
    %71 = vector.broadcast %cst_68 : f32 to vector<112x112xf32>
    %cst_69 = arith.constant dense<0.000000e+00> : vector<112x224xf32>
    %72 = tpu.matmul %71, %70, %cst_69 {dimension_numbers = #tpu.dot_dimension_numbers<[1], [0], [0], [1], [0, 0, 1, 1], [], []>} : vector<112x112xf32>, vector<112x224xf32>, vector<112x224xf32> -> vector<112x224xf32>
    %c0_70 = arith.constant 0 : index
    %c0_71 = arith.constant 0 : index
    %73 = vector.load %arg10[%c0_70, %c0_71] : memref<224x224xf32, #tpu.memory_space<vmem>>, vector<224x224xf32>
    %cst_72 = arith.constant dense<0.000000e+00> : vector<112x224xf32>
    %74 = tpu.matmul %72, %73, %cst_72 {dimension_numbers = #tpu.dot_dimension_numbers<[1], [0], [0], [1], [0, 0, 1, 1], [], []>} : vector<112x224xf32>, vector<224x224xf32>, vector<112x224xf32> -> vector<112x224xf32>
    %75 = arith.mulf %70, %70 : vector<112x224xf32>
    %cst_73 = arith.constant dense<0.000000e+00> : vector<112x224xf32>
    %76 = tpu.matmul %71, %75, %cst_73 {dimension_numbers = #tpu.dot_dimension_numbers<[1], [0], [0], [1], [0, 0, 1, 1], [], []>} : vector<112x112xf32>, vector<112x224xf32>, vector<112x224xf32> -> vector<112x224xf32>
    %c0_74 = arith.constant 0 : index
    %c0_75 = arith.constant 0 : index
    %77 = vector.load %arg10[%c0_74, %c0_75] : memref<224x224xf32, #tpu.memory_space<vmem>>, vector<224x224xf32>
    %cst_76 = arith.constant dense<0.000000e+00> : vector<112x224xf32>
    %78 = tpu.matmul %76, %77, %cst_76 {dimension_numbers = #tpu.dot_dimension_numbers<[1], [0], [0], [1], [0, 0, 1, 1], [], []>} : vector<112x224xf32>, vector<224x224xf32>, vector<112x224xf32> -> vector<112x224xf32>
    %79 = arith.mulf %74, %74 : vector<112x224xf32>
    %80 = arith.subf %78, %79 : vector<112x224xf32>
    %81 = arith.subf %70, %74 : vector<112x224xf32>
    %cst_77 = arith.constant 9.99999974E-6 : f32
    %82 = vector.broadcast %cst_77 : f32 to vector<112x224xf32>
    %83 = arith.addf %80, %82 : vector<112x224xf32>
    %84 = math.rsqrt %83 : vector<112x224xf32>
    %85 = arith.mulf %81, %84 : vector<112x224xf32>
    %c0_78 = arith.constant 0 : index
    %c0_79 = arith.constant 0 : index
    %86 = vector.load %arg11[%c0_78, %c0_79] : memref<1x224xf32, #tpu.memory_space<vmem>>, vector<1x224xf32>
    %87 = vector.broadcast %86 : vector<1x224xf32> to vector<112x224xf32>
    %88 = arith.mulf %85, %87 : vector<112x224xf32>
    %c0_80 = arith.constant 0 : index
    %c0_81 = arith.constant 0 : index
    %89 = vector.load %arg12[%c0_80, %c0_81] : memref<1x224xf32, #tpu.memory_space<vmem>>, vector<1x224xf32>
    %90 = vector.broadcast %89 : vector<1x224xf32> to vector<112x224xf32>
    %91 = arith.addf %88, %90 : vector<112x224xf32>
    %cst_82 = arith.constant 0.000000e+00 : f32
    %92 = vector.broadcast %cst_82 : f32 to vector<112x224xf32>
    %93 = arith.cmpf ogt, %91, %92 : vector<112x224xf32>
    %cst_83 = arith.constant 2.000000e-01 : f32
    %94 = vector.broadcast %cst_83 : f32 to vector<112x224xf32>
    %95 = arith.mulf %94, %91 : vector<112x224xf32>
    %96 = arith.select %93, %91, %95 : vector<112x224xi1>, vector<112x224xf32>
    %c0_84 = arith.constant 0 : index
    %c0_85 = arith.constant 0 : index
    %c0_86 = arith.constant 0 : index
    %97 = vector.load %arg8[%c0_84, %c0_85, %c0_86] : memref<3x112x112xf32, #tpu.memory_space<vmem>>, vector<1x112x112xf32>
    %98 = vector.shape_cast %97 : vector<1x112x112xf32> to vector<112x112xf32>
    %cst_87 = arith.constant dense<0.000000e+00> : vector<112x224xf32>
    %99 = tpu.matmul %98, %96, %cst_87 {dimension_numbers = #tpu.dot_dimension_numbers<[1], [0], [0], [1], [0, 0, 1, 1], [], []>} : vector<112x112xf32>, vector<112x224xf32>, vector<112x224xf32> -> vector<112x224xf32>
    %c0_88 = arith.constant 0 : index
    %c0_89 = arith.constant 0 : index
    %c0_90 = arith.constant 0 : index
    %100 = vector.load %arg13[%c0_88, %c0_89, %c0_90] : memref<3x224x128xf32, #tpu.memory_space<vmem>>, vector<1x224x128xf32>
    %101 = vector.shape_cast %100 : vector<1x224x128xf32> to vector<224x128xf32>
    %cst_91 = arith.constant dense<0.000000e+00> : vector<112x128xf32>
    %102 = tpu.matmul %99, %101, %cst_91 {dimension_numbers = #tpu.dot_dimension_numbers<[1], [0], [0], [1], [0, 0, 1, 1], [], []>} : vector<112x224xf32>, vector<224x128xf32>, vector<112x128xf32> -> vector<112x128xf32>
    %c1_92 = arith.constant 1 : index
    %c0_93 = arith.constant 0 : index
    %c0_94 = arith.constant 0 : index
    %103 = vector.load %arg8[%c1_92, %c0_93, %c0_94] : memref<3x112x112xf32, #tpu.memory_space<vmem>>, vector<1x112x112xf32>
    %104 = vector.shape_cast %103 : vector<1x112x112xf32> to vector<112x112xf32>
    %cst_95 = arith.constant dense<0.000000e+00> : vector<112x224xf32>
    %105 = tpu.matmul %104, %96, %cst_95 {dimension_numbers = #tpu.dot_dimension_numbers<[1], [0], [0], [1], [0, 0, 1, 1], [], []>} : vector<112x112xf32>, vector<112x224xf32>, vector<112x224xf32> -> vector<112x224xf32>
    %c1_96 = arith.constant 1 : index
    %c0_97 = arith.constant 0 : index
    %c0_98 = arith.constant 0 : index
    %106 = vector.load %arg13[%c1_96, %c0_97, %c0_98] : memref<3x224x128xf32, #tpu.memory_space<vmem>>, vector<1x224x128xf32>
    %107 = vector.shape_cast %106 : vector<1x224x128xf32> to vector<224x128xf32>
    %cst_99 = arith.constant dense<0.000000e+00> : vector<112x128xf32>
    %108 = tpu.matmul %105, %107, %cst_99 {dimension_numbers = #tpu.dot_dimension_numbers<[1], [0], [0], [1], [0, 0, 1, 1], [], []>} : vector<112x224xf32>, vector<224x128xf32>, vector<112x128xf32> -> vector<112x128xf32>
    %109 = arith.addf %102, %108 : vector<112x128xf32>
    %c2_100 = arith.constant 2 : index
    %c0_101 = arith.constant 0 : index
    %c0_102 = arith.constant 0 : index
    %110 = vector.load %arg8[%c2_100, %c0_101, %c0_102] : memref<3x112x112xf32, #tpu.memory_space<vmem>>, vector<1x112x112xf32>
    %111 = vector.shape_cast %110 : vector<1x112x112xf32> to vector<112x112xf32>
    %cst_103 = arith.constant dense<0.000000e+00> : vector<112x224xf32>
    %112 = tpu.matmul %111, %96, %cst_103 {dimension_numbers = #tpu.dot_dimension_numbers<[1], [0], [0], [1], [0, 0, 1, 1], [], []>} : vector<112x112xf32>, vector<112x224xf32>, vector<112x224xf32> -> vector<112x224xf32>
    %c2_104 = arith.constant 2 : index
    %c0_105 = arith.constant 0 : index
    %c0_106 = arith.constant 0 : index
    %113 = vector.load %arg13[%c2_104, %c0_105, %c0_106] : memref<3x224x128xf32, #tpu.memory_space<vmem>>, vector<1x224x128xf32>
    %114 = vector.shape_cast %113 : vector<1x224x128xf32> to vector<224x128xf32>
    %cst_107 = arith.constant dense<0.000000e+00> : vector<112x128xf32>
    %115 = tpu.matmul %112, %114, %cst_107 {dimension_numbers = #tpu.dot_dimension_numbers<[1], [0], [0], [1], [0, 0, 1, 1], [], []>} : vector<112x224xf32>, vector<224x128xf32>, vector<112x128xf32> -> vector<112x128xf32>
    %116 = arith.addf %109, %115 : vector<112x128xf32>
    %117 = arith.negf %116 : vector<112x128xf32>
    %118 = math.exp %117 : vector<112x128xf32>
    %cst_108 = arith.constant 1.000000e+00 : f32
    %119 = vector.broadcast %cst_108 : f32 to vector<112x128xf32>
    %120 = arith.addf %119, %118 : vector<112x128xf32>
    %121 = arith.divf %119, %120 : vector<112x128xf32>
    %c0_109 = arith.constant 0 : index
    %c0_110 = arith.constant 0 : index
    %122 = vector.load %arg14[%c0_109, %c0_110] : memref<112x128xf32, #tpu.memory_space<vmem>>, vector<112x128xf32>
    tpu.vector_store %arg14[%c0_109, %c0_110], %121 {strides = array<i32>} : memref<112x128xf32, #tpu.memory_space<vmem>>, vector<112x128xf32>,
    return
  }
}

</mosaic_0001>

<llo_original>
// kernel: tile.34
$region0: #{tile.34}
  %s0 = inlined_call_operand.vmem [shape: f32[28,8], index: 0, kind: input, shape index: {}]
  %s1 = inlined_call_operand.vmem [shape: f32[1,224], index: 1, kind: output, shape index: {}]
  $region1: #{tile.34} parent=0
    #allocation0 [shape = 'u8[8192]{0}', space=vmem, size = 0x2000, scoped, tag = 'scoped mem for output reshape']
    %s2 = smov 3
    %v3 = vld [vmem:[%s0] ss:$16 sm:%s2]
    %vm4 = vcmask 64512
    %5 = vst.msk [vmem:[#allocation0] ss:$8 sm:$0x3] %vm4, %v3
    %s6 = scalar_lea.vmem %s0, 15
    %v7 = vld [vmem:[%s6] sm:$0x1]
    %8 = vrot.lane.b32.xlu0 %v7, 120
    %v9 = vpop.permute.xlu0 %8
    %vm10 = vcmask 1048512
    %11 = vst.msk [vmem:[#allocation0] sm:$0x1] %vm10, %v9
    %s12 = scalar_lea.vmem %s0, 14
    %v13 = vld [vmem:[%s12] sm:$0x1]
    %14 = vrot.lane.b32.xlu0 %v13, 112
    %v15 = vpop.permute.xlu0 %14
    %vm16 = vcmask 982912
    %17 = vst.msk [vmem:[#allocation0] sm:$0x1] %vm16, %v15
    %s18 = scalar_lea.vmem %s0, 13
    %v19 = vld [vmem:[%s18] sm:$0x1]
    %20 = vrot.lane.b32.xlu0 %v19, 104
    %v21 = vpop.permute.xlu0 %20
    %vm22 = vcmask 917312
    %23 = vst.msk [vmem:[#allocation0] sm:$0x1] %vm22, %v21
    %s24 = scalar_lea.vmem %s0, 12
    %v25 = vld [vmem:[%s24] sm:$0x1]
    %26 = vrot.lane.b32.xlu0 %v25, 96
    %v27 = vpop.permute.xlu0 %26
    %vm28 = vcmask 851712
    %29 = vst.msk [vmem:[#allocation0] sm:$0x1] %vm28, %v27
    %s30 = scalar_lea.vmem %s0, 11
    %s31 = smov 3
    %v32 = vld [vmem:[%s30] ss:$16 sm:%s31]
    %33 = vrot.lane.b32.xlu0 %v32, 88
    %v34 = vpop.permute.xlu0 %33
    %vm35 = vcmask 786112
    %36 = vst.msk [vmem:[#allocation0] ss:$8 sm:$0x3] %vm35, %v34
    %s37 = scalar_lea.vmem %s0, 10
    %s38 = smov 3
    %v39 = vld [vmem:[%s37] ss:$16 sm:%s38]
    %40 = vrot.lane.b32.xlu0 %v39, 80
    %v41 = vpop.permute.xlu0 %40
    %vm42 = vcmask 720512
    %43 = vst.msk [vmem:[#allocation0] ss:$8 sm:$0x3] %vm42, %v41
    %s44 = scalar_lea.vmem %s0, 9
    %s45 = smov 3
    %v46 = vld [vmem:[%s44] ss:$16 sm:%s45]
    %47 = vrot.lane.b32.xlu0 %v46, 72
    %v48 = vpop.permute.xlu0 %47
    %vm49 = vcmask 654912
    %50 = vst.msk [vmem:[#allocation0] ss:$8 sm:$0x3] %vm49, %v48
    %s51 = scalar_lea.vmem %s0, 8
    %s52 = smov 3
    %v53 = vld [vmem:[%s51] ss:$16 sm:%s52]
    %54 = vrot.lane.b32.xlu0 %v53, 64
    %v55 = vpop.permute.xlu0 %54
    %vm56 = vcmask 589312
    %57 = vst.msk [vmem:[#allocation0] ss:$8 sm:$0x3] %vm56, %v55
    %s58 = scalar_lea.vmem %s0, 7
    %s59 = smov 3
    %v60 = vld [vmem:[%s58] ss:$16 sm:%s59]
    %61 = vrot.lane.b32.xlu0 %v60, 56
    %v62 = vpop.permute.xlu0 %61
    %vm63 = vcmask 523712
    %64 = vst.msk [vmem:[#allocation0] ss:$8 sm:$0x3] %vm63, %v62
    %s65 = scalar_lea.vmem %s0, 6
    %s66 = smov 3
    %v67 = vld [vmem:[%s65] ss:$16 sm:%s66]
    %68 = vrot.lane.b32.xlu0 %v67, 48
    %v69 = vpop.permute.xlu0 %68
    %vm70 = vcmask 458112
    %71 = vst.msk [vmem:[#allocation0] ss:$8 sm:$0x3] %vm70, %v69
    %s72 = scalar_lea.vmem %s0, 5
    %s73 = smov 3
    %v74 = vld [vmem:[%s72] ss:$16 sm:%s73]
    %75 = vrot.lane.b32.xlu0 %v74, 40
    %v76 = vpop.permute.xlu0 %75
    %vm77 = vcmask 392512
    %78 = vst.msk [vmem:[#allocation0] ss:$8 sm:$0x3] %vm77, %v76
    %s79 = scalar_lea.vmem %s0, 4
    %s80 = smov 3
    %v81 = vld [vmem:[%s79] ss:$16 sm:%s80]
    %82 = vrot.lane.b32.xlu0 %v81, 32
    %v83 = vpop.permute.xlu0 %82
    %vm84 = vcmask 326912
    %85 = vst.msk [vmem:[#allocation0] ss:$8 sm:$0x3] %vm84, %v83
    %s86 = scalar_lea.vmem %s0, 3
    %s87 = smov 3
    %v88 = vld [vmem:[%s86] ss:$16 sm:%s87]
    %89 = vrot.lane.b32.xlu0 %v88, 24
    %v90 = vpop.permute.xlu0 %89
    %vm91 = vcmask 261312
    %92 = vst.msk [vmem:[#allocation0] ss:$8 sm:$0x3] %vm91, %v90
    %s93 = scalar_lea.vmem %s0, 2
    %s94 = smov 3
    %v95 = vld [vmem:[%s93] ss:$16 sm:%s94]
    %96 = vrot.lane.b32.xlu0 %v95, 16
    %v97 = vpop.permute.xlu0 %96
    %vm98 = vcmask 195712
    %99 = vst.msk [vmem:[#allocation0] ss:$8 sm:$0x3] %vm98, %v97
    %s100 = scalar_lea.vmem %s0, 1
    %s101 = smov 3
    %v102 = vld [vmem:[%s100] ss:$16 sm:%s101]
    %103 = vrot.lane.b32.xlu0 %v102, 8
    %v104 = vpop.permute.xlu0 %103
    %vm105 = vcmask 130112
    %106 = vst.msk [vmem:[#allocation0] ss:$8 sm:$0x3] %vm105, %v104
    %s108 = sshll.u32 1, 1
    %s109 = ssub.s32 %s108, 1
    %v111 = vld [vmem:[#allocation0] sm:%s109]
    %s112 = sshll.u32 1, 1
    %s113 = ssub.s32 %s112, 1
    %114 = vst [vmem:[%s1] sm:%s113] %v111
    %s115 = scalar_lea.vmem [#allocation0], 8
    %v116 = vld [vmem:[%s115] sm:%s109]
    %s117 = sshll.u32 1, 1
    %s118 = ssub.s32 %s117, 1
    %s119 = scalar_lea.vmem %s1, 1
    %120 = vst [vmem:[%s119] sm:%s118] %v116

// kernel: tile.23
$region0: #{tile.23}
  #allocation0 [shape = 's32[1]{0}', space=sflag, size = 0x4, scoped, tag = 'scoped memory for tile.23']
  %s0 = inlined_call_operand.vmem [shape: f32[16], index: 0, kind: input, shape index: {}]
  %s1 = inlined_call_operand.vmem [shape: f32[14,16], index: 1, kind: output, shape index: {}]
  // Predicated region
  $region2: #{tile.23} parent=0 // pred_check
    _
  $region3: #{tile.23} parent=0 // pred_check_branch
    %3 = sbr.rel (0) target = $region5
  $region4: #{tile.23} parent=0 // pred_region
    _
  $region5: #{tile.23} parent=0 // pred_fallthru
    _
  %v4 = vld [vmem:[%s0] ss:$0 sm:$0xff]
  %5 = vst [vmem:[%s1] sm:$0xff] %v4
  %s6 = scalar_lea.vmem %s1, 8
  %7 = vst [vmem:[%s6] sm:$0xff] %v4

// kernel: tile.24
$region0: #{tile.24}
  %s0 = inlined_call_operand.vmem [shape: f32[14,16], index: 0, kind: input, shape index: {}]
  %s1 = inlined_call_operand.vmem [shape: f32[1,224], index: 1, kind: output, shape index: {}]
  $region1: #{tile.24} parent=0
    #allocation0 [shape = 'u8[8192]{0}', space=vmem, size = 0x2000, scoped, tag = 'scoped mem for output reshape']
    %s2 = smov 3
    %v3 = vld [vmem:[%s0] ss:$8 sm:%s2]
    %vm4 = vcmask 130048
    %5 = vst.msk [vmem:[#allocation0] ss:$8 sm:$0x3] %vm4, %v3
    %s6 = scalar_lea.vmem %s0, 7
    %v7 = vld [vmem:[%s6] sm:$0x1]
    %8 = vrot.lane.b32.xlu0 %v7, 112
    %v9 = vpop.permute.xlu0 %8
    %vm10 = vcmask 1048448
    %11 = vst.msk [vmem:[#allocation0] sm:$0x1] %vm10, %v9
    %s12 = scalar_lea.vmem %s0, 6
    %v13 = vld [vmem:[%s12] sm:$0x1]
    %14 = vrot.lane.b32.xlu0 %v13, 96
    %v15 = vpop.permute.xlu0 %14
    %vm16 = vcmask 917248
    %17 = vst.msk [vmem:[#allocation0] sm:$0x1] %vm16, %v15
    %s18 = scalar_lea.vmem %s0, 5
    %s19 = smov 3
    %v20 = vld [vmem:[%s18] ss:$8 sm:%s19]
    %21 = vrot.lane.b32.xlu0 %v20, 80
    %v22 = vpop.permute.xlu0 %21
    %vm23 = vcmask 786048
    %24 = vst.msk [vmem:[#allocation0] ss:$8 sm:$0x3] %vm23, %v22
    %s25 = scalar_lea.vmem %s0, 4
    %s26 = smov 3
    %v27 = vld [vmem:[%s25] ss:$8 sm:%s26]
    %28 = vrot.lane.b32.xlu0 %v27, 64
    %v29 = vpop.permute.xlu0 %28
    %vm30 = vcmask 654848
    %31 = vst.msk [vmem:[#allocation0] ss:$8 sm:$0x3] %vm30, %v29
    %s32 = scalar_lea.vmem %s0, 3
    %s33 = smov 3
    %v34 = vld [vmem:[%s32] ss:$8 sm:%s33]
    %35 = vrot.lane.b32.xlu0 %v34, 48
    %v36 = vpop.permute.xlu0 %35
    %vm37 = vcmask 523648
    %38 = vst.msk [vmem:[#allocation0] ss:$8 sm:$0x3] %vm37, %v36
    %s39 = scalar_lea.vmem %s0, 2
    %s40 = smov 3
    %v41 = vld [vmem:[%s39] ss:$8 sm:%s40]
    %42 = vrot.lane.b32.xlu0 %v41, 32
    %v43 = vpop.permute.xlu0 %42
    %vm44 = vcmask 392448
    %45 = vst.msk [vmem:[#allocation0] ss:$8 sm:$0x3] %vm44, %v43
    %s46 = scalar_lea.vmem %s0, 1
    %s47 = smov 3
    %v48 = vld [vmem:[%s46] ss:$8 sm:%s47]
    %49 = vrot.lane.b32.xlu0 %v48, 16
    %v50 = vpop.permute.xlu0 %49
    %vm51 = vcmask 261248
    %52 = vst.msk [vmem:[#allocation0] ss:$8 sm:$0x3] %vm51, %v50
    %s54 = sshll.u32 1, 1
    %s55 = ssub.s32 %s54, 1
    %v57 = vld [vmem:[#allocation0] sm:%s55]
    %s58 = sshll.u32 1, 1
    %s59 = ssub.s32 %s58, 1
    %60 = vst [vmem:[%s1] sm:%s59] %v57
    %s61 = scalar_lea.vmem [#allocation0], 8
    %v62 = vld [vmem:[%s61] sm:%s55]
    %s63 = sshll.u32 1, 1
    %s64 = ssub.s32 %s63, 1
    %s65 = scalar_lea.vmem %s1, 1
    %66 = vst [vmem:[%s65] sm:%s64] %v62

// kernel: px_z_forward.2
$region0: #{px_z_forward.2}
  #allocation0 [shape = 'u32[]', space=smem, size = 0x4, offset = 0x4, fixed_abs, tag = 'smem constant byte address 0x4 - core index']
  #allocation1 [shape = 'u32[144,128]{1,0:T(1,128)}', space=vmem, size = 0x12000, scoped, tag = 'internal scratch']
  %s0 = inlined_call_operand.vmem [shape: f32[4,64], index: 0, kind: input, shape index: {}]
  %s1 = inlined_call_operand.vmem [shape: f32[64,6272], index: 1, kind: input, shape index: {}]
  %s2 = inlined_call_operand.vmem [shape: f32[1,6272], index: 2, kind: input, shape index: {}]
  %s3 = inlined_call_operand.vmem [shape: f32[1,6272], index: 3, kind: input, shape index: {}]
  %s4 = inlined_call_operand.vmem [shape: f32[1,6272], index: 4, kind: input, shape index: {}]
  %s5 = inlined_call_operand.vmem [shape: f32[4,6272], index: 5, kind: output, shape index: {}]
  %s6 = sld [smem:[#allocation0]]
  $region30: #{px_z_forward.2} parent=0
    _
  %s8 = ssub.s32 1, %s6
  %s9 = scalar_select 0, %s8, %s6
  // Predicated region
  $region2: #{px_z_forward.2} parent=0 // pred_check
    _
  $region3: #{px_z_forward.2} parent=0 // pred_check_branch
    %11 = sbr.rel (0) target = $region5
  $region4: #{px_z_forward.2} parent=0 // pred_region
    _
  $region5: #{px_z_forward.2} parent=0 // pred_fallthru
    _
  // Predicated region
  $region6: #{px_z_forward.2} parent=0 // pred_check
    _
  $region7: #{px_z_forward.2} parent=0 // pred_check_branch
    %13 = sbr.rel (0) target = $region9
  $region8: #{px_z_forward.2} parent=0 // pred_region
    _
  $region9: #{px_z_forward.2} parent=0 // pred_fallthru
    _
  // Predicated region
  $region10: #{px_z_forward.2} parent=0 // pred_check
    _
  $region11: #{px_z_forward.2} parent=0 // pred_check_branch
    %15 = sbr.rel (0) target = $region13
  $region12: #{px_z_forward.2} parent=0 // pred_region
    _
  $region13: #{px_z_forward.2} parent=0 // pred_fallthru
    _
  // Predicated region
  $region14: #{px_z_forward.2} parent=0 // pred_check
    _
  $region15: #{px_z_forward.2} parent=0 // pred_check_branch
    %17 = sbr.rel (0) target = $region17
  $region16: #{px_z_forward.2} parent=0 // pred_region
    _
  $region17: #{px_z_forward.2} parent=0 // pred_fallthru
    _
  // Predicated region
  $region18: #{px_z_forward.2} parent=0 // pred_check
    _
  $region19: #{px_z_forward.2} parent=0 // pred_check_branch
    %19 = sbr.rel (0) target = $region21
  $region20: #{px_z_forward.2} parent=0 // pred_region
    _
  $region21: #{px_z_forward.2} parent=0 // pred_fallthru
    _
  %v20 = vld [vmem:[%s0] sm:$0xf]
  %v21 = vld [vmem:[%s1] sm:$0xff]
  %v22 = vld [vmem:[%s1 + $0x8] sm:$0xff]
  %v23 = vld [vmem:[%s1 + $0x10] sm:$0xff]
  %v24 = vld [vmem:[%s1 + $0x18] sm:$0xff]
  %v25 = vld [vmem:[%s1 + $0x20] sm:$0xff]
  %v26 = vld [vmem:[%s1 + $0x28] sm:$0xff]
  %v27 = vld [vmem:[%s1 + $0x30] sm:$0xff]
  %v28 = vld [vmem:[%s1 + $0x38] sm:$0xff]
  %v29 = vld [vmem:[%s1 + $0x40] sm:$0xff]
  %v30 = vld [vmem:[%s1 + $0x48] sm:$0xff]
  %v31 = vld [vmem:[%s1 + $0x50] sm:$0xff]
  %v32 = vld [vmem:[%s1 + $0x58] sm:$0xff]
  %v33 = vld [vmem:[%s1 + $0x60] sm:$0xff]
  %v34 = vld [vmem:[%s1 + $0x68] sm:$0xff]
  %v35 = vld [vmem:[%s1 + $0x70] sm:$0xff]
  %v36 = vld [vmem:[%s1 + $0x78] sm:$0xff]
  %v37 = vld [vmem:[%s1 + $0x80] sm:$0xff]
  %v38 = vld [vmem:[%s1 + $0x88] sm:$0xff]
  %v39 = vld [vmem:[%s1 + $0x90] sm:$0xff]
  %v40 = vld [vmem:[%s1 + $0x98] sm:$0xff]
  %v41 = vld [vmem:[%s1 + $0xa0] sm:$0xff]
  %v42 = vld [vmem:[%s1 + $0xa8] sm:$0xff]
  %v43 = vld [vmem:[%s1 + $0xb0] sm:$0xff]
  %v44 = vld [vmem:[%s1 + $0xb8] sm:$0xff]
  %v45 = vld [vmem:[%s1 + $0xc0] sm:$0xff]
  %v46 = vld [vmem:[%s1 + $0xc8] sm:$0xff]
  %v47 = vld [vmem:[%s1 + $0xd0] sm:$0xff]
  %v48 = vld [vmem:[%s1 + $0xd8] sm:$0xff]
  %v49 = vld [vmem:[%s1 + $0xe0] sm:$0xff]
  %v50 = vld [vmem:[%s1 + $0xe8] sm:$0xff]
  %v51 = vld [vmem:[%s1 + $0xf0] sm:$0xff]
  %v52 = vld [vmem:[%s1 + $0xf8] sm:$0xff]
  %v53 = vld [vmem:[%s1 + $0x100] sm:$0xff]
  %v54 = vld [vmem:[%s1 + $0x108] sm:$0xff]
  %v55 = vld [vmem:[%s1 + $0x110] sm:$0xff]
  %v56 = vld [vmem:[%s1 + $0x118] sm:$0xff]
  %v57 = vld [vmem:[%s1 + $0x120] sm:$0xff]
  %v58 = vld [vmem:[%s1 + $0x128] sm:$0xff]
  %v59 = vld [vmem:[%s1 + $0x130] sm:$0xff]
  %v60 = vld [vmem:[%s1 + $0x138] sm:$0xff]
  %v61 = vld [vmem:[%s1 + $0x140] sm:$0xff]
  %v62 = vld [vmem:[%s1 + $0x148] sm:$0xff]
  %v63 = vld [vmem:[%s1 + $0x150] sm:$0xff]
  %v64 = vld [vmem:[%s1 + $0x158] sm:$0xff]
  %v65 = vld [vmem:[%s1 + $0x160] sm:$0xff]
  %v66 = vld [vmem:[%s1 + $0x168] sm:$0xff]
  %v67 = vld [vmem:[%s1 + $0x170] sm:$0xff]
  %v68 = vld [vmem:[%s1 + $0x178] sm:$0xff]
  %v69 = vld [vmem:[%s1 + $0x180] sm:$0xff]
  %v70 = vld [vmem:[%s1 + $0x188] sm:$0xff]
  %v71 = vld [vmem:[%s1 + $0x190] sm:$0xff]
  %v72 = vld [vmem:[%s1 + $0x198] sm:$0xff]
  %v73 = vld [vmem:[%s1 + $0x1a0] sm:$0xff]
  %v74 = vld [vmem:[%s1 + $0x1a8] sm:$0xff]
  %v75 = vld [vmem:[%s1 + $0x1b0] sm:$0xff]
  %v76 = vld [vmem:[%s1 + $0x1b8] sm:$0xff]
  %v77 = vld [vmem:[%s1 + $0x1c0] sm:$0xff]
  %v78 = vld [vmem:[%s1 + $0x1c8] sm:$0xff]
  %v79 = vld [vmem:[%s1 + $0x1d0] sm:$0xff]
  %v80 = vld [vmem:[%s1 + $0x1d8] sm:$0xff]
  %v81 = vld [vmem:[%s1 + $0x1e0] sm:$0xff]
  %v82 = vld [vmem:[%s1 + $0x1e8] sm:$0xff]
  %v83 = vld [vmem:[%s1 + $0x1f0] sm:$0xff]
  %v84 = vld [vmem:[%s1 + $0x1f8] sm:$0xff]
  %v85 = vld [vmem:[%s1 + $0x200] sm:$0xff]
  %v86 = vld [vmem:[%s1 + $0x208] sm:$0xff]
  %v87 = vld [vmem:[%s1 + $0x210] sm:$0xff]
  %v88 = vld [vmem:[%s1 + $0x218] sm:$0xff]
  %v89 = vld [vmem:[%s1 + $0x220] sm:$0xff]
  %v90 = vld [vmem:[%s1 + $0x228] sm:$0xff]
  %v91 = vld [vmem:[%s1 + $0x230] sm:$0xff]
  %v92 = vld [vmem:[%s1 + $0x238] sm:$0xff]
  %v93 = vld [vmem:[%s1 + $0x240] sm:$0xff]
  %v94 = vld [vmem:[%s1 + $0x248] sm:$0xff]
  %v95 = vld [vmem:[%s1 + $0x250] sm:$0xff]
  %v96 = vld [vmem:[%s1 + $0x258] sm:$0xff]
  %v97 = vld [vmem:[%s1 + $0x260] sm:$0xff]
  %v98 = vld [vmem:[%s1 + $0x268] sm:$0xff]
  %v99 = vld [vmem:[%s1 + $0x270] sm:$0xff]
  %v100 = vld [vmem:[%s1 + $0x278] sm:$0xff]
  %v101 = vld [vmem:[%s1 + $0x280] sm:$0xff]
  %v102 = vld [vmem:[%s1 + $0x288] sm:$0xff]
  %v103 = vld [vmem:[%s1 + $0x290] sm:$0xff]
  %v104 = vld [vmem:[%s1 + $0x298] sm:$0xff]
  %v105 = vld [vmem:[%s1 + $0x2a0] sm:$0xff]
  %v106 = vld [vmem:[%s1 + $0x2a8] sm:$0xff]
  %v107 = vld [vmem:[%s1 + $0x2b0] sm:$0xff]
  %v108 = vld [vmem:[%s1 + $0x2b8] sm:$0xff]
  %v109 = vld [vmem:[%s1 + $0x2c0] sm:$0xff]
  %v110 = vld [vmem:[%s1 + $0x2c8] sm:$0xff]
  %v111 = vld [vmem:[%s1 + $0x2d0] sm:$0xff]
  %v112 = vld [vmem:[%s1 + $0x2d8] sm:$0xff]
  %v113 = vld [vmem:[%s1 + $0x2e0] sm:$0xff]
  %v114 = vld [vmem:[%s1 + $0x2e8] sm:$0xff]
  %v115 = vld [vmem:[%s1 + $0x2f0] sm:$0xff]
  %v116 = vld [vmem:[%s1 + $0x2f8] sm:$0xff]
  %v117 = vld [vmem:[%s1 + $0x300] sm:$0xff]
  %v118 = vld [vmem:[%s1 + $0x308] sm:$0xff]
  %v119 = vld [vmem:[%s1 + $0x310] sm:$0xff]
  %v120 = vld [vmem:[%s1 + $0x318] sm:$0xff]
  %v121 = vld [vmem:[%s1 + $0x320] sm:$0xff]
  %v122 = vld [vmem:[%s1 + $0x328] sm:$0xff]
  %v123 = vld [vmem:[%s1 + $0x330] sm:$0xff]
  %v124 = vld [vmem:[%s1 + $0x338] sm:$0xff]
  %v125 = vld [vmem:[%s1 + $0x340] sm:$0xff]
  %v126 = vld [vmem:[%s1 + $0x348] sm:$0xff]
  %v127 = vld [vmem:[%s1 + $0x350] sm:$0xff]
  %v128 = vld [vmem:[%s1 + $0x358] sm:$0xff]
  %v129 = vld [vmem:[%s1 + $0x360] sm:$0xff]
  %v130 = vld [vmem:[%s1 + $0x368] sm:$0xff]
  %v131 = vld [vmem:[%s1 + $0x370] sm:$0xff]
  %v132 = vld [vmem:[%s1 + $0x378] sm:$0xff]
  %v133 = vld [vmem:[%s1 + $0x380] sm:$0xff]
  %v134 = vld [vmem:[%s1 + $0x388] sm:$0xff]
  %v135 = vld [vmem:[%s1 + $0x390] sm:$0xff]
  %v136 = vld [vmem:[%s1 + $0x398] sm:$0xff]
  %v137 = vld [vmem:[%s1 + $0x3a0] sm:$0xff]
  %v138 = vld [vmem:[%s1 + $0x3a8] sm:$0xff]
  %v139 = vld [vmem:[%s1 + $0x3b0] sm:$0xff]
  %v140 = vld [vmem:[%s1 + $0x3b8] sm:$0xff]
  %v141 = vld [vmem:[%s1 + $0x3c0] sm:$0xff]
  %v142 = vld [vmem:[%s1 + $0x3c8] sm:$0xff]
  %v143 = vld [vmem:[%s1 + $0x3d0] sm:$0xff]
  %v144 = vld [vmem:[%s1 + $0x3d8] sm:$0xff]
  %v145 = vld [vmem:[%s1 + $0x3e0] sm:$0xff]
  %v146 = vld [vmem:[%s1 + $0x3e8] sm:$0xff]
  %v147 = vld [vmem:[%s1 + $0x3f0] sm:$0xff]
  %v148 = vld [vmem:[%s1 + $0x3f8] sm:$0xff]
  %v149 = vld [vmem:[%s1 + $0x400] sm:$0xff]
  %v150 = vld [vmem:[%s1 + $0x408] sm:$0xff]
  %v151 = vld [vmem:[%s1 + $0x410] sm:$0xff]
  %v152 = vld [vmem:[%s1 + $0x418] sm:$0xff]
  %v153 = vld [vmem:[%s1 + $0x420] sm:$0xff]
  %v154 = vld [vmem:[%s1 + $0x428] sm:$0xff]
  %v155 = vld [vmem:[%s1 + $0x430] sm:$0xff]
  %v156 = vld [vmem:[%s1 + $0x438] sm:$0xff]
  %v157 = vld [vmem:[%s1 + $0x440] sm:$0xff]
  %v158 = vld [vmem:[%s1 + $0x448] sm:$0xff]
  %v159 = vld [vmem:[%s1 + $0x450] sm:$0xff]
  %v160 = vld [vmem:[%s1 + $0x458] sm:$0xff]
  %v161 = vld [vmem:[%s1 + $0x460] sm:$0xff]
  %v162 = vld [vmem:[%s1 + $0x468] sm:$0xff]
  %v163 = vld [vmem:[%s1 + $0x470] sm:$0xff]
  %v164 = vld [vmem:[%s1 + $0x478] sm:$0xff]
  %v165 = vld [vmem:[%s1 + $0x480] sm:$0xff]
  %v166 = vld [vmem:[%s1 + $0x488] sm:$0xff]
  %v167 = vld [vmem:[%s1 + $0x490] sm:$0xff]
  %v168 = vld [vmem:[%s1 + $0x498] sm:$0xff]
  %v169 = vld [vmem:[%s1 + $0x4a0] sm:$0xff]
  %v170 = vld [vmem:[%s1 + $0x4a8] sm:$0xff]
  %v171 = vld [vmem:[%s1 + $0x4b0] sm:$0xff]
  %v172 = vld [vmem:[%s1 + $0x4b8] sm:$0xff]
  %v173 = vld [vmem:[%s1 + $0x4c0] sm:$0xff]
  %v174 = vld [vmem:[%s1 + $0x4c8] sm:$0xff]
  %v175 = vld [vmem:[%s1 + $0x4d0] sm:$0xff]
  %v176 = vld [vmem:[%s1 + $0x4d8] sm:$0xff]
  %v177 = vld [vmem:[%s1 + $0x4e0] sm:$0xff]
  %v178 = vld [vmem:[%s1 + $0x4e8] sm:$0xff]
  %v179 = vld [vmem:[%s1 + $0x4f0] sm:$0xff]
  %v180 = vld [vmem:[%s1 + $0x4f8] sm:$0xff]
  %v181 = vld [vmem:[%s1 + $0x500] sm:$0xff]
  %v182 = vld [vmem:[%s1 + $0x508] sm:$0xff]
  %v183 = vld [vmem:[%s1 + $0x510] sm:$0xff]
  %v184 = vld [vmem:[%s1 + $0x518] sm:$0xff]
  %v185 = vld [vmem:[%s1 + $0x520] sm:$0xff]
  %v186 = vld [vmem:[%s1 + $0x528] sm:$0xff]
  %v187 = vld [vmem:[%s1 + $0x530] sm:$0xff]
  %v188 = vld [vmem:[%s1 + $0x538] sm:$0xff]
  %v189 = vld [vmem:[%s1 + $0x540] sm:$0xff]
  %v190 = vld [vmem:[%s1 + $0x548] sm:$0xff]
  %v191 = vld [vmem:[%s1 + $0x550] sm:$0xff]
  %v192 = vld [vmem:[%s1 + $0x558] sm:$0xff]
  %v193 = vld [vmem:[%s1 + $0x560] sm:$0xff]
  %v194 = vld [vmem:[%s1 + $0x568] sm:$0xff]
  %v195 = vld [vmem:[%s1 + $0x570] sm:$0xff]
  %v196 = vld [vmem:[%s1 + $0x578] sm:$0xff]
  %v197 = vld [vmem:[%s1 + $0x580] sm:$0xff]
  %v198 = vld [vmem:[%s1 + $0x588] sm:$0xff]
  %v199 = vld [vmem:[%s1 + $0x590] sm:$0xff]
  %v200 = vld [vmem:[%s1 + $0x598] sm:$0xff]
  %v201 = vld [vmem:[%s1 + $0x5a0] sm:$0xff]
  %v202 = vld [vmem:[%s1 + $0x5a8] sm:$0xff]
  %v203 = vld [vmem:[%s1 + $0x5b0] sm:$0xff]
  %v204 = vld [vmem:[%s1 + $0x5b8] sm:$0xff]
  %v205 = vld [vmem:[%s1 + $0x5c0] sm:$0xff]
  %v206 = vld [vmem:[%s1 + $0x5c8] sm:$0xff]
  %v207 = vld [vmem:[%s1 + $0x5d0] sm:$0xff]
  %v208 = vld [vmem:[%s1 + $0x5d8] sm:$0xff]
  %v209 = vld [vmem:[%s1 + $0x5e0] sm:$0xff]
  %v210 = vld [vmem:[%s1 + $0x5e8] sm:$0xff]
  %v211 = vld [vmem:[%s1 + $0x5f0] sm:$0xff]
  %v212 = vld [vmem:[%s1 + $0x5f8] sm:$0xff]
  %v213 = vld [vmem:[%s1 + $0x600] sm:$0xff]
  %v214 = vld [vmem:[%s1 + $0x608] sm:$0xff]
  %v215 = vld [vmem:[%s1 + $0x610] sm:$0xff]
  %v216 = vld [vmem:[%s1 + $0x618] sm:$0xff]
  %v217 = vld [vmem:[%s1 + $0x620] sm:$0xff]
  %v218 = vld [vmem:[%s1 + $0x628] sm:$0xff]
  %v219 = vld [vmem:[%s1 + $0x630] sm:$0xff]
  %v220 = vld [vmem:[%s1 + $0x638] sm:$0xff]
  %v221 = vld [vmem:[%s1 + $0x640] sm:$0xff]
  %v222 = vld [vmem:[%s1 + $0x648] sm:$0xff]
  %v223 = vld [vmem:[%s1 + $0x650] sm:$0xff]
  %v224 = vld [vmem:[%s1 + $0x658] sm:$0xff]
  %v225 = vld [vmem:[%s1 + $0x660] sm:$0xff]
  %v226 = vld [vmem:[%s1 + $0x668] sm:$0xff]
  %v227 = vld [vmem:[%s1 + $0x670] sm:$0xff]
  %v228 = vld [vmem:[%s1 + $0x678] sm:$0xff]
  %v229 = vld [vmem:[%s1 + $0x680] sm:$0xff]
  %v230 = vld [vmem:[%s1 + $0x688] sm:$0xff]
  %v231 = vld [vmem:[%s1 + $0x690] sm:$0xff]
  %v232 = vld [vmem:[%s1 + $0x698] sm:$0xff]
  %v233 = vld [vmem:[%s1 + $0x6a0] sm:$0xff]
  %v234 = vld [vmem:[%s1 + $0x6a8] sm:$0xff]
  %v235 = vld [vmem:[%s1 + $0x6b0] sm:$0xff]
  %v236 = vld [vmem:[%s1 + $0x6b8] sm:$0xff]
  %v237 = vld [vmem:[%s1 + $0x6c0] sm:$0xff]
  %v238 = vld [vmem:[%s1 + $0x6c8] sm:$0xff]
  %v239 = vld [vmem:[%s1 + $0x6d0] sm:$0xff]
  %v240 = vld [vmem:[%s1 + $0x6d8] sm:$0xff]
  %v241 = vld [vmem:[%s1 + $0x6e0] sm:$0xff]
  %v242 = vld [vmem:[%s1 + $0x6e8] sm:$0xff]
  %v243 = vld [vmem:[%s1 + $0x6f0] sm:$0xff]
  %v244 = vld [vmem:[%s1 + $0x6f8] sm:$0xff]
  %v245 = vld [vmem:[%s1 + $0x700] sm:$0xff]
  %v246 = vld [vmem:[%s1 + $0x708] sm:$0xff]
  %v247 = vld [vmem:[%s1 + $0x710] sm:$0xff]
  %v248 = vld [vmem:[%s1 + $0x718] sm:$0xff]
  %v249 = vld [vmem:[%s1 + $0x720] sm:$0xff]
  %v250 = vld [vmem:[%s1 + $0x728] sm:$0xff]
  %v251 = vld [vmem:[%s1 + $0x730] sm:$0xff]
  %v252 = vld [vmem:[%s1 + $0x738] sm:$0xff]
  %v253 = vld [vmem:[%s1 + $0x740] sm:$0xff]
  %v254 = vld [vmem:[%s1 + $0x748] sm:$0xff]
  %v255 = vld [vmem:[%s1 + $0x750] sm:$0xff]
  %v256 = vld [vmem:[%s1 + $0x758] sm:$0xff]
  %v257 = vld [vmem:[%s1 + $0x760] sm:$0xff]
  %v258 = vld [vmem:[%s1 + $0x768] sm:$0xff]
  %v259 = vld [vmem:[%s1 + $0x770] sm:$0xff]
  %v260 = vld [vmem:[%s1 + $0x778] sm:$0xff]
  %v261 = vld [vmem:[%s1 + $0x780] sm:$0xff]
  %v262 = vld [vmem:[%s1 + $0x788] sm:$0xff]
  %v263 = vld [vmem:[%s1 + $0x790] sm:$0xff]
  %v264 = vld [vmem:[%s1 + $0x798] sm:$0xff]
  %v265 = vld [vmem:[%s1 + $0x7a0] sm:$0xff]
  %v266 = vld [vmem:[%s1 + $0x7a8] sm:$0xff]
  %v267 = vld [vmem:[%s1 + $0x7b0] sm:$0xff]
  %v268 = vld [vmem:[%s1 + $0x7b8] sm:$0xff]
  %v269 = vld [vmem:[%s1 + $0x7c0] sm:$0xff]
  %v270 = vld [vmem:[%s1 + $0x7c8] sm:$0xff]
  %v271 = vld [vmem:[%s1 + $0x7d0] sm:$0xff]
  %v272 = vld [vmem:[%s1 + $0x7d8] sm:$0xff]
  %v273 = vld [vmem:[%s1 + $0x7e0] sm:$0xff]
  %v274 = vld [vmem:[%s1 + $0x7e8] sm:$0xff]
  %v275 = vld [vmem:[%s1 + $0x7f0] sm:$0xff]
  %v276 = vld [vmem:[%s1 + $0x7f8] sm:$0xff]
  %v277 = vld [vmem:[%s1 + $0x800] sm:$0xff]
  %v278 = vld [vmem:[%s1 + $0x808] sm:$0xff]
  %v279 = vld [vmem:[%s1 + $0x810] sm:$0xff]
  %v280 = vld [vmem:[%s1 + $0x818] sm:$0xff]
  %v281 = vld [vmem:[%s1 + $0x820] sm:$0xff]
  %v282 = vld [vmem:[%s1 + $0x828] sm:$0xff]
  %v283 = vld [vmem:[%s1 + $0x830] sm:$0xff]
  %v284 = vld [vmem:[%s1 + $0x838] sm:$0xff]
  %v285 = vld [vmem:[%s1 + $0x840] sm:$0xff]
  %v286 = vld [vmem:[%s1 + $0x848] sm:$0xff]
  %v287 = vld [vmem:[%s1 + $0x850] sm:$0xff]
  %v288 = vld [vmem:[%s1 + $0x858] sm:$0xff]
  %v289 = vld [vmem:[%s1 + $0x860] sm:$0xff]
  %v290 = vld [vmem:[%s1 + $0x868] sm:$0xff]
  %v291 = vld [vmem:[%s1 + $0x870] sm:$0xff]
  %v292 = vld [vmem:[%s1 + $0x878] sm:$0xff]
  %v293 = vld [vmem:[%s1 + $0x880] sm:$0xff]
  %v294 = vld [vmem:[%s1 + $0x888] sm:$0xff]
  %v295 = vld [vmem:[%s1 + $0x890] sm:$0xff]
  %v296 = vld [vmem:[%s1 + $0x898] sm:$0xff]
  %v297 = vld [vmem:[%s1 + $0x8a0] sm:$0xff]
  %v298 = vld [vmem:[%s1 + $0x8a8] sm:$0xff]
  %v299 = vld [vmem:[%s1 + $0x8b0] sm:$0xff]
  %v300 = vld [vmem:[%s1 + $0x8b8] sm:$0xff]
  %v301 = vld [vmem:[%s1 + $0x8c0] sm:$0xff]
  %v302 = vld [vmem:[%s1 + $0x8c8] sm:$0xff]
  %v303 = vld [vmem:[%s1 + $0x8d0] sm:$0xff]
  %v304 = vld [vmem:[%s1 + $0x8d8] sm:$0xff]
  %v305 = vld [vmem:[%s1 + $0x8e0] sm:$0xff]
  %v306 = vld [vmem:[%s1 + $0x8e8] sm:$0xff]
  %v307 = vld [vmem:[%s1 + $0x8f0] sm:$0xff]
  %v308 = vld [vmem:[%s1 + $0x8f8] sm:$0xff]
  %v309 = vld [vmem:[%s1 + $0x900] sm:$0xff]
  %v310 = vld [vmem:[%s1 + $0x908] sm:$0xff]
  %v311 = vld [vmem:[%s1 + $0x910] sm:$0xff]
  %v312 = vld [vmem:[%s1 + $0x918] sm:$0xff]
  %v313 = vld [vmem:[%s1 + $0x920] sm:$0xff]
  %v314 = vld [vmem:[%s1 + $0x928] sm:$0xff]
  %v315 = vld [vmem:[%s1 + $0x930] sm:$0xff]
  %v316 = vld [vmem:[%s1 + $0x938] sm:$0xff]
  %v317 = vld [vmem:[%s1 + $0x940] sm:$0xff]
  %v318 = vld [vmem:[%s1 + $0x948] sm:$0xff]
  %v319 = vld [vmem:[%s1 + $0x950] sm:$0xff]
  %v320 = vld [vmem:[%s1 + $0x958] sm:$0xff]
  %v321 = vld [vmem:[%s1 + $0x960] sm:$0xff]
  %v322 = vld [vmem:[%s1 + $0x968] sm:$0xff]
  %v323 = vld [vmem:[%s1 + $0x970] sm:$0xff]
  %v324 = vld [vmem:[%s1 + $0x978] sm:$0xff]
  %v325 = vld [vmem:[%s1 + $0x980] sm:$0xff]
  %v326 = vld [vmem:[%s1 + $0x988] sm:$0xff]
  %v327 = vld [vmem:[%s1 + $0x990] sm:$0xff]
  %v328 = vld [vmem:[%s1 + $0x998] sm:$0xff]
  %v329 = vld [vmem:[%s1 + $0x9a0] sm:$0xff]
  %v330 = vld [vmem:[%s1 + $0x9a8] sm:$0xff]
  %v331 = vld [vmem:[%s1 + $0x9b0] sm:$0xff]
  %v332 = vld [vmem:[%s1 + $0x9b8] sm:$0xff]
  %v333 = vld [vmem:[%s1 + $0x9c0] sm:$0xff]
  %v334 = vld [vmem:[%s1 + $0x9c8] sm:$0xff]
  %v335 = vld [vmem:[%s1 + $0x9d0] sm:$0xff]
  %v336 = vld [vmem:[%s1 + $0x9d8] sm:$0xff]
  %v337 = vld [vmem:[%s1 + $0x9e0] sm:$0xff]
  %v338 = vld [vmem:[%s1 + $0x9e8] sm:$0xff]
  %v339 = vld [vmem:[%s1 + $0x9f0] sm:$0xff]
  %v340 = vld [vmem:[%s1 + $0x9f8] sm:$0xff]
  %v341 = vld [vmem:[%s1 + $0xa00] sm:$0xff]
  %v342 = vld [vmem:[%s1 + $0xa08] sm:$0xff]
  %v343 = vld [vmem:[%s1 + $0xa10] sm:$0xff]
  %v344 = vld [vmem:[%s1 + $0xa18] sm:$0xff]
  %v345 = vld [vmem:[%s1 + $0xa20] sm:$0xff]
  %v346 = vld [vmem:[%s1 + $0xa28] sm:$0xff]
  %v347 = vld [vmem:[%s1 + $0xa30] sm:$0xff]
  %v348 = vld [vmem:[%s1 + $0xa38] sm:$0xff]
  %v349 = vld [vmem:[%s1 + $0xa40] sm:$0xff]
  %v350 = vld [vmem:[%s1 + $0xa48] sm:$0xff]
  %v351 = vld [vmem:[%s1 + $0xa50] sm:$0xff]
  %v352 = vld [vmem:[%s1 + $0xa58] sm:$0xff]
  %v353 = vld [vmem:[%s1 + $0xa60] sm:$0xff]
  %v354 = vld [vmem:[%s1 + $0xa68] sm:$0xff]
  %v355 = vld [vmem:[%s1 + $0xa70] sm:$0xff]
  %v356 = vld [vmem:[%s1 + $0xa78] sm:$0xff]
  %v357 = vld [vmem:[%s1 + $0xa80] sm:$0xff]
  %v358 = vld [vmem:[%s1 + $0xa88] sm:$0xff]
  %v359 = vld [vmem:[%s1 + $0xa90] sm:$0xff]
  %v360 = vld [vmem:[%s1 + $0xa98] sm:$0xff]
  %v361 = vld [vmem:[%s1 + $0xaa0] sm:$0xff]
  %v362 = vld [vmem:[%s1 + $0xaa8] sm:$0xff]
  %v363 = vld [vmem:[%s1 + $0xab0] sm:$0xff]
  %v364 = vld [vmem:[%s1 + $0xab8] sm:$0xff]
  %v365 = vld [vmem:[%s1 + $0xac0] sm:$0xff]
  %v366 = vld [vmem:[%s1 + $0xac8] sm:$0xff]
  %v367 = vld [vmem:[%s1 + $0xad0] sm:$0xff]
  %v368 = vld [vmem:[%s1 + $0xad8] sm:$0xff]
  %v369 = vld [vmem:[%s1 + $0xae0] sm:$0xff]
  %v370 = vld [vmem:[%s1 + $0xae8] sm:$0xff]
  %v371 = vld [vmem:[%s1 + $0xaf0] sm:$0xff]
  %v372 = vld [vmem:[%s1 + $0xaf8] sm:$0xff]
  %v373 = vld [vmem:[%s1 + $0xb00] sm:$0xff]
  %v374 = vld [vmem:[%s1 + $0xb08] sm:$0xff]
  %v375 = vld [vmem:[%s1 + $0xb10] sm:$0xff]
  %v376 = vld [vmem:[%s1 + $0xb18] sm:$0xff]
  %v377 = vld [vmem:[%s1 + $0xb20] sm:$0xff]
  %v378 = vld [vmem:[%s1 + $0xb28] sm:$0xff]
  %v379 = vld [vmem:[%s1 + $0xb30] sm:$0xff]
  %v380 = vld [vmem:[%s1 + $0xb38] sm:$0xff]
  %v381 = vld [vmem:[%s1 + $0xb40] sm:$0xff]
  %v382 = vld [vmem:[%s1 + $0xb48] sm:$0xff]
  %v383 = vld [vmem:[%s1 + $0xb50] sm:$0xff]
  %v384 = vld [vmem:[%s1 + $0xb58] sm:$0xff]
  %v385 = vld [vmem:[%s1 + $0xb60] sm:$0xff]
  %v386 = vld [vmem:[%s1 + $0xb68] sm:$0xff]
  %v387 = vld [vmem:[%s1 + $0xb70] sm:$0xff]
  %v388 = vld [vmem:[%s1 + $0xb78] sm:$0xff]
  %v389 = vld [vmem:[%s1 + $0xb80] sm:$0xff]
  %v390 = vld [vmem:[%s1 + $0xb88] sm:$0xff]
  %v391 = vld [vmem:[%s1 + $0xb90] sm:$0xff]
  %v392 = vld [vmem:[%s1 + $0xb98] sm:$0xff]
  %v393 = vld [vmem:[%s1 + $0xba0] sm:$0xff]
  %v394 = vld [vmem:[%s1 + $0xba8] sm:$0xff]
  %v395 = vld [vmem:[%s1 + $0xbb0] sm:$0xff]
  %v396 = vld [vmem:[%s1 + $0xbb8] sm:$0xff]
  %v397 = vld [vmem:[%s1 + $0xbc0] sm:$0xff]
  %v398 = vld [vmem:[%s1 + $0xbc8] sm:$0xff]
  %v399 = vld [vmem:[%s1 + $0xbd0] sm:$0xff]
  %v400 = vld [vmem:[%s1 + $0xbd8] sm:$0xff]
  %v401 = vld [vmem:[%s1 + $0xbe0] sm:$0xff]
  %v402 = vld [vmem:[%s1 + $0xbe8] sm:$0xff]
  %v403 = vld [vmem:[%s1 + $0xbf0] sm:$0xff]
  %v404 = vld [vmem:[%s1 + $0xbf8] sm:$0xff]
  %v405 = vld [vmem:[%s1 + $0xc00] sm:$0xff]
  %v406 = vld [vmem:[%s1 + $0xc08] sm:$0xff]
  %v407 = vld [vmem:[%s1 + $0xc10] sm:$0xff]
  %v408 = vld [vmem:[%s1 + $0xc18] sm:$0xff]
  %v409 = vld [vmem:[%s1 + $0xc20] sm:$0xff]
  %v410 = vld [vmem:[%s1 + $0xc28] sm:$0xff]
  %v411 = vld [vmem:[%s1 + $0xc30] sm:$0xff]
  %v412 = vld [vmem:[%s1 + $0xc38] sm:$0xff]
  %v413 = vld [vmem:[%s2] sm:$0xff]
  %v414 = vld [vmem:[%s2 + $0x8] sm:$0xff]
  %v415 = vld [vmem:[%s2 + $0x10] sm:$0xff]
  %v416 = vld [vmem:[%s2 + $0x18] sm:$0xff]
  %v417 = vld [vmem:[%s2 + $0x20] sm:$0xff]
  %v418 = vld [vmem:[%s2 + $0x28] sm:$0xff]
  %v419 = vld [vmem:[%s2 + $0x30] sm:$0x1]
  %v427 = vlaneseq
  %v428 = vshrl.u32 %v427, 7
  %v429 = vsub.s32 0, %v428
  %v430 = vrot.slane %v413, %v429
  %v431 = vlaneseq
  %v432 = vshrl.u32 %v431, 7
  %v433 = vsub.s32 1, %v432
  %v434 = vrot.slane %v413, %v433
  %v435 = vlaneseq
  %v436 = vshrl.u32 %v435, 7
  %v437 = vsub.s32 2, %v436
  %v438 = vrot.slane %v413, %v437
  %v439 = vlaneseq
  %v440 = vshrl.u32 %v439, 7
  %v441 = vsub.s32 3, %v440
  %v442 = vrot.slane %v413, %v441
  %v443 = vlaneseq
  %v444 = vshrl.u32 %v443, 7
  %v445 = vsub.s32 4, %v444
  %v446 = vrot.slane %v413, %v445
  %v447 = vlaneseq
  %v448 = vshrl.u32 %v447, 7
  %v449 = vsub.s32 5, %v448
  %v450 = vrot.slane %v413, %v449
  %v451 = vlaneseq
  %v452 = vshrl.u32 %v451, 7
  %v453 = vsub.s32 6, %v452
  %v454 = vrot.slane %v413, %v453
  %v455 = vlaneseq
  %v456 = vshrl.u32 %v455, 7
  %v457 = vsub.s32 7, %v456
  %v458 = vrot.slane %v413, %v457
  %v459 = vlaneseq
  %v460 = vshrl.u32 %v459, 7
  %v461 = vsub.s32 0, %v460
  %v462 = vrot.slane %v414, %v461
  %v463 = vlaneseq
  %v464 = vshrl.u32 %v463, 7
  %v465 = vsub.s32 1, %v464
  %v466 = vrot.slane %v414, %v465
  %v467 = vlaneseq
  %v468 = vshrl.u32 %v467, 7
  %v469 = vsub.s32 2, %v468
  %v470 = vrot.slane %v414, %v469
  %v471 = vlaneseq
  %v472 = vshrl.u32 %v471, 7
  %v473 = vsub.s32 3, %v472
  %v474 = vrot.slane %v414, %v473
  %v475 = vlaneseq
  %v476 = vshrl.u32 %v475, 7
  %v477 = vsub.s32 4, %v476
  %v478 = vrot.slane %v414, %v477
  %v479 = vlaneseq
  %v480 = vshrl.u32 %v479, 7
  %v481 = vsub.s32 5, %v480
  %v482 = vrot.slane %v414, %v481
  %v483 = vlaneseq
  %v484 = vshrl.u32 %v483, 7
  %v485 = vsub.s32 6, %v484
  %v486 = vrot.slane %v414, %v485
  %v487 = vlaneseq
  %v488 = vshrl.u32 %v487, 7
  %v489 = vsub.s32 7, %v488
  %v490 = vrot.slane %v414, %v489
  %v491 = vlaneseq
  %v492 = vshrl.u32 %v491, 7
  %v493 = vsub.s32 0, %v492
  %v494 = vrot.slane %v415, %v493
  %v495 = vlaneseq
  %v496 = vshrl.u32 %v495, 7
  %v497 = vsub.s32 1, %v496
  %v498 = vrot.slane %v415, %v497
  %v499 = vlaneseq
  %v500 = vshrl.u32 %v499, 7
  %v501 = vsub.s32 2, %v500
  %v502 = vrot.slane %v415, %v501
  %v503 = vlaneseq
  %v504 = vshrl.u32 %v503, 7
  %v505 = vsub.s32 3, %v504
  %v506 = vrot.slane %v415, %v505
  %v507 = vlaneseq
  %v508 = vshrl.u32 %v507, 7
  %v509 = vsub.s32 4, %v508
  %v510 = vrot.slane %v415, %v509
  %v511 = vlaneseq
  %v512 = vshrl.u32 %v511, 7
  %v513 = vsub.s32 5, %v512
  %v514 = vrot.slane %v415, %v513
  %v515 = vlaneseq
  %v516 = vshrl.u32 %v515, 7
  %v517 = vsub.s32 6, %v516
  %v518 = vrot.slane %v415, %v517
  %v519 = vlaneseq
  %v520 = vshrl.u32 %v519, 7
  %v521 = vsub.s32 7, %v520
  %v522 = vrot.slane %v415, %v521
  %v523 = vlaneseq
  %v524 = vshrl.u32 %v523, 7
  %v525 = vsub.s32 0, %v524
  %v526 = vrot.slane %v416, %v525
  %v527 = vlaneseq
  %v528 = vshrl.u32 %v527, 7
  %v529 = vsub.s32 1, %v528
  %v530 = vrot.slane %v416, %v529
  %v531 = vlaneseq
  %v532 = vshrl.u32 %v531, 7
  %v533 = vsub.s32 2, %v532
  %v534 = vrot.slane %v416, %v533
  %v535 = vlaneseq
  %v536 = vshrl.u32 %v535, 7
  %v537 = vsub.s32 3, %v536
  %v538 = vrot.slane %v416, %v537
  %v539 = vlaneseq
  %v540 = vshrl.u32 %v539, 7
  %v541 = vsub.s32 4, %v540
  %v542 = vrot.slane %v416, %v541
  %v543 = vlaneseq
  %v544 = vshrl.u32 %v543, 7
  %v545 = vsub.s32 5, %v544
  %v546 = vrot.slane %v416, %v545
  %v547 = vlaneseq
  %v548 = vshrl.u32 %v547, 7
  %v549 = vsub.s32 6, %v548
  %v550 = vrot.slane %v416, %v549
  %v551 = vlaneseq
  %v552 = vshrl.u32 %v551, 7
  %v553 = vsub.s32 7, %v552
  %v554 = vrot.slane %v416, %v553
  %v555 = vlaneseq
  %v556 = vshrl.u32 %v555, 7
  %v557 = vsub.s32 0, %v556
  %v558 = vrot.slane %v417, %v557
  %v559 = vlaneseq
  %v560 = vshrl.u32 %v559, 7
  %v561 = vsub.s32 1, %v560
  %v562 = vrot.slane %v417, %v561
  %v563 = vlaneseq
  %v564 = vshrl.u32 %v563, 7
  %v565 = vsub.s32 2, %v564
  %v566 = vrot.slane %v417, %v565
  %v567 = vlaneseq
  %v568 = vshrl.u32 %v567, 7
  %v569 = vsub.s32 3, %v568
  %v570 = vrot.slane %v417, %v569
  %v571 = vlaneseq
  %v572 = vshrl.u32 %v571, 7
  %v573 = vsub.s32 4, %v572
  %v574 = vrot.slane %v417, %v573
  %v575 = vlaneseq
  %v576 = vshrl.u32 %v575, 7
  %v577 = vsub.s32 5, %v576
  %v578 = vrot.slane %v417, %v577
  %v579 = vlaneseq
  %v580 = vshrl.u32 %v579, 7
  %v581 = vsub.s32 6, %v580
  %v582 = vrot.slane %v417, %v581
  %v583 = vlaneseq
  %v584 = vshrl.u32 %v583, 7
  %v585 = vsub.s32 7, %v584
  %v586 = vrot.slane %v417, %v585
  %v587 = vlaneseq
  %v588 = vshrl.u32 %v587, 7
  %v589 = vsub.s32 0, %v588
  %v590 = vrot.slane %v418, %v589
  %v591 = vlaneseq
  %v592 = vshrl.u32 %v591, 7
  %v593 = vsub.s32 1, %v592
  %v594 = vrot.slane %v418, %v593
  %v595 = vlaneseq
  %v596 = vshrl.u32 %v595, 7
  %v597 = vsub.s32 2, %v596
  %v598 = vrot.slane %v418, %v597
  %v599 = vlaneseq
  %v600 = vshrl.u32 %v599, 7
  %v601 = vsub.s32 3, %v600
  %v602 = vrot.slane %v418, %v601
  %v603 = vlaneseq
  %v604 = vshrl.u32 %v603, 7
  %v605 = vsub.s32 4, %v604
  %v606 = vrot.slane %v418, %v605
  %v607 = vlaneseq
  %v608 = vshrl.u32 %v607, 7
  %v609 = vsub.s32 5, %v608
  %v610 = vrot.slane %v418, %v609
  %v611 = vlaneseq
  %v612 = vshrl.u32 %v611, 7
  %v613 = vsub.s32 6, %v612
  %v614 = vrot.slane %v418, %v613
  %v615 = vlaneseq
  %v616 = vshrl.u32 %v615, 7
  %v617 = vsub.s32 7, %v616
  %v618 = vrot.slane %v418, %v617
  %v619 = vlaneseq
  %v620 = vshrl.u32 %v619, 7
  %v621 = vsub.s32 0, %v620
  %v622 = vrot.slane %v419, %v621
  %vm672 = vcmask 523264
  %v674 = vsel %vm672, %v20, 0
  %676 = vmatprep.subr.mxu0 0.0
  %677 = vmatpush1.msra.mxu0 0.0
  %678 = vmatprep.subr.mxu0 0.0
  %679 = vmatpush1.msra.mxu0 0.0
  %680 = vmatprep.subr.mxu0 0.0
  %681 = vmatpush1.msra.mxu0 0.0
  %682 = vmatprep.subr.mxu0 0.0
  %683 = vmatpush1.msra.mxu0 0.0
  %684 = vmatprep.subr.mxu0 0.0
  %685 = vmatpush1.msra.mxu0 0.0
  %686 = vmatprep.subr.mxu0 0.0
  %687 = vmatpush1.msra.mxu0 0.0
  %688 = vmatprep.subr.mxu0 0.0
  %689 = vmatpush1.msra.mxu0 0.0
  %690 = vmatprep.subr.mxu0 0.0
  %691 = vmatpush1.msra.mxu0 0.0
  %692 = vmatprep.subr.mxu0 %v365
  %693 = vmatpush1.msra.mxu0 %v364
  %694 = vmatprep.subr.mxu0 %v316
  %695 = vmatpush1.msra.mxu0 %v315
  %696 = vmatprep.subr.mxu0 %v267
  %697 = vmatpush1.msra.mxu0 %v266
  %698 = vmatprep.subr.mxu0 %v218
  %699 = vmatpush1.msra.mxu0 %v217
  %700 = vmatprep.subr.mxu0 %v169
  %701 = vmatpush1.msra.mxu0 %v168
  %702 = vmatprep.subr.mxu0 %v120
  %703 = vmatpush1.msra.mxu0 %v119
  %704 = vmatprep.subr.mxu0 %v71
  %705 = vmatpush1.msra.mxu0 %v70
  %706 = vmatprep.subr.mxu0 %v22
  %707 = vmatpush1.msra.mxu0 %v21
  %708 = vmatprep.subr.mxu0 0.0
  %709 = vmatpush2.msra.mxu0 0.0
  %710 = vmatprep.subr.mxu0 0.0
  %711 = vmatpush2.msra.mxu0 0.0
  %712 = vmatprep.subr.mxu0 0.0
  %713 = vmatpush2.msra.mxu0 0.0
  %714 = vmatprep.subr.mxu0 0.0
  %715 = vmatpush2.msra.mxu0 0.0
  %716 = vmatprep.subr.mxu0 0.0
  %717 = vmatpush2.msra.mxu0 0.0
  %718 = vmatprep.subr.mxu0 0.0
  %719 = vmatpush2.msra.mxu0 0.0
  %720 = vmatprep.subr.mxu0 0.0
  %721 = vmatpush2.msra.mxu0 0.0
  %722 = vmatprep.subr.mxu0 0.0
  %723 = vmatpush2.msra.mxu0 0.0
  %724 = vmatprep.subr.mxu0 0.0
  %725 = vmatpush2.msra.mxu0 0.0
  %726 = vmatprep.subr.mxu0 0.0
  %727 = vmatpush2.msra.mxu0 0.0
  %728 = vmatprep.subr.mxu0 0.0
  %729 = vmatpush2.msra.mxu0 0.0
  %730 = vmatprep.subr.mxu0 0.0
  %731 = vmatpush2.msra.mxu0 0.0
  %732 = vmatprep.subr.mxu0 0.0
  %733 = vmatpush2.msra.mxu0 0.0
  %734 = vmatprep.subr.mxu0 0.0
  %735 = vmatpush2.msra.mxu0 0.0
  %736 = vmatprep.subr.mxu0 0.0
  %737 = vmatpush2.msra.mxu0 0.0
  %738 = vmatprep.subr.mxu0 0.0
  %739 = vmatpush2.msra.mxu0 0.0
  %740 = vmatprep.mubr.f32.mxu0 0.0
  %741 = vmatmul.mubr.f32.gmra.mxu0 %v674
  %v742 = vpop.f32.mrf.mxu0
  %v743 = vadd.f32 %v430, %v742
  %v744 = vpop.f32.mrf.mxu0
  %v745 = vadd.f32 %v434, %v744
  %746 = vdwg.mxu0
  %747 = vmatprep.subr.mxu0 0.0
  %748 = vmatpush1.msra.mxu0 0.0
  %749 = vmatprep.subr.mxu0 0.0
  %750 = vmatpush1.msra.mxu0 0.0
  %751 = vmatprep.subr.mxu0 0.0
  %752 = vmatpush1.msra.mxu0 0.0
  %753 = vmatprep.subr.mxu0 0.0
  %754 = vmatpush1.msra.mxu0 0.0
  %755 = vmatprep.subr.mxu0 0.0
  %756 = vmatpush1.msra.mxu0 0.0
  %757 = vmatprep.subr.mxu0 0.0
  %758 = vmatpush1.msra.mxu0 0.0
  %759 = vmatprep.subr.mxu0 0.0
  %760 = vmatpush1.msra.mxu0 0.0
  %761 = vmatprep.subr.mxu0 0.0
  %762 = vmatpush1.msra.mxu0 0.0
  %763 = vmatprep.subr.mxu0 %v367
  %764 = vmatpush1.msra.mxu0 %v366
  %765 = vmatprep.subr.mxu0 %v318
  %766 = vmatpush1.msra.mxu0 %v317
  %767 = vmatprep.subr.mxu0 %v269
  %768 = vmatpush1.msra.mxu0 %v268
  %769 = vmatprep.subr.mxu0 %v220
  %770 = vmatpush1.msra.mxu0 %v219
  %771 = vmatprep.subr.mxu0 %v171
  %772 = vmatpush1.msra.mxu0 %v170
  %773 = vmatprep.subr.mxu0 %v122
  %774 = vmatpush1.msra.mxu0 %v121
  %775 = vmatprep.subr.mxu0 %v73
  %776 = vmatpush1.msra.mxu0 %v72
  %777 = vmatprep.subr.mxu0 %v24
  %778 = vmatpush1.msra.mxu0 %v23
  %779 = vmatprep.subr.mxu0 0.0
  %780 = vmatpush2.msra.mxu0 0.0
  %781 = vmatprep.subr.mxu0 0.0
  %782 = vmatpush2.msra.mxu0 0.0
  %783 = vmatprep.subr.mxu0 0.0
  %784 = vmatpush2.msra.mxu0 0.0
  %785 = vmatprep.subr.mxu0 0.0
  %786 = vmatpush2.msra.mxu0 0.0
  %787 = vmatprep.subr.mxu0 0.0
  %788 = vmatpush2.msra.mxu0 0.0
  %789 = vmatprep.subr.mxu0 0.0
  %790 = vmatpush2.msra.mxu0 0.0
  %791 = vmatprep.subr.mxu0 0.0
  %792 = vmatpush2.msra.mxu0 0.0
  %793 = vmatprep.subr.mxu0 0.0
  %794 = vmatpush2.msra.mxu0 0.0
  %795 = vmatprep.subr.mxu0 0.0
  %796 = vmatpush2.msra.mxu0 0.0
  %797 = vmatprep.subr.mxu0 0.0
  %798 = vmatpush2.msra.mxu0 0.0
  %799 = vmatprep.subr.mxu0 0.0
  %800 = vmatpush2.msra.mxu0 0.0
  %801 = vmatprep.subr.mxu0 0.0
  %802 = vmatpush2.msra.mxu0 0.0
  %803 = vmatprep.subr.mxu0 0.0
  %804 = vmatpush2.msra.mxu0 0.0
  %805 = vmatprep.subr.mxu0 0.0
  %806 = vmatpush2.msra.mxu0 0.0
  %807 = vmatprep.subr.mxu0 0.0
  %808 = vmatpush2.msra.mxu0 0.0
  %809 = vmatprep.subr.mxu0 0.0
  %810 = vmatpush2.msra.mxu0 0.0
  %811 = vmatprep.mubr.f32.mxu0 0.0
  %812 = vmatmul.mubr.f32.gmra.mxu0 %v674
  %v813 = vpop.f32.mrf.mxu0
  %v814 = vadd.f32 %v438, %v813
  %v815 = vpop.f32.mrf.mxu0
  %v816 = vadd.f32 %v442, %v815
  %817 = vdwg.mxu0
  %818 = vmatprep.subr.mxu0 0.0
  %819 = vmatpush1.msra.mxu0 0.0
  %820 = vmatprep.subr.mxu0 0.0
  %821 = vmatpush1.msra.mxu0 0.0
  %822 = vmatprep.subr.mxu0 0.0
  %823 = vmatpush1.msra.mxu0 0.0
  %824 = vmatprep.subr.mxu0 0.0
  %825 = vmatpush1.msra.mxu0 0.0
  %826 = vmatprep.subr.mxu0 0.0
  %827 = vmatpush1.msra.mxu0 0.0
  %828 = vmatprep.subr.mxu0 0.0
  %829 = vmatpush1.msra.mxu0 0.0
  %830 = vmatprep.subr.mxu0 0.0
  %831 = vmatpush1.msra.mxu0 0.0
  %832 = vmatprep.subr.mxu0 0.0
  %833 = vmatpush1.msra.mxu0 0.0
  %834 = vmatprep.subr.mxu0 %v369
  %835 = vmatpush1.msra.mxu0 %v368
  %836 = vmatprep.subr.mxu0 %v320
  %837 = vmatpush1.msra.mxu0 %v319
  %838 = vmatprep.subr.mxu0 %v271
  %839 = vmatpush1.msra.mxu0 %v270
  %840 = vmatprep.subr.mxu0 %v222
  %841 = vmatpush1.msra.mxu0 %v221
  %842 = vmatprep.subr.mxu0 %v173
  %843 = vmatpush1.msra.mxu0 %v172
  %844 = vmatprep.subr.mxu0 %v124
  %845 = vmatpush1.msra.mxu0 %v123
  %846 = vmatprep.subr.mxu0 %v75
  %847 = vmatpush1.msra.mxu0 %v74
  %848 = vmatprep.subr.mxu0 %v26
  %849 = vmatpush1.msra.mxu0 %v25
  %850 = vmatprep.subr.mxu0 0.0
  %851 = vmatpush2.msra.mxu0 0.0
  %852 = vmatprep.subr.mxu0 0.0
  %853 = vmatpush2.msra.mxu0 0.0
  %854 = vmatprep.subr.mxu0 0.0
  %855 = vmatpush2.msra.mxu0 0.0
  %856 = vmatprep.subr.mxu0 0.0
  %857 = vmatpush2.msra.mxu0 0.0
  %858 = vmatprep.subr.mxu0 0.0
  %859 = vmatpush2.msra.mxu0 0.0
  %860 = vmatprep.subr.mxu0 0.0
  %861 = vmatpush2.msra.mxu0 0.0
  %862 = vmatprep.subr.mxu0 0.0
  %863 = vmatpush2.msra.mxu0 0.0
  %864 = vmatprep.subr.mxu0 0.0
  %865 = vmatpush2.msra.mxu0 0.0
  %866 = vmatprep.subr.mxu0 0.0
  %867 = vmatpush2.msra.mxu0 0.0
  %868 = vmatprep.subr.mxu0 0.0
  %869 = vmatpush2.msra.mxu0 0.0
  %870 = vmatprep.subr.mxu0 0.0
  %871 = vmatpush2.msra.mxu0 0.0
  %872 = vmatprep.subr.mxu0 0.0
  %873 = vmatpush2.msra.mxu0 0.0
  %874 = vmatprep.subr.mxu0 0.0
  %875 = vmatpush2.msra.mxu0 0.0
  %876 = vmatprep.subr.mxu0 0.0
  %877 = vmatpush2.msra.mxu0 0.0
  %878 = vmatprep.subr.mxu0 0.0
  %879 = vmatpush2.msra.mxu0 0.0
  %880 = vmatprep.subr.mxu0 0.0
  %881 = vmatpush2.msra.mxu0 0.0
  %882 = vmatprep.mubr.f32.mxu0 0.0
  %883 = vmatmul.mubr.f32.gmra.mxu0 %v674
  %v884 = vpop.f32.mrf.mxu0
  %v885 = vadd.f32 %v446, %v884
  %v886 = vpop.f32.mrf.mxu0
  %v887 = vadd.f32 %v450, %v886
  %888 = vdwg.mxu0
  %889 = vmatprep.subr.mxu0 0.0
  %890 = vmatpush1.msra.mxu0 0.0
  %891 = vmatprep.subr.mxu0 0.0
  %892 = vmatpush1.msra.mxu0 0.0
  %893 = vmatprep.subr.mxu0 0.0
  %894 = vmatpush1.msra.mxu0 0.0
  %895 = vmatprep.subr.mxu0 0.0
  %896 = vmatpush1.msra.mxu0 0.0
  %897 = vmatprep.subr.mxu0 0.0
  %898 = vmatpush1.msra.mxu0 0.0
  %899 = vmatprep.subr.mxu0 0.0
  %900 = vmatpush1.msra.mxu0 0.0
  %901 = vmatprep.subr.mxu0 0.0
  %902 = vmatpush1.msra.mxu0 0.0
  %903 = vmatprep.subr.mxu0 0.0
  %904 = vmatpush1.msra.mxu0 0.0
  %905 = vmatprep.subr.mxu0 %v371
  %906 = vmatpush1.msra.mxu0 %v370
  %907 = vmatprep.subr.mxu0 %v322
  %908 = vmatpush1.msra.mxu0 %v321
  %909 = vmatprep.subr.mxu0 %v273
  %910 = vmatpush1.msra.mxu0 %v272
  %911 = vmatprep.subr.mxu0 %v224
  %912 = vmatpush1.msra.mxu0 %v223
  %913 = vmatprep.subr.mxu0 %v175
  %914 = vmatpush1.msra.mxu0 %v174
  %915 = vmatprep.subr.mxu0 %v126
  %916 = vmatpush1.msra.mxu0 %v125
  %917 = vmatprep.subr.mxu0 %v77
  %918 = vmatpush1.msra.mxu0 %v76
  %919 = vmatprep.subr.mxu0 %v28
  %920 = vmatpush1.msra.mxu0 %v27
  %921 = vmatprep.subr.mxu0 0.0
  %922 = vmatpush2.msra.mxu0 0.0
  %923 = vmatprep.subr.mxu0 0.0
  %924 = vmatpush2.msra.mxu0 0.0
  %925 = vmatprep.subr.mxu0 0.0
  %926 = vmatpush2.msra.mxu0 0.0
  %927 = vmatprep.subr.mxu0 0.0
  %928 = vmatpush2.msra.mxu0 0.0
  %929 = vmatprep.subr.mxu0 0.0
  %930 = vmatpush2.msra.mxu0 0.0
  %931 = vmatprep.subr.mxu0 0.0
  %932 = vmatpush2.msra.mxu0 0.0
  %933 = vmatprep.subr.mxu0 0.0
  %934 = vmatpush2.msra.mxu0 0.0
  %935 = vmatprep.subr.mxu0 0.0
  %936 = vmatpush2.msra.mxu0 0.0
  %937 = vmatprep.subr.mxu0 0.0
  %938 = vmatpush2.msra.mxu0 0.0
  %939 = vmatprep.subr.mxu0 0.0
  %940 = vmatpush2.msra.mxu0 0.0
  %941 = vmatprep.subr.mxu0 0.0
  %942 = vmatpush2.msra.mxu0 0.0
  %943 = vmatprep.subr.mxu0 0.0
  %944 = vmatpush2.msra.mxu0 0.0
  %945 = vmatprep.subr.mxu0 0.0
  %946 = vmatpush2.msra.mxu0 0.0
  %947 = vmatprep.subr.mxu0 0.0
  %948 = vmatpush2.msra.mxu0 0.0
  %949 = vmatprep.subr.mxu0 0.0
  %950 = vmatpush2.msra.mxu0 0.0
  %951 = vmatprep.subr.mxu0 0.0
  %952 = vmatpush2.msra.mxu0 0.0
  %953 = vmatprep.mubr.f32.mxu0 0.0
  %954 = vmatmul.mubr.f32.gmra.mxu0 %v674
  %v955 = vpop.f32.mrf.mxu0
  %v956 = vadd.f32 %v454, %v955
  %v957 = vpop.f32.mrf.mxu0
  %v958 = vadd.f32 %v458, %v957
  %959 = vdwg.mxu0
  %960 = vmatprep.subr.mxu0 0.0
  %961 = vmatpush1.msra.mxu0 0.0
  %962 = vmatprep.subr.mxu0 0.0
  %963 = vmatpush1.msra.mxu0 0.0
  %964 = vmatprep.subr.mxu0 0.0
  %965 = vmatpush1.msra.mxu0 0.0
  %966 = vmatprep.subr.mxu0 0.0
  %967 = vmatpush1.msra.mxu0 0.0
  %968 = vmatprep.subr.mxu0 0.0
  %969 = vmatpush1.msra.mxu0 0.0
  %970 = vmatprep.subr.mxu0 0.0
  %971 = vmatpush1.msra.mxu0 0.0
  %972 = vmatprep.subr.mxu0 0.0
  %973 = vmatpush1.msra.mxu0 0.0
  %974 = vmatprep.subr.mxu0 0.0
  %975 = vmatpush1.msra.mxu0 0.0
  %976 = vmatprep.subr.mxu0 %v373
  %977 = vmatpush1.msra.mxu0 %v372
  %978 = vmatprep.subr.mxu0 %v324
  %979 = vmatpush1.msra.mxu0 %v323
  %980 = vmatprep.subr.mxu0 %v275
  %981 = vmatpush1.msra.mxu0 %v274
  %982 = vmatprep.subr.mxu0 %v226
  %983 = vmatpush1.msra.mxu0 %v225
  %984 = vmatprep.subr.mxu0 %v177
  %985 = vmatpush1.msra.mxu0 %v176
  %986 = vmatprep.subr.mxu0 %v128
  %987 = vmatpush1.msra.mxu0 %v127
  %988 = vmatprep.subr.mxu0 %v79
  %989 = vmatpush1.msra.mxu0 %v78
  %990 = vmatprep.subr.mxu0 %v30
  %991 = vmatpush1.msra.mxu0 %v29
  %992 = vmatprep.subr.mxu0 0.0
  %993 = vmatpush2.msra.mxu0 0.0
  %994 = vmatprep.subr.mxu0 0.0
  %995 = vmatpush2.msra.mxu0 0.0
  %996 = vmatprep.subr.mxu0 0.0
  %997 = vmatpush2.msra.mxu0 0.0
  %998 = vmatprep.subr.mxu0 0.0
  %999 = vmatpush2.msra.mxu0 0.0
  %1000 = vmatprep.subr.mxu0 0.0
  %1001 = vmatpush2.msra.mxu0 0.0
  %1002 = vmatprep.subr.mxu0 0.0
  %1003 = vmatpush2.msra.mxu0 0.0
  %1004 = vmatprep.subr.mxu0 0.0
  %1005 = vmatpush2.msra.mxu0 0.0
  %1006 = vmatprep.subr.mxu0 0.0
  %1007 = vmatpush2.msra.mxu0 0.0
  %1008 = vmatprep.subr.mxu0 0.0
  %1009 = vmatpush2.msra.mxu0 0.0
  %1010 = vmatprep.subr.mxu0 0.0
  %1011 = vmatpush2.msra.mxu0 0.0
  %1012 = vmatprep.subr.mxu0 0.0
  %1013 = vmatpush2.msra.mxu0 0.0
  %1014 = vmatprep.subr.mxu0 0.0
  %1015 = vmatpush2.msra.mxu0 0.0
  %1016 = vmatprep.subr.mxu0 0.0
  %1017 = vmatpush2.msra.mxu0 0.0
  %1018 = vmatprep.subr.mxu0 0.0
  %1019 = vmatpush2.msra.mxu0 0.0
  %1020 = vmatprep.subr.mxu0 0.0
  %1021 = vmatpush2.msra.mxu0 0.0
  %1022 = vmatprep.subr.mxu0 0.0
  %1023 = vmatpush2.msra.mxu0 0.0
  %1024 = vmatprep.mubr.f32.mxu0 0.0
  %1025 = vmatmul.mubr.f32.gmra.mxu0 %v674
  %v1026 = vpop.f32.mrf.mxu0
  %v1027 = vadd.f32 %v462, %v1026
  %v1028 = vpop.f32.mrf.mxu0
  %v1029 = vadd.f32 %v466, %v1028
  %1030 = vdwg.mxu0
  %1031 = vmatprep.subr.mxu0 0.0
  %1032 = vmatpush1.msra.mxu0 0.0
  %1033 = vmatprep.subr.mxu0 0.0
  %1034 = vmatpush1.msra.mxu0 0.0
  %1035 = vmatprep.subr.mxu0 0.0
  %1036 = vmatpush1.msra.mxu0 0.0
  %1037 = vmatprep.subr.mxu0 0.0
  %1038 = vmatpush1.msra.mxu0 0.0
  %1039 = vmatprep.subr.mxu0 0.0
  %1040 = vmatpush1.msra.mxu0 0.0
  %1041 = vmatprep.subr.mxu0 0.0
  %1042 = vmatpush1.msra.mxu0 0.0
  %1043 = vmatprep.subr.mxu0 0.0
  %1044 = vmatpush1.msra.mxu0 0.0
  %1045 = vmatprep.subr.mxu0 0.0
  %1046 = vmatpush1.msra.mxu0 0.0
  %1047 = vmatprep.subr.mxu0 %v375
  %1048 = vmatpush1.msra.mxu0 %v374
  %1049 = vmatprep.subr.mxu0 %v326
  %1050 = vmatpush1.msra.mxu0 %v325
  %1051 = vmatprep.subr.mxu0 %v277
  %1052 = vmatpush1.msra.mxu0 %v276
  %1053 = vmatprep.subr.mxu0 %v228
  %1054 = vmatpush1.msra.mxu0 %v227
  %1055 = vmatprep.subr.mxu0 %v179
  %1056 = vmatpush1.msra.mxu0 %v178
  %1057 = vmatprep.subr.mxu0 %v130
  %1058 = vmatpush1.msra.mxu0 %v129
  %1059 = vmatprep.subr.mxu0 %v81
  %1060 = vmatpush1.msra.mxu0 %v80
  %1061 = vmatprep.subr.mxu0 %v32
  %1062 = vmatpush1.msra.mxu0 %v31
  %1063 = vmatprep.subr.mxu0 0.0
  %1064 = vmatpush2.msra.mxu0 0.0
  %1065 = vmatprep.subr.mxu0 0.0
  %1066 = vmatpush2.msra.mxu0 0.0
  %1067 = vmatprep.subr.mxu0 0.0
  %1068 = vmatpush2.msra.mxu0 0.0
  %1069 = vmatprep.subr.mxu0 0.0
  %1070 = vmatpush2.msra.mxu0 0.0
  %1071 = vmatprep.subr.mxu0 0.0
  %1072 = vmatpush2.msra.mxu0 0.0
  %1073 = vmatprep.subr.mxu0 0.0
  %1074 = vmatpush2.msra.mxu0 0.0
  %1075 = vmatprep.subr.mxu0 0.0
  %1076 = vmatpush2.msra.mxu0 0.0
  %1077 = vmatprep.subr.mxu0 0.0
  %1078 = vmatpush2.msra.mxu0 0.0
  %1079 = vmatprep.subr.mxu0 0.0
  %1080 = vmatpush2.msra.mxu0 0.0
  %1081 = vmatprep.subr.mxu0 0.0
  %1082 = vmatpush2.msra.mxu0 0.0
  %1083 = vmatprep.subr.mxu0 0.0
  %1084 = vmatpush2.msra.mxu0 0.0
  %1085 = vmatprep.subr.mxu0 0.0
  %1086 = vmatpush2.msra.mxu0 0.0
  %1087 = vmatprep.subr.mxu0 0.0
  %1088 = vmatpush2.msra.mxu0 0.0
  %1089 = vmatprep.subr.mxu0 0.0
  %1090 = vmatpush2.msra.mxu0 0.0
  %1091 = vmatprep.subr.mxu0 0.0
  %1092 = vmatpush2.msra.mxu0 0.0
  %1093 = vmatprep.subr.mxu0 0.0
  %1094 = vmatpush2.msra.mxu0 0.0
  %1095 = vmatprep.mubr.f32.mxu0 0.0
  %1096 = vmatmul.mubr.f32.gmra.mxu0 %v674
  %v1097 = vpop.f32.mrf.mxu0
  %v1098 = vadd.f32 %v470, %v1097
  %v1099 = vpop.f32.mrf.mxu0
  %v1100 = vadd.f32 %v474, %v1099
  %1101 = vdwg.mxu0
  %1102 = vmatprep.subr.mxu0 0.0
  %1103 = vmatpush1.msra.mxu0 0.0
  %1104 = vmatprep.subr.mxu0 0.0
  %1105 = vmatpush1.msra.mxu0 0.0
  %1106 = vmatprep.subr.mxu0 0.0
  %1107 = vmatpush1.msra.mxu0 0.0
  %1108 = vmatprep.subr.mxu0 0.0
  %1109 = vmatpush1.msra.mxu0 0.0
  %1110 = vmatprep.subr.mxu0 0.0
  %1111 = vmatpush1.msra.mxu0 0.0
  %1112 = vmatprep.subr.mxu0 0.0
  %1113 = vmatpush1.msra.mxu0 0.0
  %1114 = vmatprep.subr.mxu0 0.0
  %1115 = vmatpush1.msra.mxu0 0.0
  %1116 = vmatprep.subr.mxu0 0.0
  %1117 = vmatpush1.msra.mxu0 0.0
  %1118 = vmatprep.subr.mxu0 %v377
  %1119 = vmatpush1.msra.mxu0 %v376
  %1120 = vmatprep.subr.mxu0 %v328
  %1121 = vmatpush1.msra.mxu0 %v327
  %1122 = vmatprep.subr.mxu0 %v279
  %1123 = vmatpush1.msra.mxu0 %v278
  %1124 = vmatprep.subr.mxu0 %v230
  %1125 = vmatpush1.msra.mxu0 %v229
  %1126 = vmatprep.subr.mxu0 %v181
  %1127 = vmatpush1.msra.mxu0 %v180
  %1128 = vmatprep.subr.mxu0 %v132
  %1129 = vmatpush1.msra.mxu0 %v131
  %1130 = vmatprep.subr.mxu0 %v83
  %1131 = vmatpush1.msra.mxu0 %v82
  %1132 = vmatprep.subr.mxu0 %v34
  %1133 = vmatpush1.msra.mxu0 %v33
  %1134 = vmatprep.subr.mxu0 0.0
  %1135 = vmatpush2.msra.mxu0 0.0
  %1136 = vmatprep.subr.mxu0 0.0
  %1137 = vmatpush2.msra.mxu0 0.0
  %1138 = vmatprep.subr.mxu0 0.0
  %1139 = vmatpush2.msra.mxu0 0.0
  %1140 = vmatprep.subr.mxu0 0.0
  %1141 = vmatpush2.msra.mxu0 0.0
  %1142 = vmatprep.subr.mxu0 0.0
  %1143 = vmatpush2.msra.mxu0 0.0
  %1144 = vmatprep.subr.mxu0 0.0
  %1145 = vmatpush2.msra.mxu0 0.0
  %1146 = vmatprep.subr.mxu0 0.0
  %1147 = vmatpush2.msra.mxu0 0.0
  %1148 = vmatprep.subr.mxu0 0.0
  %1149 = vmatpush2.msra.mxu0 0.0
  %1150 = vmatprep.subr.mxu0 0.0
  %1151 = vmatpush2.msra.mxu0 0.0
  %1152 = vmatprep.subr.mxu0 0.0
  %1153 = vmatpush2.msra.mxu0 0.0
  %1154 = vmatprep.subr.mxu0 0.0
  %1155 = vmatpush2.msra.mxu0 0.0
  %1156 = vmatprep.subr.mxu0 0.0
  %1157 = vmatpush2.msra.mxu0 0.0
  %1158 = vmatprep.subr.mxu0 0.0
  %1159 = vmatpush2.msra.mxu0 0.0
  %1160 = vmatprep.subr.mxu0 0.0
  %1161 = vmatpush2.msra.mxu0 0.0
  %1162 = vmatprep.subr.mxu0 0.0
  %1163 = vmatpush2.msra.mxu0 0.0
  %1164 = vmatprep.subr.mxu0 0.0
  %1165 = vmatpush2.msra.mxu0 0.0
  %1166 = vmatprep.mubr.f32.mxu0 0.0
  %1167 = vmatmul.mubr.f32.gmra.mxu0 %v674
  %v1168 = vpop.f32.mrf.mxu0
  %v1169 = vadd.f32 %v478, %v1168
  %v1170 = vpop.f32.mrf.mxu0
  %v1171 = vadd.f32 %v482, %v1170
  %1172 = vdwg.mxu0
  %1173 = vmatprep.subr.mxu0 0.0
  %1174 = vmatpush1.msra.mxu0 0.0
  %1175 = vmatprep.subr.mxu0 0.0
  %1176 = vmatpush1.msra.mxu0 0.0
  %1177 = vmatprep.subr.mxu0 0.0
  %1178 = vmatpush1.msra.mxu0 0.0
  %1179 = vmatprep.subr.mxu0 0.0
  %1180 = vmatpush1.msra.mxu0 0.0
  %1181 = vmatprep.subr.mxu0 0.0
  %1182 = vmatpush1.msra.mxu0 0.0
  %1183 = vmatprep.subr.mxu0 0.0
  %1184 = vmatpush1.msra.mxu0 0.0
  %1185 = vmatprep.subr.mxu0 0.0
  %1186 = vmatpush1.msra.mxu0 0.0
  %1187 = vmatprep.subr.mxu0 0.0
  %1188 = vmatpush1.msra.mxu0 0.0
  %1189 = vmatprep.subr.mxu0 %v379
  %1190 = vmatpush1.msra.mxu0 %v378
  %1191 = vmatprep.subr.mxu0 %v330
  %1192 = vmatpush1.msra.mxu0 %v329
  %1193 = vmatprep.subr.mxu0 %v281
  %1194 = vmatpush1.msra.mxu0 %v280
  %1195 = vmatprep.subr.mxu0 %v232
  %1196 = vmatpush1.msra.mxu0 %v231
  %1197 = vmatprep.subr.mxu0 %v183
  %1198 = vmatpush1.msra.mxu0 %v182
  %1199 = vmatprep.subr.mxu0 %v134
  %1200 = vmatpush1.msra.mxu0 %v133
  %1201 = vmatprep.subr.mxu0 %v85
  %1202 = vmatpush1.msra.mxu0 %v84
  %1203 = vmatprep.subr.mxu0 %v36
  %1204 = vmatpush1.msra.mxu0 %v35
  %1205 = vmatprep.subr.mxu0 0.0
  %1206 = vmatpush2.msra.mxu0 0.0
  %1207 = vmatprep.subr.mxu0 0.0
  %1208 = vmatpush2.msra.mxu0 0.0
  %1209 = vmatprep.subr.mxu0 0.0
  %1210 = vmatpush2.msra.mxu0 0.0
  %1211 = vmatprep.subr.mxu0 0.0
  %1212 = vmatpush2.msra.mxu0 0.0
  %1213 = vmatprep.subr.mxu0 0.0
  %1214 = vmatpush2.msra.mxu0 0.0
  %1215 = vmatprep.subr.mxu0 0.0
  %1216 = vmatpush2.msra.mxu0 0.0
  %1217 = vmatprep.subr.mxu0 0.0
  %1218 = vmatpush2.msra.mxu0 0.0
  %1219 = vmatprep.subr.mxu0 0.0
  %1220 = vmatpush2.msra.mxu0 0.0
  %1221 = vmatprep.subr.mxu0 0.0
  %1222 = vmatpush2.msra.mxu0 0.0
  %1223 = vmatprep.subr.mxu0 0.0
  %1224 = vmatpush2.msra.mxu0 0.0
  %1225 = vmatprep.subr.mxu0 0.0
  %1226 = vmatpush2.msra.mxu0 0.0
  %1227 = vmatprep.subr.mxu0 0.0
  %1228 = vmatpush2.msra.mxu0 0.0
  %1229 = vmatprep.subr.mxu0 0.0
  %1230 = vmatpush2.msra.mxu0 0.0
  %1231 = vmatprep.subr.mxu0 0.0
  %1232 = vmatpush2.msra.mxu0 0.0
  %1233 = vmatprep.subr.mxu0 0.0
  %1234 = vmatpush2.msra.mxu0 0.0
  %1235 = vmatprep.subr.mxu0 0.0
  %1236 = vmatpush2.msra.mxu0 0.0
  %1237 = vmatprep.mubr.f32.mxu0 0.0
  %1238 = vmatmul.mubr.f32.gmra.mxu0 %v674
  %v1239 = vpop.f32.mrf.mxu0
  %v1240 = vadd.f32 %v486, %v1239
  %v1241 = vpop.f32.mrf.mxu0
  %v1242 = vadd.f32 %v490, %v1241
  %1243 = vdwg.mxu0
  %1244 = vmatprep.subr.mxu0 0.0
  %1245 = vmatpush1.msra.mxu0 0.0
  %1246 = vmatprep.subr.mxu0 0.0
  %1247 = vmatpush1.msra.mxu0 0.0
  %1248 = vmatprep.subr.mxu0 0.0
  %1249 = vmatpush1.msra.mxu0 0.0
  %1250 = vmatprep.subr.mxu0 0.0
  %1251 = vmatpush1.msra.mxu0 0.0
  %1252 = vmatprep.subr.mxu0 0.0
  %1253 = vmatpush1.msra.mxu0 0.0
  %1254 = vmatprep.subr.mxu0 0.0
  %1255 = vmatpush1.msra.mxu0 0.0
  %1256 = vmatprep.subr.mxu0 0.0
  %1257 = vmatpush1.msra.mxu0 0.0
  %1258 = vmatprep.subr.mxu0 0.0
  %1259 = vmatpush1.msra.mxu0 0.0
  %1260 = vmatprep.subr.mxu0 %v381
  %1261 = vmatpush1.msra.mxu0 %v380
  %1262 = vmatprep.subr.mxu0 %v332
  %1263 = vmatpush1.msra.mxu0 %v331
  %1264 = vmatprep.subr.mxu0 %v283
  %1265 = vmatpush1.msra.mxu0 %v282
  %1266 = vmatprep.subr.mxu0 %v234
  %1267 = vmatpush1.msra.mxu0 %v233
  %1268 = vmatprep.subr.mxu0 %v185
  %1269 = vmatpush1.msra.mxu0 %v184
  %1270 = vmatprep.subr.mxu0 %v136
  %1271 = vmatpush1.msra.mxu0 %v135
  %1272 = vmatprep.subr.mxu0 %v87
  %1273 = vmatpush1.msra.mxu0 %v86
  %1274 = vmatprep.subr.mxu0 %v38
  %1275 = vmatpush1.msra.mxu0 %v37
  %1276 = vmatprep.subr.mxu0 0.0
  %1277 = vmatpush2.msra.mxu0 0.0
  %1278 = vmatprep.subr.mxu0 0.0
  %1279 = vmatpush2.msra.mxu0 0.0
  %1280 = vmatprep.subr.mxu0 0.0
  %1281 = vmatpush2.msra.mxu0 0.0
  %1282 = vmatprep.subr.mxu0 0.0
  %1283 = vmatpush2.msra.mxu0 0.0
  %1284 = vmatprep.subr.mxu0 0.0
  %1285 = vmatpush2.msra.mxu0 0.0
  %1286 = vmatprep.subr.mxu0 0.0
  %1287 = vmatpush2.msra.mxu0 0.0
  %1288 = vmatprep.subr.mxu0 0.0
  %1289 = vmatpush2.msra.mxu0 0.0
  %1290 = vmatprep.subr.mxu0 0.0
  %1291 = vmatpush2.msra.mxu0 0.0
  %1292 = vmatprep.subr.mxu0 0.0
  %1293 = vmatpush2.msra.mxu0 0.0
  %1294 = vmatprep.subr.mxu0 0.0
  %1295 = vmatpush2.msra.mxu0 0.0
  %1296 = vmatprep.subr.mxu0 0.0
  %1297 = vmatpush2.msra.mxu0 0.0
  %1298 = vmatprep.subr.mxu0 0.0
  %1299 = vmatpush2.msra.mxu0 0.0
  %1300 = vmatprep.subr.mxu0 0.0
  %1301 = vmatpush2.msra.mxu0 0.0
  %1302 = vmatprep.subr.mxu0 0.0
  %1303 = vmatpush2.msra.mxu0 0.0
  %1304 = vmatprep.subr.mxu0 0.0
  %1305 = vmatpush2.msra.mxu0 0.0
  %1306 = vmatprep.subr.mxu0 0.0
  %1307 = vmatpush2.msra.mxu0 0.0
  %1308 = vmatprep.mubr.f32.mxu0 0.0
  %1309 = vmatmul.mubr.f32.gmra.mxu0 %v674
  %v1310 = vpop.f32.mrf.mxu0
  %v1311 = vadd.f32 %v494, %v1310
  %v1312 = vpop.f32.mrf.mxu0
  %v1313 = vadd.f32 %v498, %v1312
  %1314 = vdwg.mxu0
  %1315 = vmatprep.subr.mxu0 0.0
  %1316 = vmatpush1.msra.mxu0 0.0
  %1317 = vmatprep.subr.mxu0 0.0
  %1318 = vmatpush1.msra.mxu0 0.0
  %1319 = vmatprep.subr.mxu0 0.0
  %1320 = vmatpush1.msra.mxu0 0.0
  %1321 = vmatprep.subr.mxu0 0.0
  %1322 = vmatpush1.msra.mxu0 0.0
  %1323 = vmatprep.subr.mxu0 0.0
  %1324 = vmatpush1.msra.mxu0 0.0
  %1325 = vmatprep.subr.mxu0 0.0
  %1326 = vmatpush1.msra.mxu0 0.0
  %1327 = vmatprep.subr.mxu0 0.0
  %1328 = vmatpush1.msra.mxu0 0.0
  %1329 = vmatprep.subr.mxu0 0.0
  %1330 = vmatpush1.msra.mxu0 0.0
  %1331 = vmatprep.subr.mxu0 %v383
  %1332 = vmatpush1.msra.mxu0 %v382
  %1333 = vmatprep.subr.mxu0 %v334
  %1334 = vmatpush1.msra.mxu0 %v333
  %1335 = vmatprep.subr.mxu0 %v285
  %1336 = vmatpush1.msra.mxu0 %v284
  %1337 = vmatprep.subr.mxu0 %v236
  %1338 = vmatpush1.msra.mxu0 %v235
  %1339 = vmatprep.subr.mxu0 %v187
  %1340 = vmatpush1.msra.mxu0 %v186
  %1341 = vmatprep.subr.mxu0 %v138
  %1342 = vmatpush1.msra.mxu0 %v137
  %1343 = vmatprep.subr.mxu0 %v89
  %1344 = vmatpush1.msra.mxu0 %v88
  %1345 = vmatprep.subr.mxu0 %v40
  %1346 = vmatpush1.msra.mxu0 %v39
  %1347 = vmatprep.subr.mxu0 0.0
  %1348 = vmatpush2.msra.mxu0 0.0
  %1349 = vmatprep.subr.mxu0 0.0
  %1350 = vmatpush2.msra.mxu0 0.0
  %1351 = vmatprep.subr.mxu0 0.0
  %1352 = vmatpush2.msra.mxu0 0.0
  %1353 = vmatprep.subr.mxu0 0.0
  %1354 = vmatpush2.msra.mxu0 0.0
  %1355 = vmatprep.subr.mxu0 0.0
  %1356 = vmatpush2.msra.mxu0 0.0
  %1357 = vmatprep.subr.mxu0 0.0
  %1358 = vmatpush2.msra.mxu0 0.0
  %1359 = vmatprep.subr.mxu0 0.0
  %1360 = vmatpush2.msra.mxu0 0.0
  %1361 = vmatprep.subr.mxu0 0.0
  %1362 = vmatpush2.msra.mxu0 0.0
  %1363 = vmatprep.subr.mxu0 0.0
  %1364 = vmatpush2.msra.mxu0 0.0
  %1365 = vmatprep.subr.mxu0 0.0
  %1366 = vmatpush2.msra.mxu0 0.0
  %1367 = vmatprep.subr.mxu0 0.0
  %1368 = vmatpush2.msra.mxu0 0.0
  %1369 = vmatprep.subr.mxu0 0.0
  %1370 = vmatpush2.msra.mxu0 0.0
  %1371 = vmatprep.subr.mxu0 0.0
  %1372 = vmatpush2.msra.mxu0 0.0
  %1373 = vmatprep.subr.mxu0 0.0
  %1374 = vmatpush2.msra.mxu0 0.0
  %1375 = vmatprep.subr.mxu0 0.0
  %1376 = vmatpush2.msra.mxu0 0.0
  %1377 = vmatprep.subr.mxu0 0.0
  %1378 = vmatpush2.msra.mxu0 0.0
  %1379 = vmatprep.mubr.f32.mxu0 0.0
  %1380 = vmatmul.mubr.f32.gmra.mxu0 %v674
  %v1381 = vpop.f32.mrf.mxu0
  %v1382 = vadd.f32 %v502, %v1381
  %v1383 = vpop.f32.mrf.mxu0
  %v1384 = vadd.f32 %v506, %v1383
  %1385 = vdwg.mxu0
  %1386 = vmatprep.subr.mxu0 0.0
  %1387 = vmatpush1.msra.mxu0 0.0
  %1388 = vmatprep.subr.mxu0 0.0
  %1389 = vmatpush1.msra.mxu0 0.0
  %1390 = vmatprep.subr.mxu0 0.0
  %1391 = vmatpush1.msra.mxu0 0.0
  %1392 = vmatprep.subr.mxu0 0.0
  %1393 = vmatpush1.msra.mxu0 0.0
  %1394 = vmatprep.subr.mxu0 0.0
  %1395 = vmatpush1.msra.mxu0 0.0
  %1396 = vmatprep.subr.mxu0 0.0
  %1397 = vmatpush1.msra.mxu0 0.0
  %1398 = vmatprep.subr.mxu0 0.0
  %1399 = vmatpush1.msra.mxu0 0.0
  %1400 = vmatprep.subr.mxu0 0.0
  %1401 = vmatpush1.msra.mxu0 0.0
  %1402 = vmatprep.subr.mxu0 %v385
  %1403 = vmatpush1.msra.mxu0 %v384
  %1404 = vmatprep.subr.mxu0 %v336
  %1405 = vmatpush1.msra.mxu0 %v335
  %1406 = vmatprep.subr.mxu0 %v287
  %1407 = vmatpush1.msra.mxu0 %v286
  %1408 = vmatprep.subr.mxu0 %v238
  %1409 = vmatpush1.msra.mxu0 %v237
  %1410 = vmatprep.subr.mxu0 %v189
  %1411 = vmatpush1.msra.mxu0 %v188
  %1412 = vmatprep.subr.mxu0 %v140
  %1413 = vmatpush1.msra.mxu0 %v139
  %1414 = vmatprep.subr.mxu0 %v91
  %1415 = vmatpush1.msra.mxu0 %v90
  %1416 = vmatprep.subr.mxu0 %v42
  %1417 = vmatpush1.msra.mxu0 %v41
  %1418 = vmatprep.subr.mxu0 0.0
  %1419 = vmatpush2.msra.mxu0 0.0
  %1420 = vmatprep.subr.mxu0 0.0
  %1421 = vmatpush2.msra.mxu0 0.0
  %1422 = vmatprep.subr.mxu0 0.0
  %1423 = vmatpush2.msra.mxu0 0.0
  %1424 = vmatprep.subr.mxu0 0.0
  %1425 = vmatpush2.msra.mxu0 0.0
  %1426 = vmatprep.subr.mxu0 0.0
  %1427 = vmatpush2.msra.mxu0 0.0
  %1428 = vmatprep.subr.mxu0 0.0
  %1429 = vmatpush2.msra.mxu0 0.0
  %1430 = vmatprep.subr.mxu0 0.0
  %1431 = vmatpush2.msra.mxu0 0.0
  %1432 = vmatprep.subr.mxu0 0.0
  %1433 = vmatpush2.msra.mxu0 0.0
  %1434 = vmatprep.subr.mxu0 0.0
  %1435 = vmatpush2.msra.mxu0 0.0
  %1436 = vmatprep.subr.mxu0 0.0
  %1437 = vmatpush2.msra.mxu0 0.0
  %1438 = vmatprep.subr.mxu0 0.0
  %1439 = vmatpush2.msra.mxu0 0.0
  %1440 = vmatprep.subr.mxu0 0.0
  %1441 = vmatpush2.msra.mxu0 0.0
  %1442 = vmatprep.subr.mxu0 0.0
  %1443 = vmatpush2.msra.mxu0 0.0
  %1444 = vmatprep.subr.mxu0 0.0
  %1445 = vmatpush2.msra.mxu0 0.0
  %1446 = vmatprep.subr.mxu0 0.0
  %1447 = vmatpush2.msra.mxu0 0.0
  %1448 = vmatprep.subr.mxu0 0.0
  %1449 = vmatpush2.msra.mxu0 0.0
  %1450 = vmatprep.mubr.f32.mxu0 0.0
  %1451 = vmatmul.mubr.f32.gmra.mxu0 %v674
  %v1452 = vpop.f32.mrf.mxu0
  %v1453 = vadd.f32 %v510, %v1452
  %v1454 = vpop.f32.mrf.mxu0
  %v1455 = vadd.f32 %v514, %v1454
  %1456 = vdwg.mxu0
  %1457 = vmatprep.subr.mxu0 0.0
  %1458 = vmatpush1.msra.mxu0 0.0
  %1459 = vmatprep.subr.mxu0 0.0
  %1460 = vmatpush1.msra.mxu0 0.0
  %1461 = vmatprep.subr.mxu0 0.0
  %1462 = vmatpush1.msra.mxu0 0.0
  %1463 = vmatprep.subr.mxu0 0.0
  %1464 = vmatpush1.msra.mxu0 0.0
  %1465 = vmatprep.subr.mxu0 0.0
  %1466 = vmatpush1.msra.mxu0 0.0
  %1467 = vmatprep.subr.mxu0 0.0
  %1468 = vmatpush1.msra.mxu0 0.0
  %1469 = vmatprep.subr.mxu0 0.0
  %1470 = vmatpush1.msra.mxu0 0.0
  %1471 = vmatprep.subr.mxu0 0.0
  %1472 = vmatpush1.msra.mxu0 0.0
  %1473 = vmatprep.subr.mxu0 %v387
  %1474 = vmatpush1.msra.mxu0 %v386
  %1475 = vmatprep.subr.mxu0 %v338
  %1476 = vmatpush1.msra.mxu0 %v337
  %1477 = vmatprep.subr.mxu0 %v289
  %1478 = vmatpush1.msra.mxu0 %v288
  %1479 = vmatprep.subr.mxu0 %v240
  %1480 = vmatpush1.msra.mxu0 %v239
  %1481 = vmatprep.subr.mxu0 %v191
  %1482 = vmatpush1.msra.mxu0 %v190
  %1483 = vmatprep.subr.mxu0 %v142
  %1484 = vmatpush1.msra.mxu0 %v141
  %1485 = vmatprep.subr.mxu0 %v93
  %1486 = vmatpush1.msra.mxu0 %v92
  %1487 = vmatprep.subr.mxu0 %v44
  %1488 = vmatpush1.msra.mxu0 %v43
  %1489 = vmatprep.subr.mxu0 0.0
  %1490 = vmatpush2.msra.mxu0 0.0
  %1491 = vmatprep.subr.mxu0 0.0
  %1492 = vmatpush2.msra.mxu0 0.0
  %1493 = vmatprep.subr.mxu0 0.0
  %1494 = vmatpush2.msra.mxu0 0.0
  %1495 = vmatprep.subr.mxu0 0.0
  %1496 = vmatpush2.msra.mxu0 0.0
  %1497 = vmatprep.subr.mxu0 0.0
  %1498 = vmatpush2.msra.mxu0 0.0
  %1499 = vmatprep.subr.mxu0 0.0
  %1500 = vmatpush2.msra.mxu0 0.0
  %1501 = vmatprep.subr.mxu0 0.0
  %1502 = vmatpush2.msra.mxu0 0.0
  %1503 = vmatprep.subr.mxu0 0.0
  %1504 = vmatpush2.msra.mxu0 0.0
  %1505 = vmatprep.subr.mxu0 0.0
  %1506 = vmatpush2.msra.mxu0 0.0
  %1507 = vmatprep.subr.mxu0 0.0
  %1508 = vmatpush2.msra.mxu0 0.0
  %1509 = vmatprep.subr.mxu0 0.0
  %1510 = vmatpush2.msra.mxu0 0.0
  %1511 = vmatprep.subr.mxu0 0.0
  %1512 = vmatpush2.msra.mxu0 0.0
  %1513 = vmatprep.subr.mxu0 0.0
  %1514 = vmatpush2.msra.mxu0 0.0
  %1515 = vmatprep.subr.mxu0 0.0
  %1516 = vmatpush2.msra.mxu0 0.0
  %1517 = vmatprep.subr.mxu0 0.0
  %1518 = vmatpush2.msra.mxu0 0.0
  %1519 = vmatprep.subr.mxu0 0.0
  %1520 = vmatpush2.msra.mxu0 0.0
  %1521 = vmatprep.mubr.f32.mxu0 0.0
  %1522 = vmatmul.mubr.f32.gmra.mxu0 %v674
  %v1523 = vpop.f32.mrf.mxu0
  %v1524 = vadd.f32 %v518, %v1523
  %v1525 = vpop.f32.mrf.mxu0
  %v1526 = vadd.f32 %v522, %v1525
  %1527 = vdwg.mxu0
  %1528 = vmatprep.subr.mxu0 0.0
  %1529 = vmatpush1.msra.mxu0 0.0
  %1530 = vmatprep.subr.mxu0 0.0
  %1531 = vmatpush1.msra.mxu0 0.0
  %1532 = vmatprep.subr.mxu0 0.0
  %1533 = vmatpush1.msra.mxu0 0.0
  %1534 = vmatprep.subr.mxu0 0.0
  %1535 = vmatpush1.msra.mxu0 0.0
  %1536 = vmatprep.subr.mxu0 0.0
  %1537 = vmatpush1.msra.mxu0 0.0
  %1538 = vmatprep.subr.mxu0 0.0
  %1539 = vmatpush1.msra.mxu0 0.0
  %1540 = vmatprep.subr.mxu0 0.0
  %1541 = vmatpush1.msra.mxu0 0.0
  %1542 = vmatprep.subr.mxu0 0.0
  %1543 = vmatpush1.msra.mxu0 0.0
  %1544 = vmatprep.subr.mxu0 %v389
  %1545 = vmatpush1.msra.mxu0 %v388
  %1546 = vmatprep.subr.mxu0 %v340
  %1547 = vmatpush1.msra.mxu0 %v339
  %1548 = vmatprep.subr.mxu0 %v291
  %1549 = vmatpush1.msra.mxu0 %v290
  %1550 = vmatprep.subr.mxu0 %v242
  %1551 = vmatpush1.msra.mxu0 %v241
  %1552 = vmatprep.subr.mxu0 %v193
  %1553 = vmatpush1.msra.mxu0 %v192
  %1554 = vmatprep.subr.mxu0 %v144
  %1555 = vmatpush1.msra.mxu0 %v143
  %1556 = vmatprep.subr.mxu0 %v95
  %1557 = vmatpush1.msra.mxu0 %v94
  %1558 = vmatprep.subr.mxu0 %v46
  %1559 = vmatpush1.msra.mxu0 %v45
  %1560 = vmatprep.subr.mxu0 0.0
  %1561 = vmatpush2.msra.mxu0 0.0
  %1562 = vmatprep.subr.mxu0 0.0
  %1563 = vmatpush2.msra.mxu0 0.0
  %1564 = vmatprep.subr.mxu0 0.0
  %1565 = vmatpush2.msra.mxu0 0.0
  %1566 = vmatprep.subr.mxu0 0.0
  %1567 = vmatpush2.msra.mxu0 0.0
  %1568 = vmatprep.subr.mxu0 0.0
  %1569 = vmatpush2.msra.mxu0 0.0
  %1570 = vmatprep.subr.mxu0 0.0
  %1571 = vmatpush2.msra.mxu0 0.0
  %1572 = vmatprep.subr.mxu0 0.0
  %1573 = vmatpush2.msra.mxu0 0.0
  %1574 = vmatprep.subr.mxu0 0.0
  %1575 = vmatpush2.msra.mxu0 0.0
  %1576 = vmatprep.subr.mxu0 0.0
  %1577 = vmatpush2.msra.mxu0 0.0
  %1578 = vmatprep.subr.mxu0 0.0
  %1579 = vmatpush2.msra.mxu0 0.0
  %1580 = vmatprep.subr.mxu0 0.0
  %1581 = vmatpush2.msra.mxu0 0.0
  %1582 = vmatprep.subr.mxu0 0.0
  %1583 = vmatpush2.msra.mxu0 0.0
  %1584 = vmatprep.subr.mxu0 0.0
  %1585 = vmatpush2.msra.mxu0 0.0
  %1586 = vmatprep.subr.mxu0 0.0
  %1587 = vmatpush2.msra.mxu0 0.0
  %1588 = vmatprep.subr.mxu0 0.0
  %1589 = vmatpush2.msra.mxu0 0.0
  %1590 = vmatprep.subr.mxu0 0.0
  %1591 = vmatpush2.msra.mxu0 0.0
  %1592 = vmatprep.mubr.f32.mxu0 0.0
  %1593 = vmatmul.mubr.f32.gmra.mxu0 %v674
  %v1594 = vpop.f32.mrf.mxu0
  %v1595 = vadd.f32 %v526, %v1594
  %v1596 = vpop.f32.mrf.mxu0
  %v1597 = vadd.f32 %v530, %v1596
  %1598 = vdwg.mxu0
  %1599 = vmatprep.subr.mxu0 0.0
  %1600 = vmatpush1.msra.mxu0 0.0
  %1601 = vmatprep.subr.mxu0 0.0
  %1602 = vmatpush1.msra.mxu0 0.0
  %1603 = vmatprep.subr.mxu0 0.0
  %1604 = vmatpush1.msra.mxu0 0.0
  %1605 = vmatprep.subr.mxu0 0.0
  %1606 = vmatpush1.msra.mxu0 0.0
  %1607 = vmatprep.subr.mxu0 0.0
  %1608 = vmatpush1.msra.mxu0 0.0
  %1609 = vmatprep.subr.mxu0 0.0
  %1610 = vmatpush1.msra.mxu0 0.0
  %1611 = vmatprep.subr.mxu0 0.0
  %1612 = vmatpush1.msra.mxu0 0.0
  %1613 = vmatprep.subr.mxu0 0.0
  %1614 = vmatpush1.msra.mxu0 0.0
  %1615 = vmatprep.subr.mxu0 %v391
  %1616 = vmatpush1.msra.mxu0 %v390
  %1617 = vmatprep.subr.mxu0 %v342
  %1618 = vmatpush1.msra.mxu0 %v341
  %1619 = vmatprep.subr.mxu0 %v293
  %1620 = vmatpush1.msra.mxu0 %v292
  %1621 = vmatprep.subr.mxu0 %v244
  %1622 = vmatpush1.msra.mxu0 %v243
  %1623 = vmatprep.subr.mxu0 %v195
  %1624 = vmatpush1.msra.mxu0 %v194
  %1625 = vmatprep.subr.mxu0 %v146
  %1626 = vmatpush1.msra.mxu0 %v145
  %1627 = vmatprep.subr.mxu0 %v97
  %1628 = vmatpush1.msra.mxu0 %v96
  %1629 = vmatprep.subr.mxu0 %v48
  %1630 = vmatpush1.msra.mxu0 %v47
  %1631 = vmatprep.subr.mxu0 0.0
  %1632 = vmatpush2.msra.mxu0 0.0
  %1633 = vmatprep.subr.mxu0 0.0
  %1634 = vmatpush2.msra.mxu0 0.0
  %1635 = vmatprep.subr.mxu0 0.0
  %1636 = vmatpush2.msra.mxu0 0.0
  %1637 = vmatprep.subr.mxu0 0.0
  %1638 = vmatpush2.msra.mxu0 0.0
  %1639 = vmatprep.subr.mxu0 0.0
  %1640 = vmatpush2.msra.mxu0 0.0
  %1641 = vmatprep.subr.mxu0 0.0
  %1642 = vmatpush2.msra.mxu0 0.0
  %1643 = vmatprep.subr.mxu0 0.0
  %1644 = vmatpush2.msra.mxu0 0.0
  %1645 = vmatprep.subr.mxu0 0.0
  %1646 = vmatpush2.msra.mxu0 0.0
  %1647 = vmatprep.subr.mxu0 0.0
  %1648 = vmatpush2.msra.mxu0 0.0
  %1649 = vmatprep.subr.mxu0 0.0
  %1650 = vmatpush2.msra.mxu0 0.0
  %1651 = vmatprep.subr.mxu0 0.0
  %1652 = vmatpush2.msra.mxu0 0.0
  %1653 = vmatprep.subr.mxu0 0.0
  %1654 = vmatpush2.msra.mxu0 0.0
  %1655 = vmatprep.subr.mxu0 0.0
  %1656 = vmatpush2.msra.mxu0 0.0
  %1657 = vmatprep.subr.mxu0 0.0
  %1658 = vmatpush2.msra.mxu0 0.0
  %1659 = vmatprep.subr.mxu0 0.0
  %1660 = vmatpush2.msra.mxu0 0.0
  %1661 = vmatprep.subr.mxu0 0.0
  %1662 = vmatpush2.msra.mxu0 0.0
  %1663 = vmatprep.mubr.f32.mxu0 0.0
  %1664 = vmatmul.mubr.f32.gmra.mxu0 %v674
  %v1665 = vpop.f32.mrf.mxu0
  %v1666 = vadd.f32 %v534, %v1665
  %v1667 = vpop.f32.mrf.mxu0
  %v1668 = vadd.f32 %v538, %v1667
  %1669 = vdwg.mxu0
  %1670 = vmatprep.subr.mxu0 0.0
  %1671 = vmatpush1.msra.mxu0 0.0
  %1672 = vmatprep.subr.mxu0 0.0
  %1673 = vmatpush1.msra.mxu0 0.0
  %1674 = vmatprep.subr.mxu0 0.0
  %1675 = vmatpush1.msra.mxu0 0.0
  %1676 = vmatprep.subr.mxu0 0.0
  %1677 = vmatpush1.msra.mxu0 0.0
  %1678 = vmatprep.subr.mxu0 0.0
  %1679 = vmatpush1.msra.mxu0 0.0
  %1680 = vmatprep.subr.mxu0 0.0
  %1681 = vmatpush1.msra.mxu0 0.0
  %1682 = vmatprep.subr.mxu0 0.0
  %1683 = vmatpush1.msra.mxu0 0.0
  %1684 = vmatprep.subr.mxu0 0.0
  %1685 = vmatpush1.msra.mxu0 0.0
  %1686 = vmatprep.subr.mxu0 %v393
  %1687 = vmatpush1.msra.mxu0 %v392
  %1688 = vmatprep.subr.mxu0 %v344
  %1689 = vmatpush1.msra.mxu0 %v343
  %1690 = vmatprep.subr.mxu0 %v295
  %1691 = vmatpush1.msra.mxu0 %v294
  %1692 = vmatprep.subr.mxu0 %v246
  %1693 = vmatpush1.msra.mxu0 %v245
  %1694 = vmatprep.subr.mxu0 %v197
  %1695 = vmatpush1.msra.mxu0 %v196
  %1696 = vmatprep.subr.mxu0 %v148
  %1697 = vmatpush1.msra.mxu0 %v147
  %1698 = vmatprep.subr.mxu0 %v99
  %1699 = vmatpush1.msra.mxu0 %v98
  %1700 = vmatprep.subr.mxu0 %v50
  %1701 = vmatpush1.msra.mxu0 %v49
  %1702 = vmatprep.subr.mxu0 0.0
  %1703 = vmatpush2.msra.mxu0 0.0
  %1704 = vmatprep.subr.mxu0 0.0
  %1705 = vmatpush2.msra.mxu0 0.0
  %1706 = vmatprep.subr.mxu0 0.0
  %1707 = vmatpush2.msra.mxu0 0.0
  %1708 = vmatprep.subr.mxu0 0.0
  %1709 = vmatpush2.msra.mxu0 0.0
  %1710 = vmatprep.subr.mxu0 0.0
  %1711 = vmatpush2.msra.mxu0 0.0
  %1712 = vmatprep.subr.mxu0 0.0
  %1713 = vmatpush2.msra.mxu0 0.0
  %1714 = vmatprep.subr.mxu0 0.0
  %1715 = vmatpush2.msra.mxu0 0.0
  %1716 = vmatprep.subr.mxu0 0.0
  %1717 = vmatpush2.msra.mxu0 0.0
  %1718 = vmatprep.subr.mxu0 0.0
  %1719 = vmatpush2.msra.mxu0 0.0
  %1720 = vmatprep.subr.mxu0 0.0
  %1721 = vmatpush2.msra.mxu0 0.0
  %1722 = vmatprep.subr.mxu0 0.0
  %1723 = vmatpush2.msra.mxu0 0.0
  %1724 = vmatprep.subr.mxu0 0.0
  %1725 = vmatpush2.msra.mxu0 0.0
  %1726 = vmatprep.subr.mxu0 0.0
  %1727 = vmatpush2.msra.mxu0 0.0
  %1728 = vmatprep.subr.mxu0 0.0
  %1729 = vmatpush2.msra.mxu0 0.0
  %1730 = vmatprep.subr.mxu0 0.0
  %1731 = vmatpush2.msra.mxu0 0.0
  %1732 = vmatprep.subr.mxu0 0.0
  %1733 = vmatpush2.msra.mxu0 0.0
  %1734 = vmatprep.mubr.f32.mxu0 0.0
  %1735 = vmatmul.mubr.f32.gmra.mxu0 %v674
  %v1736 = vpop.f32.mrf.mxu0
  %v1737 = vadd.f32 %v542, %v1736
  %v1738 = vpop.f32.mrf.mxu0
  %v1739 = vadd.f32 %v546, %v1738
  %1740 = vdwg.mxu0
  %1741 = vmatprep.subr.mxu0 0.0
  %1742 = vmatpush1.msra.mxu0 0.0
  %1743 = vmatprep.subr.mxu0 0.0
  %1744 = vmatpush1.msra.mxu0 0.0
  %1745 = vmatprep.subr.mxu0 0.0
  %1746 = vmatpush1.msra.mxu0 0.0
  %1747 = vmatprep.subr.mxu0 0.0
  %1748 = vmatpush1.msra.mxu0 0.0
  %1749 = vmatprep.subr.mxu0 0.0
  %1750 = vmatpush1.msra.mxu0 0.0
  %1751 = vmatprep.subr.mxu0 0.0
  %1752 = vmatpush1.msra.mxu0 0.0
  %1753 = vmatprep.subr.mxu0 0.0
  %1754 = vmatpush1.msra.mxu0 0.0
  %1755 = vmatprep.subr.mxu0 0.0
  %1756 = vmatpush1.msra.mxu0 0.0
  %1757 = vmatprep.subr.mxu0 %v395
  %1758 = vmatpush1.msra.mxu0 %v394
  %1759 = vmatprep.subr.mxu0 %v346
  %1760 = vmatpush1.msra.mxu0 %v345
  %1761 = vmatprep.subr.mxu0 %v297
  %1762 = vmatpush1.msra.mxu0 %v296
  %1763 = vmatprep.subr.mxu0 %v248
  %1764 = vmatpush1.msra.mxu0 %v247
  %1765 = vmatprep.subr.mxu0 %v199
  %1766 = vmatpush1.msra.mxu0 %v198
  %1767 = vmatprep.subr.mxu0 %v150
  %1768 = vmatpush1.msra.mxu0 %v149
  %1769 = vmatprep.subr.mxu0 %v101
  %1770 = vmatpush1.msra.mxu0 %v100
  %1771 = vmatprep.subr.mxu0 %v52
  %1772 = vmatpush1.msra.mxu0 %v51
  %1773 = vmatprep.subr.mxu0 0.0
  %1774 = vmatpush2.msra.mxu0 0.0
  %1775 = vmatprep.subr.mxu0 0.0
  %1776 = vmatpush2.msra.mxu0 0.0
  %1777 = vmatprep.subr.mxu0 0.0
  %1778 = vmatpush2.msra.mxu0 0.0
  %1779 = vmatprep.subr.mxu0 0.0
  %1780 = vmatpush2.msra.mxu0 0.0
  %1781 = vmatprep.subr.mxu0 0.0
  %1782 = vmatpush2.msra.mxu0 0.0
  %1783 = vmatprep.subr.mxu0 0.0
  %1784 = vmatpush2.msra.mxu0 0.0
  %1785 = vmatprep.subr.mxu0 0.0
  %1786 = vmatpush2.msra.mxu0 0.0
  %1787 = vmatprep.subr.mxu0 0.0
  %1788 = vmatpush2.msra.mxu0 0.0
  %1789 = vmatprep.subr.mxu0 0.0
  %1790 = vmatpush2.msra.mxu0 0.0
  %1791 = vmatprep.subr.mxu0 0.0
  %1792 = vmatpush2.msra.mxu0 0.0
  %1793 = vmatprep.subr.mxu0 0.0
  %1794 = vmatpush2.msra.mxu0 0.0
  %1795 = vmatprep.subr.mxu0 0.0
  %1796 = vmatpush2.msra.mxu0 0.0
  %1797 = vmatprep.subr.mxu0 0.0
  %1798 = vmatpush2.msra.mxu0 0.0
  %1799 = vmatprep.subr.mxu0 0.0
  %1800 = vmatpush2.msra.mxu0 0.0
  %1801 = vmatprep.subr.mxu0 0.0
  %1802 = vmatpush2.msra.mxu0 0.0
  %1803 = vmatprep.subr.mxu0 0.0
  %1804 = vmatpush2.msra.mxu0 0.0
  %1805 = vmatprep.mubr.f32.mxu0 0.0
  %1806 = vmatmul.mubr.f32.gmra.mxu0 %v674
  %v1807 = vpop.f32.mrf.mxu0
  %v1808 = vadd.f32 %v550, %v1807
  %v1809 = vpop.f32.mrf.mxu0
  %v1810 = vadd.f32 %v554, %v1809
  %1811 = vdwg.mxu0
  %1812 = vmatprep.subr.mxu0 0.0
  %1813 = vmatpush1.msra.mxu0 0.0
  %1814 = vmatprep.subr.mxu0 0.0
  %1815 = vmatpush1.msra.mxu0 0.0
  %1816 = vmatprep.subr.mxu0 0.0
  %1817 = vmatpush1.msra.mxu0 0.0
  %1818 = vmatprep.subr.mxu0 0.0
  %1819 = vmatpush1.msra.mxu0 0.0
  %1820 = vmatprep.subr.mxu0 0.0
  %1821 = vmatpush1.msra.mxu0 0.0
  %1822 = vmatprep.subr.mxu0 0.0
  %1823 = vmatpush1.msra.mxu0 0.0
  %1824 = vmatprep.subr.mxu0 0.0
  %1825 = vmatpush1.msra.mxu0 0.0
  %1826 = vmatprep.subr.mxu0 0.0
  %1827 = vmatpush1.msra.mxu0 0.0
  %1828 = vmatprep.subr.mxu0 %v397
  %1829 = vmatpush1.msra.mxu0 %v396
  %1830 = vmatprep.subr.mxu0 %v348
  %1831 = vmatpush1.msra.mxu0 %v347
  %1832 = vmatprep.subr.mxu0 %v299
  %1833 = vmatpush1.msra.mxu0 %v298
  %1834 = vmatprep.subr.mxu0 %v250
  %1835 = vmatpush1.msra.mxu0 %v249
  %1836 = vmatprep.subr.mxu0 %v201
  %1837 = vmatpush1.msra.mxu0 %v200
  %1838 = vmatprep.subr.mxu0 %v152
  %1839 = vmatpush1.msra.mxu0 %v151
  %1840 = vmatprep.subr.mxu0 %v103
  %1841 = vmatpush1.msra.mxu0 %v102
  %1842 = vmatprep.subr.mxu0 %v54
  %1843 = vmatpush1.msra.mxu0 %v53
  %1844 = vmatprep.subr.mxu0 0.0
  %1845 = vmatpush2.msra.mxu0 0.0
  %1846 = vmatprep.subr.mxu0 0.0
  %1847 = vmatpush2.msra.mxu0 0.0
  %1848 = vmatprep.subr.mxu0 0.0
  %1849 = vmatpush2.msra.mxu0 0.0
  %1850 = vmatprep.subr.mxu0 0.0
  %1851 = vmatpush2.msra.mxu0 0.0
  %1852 = vmatprep.subr.mxu0 0.0
  %1853 = vmatpush2.msra.mxu0 0.0
  %1854 = vmatprep.subr.mxu0 0.0
  %1855 = vmatpush2.msra.mxu0 0.0
  %1856 = vmatprep.subr.mxu0 0.0
  %1857 = vmatpush2.msra.mxu0 0.0
  %1858 = vmatprep.subr.mxu0 0.0
  %1859 = vmatpush2.msra.mxu0 0.0
  %1860 = vmatprep.subr.mxu0 0.0
  %1861 = vmatpush2.msra.mxu0 0.0
  %1862 = vmatprep.subr.mxu0 0.0
  %1863 = vmatpush2.msra.mxu0 0.0
  %1864 = vmatprep.subr.mxu0 0.0
  %1865 = vmatpush2.msra.mxu0 0.0
  %1866 = vmatprep.subr.mxu0 0.0
  %1867 = vmatpush2.msra.mxu0 0.0
  %1868 = vmatprep.subr.mxu0 0.0
  %1869 = vmatpush2.msra.mxu0 0.0
  %1870 = vmatprep.subr.mxu0 0.0
  %1871 = vmatpush2.msra.mxu0 0.0
  %1872 = vmatprep.subr.mxu0 0.0
  %1873 = vmatpush2.msra.mxu0 0.0
  %1874 = vmatprep.subr.mxu0 0.0
  %1875 = vmatpush2.msra.mxu0 0.0
  %1876 = vmatprep.mubr.f32.mxu0 0.0
  %1877 = vmatmul.mubr.f32.gmra.mxu0 %v674
  %v1878 = vpop.f32.mrf.mxu0
  %v1879 = vadd.f32 %v558, %v1878
  %v1880 = vpop.f32.mrf.mxu0
  %v1881 = vadd.f32 %v562, %v1880
  %1882 = vdwg.mxu0
  %1883 = vmatprep.subr.mxu0 0.0
  %1884 = vmatpush1.msra.mxu0 0.0
  %1885 = vmatprep.subr.mxu0 0.0
  %1886 = vmatpush1.msra.mxu0 0.0
  %1887 = vmatprep.subr.mxu0 0.0
  %1888 = vmatpush1.msra.mxu0 0.0
  %1889 = vmatprep.subr.mxu0 0.0
  %1890 = vmatpush1.msra.mxu0 0.0
  %1891 = vmatprep.subr.mxu0 0.0
  %1892 = vmatpush1.msra.mxu0 0.0
  %1893 = vmatprep.subr.mxu0 0.0
  %1894 = vmatpush1.msra.mxu0 0.0
  %1895 = vmatprep.subr.mxu0 0.0
  %1896 = vmatpush1.msra.mxu0 0.0
  %1897 = vmatprep.subr.mxu0 0.0
  %1898 = vmatpush1.msra.mxu0 0.0
  %1899 = vmatprep.subr.mxu0 %v399
  %1900 = vmatpush1.msra.mxu0 %v398
  %1901 = vmatprep.subr.mxu0 %v350
  %1902 = vmatpush1.msra.mxu0 %v349
  %1903 = vmatprep.subr.mxu0 %v301
  %1904 = vmatpush1.msra.mxu0 %v300
  %1905 = vmatprep.subr.mxu0 %v252
  %1906 = vmatpush1.msra.mxu0 %v251
  %1907 = vmatprep.subr.mxu0 %v203
  %1908 = vmatpush1.msra.mxu0 %v202
  %1909 = vmatprep.subr.mxu0 %v154
  %1910 = vmatpush1.msra.mxu0 %v153
  %1911 = vmatprep.subr.mxu0 %v105
  %1912 = vmatpush1.msra.mxu0 %v104
  %1913 = vmatprep.subr.mxu0 %v56
  %1914 = vmatpush1.msra.mxu0 %v55
  %1915 = vmatprep.subr.mxu0 0.0
  %1916 = vmatpush2.msra.mxu0 0.0
  %1917 = vmatprep.subr.mxu0 0.0
  %1918 = vmatpush2.msra.mxu0 0.0
  %1919 = vmatprep.subr.mxu0 0.0
  %1920 = vmatpush2.msra.mxu0 0.0
  %1921 = vmatprep.subr.mxu0 0.0
  %1922 = vmatpush2.msra.mxu0 0.0
  %1923 = vmatprep.subr.mxu0 0.0
  %1924 = vmatpush2.msra.mxu0 0.0
  %1925 = vmatprep.subr.mxu0 0.0
  %1926 = vmatpush2.msra.mxu0 0.0
  %1927 = vmatprep.subr.mxu0 0.0
  %1928 = vmatpush2.msra.mxu0 0.0
  %1929 = vmatprep.subr.mxu0 0.0
  %1930 = vmatpush2.msra.mxu0 0.0
  %1931 = vmatprep.subr.mxu0 0.0
  %1932 = vmatpush2.msra.mxu0 0.0
  %1933 = vmatprep.subr.mxu0 0.0
  %1934 = vmatpush2.msra.mxu0 0.0
  %1935 = vmatprep.subr.mxu0 0.0
  %1936 = vmatpush2.msra.mxu0 0.0
  %1937 = vmatprep.subr.mxu0 0.0
  %1938 = vmatpush2.msra.mxu0 0.0
  %1939 = vmatprep.subr.mxu0 0.0
  %1940 = vmatpush2.msra.mxu0 0.0
  %1941 = vmatprep.subr.mxu0 0.0
  %1942 = vmatpush2.msra.mxu0 0.0
  %1943 = vmatprep.subr.mxu0 0.0
  %1944 = vmatpush2.msra.mxu0 0.0
  %1945 = vmatprep.subr.mxu0 0.0
  %1946 = vmatpush2.msra.mxu0 0.0
  %1947 = vmatprep.mubr.f32.mxu0 0.0
  %1948 = vmatmul.mubr.f32.gmra.mxu0 %v674
  %v1949 = vpop.f32.mrf.mxu0
  %v1950 = vadd.f32 %v566, %v1949
  %v1951 = vpop.f32.mrf.mxu0
  %v1952 = vadd.f32 %v570, %v1951
  %1953 = vdwg.mxu0
  %1954 = vmatprep.subr.mxu0 0.0
  %1955 = vmatpush1.msra.mxu0 0.0
  %1956 = vmatprep.subr.mxu0 0.0
  %1957 = vmatpush1.msra.mxu0 0.0
  %1958 = vmatprep.subr.mxu0 0.0
  %1959 = vmatpush1.msra.mxu0 0.0
  %1960 = vmatprep.subr.mxu0 0.0
  %1961 = vmatpush1.msra.mxu0 0.0
  %1962 = vmatprep.subr.mxu0 0.0
  %1963 = vmatpush1.msra.mxu0 0.0
  %1964 = vmatprep.subr.mxu0 0.0
  %1965 = vmatpush1.msra.mxu0 0.0
  %1966 = vmatprep.subr.mxu0 0.0
  %1967 = vmatpush1.msra.mxu0 0.0
  %1968 = vmatprep.subr.mxu0 0.0
  %1969 = vmatpush1.msra.mxu0 0.0
  %1970 = vmatprep.subr.mxu0 %v401
  %1971 = vmatpush1.msra.mxu0 %v400
  %1972 = vmatprep.subr.mxu0 %v352
  %1973 = vmatpush1.msra.mxu0 %v351
  %1974 = vmatprep.subr.mxu0 %v303
  %1975 = vmatpush1.msra.mxu0 %v302
  %1976 = vmatprep.subr.mxu0 %v254
  %1977 = vmatpush1.msra.mxu0 %v253
  %1978 = vmatprep.subr.mxu0 %v205
  %1979 = vmatpush1.msra.mxu0 %v204
  %1980 = vmatprep.subr.mxu0 %v156
  %1981 = vmatpush1.msra.mxu0 %v155
  %1982 = vmatprep.subr.mxu0 %v107
  %1983 = vmatpush1.msra.mxu0 %v106
  %1984 = vmatprep.subr.mxu0 %v58
  %1985 = vmatpush1.msra.mxu0 %v57
  %1986 = vmatprep.subr.mxu0 0.0
  %1987 = vmatpush2.msra.mxu0 0.0
  %1988 = vmatprep.subr.mxu0 0.0
  %1989 = vmatpush2.msra.mxu0 0.0
  %1990 = vmatprep.subr.mxu0 0.0
  %1991 = vmatpush2.msra.mxu0 0.0
  %1992 = vmatprep.subr.mxu0 0.0
  %1993 = vmatpush2.msra.mxu0 0.0
  %1994 = vmatprep.subr.mxu0 0.0
  %1995 = vmatpush2.msra.mxu0 0.0
  %1996 = vmatprep.subr.mxu0 0.0
  %1997 = vmatpush2.msra.mxu0 0.0
  %1998 = vmatprep.subr.mxu0 0.0
  %1999 = vmatpush2.msra.mxu0 0.0
  %2000 = vmatprep.subr.mxu0 0.0
  %2001 = vmatpush2.msra.mxu0 0.0
  %2002 = vmatprep.subr.mxu0 0.0
  %2003 = vmatpush2.msra.mxu0 0.0
  %2004 = vmatprep.subr.mxu0 0.0
  %2005 = vmatpush2.msra.mxu0 0.0
  %2006 = vmatprep.subr.mxu0 0.0
  %2007 = vmatpush2.msra.mxu0 0.0
  %2008 = vmatprep.subr.mxu0 0.0
  %2009 = vmatpush2.msra.mxu0 0.0
  %2010 = vmatprep.subr.mxu0 0.0
  %2011 = vmatpush2.msra.mxu0 0.0
  %2012 = vmatprep.subr.mxu0 0.0
  %2013 = vmatpush2.msra.mxu0 0.0
  %2014 = vmatprep.subr.mxu0 0.0
  %2015 = vmatpush2.msra.mxu0 0.0
  %2016 = vmatprep.subr.mxu0 0.0
  %2017 = vmatpush2.msra.mxu0 0.0
  %2018 = vmatprep.mubr.f32.mxu0 0.0
  %2019 = vmatmul.mubr.f32.gmra.mxu0 %v674
  %v2020 = vpop.f32.mrf.mxu0
  %v2021 = vadd.f32 %v574, %v2020
  %v2022 = vpop.f32.mrf.mxu0
  %v2023 = vadd.f32 %v578, %v2022
  %2024 = vdwg.mxu0
  %2025 = vmatprep.subr.mxu0 0.0
  %2026 = vmatpush1.msra.mxu0 0.0
  %2027 = vmatprep.subr.mxu0 0.0
  %2028 = vmatpush1.msra.mxu0 0.0
  %2029 = vmatprep.subr.mxu0 0.0
  %2030 = vmatpush1.msra.mxu0 0.0
  %2031 = vmatprep.subr.mxu0 0.0
  %2032 = vmatpush1.msra.mxu0 0.0
  %2033 = vmatprep.subr.mxu0 0.0
  %2034 = vmatpush1.msra.mxu0 0.0
  %2035 = vmatprep.subr.mxu0 0.0
  %2036 = vmatpush1.msra.mxu0 0.0
  %2037 = vmatprep.subr.mxu0 0.0
  %2038 = vmatpush1.msra.mxu0 0.0
  %2039 = vmatprep.subr.mxu0 0.0
  %2040 = vmatpush1.msra.mxu0 0.0
  %2041 = vmatprep.subr.mxu0 %v403
  %2042 = vmatpush1.msra.mxu0 %v402
  %2043 = vmatprep.subr.mxu0 %v354
  %2044 = vmatpush1.msra.mxu0 %v353
  %2045 = vmatprep.subr.mxu0 %v305
  %2046 = vmatpush1.msra.mxu0 %v304
  %2047 = vmatprep.subr.mxu0 %v256
  %2048 = vmatpush1.msra.mxu0 %v255
  %2049 = vmatprep.subr.mxu0 %v207
  %2050 = vmatpush1.msra.mxu0 %v206
  %2051 = vmatprep.subr.mxu0 %v158
  %2052 = vmatpush1.msra.mxu0 %v157
  %2053 = vmatprep.subr.mxu0 %v109
  %2054 = vmatpush1.msra.mxu0 %v108
  %2055 = vmatprep.subr.mxu0 %v60
  %2056 = vmatpush1.msra.mxu0 %v59
  %2057 = vmatprep.subr.mxu0 0.0
  %2058 = vmatpush2.msra.mxu0 0.0
  %2059 = vmatprep.subr.mxu0 0.0
  %2060 = vmatpush2.msra.mxu0 0.0
  %2061 = vmatprep.subr.mxu0 0.0
  %2062 = vmatpush2.msra.mxu0 0.0
  %2063 = vmatprep.subr.mxu0 0.0
  %2064 = vmatpush2.msra.mxu0 0.0
  %2065 = vmatprep.subr.mxu0 0.0
  %2066 = vmatpush2.msra.mxu0 0.0
  %2067 = vmatprep.subr.mxu0 0.0
  %2068 = vmatpush2.msra.mxu0 0.0
  %2069 = vmatprep.subr.mxu0 0.0
  %2070 = vmatpush2.msra.mxu0 0.0
  %2071 = vmatprep.subr.mxu0 0.0
  %2072 = vmatpush2.msra.mxu0 0.0
  %2073 = vmatprep.subr.mxu0 0.0
  %2074 = vmatpush2.msra.mxu0 0.0
  %2075 = vmatprep.subr.mxu0 0.0
  %2076 = vmatpush2.msra.mxu0 0.0
  %2077 = vmatprep.subr.mxu0 0.0
  %2078 = vmatpush2.msra.mxu0 0.0
  %2079 = vmatprep.subr.mxu0 0.0
  %2080 = vmatpush2.msra.mxu0 0.0
  %2081 = vmatprep.subr.mxu0 0.0
  %2082 = vmatpush2.msra.mxu0 0.0
  %2083 = vmatprep.subr.mxu0 0.0
  %2084 = vmatpush2.msra.mxu0 0.0
  %2085 = vmatprep.subr.mxu0 0.0
  %2086 = vmatpush2.msra.mxu0 0.0
  %2087 = vmatprep.subr.mxu0 0.0
  %2088 = vmatpush2.msra.mxu0 0.0
  %2089 = vmatprep.mubr.f32.mxu0 0.0
  %2090 = vmatmul.mubr.f32.gmra.mxu0 %v674
  %v2091 = vpop.f32.mrf.mxu0
  %v2092 = vadd.f32 %v582, %v2091
  %v2093 = vpop.f32.mrf.mxu0
  %v2094 = vadd.f32 %v586, %v2093
  %2095 = vdwg.mxu0
  %2096 = vmatprep.subr.mxu0 0.0
  %2097 = vmatpush1.msra.mxu0 0.0
  %2098 = vmatprep.subr.mxu0 0.0
  %2099 = vmatpush1.msra.mxu0 0.0
  %2100 = vmatprep.subr.mxu0 0.0
  %2101 = vmatpush1.msra.mxu0 0.0
  %2102 = vmatprep.subr.mxu0 0.0
  %2103 = vmatpush1.msra.mxu0 0.0
  %2104 = vmatprep.subr.mxu0 0.0
  %2105 = vmatpush1.msra.mxu0 0.0
  %2106 = vmatprep.subr.mxu0 0.0
  %2107 = vmatpush1.msra.mxu0 0.0
  %2108 = vmatprep.subr.mxu0 0.0
  %2109 = vmatpush1.msra.mxu0 0.0
  %2110 = vmatprep.subr.mxu0 0.0
  %2111 = vmatpush1.msra.mxu0 0.0
  %2112 = vmatprep.subr.mxu0 %v405
  %2113 = vmatpush1.msra.mxu0 %v404
  %2114 = vmatprep.subr.mxu0 %v356
  %2115 = vmatpush1.msra.mxu0 %v355
  %2116 = vmatprep.subr.mxu0 %v307
  %2117 = vmatpush1.msra.mxu0 %v306
  %2118 = vmatprep.subr.mxu0 %v258
  %2119 = vmatpush1.msra.mxu0 %v257
  %2120 = vmatprep.subr.mxu0 %v209
  %2121 = vmatpush1.msra.mxu0 %v208
  %2122 = vmatprep.subr.mxu0 %v160
  %2123 = vmatpush1.msra.mxu0 %v159
  %2124 = vmatprep.subr.mxu0 %v111
  %2125 = vmatpush1.msra.mxu0 %v110
  %2126 = vmatprep.subr.mxu0 %v62
  %2127 = vmatpush1.msra.mxu0 %v61
  %2128 = vmatprep.subr.mxu0 0.0
  %2129 = vmatpush2.msra.mxu0 0.0
  %2130 = vmatprep.subr.mxu0 0.0
  %2131 = vmatpush2.msra.mxu0 0.0
  %2132 = vmatprep.subr.mxu0 0.0
  %2133 = vmatpush2.msra.mxu0 0.0
  %2134 = vmatprep.subr.mxu0 0.0
  %2135 = vmatpush2.msra.mxu0 0.0
  %2136 = vmatprep.subr.mxu0 0.0
  %2137 = vmatpush2.msra.mxu0 0.0
  %2138 = vmatprep.subr.mxu0 0.0
  %2139 = vmatpush2.msra.mxu0 0.0
  %2140 = vmatprep.subr.mxu0 0.0
  %2141 = vmatpush2.msra.mxu0 0.0
  %2142 = vmatprep.subr.mxu0 0.0
  %2143 = vmatpush2.msra.mxu0 0.0
  %2144 = vmatprep.subr.mxu0 0.0
  %2145 = vmatpush2.msra.mxu0 0.0
  %2146 = vmatprep.subr.mxu0 0.0
  %2147 = vmatpush2.msra.mxu0 0.0
  %2148 = vmatprep.subr.mxu0 0.0
  %2149 = vmatpush2.msra.mxu0 0.0
  %2150 = vmatprep.subr.mxu0 0.0
  %2151 = vmatpush2.msra.mxu0 0.0
  %2152 = vmatprep.subr.mxu0 0.0
  %2153 = vmatpush2.msra.mxu0 0.0
  %2154 = vmatprep.subr.mxu0 0.0
  %2155 = vmatpush2.msra.mxu0 0.0
  %2156 = vmatprep.subr.mxu0 0.0
  %2157 = vmatpush2.msra.mxu0 0.0
  %2158 = vmatprep.subr.mxu0 0.0
  %2159 = vmatpush2.msra.mxu0 0.0
  %2160 = vmatprep.mubr.f32.mxu0 0.0
  %2161 = vmatmul.mubr.f32.gmra.mxu0 %v674
  %v2162 = vpop.f32.mrf.mxu0
  %v2163 = vadd.f32 %v590, %v2162
  %v2164 = vpop.f32.mrf.mxu0
  %v2165 = vadd.f32 %v594, %v2164
  %2166 = vdwg.mxu0
  %2167 = vmatprep.subr.mxu0 0.0
  %2168 = vmatpush1.msra.mxu0 0.0
  %2169 = vmatprep.subr.mxu0 0.0
  %2170 = vmatpush1.msra.mxu0 0.0
  %2171 = vmatprep.subr.mxu0 0.0
  %2172 = vmatpush1.msra.mxu0 0.0
  %2173 = vmatprep.subr.mxu0 0.0
  %2174 = vmatpush1.msra.mxu0 0.0
  %2175 = vmatprep.subr.mxu0 0.0
  %2176 = vmatpush1.msra.mxu0 0.0
  %2177 = vmatprep.subr.mxu0 0.0
  %2178 = vmatpush1.msra.mxu0 0.0
  %2179 = vmatprep.subr.mxu0 0.0
  %2180 = vmatpush1.msra.mxu0 0.0
  %2181 = vmatprep.subr.mxu0 0.0
  %2182 = vmatpush1.msra.mxu0 0.0
  %2183 = vmatprep.subr.mxu0 %v407
  %2184 = vmatpush1.msra.mxu0 %v406
  %2185 = vmatprep.subr.mxu0 %v358
  %2186 = vmatpush1.msra.mxu0 %v357
  %2187 = vmatprep.subr.mxu0 %v309
  %2188 = vmatpush1.msra.mxu0 %v308
  %2189 = vmatprep.subr.mxu0 %v260
  %2190 = vmatpush1.msra.mxu0 %v259
  %2191 = vmatprep.subr.mxu0 %v211
  %2192 = vmatpush1.msra.mxu0 %v210
  %2193 = vmatprep.subr.mxu0 %v162
  %2194 = vmatpush1.msra.mxu0 %v161
  %2195 = vmatprep.subr.mxu0 %v113
  %2196 = vmatpush1.msra.mxu0 %v112
  %2197 = vmatprep.subr.mxu0 %v64
  %2198 = vmatpush1.msra.mxu0 %v63
  %2199 = vmatprep.subr.mxu0 0.0
  %2200 = vmatpush2.msra.mxu0 0.0
  %2201 = vmatprep.subr.mxu0 0.0
  %2202 = vmatpush2.msra.mxu0 0.0
  %2203 = vmatprep.subr.mxu0 0.0
  %2204 = vmatpush2.msra.mxu0 0.0
  %2205 = vmatprep.subr.mxu0 0.0
  %2206 = vmatpush2.msra.mxu0 0.0
  %2207 = vmatprep.subr.mxu0 0.0
  %2208 = vmatpush2.msra.mxu0 0.0
  %2209 = vmatprep.subr.mxu0 0.0
  %2210 = vmatpush2.msra.mxu0 0.0
  %2211 = vmatprep.subr.mxu0 0.0
  %2212 = vmatpush2.msra.mxu0 0.0
  %2213 = vmatprep.subr.mxu0 0.0
  %2214 = vmatpush2.msra.mxu0 0.0
  %2215 = vmatprep.subr.mxu0 0.0
  %2216 = vmatpush2.msra.mxu0 0.0
  %2217 = vmatprep.subr.mxu0 0.0
  %2218 = vmatpush2.msra.mxu0 0.0
  %2219 = vmatprep.subr.mxu0 0.0
  %2220 = vmatpush2.msra.mxu0 0.0
  %2221 = vmatprep.subr.mxu0 0.0
  %2222 = vmatpush2.msra.mxu0 0.0
  %2223 = vmatprep.subr.mxu0 0.0
  %2224 = vmatpush2.msra.mxu0 0.0
  %2225 = vmatprep.subr.mxu0 0.0
  %2226 = vmatpush2.msra.mxu0 0.0
  %2227 = vmatprep.subr.mxu0 0.0
  %2228 = vmatpush2.msra.mxu0 0.0
  %2229 = vmatprep.subr.mxu0 0.0
  %2230 = vmatpush2.msra.mxu0 0.0
  %2231 = vmatprep.mubr.f32.mxu0 0.0
  %2232 = vmatmul.mubr.f32.gmra.mxu0 %v674
  %v2233 = vpop.f32.mrf.mxu0
  %v2234 = vadd.f32 %v598, %v2233
  %v2235 = vpop.f32.mrf.mxu0
  %v2236 = vadd.f32 %v602, %v2235
  %2237 = vdwg.mxu0
  %2238 = vmatprep.subr.mxu0 0.0
  %2239 = vmatpush1.msra.mxu0 0.0
  %2240 = vmatprep.subr.mxu0 0.0
  %2241 = vmatpush1.msra.mxu0 0.0
  %2242 = vmatprep.subr.mxu0 0.0
  %2243 = vmatpush1.msra.mxu0 0.0
  %2244 = vmatprep.subr.mxu0 0.0
  %2245 = vmatpush1.msra.mxu0 0.0
  %2246 = vmatprep.subr.mxu0 0.0
  %2247 = vmatpush1.msra.mxu0 0.0
  %2248 = vmatprep.subr.mxu0 0.0
  %2249 = vmatpush1.msra.mxu0 0.0
  %2250 = vmatprep.subr.mxu0 0.0
  %2251 = vmatpush1.msra.mxu0 0.0
  %2252 = vmatprep.subr.mxu0 0.0
  %2253 = vmatpush1.msra.mxu0 0.0
  %2254 = vmatprep.subr.mxu0 %v409
  %2255 = vmatpush1.msra.mxu0 %v408
  %2256 = vmatprep.subr.mxu0 %v360
  %2257 = vmatpush1.msra.mxu0 %v359
  %2258 = vmatprep.subr.mxu0 %v311
  %2259 = vmatpush1.msra.mxu0 %v310
  %2260 = vmatprep.subr.mxu0 %v262
  %2261 = vmatpush1.msra.mxu0 %v261
  %2262 = vmatprep.subr.mxu0 %v213
  %2263 = vmatpush1.msra.mxu0 %v212
  %2264 = vmatprep.subr.mxu0 %v164
  %2265 = vmatpush1.msra.mxu0 %v163
  %2266 = vmatprep.subr.mxu0 %v115
  %2267 = vmatpush1.msra.mxu0 %v114
  %2268 = vmatprep.subr.mxu0 %v66
  %2269 = vmatpush1.msra.mxu0 %v65
  %2270 = vmatprep.subr.mxu0 0.0
  %2271 = vmatpush2.msra.mxu0 0.0
  %2272 = vmatprep.subr.mxu0 0.0
  %2273 = vmatpush2.msra.mxu0 0.0
  %2274 = vmatprep.subr.mxu0 0.0
  %2275 = vmatpush2.msra.mxu0 0.0
  %2276 = vmatprep.subr.mxu0 0.0
  %2277 = vmatpush2.msra.mxu0 0.0
  %2278 = vmatprep.subr.mxu0 0.0
  %2279 = vmatpush2.msra.mxu0 0.0
  %2280 = vmatprep.subr.mxu0 0.0
  %2281 = vmatpush2.msra.mxu0 0.0
  %2282 = vmatprep.subr.mxu0 0.0
  %2283 = vmatpush2.msra.mxu0 0.0
  %2284 = vmatprep.subr.mxu0 0.0
  %2285 = vmatpush2.msra.mxu0 0.0
  %2286 = vmatprep.subr.mxu0 0.0
  %2287 = vmatpush2.msra.mxu0 0.0
  %2288 = vmatprep.subr.mxu0 0.0
  %2289 = vmatpush2.msra.mxu0 0.0
  %2290 = vmatprep.subr.mxu0 0.0
  %2291 = vmatpush2.msra.mxu0 0.0
  %2292 = vmatprep.subr.mxu0 0.0
  %2293 = vmatpush2.msra.mxu0 0.0
  %2294 = vmatprep.subr.mxu0 0.0
  %2295 = vmatpush2.msra.mxu0 0.0
  %2296 = vmatprep.subr.mxu0 0.0
  %2297 = vmatpush2.msra.mxu0 0.0
  %2298 = vmatprep.subr.mxu0 0.0
  %2299 = vmatpush2.msra.mxu0 0.0
  %2300 = vmatprep.subr.mxu0 0.0
  %2301 = vmatpush2.msra.mxu0 0.0
  %2302 = vmatprep.mubr.f32.mxu0 0.0
  %2303 = vmatmul.mubr.f32.gmra.mxu0 %v674
  %v2304 = vpop.f32.mrf.mxu0
  %v2305 = vadd.f32 %v606, %v2304
  %v2306 = vpop.f32.mrf.mxu0
  %v2307 = vadd.f32 %v610, %v2306
  %2308 = vdwg.mxu0
  %2309 = vmatprep.subr.mxu0 0.0
  %2310 = vmatpush1.msra.mxu0 0.0
  %2311 = vmatprep.subr.mxu0 0.0
  %2312 = vmatpush1.msra.mxu0 0.0
  %2313 = vmatprep.subr.mxu0 0.0
  %2314 = vmatpush1.msra.mxu0 0.0
  %2315 = vmatprep.subr.mxu0 0.0
  %2316 = vmatpush1.msra.mxu0 0.0
  %2317 = vmatprep.subr.mxu0 0.0
  %2318 = vmatpush1.msra.mxu0 0.0
  %2319 = vmatprep.subr.mxu0 0.0
  %2320 = vmatpush1.msra.mxu0 0.0
  %2321 = vmatprep.subr.mxu0 0.0
  %2322 = vmatpush1.msra.mxu0 0.0
  %2323 = vmatprep.subr.mxu0 0.0
  %2324 = vmatpush1.msra.mxu0 0.0
  %2325 = vmatprep.subr.mxu0 %v411
  %2326 = vmatpush1.msra.mxu0 %v410
  %2327 = vmatprep.subr.mxu0 %v362
  %2328 = vmatpush1.msra.mxu0 %v361
  %2329 = vmatprep.subr.mxu0 %v313
  %2330 = vmatpush1.msra.mxu0 %v312
  %2331 = vmatprep.subr.mxu0 %v264
  %2332 = vmatpush1.msra.mxu0 %v263
  %2333 = vmatprep.subr.mxu0 %v215
  %2334 = vmatpush1.msra.mxu0 %v214
  %2335 = vmatprep.subr.mxu0 %v166
  %2336 = vmatpush1.msra.mxu0 %v165
  %2337 = vmatprep.subr.mxu0 %v117
  %2338 = vmatpush1.msra.mxu0 %v116
  %2339 = vmatprep.subr.mxu0 %v68
  %2340 = vmatpush1.msra.mxu0 %v67
  %2341 = vmatprep.subr.mxu0 0.0
  %2342 = vmatpush2.msra.mxu0 0.0
  %2343 = vmatprep.subr.mxu0 0.0
  %2344 = vmatpush2.msra.mxu0 0.0
  %2345 = vmatprep.subr.mxu0 0.0
  %2346 = vmatpush2.msra.mxu0 0.0
  %2347 = vmatprep.subr.mxu0 0.0
  %2348 = vmatpush2.msra.mxu0 0.0
  %2349 = vmatprep.subr.mxu0 0.0
  %2350 = vmatpush2.msra.mxu0 0.0
  %2351 = vmatprep.subr.mxu0 0.0
  %2352 = vmatpush2.msra.mxu0 0.0
  %2353 = vmatprep.subr.mxu0 0.0
  %2354 = vmatpush2.msra.mxu0 0.0
  %2355 = vmatprep.subr.mxu0 0.0
  %2356 = vmatpush2.msra.mxu0 0.0
  %2357 = vmatprep.subr.mxu0 0.0
  %2358 = vmatpush2.msra.mxu0 0.0
  %2359 = vmatprep.subr.mxu0 0.0
  %2360 = vmatpush2.msra.mxu0 0.0
  %2361 = vmatprep.subr.mxu0 0.0
  %2362 = vmatpush2.msra.mxu0 0.0
  %2363 = vmatprep.subr.mxu0 0.0
  %2364 = vmatpush2.msra.mxu0 0.0
  %2365 = vmatprep.subr.mxu0 0.0
  %2366 = vmatpush2.msra.mxu0 0.0
  %2367 = vmatprep.subr.mxu0 0.0
  %2368 = vmatpush2.msra.mxu0 0.0
  %2369 = vmatprep.subr.mxu0 0.0
  %2370 = vmatpush2.msra.mxu0 0.0
  %2371 = vmatprep.subr.mxu0 0.0
  %2372 = vmatpush2.msra.mxu0 0.0
  %2373 = vmatprep.mubr.f32.mxu0 0.0
  %2374 = vmatmul.mubr.f32.gmra.mxu0 %v674
  %v2375 = vpop.f32.mrf.mxu0
  %v2376 = vadd.f32 %v614, %v2375
  %v2377 = vpop.f32.mrf.mxu0
  %v2378 = vadd.f32 %v618, %v2377
  %2379 = vdwg.mxu0
  %2380 = vmatprep.subr.mxu0 0.0
  %2381 = vmatpush1.msra.mxu0 0.0
  %2382 = vmatprep.subr.mxu0 0.0
  %2383 = vmatpush1.msra.mxu0 0.0
  %2384 = vmatprep.subr.mxu0 0.0
  %2385 = vmatpush1.msra.mxu0 0.0
  %2386 = vmatprep.subr.mxu0 0.0
  %2387 = vmatpush1.msra.mxu0 0.0
  %2388 = vmatprep.subr.mxu0 0.0
  %2389 = vmatpush1.msra.mxu0 0.0
  %2390 = vmatprep.subr.mxu0 0.0
  %2391 = vmatpush1.msra.mxu0 0.0
  %2392 = vmatprep.subr.mxu0 0.0
  %2393 = vmatpush1.msra.mxu0 0.0
  %2394 = vmatprep.subr.mxu0 0.0
  %2395 = vmatpush1.msra.mxu0 0.0
  %2396 = vmatprep.subr.mxu0 0.0
  %2397 = vmatpush1.msra.mxu0 %v412
  %2398 = vmatprep.subr.mxu0 0.0
  %2399 = vmatpush1.msra.mxu0 %v363
  %2400 = vmatprep.subr.mxu0 0.0
  %2401 = vmatpush1.msra.mxu0 %v314
  %2402 = vmatprep.subr.mxu0 0.0
  %2403 = vmatpush1.msra.mxu0 %v265
  %2404 = vmatprep.subr.mxu0 0.0
  %2405 = vmatpush1.msra.mxu0 %v216
  %2406 = vmatprep.subr.mxu0 0.0
  %2407 = vmatpush1.msra.mxu0 %v167
  %2408 = vmatprep.subr.mxu0 0.0
  %2409 = vmatpush1.msra.mxu0 %v118
  %2410 = vmatprep.subr.mxu0 0.0
  %2411 = vmatpush1.msra.mxu0 %v69
  %2412 = vmatprep.subr.mxu0 0.0
  %2413 = vmatpush2.msra.mxu0 0.0
  %2414 = vmatprep.subr.mxu0 0.0
  %2415 = vmatpush2.msra.mxu0 0.0
  %2416 = vmatprep.subr.mxu0 0.0
  %2417 = vmatpush2.msra.mxu0 0.0
  %2418 = vmatprep.subr.mxu0 0.0
  %2419 = vmatpush2.msra.mxu0 0.0
  %2420 = vmatprep.subr.mxu0 0.0
  %2421 = vmatpush2.msra.mxu0 0.0
  %2422 = vmatprep.subr.mxu0 0.0
  %2423 = vmatpush2.msra.mxu0 0.0
  %2424 = vmatprep.subr.mxu0 0.0
  %2425 = vmatpush2.msra.mxu0 0.0
  %2426 = vmatprep.subr.mxu0 0.0
  %2427 = vmatpush2.msra.mxu0 0.0
  %2428 = vmatprep.subr.mxu0 0.0
  %2429 = vmatpush2.msra.mxu0 0.0
  %2430 = vmatprep.subr.mxu0 0.0
  %2431 = vmatpush2.msra.mxu0 0.0
  %2432 = vmatprep.subr.mxu0 0.0
  %2433 = vmatpush2.msra.mxu0 0.0
  %2434 = vmatprep.subr.mxu0 0.0
  %2435 = vmatpush2.msra.mxu0 0.0
  %2436 = vmatprep.subr.mxu0 0.0
  %2437 = vmatpush2.msra.mxu0 0.0
  %2438 = vmatprep.subr.mxu0 0.0
  %2439 = vmatpush2.msra.mxu0 0.0
  %2440 = vmatprep.subr.mxu0 0.0
  %2441 = vmatpush2.msra.mxu0 0.0
  %2442 = vmatprep.subr.mxu0 0.0
  %2443 = vmatpush2.msra.mxu0 0.0
  %2444 = vmatprep.mubr.f32.mxu0 0.0
  %2445 = vmatmul.mubr.f32.gmra.mxu0 %v674
  %v2446 = vpop.f32.mrf.mxu0
  %v2447 = vadd.f32 %v622, %v2446
  %v2448 = vpop.f32.mrf.mxu0
  %2449 = vdwg.mxu0
  %vm2450 = vcmask 1043456
  %v2451 = vsel %vm2450, %v743, 0.0
  %v2452 = vrot.slane %v2451, 4
  %v2453 = vadd.f32 %v2451, %v2452
  %v2454 = vrot.slane %v2453, 2
  %v2455 = vadd.f32 %v2453, %v2454
  %v2456 = vrot.slane %v2455, 1
  %v2457 = vadd.f32 %v2455, %v2456
  %v2458 = vsel %vm2450, %v745, 0.0
  %v2459 = vrot.slane %v2458, 4
  %v2460 = vadd.f32 %v2458, %v2459
  %v2461 = vrot.slane %v2460, 2
  %v2462 = vadd.f32 %v2460, %v2461
  %v2463 = vrot.slane %v2462, 1
  %v2464 = vadd.f32 %v2462, %v2463
  %v2465 = vsel %vm2450, %v814, 0.0
  %v2466 = vrot.slane %v2465, 4
  %v2467 = vadd.f32 %v2465, %v2466
  %v2468 = vrot.slane %v2467, 2
  %v2469 = vadd.f32 %v2467, %v2468
  %v2470 = vrot.slane %v2469, 1
  %v2471 = vadd.f32 %v2469, %v2470
  %v2472 = vsel %vm2450, %v816, 0.0
  %v2473 = vrot.slane %v2472, 4
  %v2474 = vadd.f32 %v2472, %v2473
  %v2475 = vrot.slane %v2474, 2
  %v2476 = vadd.f32 %v2474, %v2475
  %v2477 = vrot.slane %v2476, 1
  %v2478 = vadd.f32 %v2476, %v2477
  %v2479 = vsel %vm2450, %v885, 0.0
  %v2480 = vrot.slane %v2479, 4
  %v2481 = vadd.f32 %v2479, %v2480
  %v2482 = vrot.slane %v2481, 2
  %v2483 = vadd.f32 %v2481, %v2482
  %v2484 = vrot.slane %v2483, 1
  %v2485 = vadd.f32 %v2483, %v2484
  %v2486 = vsel %vm2450, %v887, 0.0
  %v2487 = vrot.slane %v2486, 4
  %v2488 = vadd.f32 %v2486, %v2487
  %v2489 = vrot.slane %v2488, 2
  %v2490 = vadd.f32 %v2488, %v2489
  %v2491 = vrot.slane %v2490, 1
  %v2492 = vadd.f32 %v2490, %v2491
  %v2493 = vsel %vm2450, %v956, 0.0
  %v2494 = vrot.slane %v2493, 4
  %v2495 = vadd.f32 %v2493, %v2494
  %v2496 = vrot.slane %v2495, 2
  %v2497 = vadd.f32 %v2495, %v2496
  %v2498 = vrot.slane %v2497, 1
  %v2499 = vadd.f32 %v2497, %v2498
  %v2500 = vsel %vm2450, %v958, 0.0
  %v2501 = vrot.slane %v2500, 4
  %v2502 = vadd.f32 %v2500, %v2501
  %v2503 = vrot.slane %v2502, 2
  %v2504 = vadd.f32 %v2502, %v2503
  %v2505 = vrot.slane %v2504, 1
  %v2506 = vadd.f32 %v2504, %v2505
  %v2507 = vsel %vm2450, %v1027, 0.0
  %v2508 = vrot.slane %v2507, 4
  %v2509 = vadd.f32 %v2507, %v2508
  %v2510 = vrot.slane %v2509, 2
  %v2511 = vadd.f32 %v2509, %v2510
  %v2512 = vrot.slane %v2511, 1
  %v2513 = vadd.f32 %v2511, %v2512
  %v2514 = vsel %vm2450, %v1029, 0.0
  %v2515 = vrot.slane %v2514, 4
  %v2516 = vadd.f32 %v2514, %v2515
  %v2517 = vrot.slane %v2516, 2
  %v2518 = vadd.f32 %v2516, %v2517
  %v2519 = vrot.slane %v2518, 1
  %v2520 = vadd.f32 %v2518, %v2519
  %v2521 = vsel %vm2450, %v1098, 0.0
  %v2522 = vrot.slane %v2521, 4
  %v2523 = vadd.f32 %v2521, %v2522
  %v2524 = vrot.slane %v2523, 2
  %v2525 = vadd.f32 %v2523, %v2524
  %v2526 = vrot.slane %v2525, 1
  %v2527 = vadd.f32 %v2525, %v2526
  %v2528 = vsel %vm2450, %v1100, 0.0
  %v2529 = vrot.slane %v2528, 4
  %v2530 = vadd.f32 %v2528, %v2529
  %v2531 = vrot.slane %v2530, 2
  %v2532 = vadd.f32 %v2530, %v2531
  %v2533 = vrot.slane %v2532, 1
  %v2534 = vadd.f32 %v2532, %v2533
  %v2535 = vsel %vm2450, %v1169, 0.0
  %v2536 = vrot.slane %v2535, 4
  %v2537 = vadd.f32 %v2535, %v2536
  %v2538 = vrot.slane %v2537, 2
  %v2539 = vadd.f32 %v2537, %v2538
  %v2540 = vrot.slane %v2539, 1
  %v2541 = vadd.f32 %v2539, %v2540
  %v2542 = vsel %vm2450, %v1171, 0.0
  %v2543 = vrot.slane %v2542, 4
  %v2544 = vadd.f32 %v2542, %v2543
  %v2545 = vrot.slane %v2544, 2
  %v2546 = vadd.f32 %v2544, %v2545
  %v2547 = vrot.slane %v2546, 1
  %v2548 = vadd.f32 %v2546, %v2547
  %v2549 = vsel %vm2450, %v1240, 0.0
  %v2550 = vrot.slane %v2549, 4
  %v2551 = vadd.f32 %v2549, %v2550
  %v2552 = vrot.slane %v2551, 2
  %v2553 = vadd.f32 %v2551, %v2552
  %v2554 = vrot.slane %v2553, 1
  %v2555 = vadd.f32 %v2553, %v2554
  %v2556 = vsel %vm2450, %v1242, 0.0
  %v2557 = vrot.slane %v2556, 4
  %v2558 = vadd.f32 %v2556, %v2557
  %v2559 = vrot.slane %v2558, 2
  %v2560 = vadd.f32 %v2558, %v2559
  %v2561 = vrot.slane %v2560, 1
  %v2562 = vadd.f32 %v2560, %v2561
  %v2563 = vsel %vm2450, %v1311, 0.0
  %v2564 = vrot.slane %v2563, 4
  %v2565 = vadd.f32 %v2563, %v2564
  %v2566 = vrot.slane %v2565, 2
  %v2567 = vadd.f32 %v2565, %v2566
  %v2568 = vrot.slane %v2567, 1
  %v2569 = vadd.f32 %v2567, %v2568
  %v2570 = vsel %vm2450, %v1313, 0.0
  %v2571 = vrot.slane %v2570, 4
  %v2572 = vadd.f32 %v2570, %v2571
  %v2573 = vrot.slane %v2572, 2
  %v2574 = vadd.f32 %v2572, %v2573
  %v2575 = vrot.slane %v2574, 1
  %v2576 = vadd.f32 %v2574, %v2575
  %v2577 = vsel %vm2450, %v1382, 0.0
  %v2578 = vrot.slane %v2577, 4
  %v2579 = vadd.f32 %v2577, %v2578
  %v2580 = vrot.slane %v2579, 2
  %v2581 = vadd.f32 %v2579, %v2580
  %v2582 = vrot.slane %v2581, 1
  %v2583 = vadd.f32 %v2581, %v2582
  %v2584 = vsel %vm2450, %v1384, 0.0
  %v2585 = vrot.slane %v2584, 4
  %v2586 = vadd.f32 %v2584, %v2585
  %v2587 = vrot.slane %v2586, 2
  %v2588 = vadd.f32 %v2586, %v2587
  %v2589 = vrot.slane %v2588, 1
  %v2590 = vadd.f32 %v2588, %v2589
  %v2591 = vsel %vm2450, %v1453, 0.0
  %v2592 = vrot.slane %v2591, 4
  %v2593 = vadd.f32 %v2591, %v2592
  %v2594 = vrot.slane %v2593, 2
  %v2595 = vadd.f32 %v2593, %v2594
  %v2596 = vrot.slane %v2595, 1
  %v2597 = vadd.f32 %v2595, %v2596
  %v2598 = vsel %vm2450, %v1455, 0.0
  %v2599 = vrot.slane %v2598, 4
  %v2600 = vadd.f32 %v2598, %v2599
  %v2601 = vrot.slane %v2600, 2
  %v2602 = vadd.f32 %v2600, %v2601
  %v2603 = vrot.slane %v2602, 1
  %v2604 = vadd.f32 %v2602, %v2603
  %v2605 = vsel %vm2450, %v1524, 0.0
  %v2606 = vrot.slane %v2605, 4
  %v2607 = vadd.f32 %v2605, %v2606
  %v2608 = vrot.slane %v2607, 2
  %v2609 = vadd.f32 %v2607, %v2608
  %v2610 = vrot.slane %v2609, 1
  %v2611 = vadd.f32 %v2609, %v2610
  %v2612 = vsel %vm2450, %v1526, 0.0
  %v2613 = vrot.slane %v2612, 4
  %v2614 = vadd.f32 %v2612, %v2613
  %v2615 = vrot.slane %v2614, 2
  %v2616 = vadd.f32 %v2614, %v2615
  %v2617 = vrot.slane %v2616, 1
  %v2618 = vadd.f32 %v2616, %v2617
  %v2619 = vsel %vm2450, %v1595, 0.0
  %v2620 = vrot.slane %v2619, 4
  %v2621 = vadd.f32 %v2619, %v2620
  %v2622 = vrot.slane %v2621, 2
  %v2623 = vadd.f32 %v2621, %v2622
  %v2624 = vrot.slane %v2623, 1
  %v2625 = vadd.f32 %v2623, %v2624
  %v2626 = vsel %vm2450, %v1597, 0.0
  %v2627 = vrot.slane %v2626, 4
  %v2628 = vadd.f32 %v2626, %v2627
  %v2629 = vrot.slane %v2628, 2
  %v2630 = vadd.f32 %v2628, %v2629
  %v2631 = vrot.slane %v2630, 1
  %v2632 = vadd.f32 %v2630, %v2631
  %v2633 = vsel %vm2450, %v1666, 0.0
  %v2634 = vrot.slane %v2633, 4
  %v2635 = vadd.f32 %v2633, %v2634
  %v2636 = vrot.slane %v2635, 2
  %v2637 = vadd.f32 %v2635, %v2636
  %v2638 = vrot.slane %v2637, 1
  %v2639 = vadd.f32 %v2637, %v2638
  %v2640 = vsel %vm2450, %v1668, 0.0
  %v2641 = vrot.slane %v2640, 4
  %v2642 = vadd.f32 %v2640, %v2641
  %v2643 = vrot.slane %v2642, 2
  %v2644 = vadd.f32 %v2642, %v2643
  %v2645 = vrot.slane %v2644, 1
  %v2646 = vadd.f32 %v2644, %v2645
  %v2647 = vsel %vm2450, %v1737, 0.0
  %v2648 = vrot.slane %v2647, 4
  %v2649 = vadd.f32 %v2647, %v2648
  %v2650 = vrot.slane %v2649, 2
  %v2651 = vadd.f32 %v2649, %v2650
  %v2652 = vrot.slane %v2651, 1
  %v2653 = vadd.f32 %v2651, %v2652
  %v2654 = vsel %vm2450, %v1739, 0.0
  %v2655 = vrot.slane %v2654, 4
  %v2656 = vadd.f32 %v2654, %v2655
  %v2657 = vrot.slane %v2656, 2
  %v2658 = vadd.f32 %v2656, %v2657
  %v2659 = vrot.slane %v2658, 1
  %v2660 = vadd.f32 %v2658, %v2659
  %v2661 = vsel %vm2450, %v1808, 0.0
  %v2662 = vrot.slane %v2661, 4
  %v2663 = vadd.f32 %v2661, %v2662
  %v2664 = vrot.slane %v2663, 2
  %v2665 = vadd.f32 %v2663, %v2664
  %v2666 = vrot.slane %v2665, 1
  %v2667 = vadd.f32 %v2665, %v2666
  %v2668 = vsel %vm2450, %v1810, 0.0
  %v2669 = vrot.slane %v2668, 4
  %v2670 = vadd.f32 %v2668, %v2669
  %v2671 = vrot.slane %v2670, 2
  %v2672 = vadd.f32 %v2670, %v2671
  %v2673 = vrot.slane %v2672, 1
  %v2674 = vadd.f32 %v2672, %v2673
  %v2675 = vsel %vm2450, %v1879, 0.0
  %v2676 = vrot.slane %v2675, 4
  %v2677 = vadd.f32 %v2675, %v2676
  %v2678 = vrot.slane %v2677, 2
  %v2679 = vadd.f32 %v2677, %v2678
  %v2680 = vrot.slane %v2679, 1
  %v2681 = vadd.f32 %v2679, %v2680
  %v2682 = vsel %vm2450, %v1881, 0.0
  %v2683 = vrot.slane %v2682, 4
  %v2684 = vadd.f32 %v2682, %v2683
  %v2685 = vrot.slane %v2684, 2
  %v2686 = vadd.f32 %v2684, %v2685
  %v2687 = vrot.slane %v2686, 1
  %v2688 = vadd.f32 %v2686, %v2687
  %v2689 = vsel %vm2450, %v1950, 0.0
  %v2690 = vrot.slane %v2689, 4
  %v2691 = vadd.f32 %v2689, %v2690
  %v2692 = vrot.slane %v2691, 2
  %v2693 = vadd.f32 %v2691, %v2692
  %v2694 = vrot.slane %v2693, 1
  %v2695 = vadd.f32 %v2693, %v2694
  %v2696 = vsel %vm2450, %v1952, 0.0
  %v2697 = vrot.slane %v2696, 4
  %v2698 = vadd.f32 %v2696, %v2697
  %v2699 = vrot.slane %v2698, 2
  %v2700 = vadd.f32 %v2698, %v2699
  %v2701 = vrot.slane %v2700, 1
  %v2702 = vadd.f32 %v2700, %v2701
  %v2703 = vsel %vm2450, %v2021, 0.0
  %v2704 = vrot.slane %v2703, 4
  %v2705 = vadd.f32 %v2703, %v2704
  %v2706 = vrot.slane %v2705, 2
  %v2707 = vadd.f32 %v2705, %v2706
  %v2708 = vrot.slane %v2707, 1
  %v2709 = vadd.f32 %v2707, %v2708
  %v2710 = vsel %vm2450, %v2023, 0.0
  %v2711 = vrot.slane %v2710, 4
  %v2712 = vadd.f32 %v2710, %v2711
  %v2713 = vrot.slane %v2712, 2
  %v2714 = vadd.f32 %v2712, %v2713
  %v2715 = vrot.slane %v2714, 1
  %v2716 = vadd.f32 %v2714, %v2715
  %v2717 = vsel %vm2450, %v2092, 0.0
  %v2718 = vrot.slane %v2717, 4
  %v2719 = vadd.f32 %v2717, %v2718
  %v2720 = vrot.slane %v2719, 2
  %v2721 = vadd.f32 %v2719, %v2720
  %v2722 = vrot.slane %v2721, 1
  %v2723 = vadd.f32 %v2721, %v2722
  %v2724 = vsel %vm2450, %v2094, 0.0
  %v2725 = vrot.slane %v2724, 4
  %v2726 = vadd.f32 %v2724, %v2725
  %v2727 = vrot.slane %v2726, 2
  %v2728 = vadd.f32 %v2726, %v2727
  %v2729 = vrot.slane %v2728, 1
  %v2730 = vadd.f32 %v2728, %v2729
  %v2731 = vsel %vm2450, %v2163, 0.0
  %v2732 = vrot.slane %v2731, 4
  %v2733 = vadd.f32 %v2731, %v2732
  %v2734 = vrot.slane %v2733, 2
  %v2735 = vadd.f32 %v2733, %v2734
  %v2736 = vrot.slane %v2735, 1
  %v2737 = vadd.f32 %v2735, %v2736
  %v2738 = vsel %vm2450, %v2165, 0.0
  %v2739 = vrot.slane %v2738, 4
  %v2740 = vadd.f32 %v2738, %v2739
  %v2741 = vrot.slane %v2740, 2
  %v2742 = vadd.f32 %v2740, %v2741
  %v2743 = vrot.slane %v2742, 1
  %v2744 = vadd.f32 %v2742, %v2743
  %v2745 = vsel %vm2450, %v2234, 0.0
  %v2746 = vrot.slane %v2745, 4
  %v2747 = vadd.f32 %v2745, %v2746
  %v2748 = vrot.slane %v2747, 2
  %v2749 = vadd.f32 %v2747, %v2748
  %v2750 = vrot.slane %v2749, 1
  %v2751 = vadd.f32 %v2749, %v2750
  %v2752 = vsel %vm2450, %v2236, 0.0
  %v2753 = vrot.slane %v2752, 4
  %v2754 = vadd.f32 %v2752, %v2753
  %v2755 = vrot.slane %v2754, 2
  %v2756 = vadd.f32 %v2754, %v2755
  %v2757 = vrot.slane %v2756, 1
  %v2758 = vadd.f32 %v2756, %v2757
  %v2759 = vsel %vm2450, %v2305, 0.0
  %v2760 = vrot.slane %v2759, 4
  %v2761 = vadd.f32 %v2759, %v2760
  %v2762 = vrot.slane %v2761, 2
  %v2763 = vadd.f32 %v2761, %v2762
  %v2764 = vrot.slane %v2763, 1
  %v2765 = vadd.f32 %v2763, %v2764
  %v2766 = vsel %vm2450, %v2307, 0.0
  %v2767 = vrot.slane %v2766, 4
  %v2768 = vadd.f32 %v2766, %v2767
  %v2769 = vrot.slane %v2768, 2
  %v2770 = vadd.f32 %v2768, %v2769
  %v2771 = vrot.slane %v2770, 1
  %v2772 = vadd.f32 %v2770, %v2771
  %v2773 = vsel %vm2450, %v2376, 0.0
  %v2774 = vrot.slane %v2773, 4
  %v2775 = vadd.f32 %v2773, %v2774
  %v2776 = vrot.slane %v2775, 2
  %v2777 = vadd.f32 %v2775, %v2776
  %v2778 = vrot.slane %v2777, 1
  %v2779 = vadd.f32 %v2777, %v2778
  %v2780 = vsel %vm2450, %v2378, 0.0
  %v2781 = vrot.slane %v2780, 4
  %v2782 = vadd.f32 %v2780, %v2781
  %v2783 = vrot.slane %v2782, 2
  %v2784 = vadd.f32 %v2782, %v2783
  %v2785 = vrot.slane %v2784, 1
  %v2786 = vadd.f32 %v2784, %v2785
  %v2787 = vsel %vm2450, %v2447, 0.0
  %v2788 = vrot.slane %v2787, 4
  %v2789 = vadd.f32 %v2787, %v2788
  %v2790 = vrot.slane %v2789, 2
  %v2791 = vadd.f32 %v2789, %v2790
  %v2792 = vrot.slane %v2791, 1
  %v2793 = vadd.f32 %v2791, %v2792
  %v2794 = vrcp.pop 4.0
  %v2795 = vmul.f32 %v2457, %v2794
  %v2796 = vmul.f32 %v2464, %v2794
  %v2797 = vmul.f32 %v2471, %v2794
  %v2798 = vmul.f32 %v2478, %v2794
  %v2799 = vmul.f32 %v2485, %v2794
  %v2800 = vmul.f32 %v2492, %v2794
  %v2801 = vmul.f32 %v2499, %v2794
  %v2802 = vmul.f32 %v2506, %v2794
  %v2803 = vmul.f32 %v2513, %v2794
  %v2804 = vmul.f32 %v2520, %v2794
  %v2805 = vmul.f32 %v2527, %v2794
  %v2806 = vmul.f32 %v2534, %v2794
  %v2807 = vmul.f32 %v2541, %v2794
  %v2808 = vmul.f32 %v2548, %v2794
  %v2809 = vmul.f32 %v2555, %v2794
  %v2810 = vmul.f32 %v2562, %v2794
  %v2811 = vmul.f32 %v2569, %v2794
  %v2812 = vmul.f32 %v2576, %v2794
  %v2813 = vmul.f32 %v2583, %v2794
  %v2814 = vmul.f32 %v2590, %v2794
  %v2815 = vmul.f32 %v2597, %v2794
  %v2816 = vmul.f32 %v2604, %v2794
  %v2817 = vmul.f32 %v2611, %v2794
  %v2818 = vmul.f32 %v2618, %v2794
  %v2819 = vmul.f32 %v2625, %v2794
  %v2820 = vmul.f32 %v2632, %v2794
  %v2821 = vmul.f32 %v2639, %v2794
  %v2822 = vmul.f32 %v2646, %v2794
  %v2823 = vmul.f32 %v2653, %v2794
  %v2824 = vmul.f32 %v2660, %v2794
  %v2825 = vmul.f32 %v2667, %v2794
  %v2826 = vmul.f32 %v2674, %v2794
  %v2827 = vmul.f32 %v2681, %v2794
  %v2828 = vmul.f32 %v2688, %v2794
  %v2829 = vmul.f32 %v2695, %v2794
  %v2830 = vmul.f32 %v2702, %v2794
  %v2831 = vmul.f32 %v2709, %v2794
  %v2832 = vmul.f32 %v2716, %v2794
  %v2833 = vmul.f32 %v2723, %v2794
  %v2834 = vmul.f32 %v2730, %v2794
  %v2835 = vmul.f32 %v2737, %v2794
  %v2836 = vmul.f32 %v2744, %v2794
  %v2837 = vmul.f32 %v2751, %v2794
  %v2838 = vmul.f32 %v2758, %v2794
  %v2839 = vmul.f32 %v2765, %v2794
  %v2840 = vmul.f32 %v2772, %v2794
  %v2841 = vmul.f32 %v2779, %v2794
  %v2842 = vmul.f32 %v2786, %v2794
  %v2843 = vmul.f32 %v2793, %v2794
  %v2844 = vmul.f32 %v743, %v743
  %v2845 = vmul.f32 %v745, %v745
  %v2846 = vmul.f32 %v814, %v814
  %v2847 = vmul.f32 %v816, %v816
  %v2848 = vmul.f32 %v885, %v885
  %v2849 = vmul.f32 %v887, %v887
  %v2850 = vmul.f32 %v956, %v956
  %v2851 = vmul.f32 %v958, %v958
  %v2852 = vmul.f32 %v1027, %v1027
  %v2853 = vmul.f32 %v1029, %v1029
  %v2854 = vmul.f32 %v1098, %v1098
  %v2855 = vmul.f32 %v1100, %v1100
  %v2856 = vmul.f32 %v1169, %v1169
  %v2857 = vmul.f32 %v1171, %v1171
  %v2858 = vmul.f32 %v1240, %v1240
  %v2859 = vmul.f32 %v1242, %v1242
  %v2860 = vmul.f32 %v1311, %v1311
  %v2861 = vmul.f32 %v1313, %v1313
  %v2862 = vmul.f32 %v1382, %v1382
  %v2863 = vmul.f32 %v1384, %v1384
  %v2864 = vmul.f32 %v1453, %v1453
  %v2865 = vmul.f32 %v1455, %v1455
  %v2866 = vmul.f32 %v1524, %v1524
  %v2867 = vmul.f32 %v1526, %v1526
  %v2868 = vmul.f32 %v1595, %v1595
  %v2869 = vmul.f32 %v1597, %v1597
  %v2870 = vmul.f32 %v1666, %v1666
  %v2871 = vmul.f32 %v1668, %v1668
  %v2872 = vmul.f32 %v1737, %v1737
  %v2873 = vmul.f32 %v1739, %v1739
  %v2874 = vmul.f32 %v1808, %v1808
  %v2875 = vmul.f32 %v1810, %v1810
  %v2876 = vmul.f32 %v1879, %v1879
  %v2877 = vmul.f32 %v1881, %v1881
  %v2878 = vmul.f32 %v1950, %v1950
  %v2879 = vmul.f32 %v1952, %v1952
  %v2880 = vmul.f32 %v2021, %v2021
  %v2881 = vmul.f32 %v2023, %v2023
  %v2882 = vmul.f32 %v2092, %v2092
  %v2883 = vmul.f32 %v2094, %v2094
  %v2884 = vmul.f32 %v2163, %v2163
  %v2885 = vmul.f32 %v2165, %v2165
  %v2886 = vmul.f32 %v2234, %v2234
  %v2887 = vmul.f32 %v2236, %v2236
  %v2888 = vmul.f32 %v2305, %v2305
  %v2889 = vmul.f32 %v2307, %v2307
  %v2890 = vmul.f32 %v2376, %v2376
  %v2891 = vmul.f32 %v2378, %v2378
  %v2892 = vmul.f32 %v2447, %v2447
  %v2893 = vsel %vm2450, %v2844, 0.0
  %v2894 = vrot.slane %v2893, 4
  %v2895 = vadd.f32 %v2893, %v2894
  %v2896 = vrot.slane %v2895, 2
  %v2897 = vadd.f32 %v2895, %v2896
  %v2898 = vrot.slane %v2897, 1
  %v2899 = vadd.f32 %v2897, %v2898
  %v2900 = vsel %vm2450, %v2845, 0.0
  %v2901 = vrot.slane %v2900, 4
  %v2902 = vadd.f32 %v2900, %v2901
  %v2903 = vrot.slane %v2902, 2
  %v2904 = vadd.f32 %v2902, %v2903
  %v2905 = vrot.slane %v2904, 1
  %v2906 = vadd.f32 %v2904, %v2905
  %v2907 = vsel %vm2450, %v2846, 0.0
  %v2908 = vrot.slane %v2907, 4
  %v2909 = vadd.f32 %v2907, %v2908
  %v2910 = vrot.slane %v2909, 2
  %v2911 = vadd.f32 %v2909, %v2910
  %v2912 = vrot.slane %v2911, 1
  %v2913 = vadd.f32 %v2911, %v2912
  %v2914 = vsel %vm2450, %v2847, 0.0
  %v2915 = vrot.slane %v2914, 4
  %v2916 = vadd.f32 %v2914, %v2915
  %v2917 = vrot.slane %v2916, 2
  %v2918 = vadd.f32 %v2916, %v2917
  %v2919 = vrot.slane %v2918, 1
  %v2920 = vadd.f32 %v2918, %v2919
  %v2921 = vsel %vm2450, %v2848, 0.0
  %v2922 = vrot.slane %v2921, 4
  %v2923 = vadd.f32 %v2921, %v2922
  %v2924 = vrot.slane %v2923, 2
  %v2925 = vadd.f32 %v2923, %v2924
  %v2926 = vrot.slane %v2925, 1
  %v2927 = vadd.f32 %v2925, %v2926
  %v2928 = vsel %vm2450, %v2849, 0.0
  %v2929 = vrot.slane %v2928, 4
  %v2930 = vadd.f32 %v2928, %v2929
  %v2931 = vrot.slane %v2930, 2
  %v2932 = vadd.f32 %v2930, %v2931
  %v2933 = vrot.slane %v2932, 1
  %v2934 = vadd.f32 %v2932, %v2933
  %v2935 = vsel %vm2450, %v2850, 0.0
  %v2936 = vrot.slane %v2935, 4
  %v2937 = vadd.f32 %v2935, %v2936
  %v2938 = vrot.slane %v2937, 2
  %v2939 = vadd.f32 %v2937, %v2938
  %v2940 = vrot.slane %v2939, 1
  %v2941 = vadd.f32 %v2939, %v2940
  %v2942 = vsel %vm2450, %v2851, 0.0
  %v2943 = vrot.slane %v2942, 4
  %v2944 = vadd.f32 %v2942, %v2943
  %v2945 = vrot.slane %v2944, 2
  %v2946 = vadd.f32 %v2944, %v2945
  %v2947 = vrot.slane %v2946, 1
  %v2948 = vadd.f32 %v2946, %v2947
  %v2949 = vsel %vm2450, %v2852, 0.0
  %v2950 = vrot.slane %v2949, 4
  %v2951 = vadd.f32 %v2949, %v2950
  %v2952 = vrot.slane %v2951, 2
  %v2953 = vadd.f32 %v2951, %v2952
  %v2954 = vrot.slane %v2953, 1
  %v2955 = vadd.f32 %v2953, %v2954
  %v2956 = vsel %vm2450, %v2853, 0.0
  %v2957 = vrot.slane %v2956, 4
  %v2958 = vadd.f32 %v2956, %v2957
  %v2959 = vrot.slane %v2958, 2
  %v2960 = vadd.f32 %v2958, %v2959
  %v2961 = vrot.slane %v2960, 1
  %v2962 = vadd.f32 %v2960, %v2961
  %v2963 = vsel %vm2450, %v2854, 0.0
  %v2964 = vrot.slane %v2963, 4
  %v2965 = vadd.f32 %v2963, %v2964
  %v2966 = vrot.slane %v2965, 2
  %v2967 = vadd.f32 %v2965, %v2966
  %v2968 = vrot.slane %v2967, 1
  %v2969 = vadd.f32 %v2967, %v2968
  %v2970 = vsel %vm2450, %v2855, 0.0
  %v2971 = vrot.slane %v2970, 4
  %v2972 = vadd.f32 %v2970, %v2971
  %v2973 = vrot.slane %v2972, 2
  %v2974 = vadd.f32 %v2972, %v2973
  %v2975 = vrot.slane %v2974, 1
  %v2976 = vadd.f32 %v2974, %v2975
  %v2977 = vsel %vm2450, %v2856, 0.0
  %v2978 = vrot.slane %v2977, 4
  %v2979 = vadd.f32 %v2977, %v2978
  %v2980 = vrot.slane %v2979, 2
  %v2981 = vadd.f32 %v2979, %v2980
  %v2982 = vrot.slane %v2981, 1
  %v2983 = vadd.f32 %v2981, %v2982
  %v2984 = vsel %vm2450, %v2857, 0.0
  %v2985 = vrot.slane %v2984, 4
  %v2986 = vadd.f32 %v2984, %v2985
  %v2987 = vrot.slane %v2986, 2
  %v2988 = vadd.f32 %v2986, %v2987
  %v2989 = vrot.slane %v2988, 1
  %v2990 = vadd.f32 %v2988, %v2989
  %v2991 = vsel %vm2450, %v2858, 0.0
  %v2992 = vrot.slane %v2991, 4
  %v2993 = vadd.f32 %v2991, %v2992
  %v2994 = vrot.slane %v2993, 2
  %v2995 = vadd.f32 %v2993, %v2994
  %v2996 = vrot.slane %v2995, 1
  %v2997 = vadd.f32 %v2995, %v2996
  %v2998 = vsel %vm2450, %v2859, 0.0
  %v2999 = vrot.slane %v2998, 4
  %v3000 = vadd.f32 %v2998, %v2999
  %v3001 = vrot.slane %v3000, 2
  %v3002 = vadd.f32 %v3000, %v3001
  %v3003 = vrot.slane %v3002, 1
  %v3004 = vadd.f32 %v3002, %v3003
  %v3005 = vsel %vm2450, %v2860, 0.0
  %v3006 = vrot.slane %v3005, 4
  %v3007 = vadd.f32 %v3005, %v3006
  %v3008 = vrot.slane %v3007, 2
  %v3009 = vadd.f32 %v3007, %v3008
  %v3010 = vrot.slane %v3009, 1
  %v3011 = vadd.f32 %v3009, %v3010
  %v3012 = vsel %vm2450, %v2861, 0.0
  %v3013 = vrot.slane %v3012, 4
  %v3014 = vadd.f32 %v3012, %v3013
  %v3015 = vrot.slane %v3014, 2
  %v3016 = vadd.f32 %v3014, %v3015
  %v3017 = vrot.slane %v3016, 1
  %v3018 = vadd.f32 %v3016, %v3017
  %v3019 = vsel %vm2450, %v2862, 0.0
  %v3020 = vrot.slane %v3019, 4
  %v3021 = vadd.f32 %v3019, %v3020
  %v3022 = vrot.slane %v3021, 2
  %v3023 = vadd.f32 %v3021, %v3022
  %v3024 = vrot.slane %v3023, 1
  %v3025 = vadd.f32 %v3023, %v3024
  %v3026 = vsel %vm2450, %v2863, 0.0
  %v3027 = vrot.slane %v3026, 4
  %v3028 = vadd.f32 %v3026, %v3027
  %v3029 = vrot.slane %v3028, 2
  %v3030 = vadd.f32 %v3028, %v3029
  %v3031 = vrot.slane %v3030, 1
  %v3032 = vadd.f32 %v3030, %v3031
  %v3033 = vsel %vm2450, %v2864, 0.0
  %v3034 = vrot.slane %v3033, 4
  %v3035 = vadd.f32 %v3033, %v3034
  %v3036 = vrot.slane %v3035, 2
  %v3037 = vadd.f32 %v3035, %v3036
  %v3038 = vrot.slane %v3037, 1
  %v3039 = vadd.f32 %v3037, %v3038
  %v3040 = vsel %vm2450, %v2865, 0.0
  %v3041 = vrot.slane %v3040, 4
  %v3042 = vadd.f32 %v3040, %v3041
  %v3043 = vrot.slane %v3042, 2
  %v3044 = vadd.f32 %v3042, %v3043
  %v3045 = vrot.slane %v3044, 1
  %v3046 = vadd.f32 %v3044, %v3045
  %v3047 = vsel %vm2450, %v2866, 0.0
  %v3048 = vrot.slane %v3047, 4
  %v3049 = vadd.f32 %v3047, %v3048
  %v3050 = vrot.slane %v3049, 2
  %v3051 = vadd.f32 %v3049, %v3050
  %v3052 = vrot.slane %v3051, 1
  %v3053 = vadd.f32 %v3051, %v3052
  %v3054 = vsel %vm2450, %v2867, 0.0
  %v3055 = vrot.slane %v3054, 4
  %v3056 = vadd.f32 %v3054, %v3055
  %v3057 = vrot.slane %v3056, 2
  %v3058 = vadd.f32 %v3056, %v3057
  %v3059 = vrot.slane %v3058, 1
  %v3060 = vadd.f32 %v3058, %v3059
  %v3061 = vsel %vm2450, %v2868, 0.0
  %v3062 = vrot.slane %v3061, 4
  %v3063 = vadd.f32 %v3061, %v3062
  %v3064 = vrot.slane %v3063, 2
  %v3065 = vadd.f32 %v3063, %v3064
  %v3066 = vrot.slane %v3065, 1
  %v3067 = vadd.f32 %v3065, %v3066
  %v3068 = vsel %vm2450, %v2869, 0.0
  %v3069 = vrot.slane %v3068, 4
  %v3070 = vadd.f32 %v3068, %v3069
  %v3071 = vrot.slane %v3070, 2
  %v3072 = vadd.f32 %v3070, %v3071
  %v3073 = vrot.slane %v3072, 1
  %v3074 = vadd.f32 %v3072, %v3073
  %v3075 = vsel %vm2450, %v2870, 0.0
  %v3076 = vrot.slane %v3075, 4
  %v3077 = vadd.f32 %v3075, %v3076
  %v3078 = vrot.slane %v3077, 2
  %v3079 = vadd.f32 %v3077, %v3078
  %v3080 = vrot.slane %v3079, 1
  %v3081 = vadd.f32 %v3079, %v3080
  %v3082 = vsel %vm2450, %v2871, 0.0
  %v3083 = vrot.slane %v3082, 4
  %v3084 = vadd.f32 %v3082, %v3083
  %v3085 = vrot.slane %v3084, 2
  %v3086 = vadd.f32 %v3084, %v3085
  %v3087 = vrot.slane %v3086, 1
  %v3088 = vadd.f32 %v3086, %v3087
  %v3089 = vsel %vm2450, %v2872, 0.0
  %v3090 = vrot.slane %v3089, 4
  %v3091 = vadd.f32 %v3089, %v3090
  %v3092 = vrot.slane %v3091, 2
  %v3093 = vadd.f32 %v3091, %v3092
  %v3094 = vrot.slane %v3093, 1
  %v3095 = vadd.f32 %v3093, %v3094
  %v3096 = vsel %vm2450, %v2873, 0.0
  %v3097 = vrot.slane %v3096, 4
  %v3098 = vadd.f32 %v3096, %v3097
  %v3099 = vrot.slane %v3098, 2
  %v3100 = vadd.f32 %v3098, %v3099
  %v3101 = vrot.slane %v3100, 1
  %v3102 = vadd.f32 %v3100, %v3101
  %v3103 = vsel %vm2450, %v2874, 0.0
  %v3104 = vrot.slane %v3103, 4
  %v3105 = vadd.f32 %v3103, %v3104
  %v3106 = vrot.slane %v3105, 2
  %v3107 = vadd.f32 %v3105, %v3106
  %v3108 = vrot.slane %v3107, 1
  %v3109 = vadd.f32 %v3107, %v3108
  %v3110 = vsel %vm2450, %v2875, 0.0
  %v3111 = vrot.slane %v3110, 4
  %v3112 = vadd.f32 %v3110, %v3111
  %v3113 = vrot.slane %v3112, 2
  %v3114 = vadd.f32 %v3112, %v3113
  %v3115 = vrot.slane %v3114, 1
  %v3116 = vadd.f32 %v3114, %v3115
  %v3117 = vsel %vm2450, %v2876, 0.0
  %v3118 = vrot.slane %v3117, 4
  %v3119 = vadd.f32 %v3117, %v3118
  %v3120 = vrot.slane %v3119, 2
  %v3121 = vadd.f32 %v3119, %v3120
  %v3122 = vrot.slane %v3121, 1
  %v3123 = vadd.f32 %v3121, %v3122
  %v3124 = vsel %vm2450, %v2877, 0.0
  %v3125 = vrot.slane %v3124, 4
  %v3126 = vadd.f32 %v3124, %v3125
  %v3127 = vrot.slane %v3126, 2
  %v3128 = vadd.f32 %v3126, %v3127
  %v3129 = vrot.slane %v3128, 1
  %v3130 = vadd.f32 %v3128, %v3129
  %v3131 = vsel %vm2450, %v2878, 0.0
  %v3132 = vrot.slane %v3131, 4
  %v3133 = vadd.f32 %v3131, %v3132
  %v3134 = vrot.slane %v3133, 2
  %v3135 = vadd.f32 %v3133, %v3134
  %v3136 = vrot.slane %v3135, 1
  %v3137 = vadd.f32 %v3135, %v3136
  %v3138 = vsel %vm2450, %v2879, 0.0
  %v3139 = vrot.slane %v3138, 4
  %v3140 = vadd.f32 %v3138, %v3139
  %v3141 = vrot.slane %v3140, 2
  %v3142 = vadd.f32 %v3140, %v3141
  %v3143 = vrot.slane %v3142, 1
  %v3144 = vadd.f32 %v3142, %v3143
  %v3145 = vsel %vm2450, %v2880, 0.0
  %v3146 = vrot.slane %v3145, 4
  %v3147 = vadd.f32 %v3145, %v3146
  %v3148 = vrot.slane %v3147, 2
  %v3149 = vadd.f32 %v3147, %v3148
  %v3150 = vrot.slane %v3149, 1
  %v3151 = vadd.f32 %v3149, %v3150
  %v3152 = vsel %vm2450, %v2881, 0.0
  %v3153 = vrot.slane %v3152, 4
  %v3154 = vadd.f32 %v3152, %v3153
  %v3155 = vrot.slane %v3154, 2
  %v3156 = vadd.f32 %v3154, %v3155
  %v3157 = vrot.slane %v3156, 1
  %v3158 = vadd.f32 %v3156, %v3157
  %v3159 = vsel %vm2450, %v2882, 0.0
  %v3160 = vrot.slane %v3159, 4
  %v3161 = vadd.f32 %v3159, %v3160
  %v3162 = vrot.slane %v3161, 2
  %v3163 = vadd.f32 %v3161, %v3162
  %v3164 = vrot.slane %v3163, 1
  %v3165 = vadd.f32 %v3163, %v3164
  %v3166 = vsel %vm2450, %v2883, 0.0
  %v3167 = vrot.slane %v3166, 4
  %v3168 = vadd.f32 %v3166, %v3167
  %v3169 = vrot.slane %v3168, 2
  %v3170 = vadd.f32 %v3168, %v3169
  %v3171 = vrot.slane %v3170, 1
  %v3172 = vadd.f32 %v3170, %v3171
  %v3173 = vsel %vm2450, %v2884, 0.0
  %v3174 = vrot.slane %v3173, 4
  %v3175 = vadd.f32 %v3173, %v3174
  %v3176 = vrot.slane %v3175, 2
  %v3177 = vadd.f32 %v3175, %v3176
  %v3178 = vrot.slane %v3177, 1
  %v3179 = vadd.f32 %v3177, %v3178
  %v3180 = vsel %vm2450, %v2885, 0.0
  %v3181 = vrot.slane %v3180, 4
  %v3182 = vadd.f32 %v3180, %v3181
  %v3183 = vrot.slane %v3182, 2
  %v3184 = vadd.f32 %v3182, %v3183
  %v3185 = vrot.slane %v3184, 1
  %v3186 = vadd.f32 %v3184, %v3185
  %v3187 = vsel %vm2450, %v2886, 0.0
  %v3188 = vrot.slane %v3187, 4
  %v3189 = vadd.f32 %v3187, %v3188
  %v3190 = vrot.slane %v3189, 2
  %v3191 = vadd.f32 %v3189, %v3190
  %v3192 = vrot.slane %v3191, 1
  %v3193 = vadd.f32 %v3191, %v3192
  %v3194 = vsel %vm2450, %v2887, 0.0
  %v3195 = vrot.slane %v3194, 4
  %v3196 = vadd.f32 %v3194, %v3195
  %v3197 = vrot.slane %v3196, 2
  %v3198 = vadd.f32 %v3196, %v3197
  %v3199 = vrot.slane %v3198, 1
  %v3200 = vadd.f32 %v3198, %v3199
  %v3201 = vsel %vm2450, %v2888, 0.0
  %v3202 = vrot.slane %v3201, 4
  %v3203 = vadd.f32 %v3201, %v3202
  %v3204 = vrot.slane %v3203, 2
  %v3205 = vadd.f32 %v3203, %v3204
  %v3206 = vrot.slane %v3205, 1
  %v3207 = vadd.f32 %v3205, %v3206
  %v3208 = vsel %vm2450, %v2889, 0.0
  %v3209 = vrot.slane %v3208, 4
  %v3210 = vadd.f32 %v3208, %v3209
  %v3211 = vrot.slane %v3210, 2
  %v3212 = vadd.f32 %v3210, %v3211
  %v3213 = vrot.slane %v3212, 1
  %v3214 = vadd.f32 %v3212, %v3213
  %v3215 = vsel %vm2450, %v2890, 0.0
  %v3216 = vrot.slane %v3215, 4
  %v3217 = vadd.f32 %v3215, %v3216
  %v3218 = vrot.slane %v3217, 2
  %v3219 = vadd.f32 %v3217, %v3218
  %v3220 = vrot.slane %v3219, 1
  %v3221 = vadd.f32 %v3219, %v3220
  %v3222 = vsel %vm2450, %v2891, 0.0
  %v3223 = vrot.slane %v3222, 4
  %v3224 = vadd.f32 %v3222, %v3223
  %v3225 = vrot.slane %v3224, 2
  %v3226 = vadd.f32 %v3224, %v3225
  %v3227 = vrot.slane %v3226, 1
  %v3228 = vadd.f32 %v3226, %v3227
  %v3229 = vsel %vm2450, %v2892, 0.0
  %v3230 = vrot.slane %v3229, 4
  %v3231 = vadd.f32 %v3229, %v3230
  %v3232 = vrot.slane %v3231, 2
  %v3233 = vadd.f32 %v3231, %v3232
  %v3234 = vrot.slane %v3233, 1
  %v3235 = vadd.f32 %v3233, %v3234
  %v3236 = vmul.f32 %v2899, %v2794
  %v3237 = vmul.f32 %v2906, %v2794
  %v3238 = vmul.f32 %v2913, %v2794
  %v3239 = vmul.f32 %v2920, %v2794
  %v3240 = vmul.f32 %v2927, %v2794
  %v3241 = vmul.f32 %v2934, %v2794
  %v3242 = vmul.f32 %v2941, %v2794
  %v3243 = vmul.f32 %v2948, %v2794
  %v3244 = vmul.f32 %v2955, %v2794
  %v3245 = vmul.f32 %v2962, %v2794
  %v3246 = vmul.f32 %v2969, %v2794
  %v3247 = vmul.f32 %v2976, %v2794
  %v3248 = vmul.f32 %v2983, %v2794
  %v3249 = vmul.f32 %v2990, %v2794
  %v3250 = vmul.f32 %v2997, %v2794
  %v3251 = vmul.f32 %v3004, %v2794
  %v3252 = vmul.f32 %v3011, %v2794
  %v3253 = vmul.f32 %v3018, %v2794
  %v3254 = vmul.f32 %v3025, %v2794
  %v3255 = vmul.f32 %v3032, %v2794
  %v3256 = vmul.f32 %v3039, %v2794
  %v3257 = vmul.f32 %v3046, %v2794
  %v3258 = vmul.f32 %v3053, %v2794
  %v3259 = vmul.f32 %v3060, %v2794
  %v3260 = vmul.f32 %v3067, %v2794
  %v3261 = vmul.f32 %v3074, %v2794
  %v3262 = vmul.f32 %v3081, %v2794
  %v3263 = vmul.f32 %v3088, %v2794
  %v3264 = vmul.f32 %v3095, %v2794
  %v3265 = vmul.f32 %v3102, %v2794
  %v3266 = vmul.f32 %v3109, %v2794
  %v3267 = vmul.f32 %v3116, %v2794
  %v3268 = vmul.f32 %v3123, %v2794
  %v3269 = vmul.f32 %v3130, %v2794
  %v3270 = vmul.f32 %v3137, %v2794
  %v3271 = vmul.f32 %v3144, %v2794
  %v3272 = vmul.f32 %v3151, %v2794
  %v3273 = vmul.f32 %v3158, %v2794
  %v3274 = vmul.f32 %v3165, %v2794
  %v3275 = vmul.f32 %v3172, %v2794
  %v3276 = vmul.f32 %v3179, %v2794
  %v3277 = vmul.f32 %v3186, %v2794
  %v3278 = vmul.f32 %v3193, %v2794
  %v3279 = vmul.f32 %v3200, %v2794
  %v3280 = vmul.f32 %v3207, %v2794
  %v3281 = vmul.f32 %v3214, %v2794
  %v3282 = vmul.f32 %v3221, %v2794
  %v3283 = vmul.f32 %v3228, %v2794
  %v3284 = vmul.f32 %v3235, %v2794
  %v3285 = vmul.f32 %v2795, %v2795
  %v3286 = vmul.f32 %v2796, %v2796
  %v3287 = vmul.f32 %v2797, %v2797
  %v3288 = vmul.f32 %v2798, %v2798
  %v3289 = vmul.f32 %v2799, %v2799
  %v3290 = vmul.f32 %v2800, %v2800
  %v3291 = vmul.f32 %v2801, %v2801
  %v3292 = vmul.f32 %v2802, %v2802
  %v3293 = vmul.f32 %v2803, %v2803
  %v3294 = vmul.f32 %v2804, %v2804
  %v3295 = vmul.f32 %v2805, %v2805
  %v3296 = vmul.f32 %v2806, %v2806
  %v3297 = vmul.f32 %v2807, %v2807
  %v3298 = vmul.f32 %v2808, %v2808
  %v3299 = vmul.f32 %v2809, %v2809
  %v3300 = vmul.f32 %v2810, %v2810
  %v3301 = vmul.f32 %v2811, %v2811
  %v3302 = vmul.f32 %v2812, %v2812
  %v3303 = vmul.f32 %v2813, %v2813
  %v3304 = vmul.f32 %v2814, %v2814
  %v3305 = vmul.f32 %v2815, %v2815
  %v3306 = vmul.f32 %v2816, %v2816
  %v3307 = vmul.f32 %v2817, %v2817
  %v3308 = vmul.f32 %v2818, %v2818
  %v3309 = vmul.f32 %v2819, %v2819
  %v3310 = vmul.f32 %v2820, %v2820
  %v3311 = vmul.f32 %v2821, %v2821
  %v3312 = vmul.f32 %v2822, %v2822
  %v3313 = vmul.f32 %v2823, %v2823
  %v3314 = vmul.f32 %v2824, %v2824
  %v3315 = vmul.f32 %v2825, %v2825
  %v3316 = vmul.f32 %v2826, %v2826
  %v3317 = vmul.f32 %v2827, %v2827
  %v3318 = vmul.f32 %v2828, %v2828
  %v3319 = vmul.f32 %v2829, %v2829
  %v3320 = vmul.f32 %v2830, %v2830
  %v3321 = vmul.f32 %v2831, %v2831
  %v3322 = vmul.f32 %v2832, %v2832
  %v3323 = vmul.f32 %v2833, %v2833
  %v3324 = vmul.f32 %v2834, %v2834
  %v3325 = vmul.f32 %v2835, %v2835
  %v3326 = vmul.f32 %v2836, %v2836
  %v3327 = vmul.f32 %v2837, %v2837
  %v3328 = vmul.f32 %v2838, %v2838
  %v3329 = vmul.f32 %v2839, %v2839
  %v3330 = vmul.f32 %v2840, %v2840
  %v3331 = vmul.f32 %v2841, %v2841
  %v3332 = vmul.f32 %v2842, %v2842
  %v3333 = vmul.f32 %v2843, %v2843
  %v3334 = vsub.f32 %v3236, %v3285
  %v3335 = vsub.f32 %v3237, %v3286
  %v3336 = vsub.f32 %v3238, %v3287
  %v3337 = vsub.f32 %v3239, %v3288
  %v3338 = vsub.f32 %v3240, %v3289
  %v3339 = vsub.f32 %v3241, %v3290
  %v3340 = vsub.f32 %v3242, %v3291
  %v3341 = vsub.f32 %v3243, %v3292
  %v3342 = vsub.f32 %v3244, %v3293
  %v3343 = vsub.f32 %v3245, %v3294
  %v3344 = vsub.f32 %v3246, %v3295
  %v3345 = vsub.f32 %v3247, %v3296
  %v3346 = vsub.f32 %v3248, %v3297
  %v3347 = vsub.f32 %v3249, %v3298
  %v3348 = vsub.f32 %v3250, %v3299
  %v3349 = vsub.f32 %v3251, %v3300
  %v3350 = vsub.f32 %v3252, %v3301
  %v3351 = vsub.f32 %v3253, %v3302
  %v3352 = vsub.f32 %v3254, %v3303
  %v3353 = vsub.f32 %v3255, %v3304
  %v3354 = vsub.f32 %v3256, %v3305
  %v3355 = vsub.f32 %v3257, %v3306
  %v3356 = vsub.f32 %v3258, %v3307
  %v3357 = vsub.f32 %v3259, %v3308
  %v3358 = vsub.f32 %v3260, %v3309
  %v3359 = vsub.f32 %v3261, %v3310
  %v3360 = vsub.f32 %v3262, %v3311
  %v3361 = vsub.f32 %v3263, %v3312
  %v3362 = vsub.f32 %v3264, %v3313
  %v3363 = vsub.f32 %v3265, %v3314
  %v3364 = vsub.f32 %v3266, %v3315
  %v3365 = vsub.f32 %v3267, %v3316
  %v3366 = vsub.f32 %v3268, %v3317
  %v3367 = vsub.f32 %v3269, %v3318
  %v3368 = vsub.f32 %v3270, %v3319
  %v3369 = vsub.f32 %v3271, %v3320
  %v3370 = vsub.f32 %v3272, %v3321
  %v3371 = vsub.f32 %v3273, %v3322
  %v3372 = vsub.f32 %v3274, %v3323
  %v3373 = vsub.f32 %v3275, %v3324
  %v3374 = vsub.f32 %v3276, %v3325
  %v3375 = vsub.f32 %v3277, %v3326
  %v3376 = vsub.f32 %v3278, %v3327
  %v3377 = vsub.f32 %v3279, %v3328
  %v3378 = vsub.f32 %v3280, %v3329
  %v3379 = vsub.f32 %v3281, %v3330
  %v3380 = vsub.f32 %v3282, %v3331
  %v3381 = vsub.f32 %v3283, %v3332
  %v3382 = vsub.f32 %v3284, %v3333
  %v3383 = vsub.f32 %v743, %v2795
  %v3384 = vsub.f32 %v745, %v2796
  %v3385 = vsub.f32 %v814, %v2797
  %v3386 = vsub.f32 %v816, %v2798
  %v3387 = vsub.f32 %v885, %v2799
  %v3388 = vsub.f32 %v887, %v2800
  %v3389 = vsub.f32 %v956, %v2801
  %v3390 = vsub.f32 %v958, %v2802
  %v3391 = vsub.f32 %v1027, %v2803
  %v3392 = vsub.f32 %v1029, %v2804
  %v3393 = vsub.f32 %v1098, %v2805
  %v3394 = vsub.f32 %v1100, %v2806
  %v3395 = vsub.f32 %v1169, %v2807
  %v3396 = vsub.f32 %v1171, %v2808
  %v3397 = vsub.f32 %v1240, %v2809
  %v3398 = vsub.f32 %v1242, %v2810
  %v3399 = vsub.f32 %v1311, %v2811
  %v3400 = vsub.f32 %v1313, %v2812
  %v3401 = vsub.f32 %v1382, %v2813
  %v3402 = vsub.f32 %v1384, %v2814
  %v3403 = vsub.f32 %v1453, %v2815
  %v3404 = vsub.f32 %v1455, %v2816
  %v3405 = vsub.f32 %v1524, %v2817
  %v3406 = vsub.f32 %v1526, %v2818
  %v3407 = vsub.f32 %v1595, %v2819
  %v3408 = vsub.f32 %v1597, %v2820
  %v3409 = vsub.f32 %v1666, %v2821
  %v3410 = vsub.f32 %v1668, %v2822
  %v3411 = vsub.f32 %v1737, %v2823
  %v3412 = vsub.f32 %v1739, %v2824
  %v3413 = vsub.f32 %v1808, %v2825
  %v3414 = vsub.f32 %v1810, %v2826
  %v3415 = vsub.f32 %v1879, %v2827
  %v3416 = vsub.f32 %v1881, %v2828
  %v3417 = vsub.f32 %v1950, %v2829
  %v3418 = vsub.f32 %v1952, %v2830
  %v3419 = vsub.f32 %v2021, %v2831
  %v3420 = vsub.f32 %v2023, %v2832
  %v3421 = vsub.f32 %v2092, %v2833
  %v3422 = vsub.f32 %v2094, %v2834
  %v3423 = vsub.f32 %v2163, %v2835
  %v3424 = vsub.f32 %v2165, %v2836
  %v3425 = vsub.f32 %v2234, %v2837
  %v3426 = vsub.f32 %v2236, %v2838
  %v3427 = vsub.f32 %v2305, %v2839
  %v3428 = vsub.f32 %v2307, %v2840
  %v3429 = vsub.f32 %v2376, %v2841
  %v3430 = vsub.f32 %v2378, %v2842
  %v3431 = vsub.f32 %v2447, %v2843
  %v3432 = vadd.f32 %v3334, 1e-05
  %v3433 = vadd.f32 %v3335, 1e-05
  %v3434 = vadd.f32 %v3336, 1e-05
  %v3435 = vadd.f32 %v3337, 1e-05
  %v3436 = vadd.f32 %v3338, 1e-05
  %v3437 = vadd.f32 %v3339, 1e-05
  %v3438 = vadd.f32 %v3340, 1e-05
  %v3439 = vadd.f32 %v3341, 1e-05
  %v3440 = vadd.f32 %v3342, 1e-05
  %v3441 = vadd.f32 %v3343, 1e-05
  %v3442 = vadd.f32 %v3344, 1e-05
  %v3443 = vadd.f32 %v3345, 1e-05
  %v3444 = vadd.f32 %v3346, 1e-05
  %v3445 = vadd.f32 %v3347, 1e-05
  %v3446 = vadd.f32 %v3348, 1e-05
  %v3447 = vadd.f32 %v3349, 1e-05
  %v3448 = vadd.f32 %v3350, 1e-05
  %v3449 = vadd.f32 %v3351, 1e-05
  %v3450 = vadd.f32 %v3352, 1e-05
  %v3451 = vadd.f32 %v3353, 1e-05
  %v3452 = vadd.f32 %v3354, 1e-05
  %v3453 = vadd.f32 %v3355, 1e-05
  %v3454 = vadd.f32 %v3356, 1e-05
  %v3455 = vadd.f32 %v3357, 1e-05
  %v3456 = vadd.f32 %v3358, 1e-05
  %v3457 = vadd.f32 %v3359, 1e-05
  %v3458 = vadd.f32 %v3360, 1e-05
  %v3459 = vadd.f32 %v3361, 1e-05
  %v3460 = vadd.f32 %v3362, 1e-05
  %v3461 = vadd.f32 %v3363, 1e-05
  %v3462 = vadd.f32 %v3364, 1e-05
  %v3463 = vadd.f32 %v3365, 1e-05
  %v3464 = vadd.f32 %v3366, 1e-05
  %v3465 = vadd.f32 %v3367, 1e-05
  %v3466 = vadd.f32 %v3368, 1e-05
  %v3467 = vadd.f32 %v3369, 1e-05
  %v3468 = vadd.f32 %v3370, 1e-05
  %v3469 = vadd.f32 %v3371, 1e-05
  %v3470 = vadd.f32 %v3372, 1e-05
  %v3471 = vadd.f32 %v3373, 1e-05
  %v3472 = vadd.f32 %v3374, 1e-05
  %v3473 = vadd.f32 %v3375, 1e-05
  %v3474 = vadd.f32 %v3376, 1e-05
  %v3475 = vadd.f32 %v3377, 1e-05
  %v3476 = vadd.f32 %v3378, 1e-05
  %v3477 = vadd.f32 %v3379, 1e-05
  %v3478 = vadd.f32 %v3380, 1e-05
  %v3479 = vadd.f32 %v3381, 1e-05
  %v3480 = vadd.f32 %v3382, 1e-05
  %v3481 = vrsqrt.pop %v3432
  %v3482 = vrsqrt.pop %v3433
  %v3483 = vrsqrt.pop %v3434
  %v3484 = vrsqrt.pop %v3435
  %v3485 = vrsqrt.pop %v3436
  %v3486 = vrsqrt.pop %v3437
  %v3487 = vrsqrt.pop %v3438
  %v3488 = vrsqrt.pop %v3439
  %v3489 = vrsqrt.pop %v3440
  %v3490 = vrsqrt.pop %v3441
  %v3491 = vrsqrt.pop %v3442
  %v3492 = vrsqrt.pop %v3443
  %v3493 = vrsqrt.pop %v3444
  %v3494 = vrsqrt.pop %v3445
  %v3495 = vrsqrt.pop %v3446
  %v3496 = vrsqrt.pop %v3447
  %v3497 = vrsqrt.pop %v3448
  %v3498 = vrsqrt.pop %v3449
  %v3499 = vrsqrt.pop %v3450
  %v3500 = vrsqrt.pop %v3451
  %v3501 = vrsqrt.pop %v3452
  %v3502 = vrsqrt.pop %v3453
  %v3503 = vrsqrt.pop %v3454
  %v3504 = vrsqrt.pop %v3455
  %v3505 = vrsqrt.pop %v3456
  %v3506 = vrsqrt.pop %v3457
  %v3507 = vrsqrt.pop %v3458
  %v3508 = vrsqrt.pop %v3459
  %v3509 = vrsqrt.pop %v3460
  %v3510 = vrsqrt.pop %v3461
  %v3511 = vrsqrt.pop %v3462
  %v3512 = vrsqrt.pop %v3463
  %v3513 = vrsqrt.pop %v3464
  %v3514 = vrsqrt.pop %v3465
  %v3515 = vrsqrt.pop %v3466
  %v3516 = vrsqrt.pop %v3467
  %v3517 = vrsqrt.pop %v3468
  %v3518 = vrsqrt.pop %v3469
  %v3519 = vrsqrt.pop %v3470
  %v3520 = vrsqrt.pop %v3471
  %v3521 = vrsqrt.pop %v3472
  %v3522 = vrsqrt.pop %v3473
  %v3523 = vrsqrt.pop %v3474
  %v3524 = vrsqrt.pop %v3475
  %v3525 = vrsqrt.pop %v3476
  %v3526 = vrsqrt.pop %v3477
  %v3527 = vrsqrt.pop %v3478
  %v3528 = vrsqrt.pop %v3479
  %v3529 = vrsqrt.pop %v3480
  %v3530 = vmul.f32 %v3383, %v3481
  %v3531 = vmul.f32 %v3384, %v3482
  %v3532 = vmul.f32 %v3385, %v3483
  %v3533 = vmul.f32 %v3386, %v3484
  %v3534 = vmul.f32 %v3387, %v3485
  %v3535 = vmul.f32 %v3388, %v3486
  %v3536 = vmul.f32 %v3389, %v3487
  %v3537 = vmul.f32 %v3390, %v3488
  %v3538 = vmul.f32 %v3391, %v3489
  %v3539 = vmul.f32 %v3392, %v3490
  %v3540 = vmul.f32 %v3393, %v3491
  %v3541 = vmul.f32 %v3394, %v3492
  %v3542 = vmul.f32 %v3395, %v3493
  %v3543 = vmul.f32 %v3396, %v3494
  %v3544 = vmul.f32 %v3397, %v3495
  %v3545 = vmul.f32 %v3398, %v3496
  %v3546 = vmul.f32 %v3399, %v3497
  %v3547 = vmul.f32 %v3400, %v3498
  %v3548 = vmul.f32 %v3401, %v3499
  %v3549 = vmul.f32 %v3402, %v3500
  %v3550 = vmul.f32 %v3403, %v3501
  %v3551 = vmul.f32 %v3404, %v3502
  %v3552 = vmul.f32 %v3405, %v3503
  %v3553 = vmul.f32 %v3406, %v3504
  %v3554 = vmul.f32 %v3407, %v3505
  %v3555 = vmul.f32 %v3408, %v3506
  %v3556 = vmul.f32 %v3409, %v3507
  %v3557 = vmul.f32 %v3410, %v3508
  %v3558 = vmul.f32 %v3411, %v3509
  %v3559 = vmul.f32 %v3412, %v3510
  %v3560 = vmul.f32 %v3413, %v3511
  %v3561 = vmul.f32 %v3414, %v3512
  %v3562 = vmul.f32 %v3415, %v3513
  %v3563 = vmul.f32 %v3416, %v3514
  %v3564 = vmul.f32 %v3417, %v3515
  %v3565 = vmul.f32 %v3418, %v3516
  %v3566 = vmul.f32 %v3419, %v3517
  %v3567 = vmul.f32 %v3420, %v3518
  %v3568 = vmul.f32 %v3421, %v3519
  %v3569 = vmul.f32 %v3422, %v3520
  %v3570 = vmul.f32 %v3423, %v3521
  %v3571 = vmul.f32 %v3424, %v3522
  %v3572 = vmul.f32 %v3425, %v3523
  %v3573 = vmul.f32 %v3426, %v3524
  %v3574 = vmul.f32 %v3427, %v3525
  %v3575 = vmul.f32 %v3428, %v3526
  %v3576 = vmul.f32 %v3429, %v3527
  %v3577 = vmul.f32 %v3430, %v3528
  %v3578 = vmul.f32 %v3431, %v3529
  %v3579 = vld [vmem:[%s3] sm:$0xff]
  %v3580 = vld [vmem:[%s3 + $0x8] sm:$0xff]
  %v3581 = vld [vmem:[%s3 + $0x10] sm:$0xff]
  %v3582 = vld [vmem:[%s3 + $0x18] sm:$0xff]
  %v3583 = vld [vmem:[%s3 + $0x20] sm:$0xff]
  %v3584 = vld [vmem:[%s3 + $0x28] sm:$0xff]
  %v3585 = vld [vmem:[%s3 + $0x30] sm:$0x1]
  %v3593 = vlaneseq
  %v3594 = vshrl.u32 %v3593, 7
  %v3595 = vsub.s32 0, %v3594
  %v3596 = vrot.slane %v3579, %v3595
  %v3597 = vlaneseq
  %v3598 = vshrl.u32 %v3597, 7
  %v3599 = vsub.s32 1, %v3598
  %v3600 = vrot.slane %v3579, %v3599
  %v3601 = vlaneseq
  %v3602 = vshrl.u32 %v3601, 7
  %v3603 = vsub.s32 2, %v3602
  %v3604 = vrot.slane %v3579, %v3603
  %v3605 = vlaneseq
  %v3606 = vshrl.u32 %v3605, 7
  %v3607 = vsub.s32 3, %v3606
  %v3608 = vrot.slane %v3579, %v3607
  %v3609 = vlaneseq
  %v3610 = vshrl.u32 %v3609, 7
  %v3611 = vsub.s32 4, %v3610
  %v3612 = vrot.slane %v3579, %v3611
  %v3613 = vlaneseq
  %v3614 = vshrl.u32 %v3613, 7
  %v3615 = vsub.s32 5, %v3614
  %v3616 = vrot.slane %v3579, %v3615
  %v3617 = vlaneseq
  %v3618 = vshrl.u32 %v3617, 7
  %v3619 = vsub.s32 6, %v3618
  %v3620 = vrot.slane %v3579, %v3619
  %v3621 = vlaneseq
  %v3622 = vshrl.u32 %v3621, 7
  %v3623 = vsub.s32 7, %v3622
  %v3624 = vrot.slane %v3579, %v3623
  %v3625 = vlaneseq
  %v3626 = vshrl.u32 %v3625, 7
  %v3627 = vsub.s32 0, %v3626
  %v3628 = vrot.slane %v3580, %v3627
  %v3629 = vlaneseq
  %v3630 = vshrl.u32 %v3629, 7
  %v3631 = vsub.s32 1, %v3630
  %v3632 = vrot.slane %v3580, %v3631
  %v3633 = vlaneseq
  %v3634 = vshrl.u32 %v3633, 7
  %v3635 = vsub.s32 2, %v3634
  %v3636 = vrot.slane %v3580, %v3635
  %v3637 = vlaneseq
  %v3638 = vshrl.u32 %v3637, 7
  %v3639 = vsub.s32 3, %v3638
  %v3640 = vrot.slane %v3580, %v3639
  %v3641 = vlaneseq
  %v3642 = vshrl.u32 %v3641, 7
  %v3643 = vsub.s32 4, %v3642
  %v3644 = vrot.slane %v3580, %v3643
  %v3645 = vlaneseq
  %v3646 = vshrl.u32 %v3645, 7
  %v3647 = vsub.s32 5, %v3646
  %v3648 = vrot.slane %v3580, %v3647
  %v3649 = vlaneseq
  %v3650 = vshrl.u32 %v3649, 7
  %v3651 = vsub.s32 6, %v3650
  %v3652 = vrot.slane %v3580, %v3651
  %v3653 = vlaneseq
  %v3654 = vshrl.u32 %v3653, 7
  %v3655 = vsub.s32 7, %v3654
  %v3656 = vrot.slane %v3580, %v3655
  %v3657 = vlaneseq
  %v3658 = vshrl.u32 %v3657, 7
  %v3659 = vsub.s32 0, %v3658
  %v3660 = vrot.slane %v3581, %v3659
  %v3661 = vlaneseq
  %v3662 = vshrl.u32 %v3661, 7
  %v3663 = vsub.s32 1, %v3662
  %v3664 = vrot.slane %v3581, %v3663
  %v3665 = vlaneseq
  %v3666 = vshrl.u32 %v3665, 7
  %v3667 = vsub.s32 2, %v3666
  %v3668 = vrot.slane %v3581, %v3667
  %v3669 = vlaneseq
  %v3670 = vshrl.u32 %v3669, 7
  %v3671 = vsub.s32 3, %v3670
  %v3672 = vrot.slane %v3581, %v3671
  %v3673 = vlaneseq
  %v3674 = vshrl.u32 %v3673, 7
  %v3675 = vsub.s32 4, %v3674
  %v3676 = vrot.slane %v3581, %v3675
  %v3677 = vlaneseq
  %v3678 = vshrl.u32 %v3677, 7
  %v3679 = vsub.s32 5, %v3678
  %v3680 = vrot.slane %v3581, %v3679
  %v3681 = vlaneseq
  %v3682 = vshrl.u32 %v3681, 7
  %v3683 = vsub.s32 6, %v3682
  %v3684 = vrot.slane %v3581, %v3683
  %v3685 = vlaneseq
  %v3686 = vshrl.u32 %v3685, 7
  %v3687 = vsub.s32 7, %v3686
  %v3688 = vrot.slane %v3581, %v3687
  %v3689 = vlaneseq
  %v3690 = vshrl.u32 %v3689, 7
  %v3691 = vsub.s32 0, %v3690
  %v3692 = vrot.slane %v3582, %v3691
  %v3693 = vlaneseq
  %v3694 = vshrl.u32 %v3693, 7
  %v3695 = vsub.s32 1, %v3694
  %v3696 = vrot.slane %v3582, %v3695
  %v3697 = vlaneseq
  %v3698 = vshrl.u32 %v3697, 7
  %v3699 = vsub.s32 2, %v3698
  %v3700 = vrot.slane %v3582, %v3699
  %v3701 = vlaneseq
  %v3702 = vshrl.u32 %v3701, 7
  %v3703 = vsub.s32 3, %v3702
  %v3704 = vrot.slane %v3582, %v3703
  %v3705 = vlaneseq
  %v3706 = vshrl.u32 %v3705, 7
  %v3707 = vsub.s32 4, %v3706
  %v3708 = vrot.slane %v3582, %v3707
  %v3709 = vlaneseq
  %v3710 = vshrl.u32 %v3709, 7
  %v3711 = vsub.s32 5, %v3710
  %v3712 = vrot.slane %v3582, %v3711
  %v3713 = vlaneseq
  %v3714 = vshrl.u32 %v3713, 7
  %v3715 = vsub.s32 6, %v3714
  %v3716 = vrot.slane %v3582, %v3715
  %v3717 = vlaneseq
  %v3718 = vshrl.u32 %v3717, 7
  %v3719 = vsub.s32 7, %v3718
  %v3720 = vrot.slane %v3582, %v3719
  %v3721 = vlaneseq
  %v3722 = vshrl.u32 %v3721, 7
  %v3723 = vsub.s32 0, %v3722
  %v3724 = vrot.slane %v3583, %v3723
  %v3725 = vlaneseq
  %v3726 = vshrl.u32 %v3725, 7
  %v3727 = vsub.s32 1, %v3726
  %v3728 = vrot.slane %v3583, %v3727
  %v3729 = vlaneseq
  %v3730 = vshrl.u32 %v3729, 7
  %v3731 = vsub.s32 2, %v3730
  %v3732 = vrot.slane %v3583, %v3731
  %v3733 = vlaneseq
  %v3734 = vshrl.u32 %v3733, 7
  %v3735 = vsub.s32 3, %v3734
  %v3736 = vrot.slane %v3583, %v3735
  %v3737 = vlaneseq
  %v3738 = vshrl.u32 %v3737, 7
  %v3739 = vsub.s32 4, %v3738
  %v3740 = vrot.slane %v3583, %v3739
  %v3741 = vlaneseq
  %v3742 = vshrl.u32 %v3741, 7
  %v3743 = vsub.s32 5, %v3742
  %v3744 = vrot.slane %v3583, %v3743
  %v3745 = vlaneseq
  %v3746 = vshrl.u32 %v3745, 7
  %v3747 = vsub.s32 6, %v3746
  %v3748 = vrot.slane %v3583, %v3747
  %v3749 = vlaneseq
  %v3750 = vshrl.u32 %v3749, 7
  %v3751 = vsub.s32 7, %v3750
  %v3752 = vrot.slane %v3583, %v3751
  %v3753 = vlaneseq
  %v3754 = vshrl.u32 %v3753, 7
  %v3755 = vsub.s32 0, %v3754
  %v3756 = vrot.slane %v3584, %v3755
  %v3757 = vlaneseq
  %v3758 = vshrl.u32 %v3757, 7
  %v3759 = vsub.s32 1, %v3758
  %v3760 = vrot.slane %v3584, %v3759
  %v3761 = vlaneseq
  %v3762 = vshrl.u32 %v3761, 7
  %v3763 = vsub.s32 2, %v3762
  %v3764 = vrot.slane %v3584, %v3763
  %v3765 = vlaneseq
  %v3766 = vshrl.u32 %v3765, 7
  %v3767 = vsub.s32 3, %v3766
  %v3768 = vrot.slane %v3584, %v3767
  %v3769 = vlaneseq
  %v3770 = vshrl.u32 %v3769, 7
  %v3771 = vsub.s32 4, %v3770
  %v3772 = vrot.slane %v3584, %v3771
  %v3773 = vlaneseq
  %v3774 = vshrl.u32 %v3773, 7
  %v3775 = vsub.s32 5, %v3774
  %v3776 = vrot.slane %v3584, %v3775
  %v3777 = vlaneseq
  %v3778 = vshrl.u32 %v3777, 7
  %v3779 = vsub.s32 6, %v3778
  %v3780 = vrot.slane %v3584, %v3779
  %v3781 = vlaneseq
  %v3782 = vshrl.u32 %v3781, 7
  %v3783 = vsub.s32 7, %v3782
  %v3784 = vrot.slane %v3584, %v3783
  %v3785 = vlaneseq
  %v3786 = vshrl.u32 %v3785, 7
  %v3787 = vsub.s32 0, %v3786
  %v3788 = vrot.slane %v3585, %v3787
  %v3838 = vmul.f32 %v3530, %v3596
  %v3839 = vmul.f32 %v3531, %v3600
  %v3840 = vmul.f32 %v3532, %v3604
  %v3841 = vmul.f32 %v3533, %v3608
  %v3842 = vmul.f32 %v3534, %v3612
  %v3843 = vmul.f32 %v3535, %v3616
  %v3844 = vmul.f32 %v3536, %v3620
  %v3845 = vmul.f32 %v3537, %v3624
  %v3846 = vmul.f32 %v3538, %v3628
  %v3847 = vmul.f32 %v3539, %v3632
  %v3848 = vmul.f32 %v3540, %v3636
  %v3849 = vmul.f32 %v3541, %v3640
  %v3850 = vmul.f32 %v3542, %v3644
  %v3851 = vmul.f32 %v3543, %v3648
  %v3852 = vmul.f32 %v3544, %v3652
  %v3853 = vmul.f32 %v3545, %v3656
  %v3854 = vmul.f32 %v3546, %v3660
  %v3855 = vmul.f32 %v3547, %v3664
  %v3856 = vmul.f32 %v3548, %v3668
  %v3857 = vmul.f32 %v3549, %v3672
  %v3858 = vmul.f32 %v3550, %v3676
  %v3859 = vmul.f32 %v3551, %v3680
  %v3860 = vmul.f32 %v3552, %v3684
  %v3861 = vmul.f32 %v3553, %v3688
  %v3862 = vmul.f32 %v3554, %v3692
  %v3863 = vmul.f32 %v3555, %v3696
  %v3864 = vmul.f32 %v3556, %v3700
  %v3865 = vmul.f32 %v3557, %v3704
  %v3866 = vmul.f32 %v3558, %v3708
  %v3867 = vmul.f32 %v3559, %v3712
  %v3868 = vmul.f32 %v3560, %v3716
  %v3869 = vmul.f32 %v3561, %v3720
  %v3870 = vmul.f32 %v3562, %v3724
  %v3871 = vmul.f32 %v3563, %v3728
  %v3872 = vmul.f32 %v3564, %v3732
  %v3873 = vmul.f32 %v3565, %v3736
  %v3874 = vmul.f32 %v3566, %v3740
  %v3875 = vmul.f32 %v3567, %v3744
  %v3876 = vmul.f32 %v3568, %v3748
  %v3877 = vmul.f32 %v3569, %v3752
  %v3878 = vmul.f32 %v3570, %v3756
  %v3879 = vmul.f32 %v3571, %v3760
  %v3880 = vmul.f32 %v3572, %v3764
  %v3881 = vmul.f32 %v3573, %v3768
  %v3882 = vmul.f32 %v3574, %v3772
  %v3883 = vmul.f32 %v3575, %v3776
  %v3884 = vmul.f32 %v3576, %v3780
  %v3885 = vmul.f32 %v3577, %v3784
  %v3886 = vmul.f32 %v3578, %v3788
  %v3887 = vld [vmem:[%s4] sm:$0xff]
  %v3888 = vld [vmem:[%s4 + $0x8] sm:$0xff]
  %v3889 = vld [vmem:[%s4 + $0x10] sm:$0xff]
  %v3890 = vld [vmem:[%s4 + $0x18] sm:$0xff]
  %v3891 = vld [vmem:[%s4 + $0x20] sm:$0xff]
  %v3892 = vld [vmem:[%s4 + $0x28] sm:$0xff]
  %v3893 = vld [vmem:[%s4 + $0x30] sm:$0x1]
  %v3901 = vlaneseq
  %v3902 = vshrl.u32 %v3901, 7
  %v3903 = vsub.s32 0, %v3902
  %v3904 = vrot.slane %v3887, %v3903
  %v3905 = vlaneseq
  %v3906 = vshrl.u32 %v3905, 7
  %v3907 = vsub.s32 1, %v3906
  %v3908 = vrot.slane %v3887, %v3907
  %v3909 = vlaneseq
  %v3910 = vshrl.u32 %v3909, 7
  %v3911 = vsub.s32 2, %v3910
  %v3912 = vrot.slane %v3887, %v3911
  %v3913 = vlaneseq
  %v3914 = vshrl.u32 %v3913, 7
  %v3915 = vsub.s32 3, %v3914
  %v3916 = vrot.slane %v3887, %v3915
  %v3917 = vlaneseq
  %v3918 = vshrl.u32 %v3917, 7
  %v3919 = vsub.s32 4, %v3918
  %v3920 = vrot.slane %v3887, %v3919
  %v3921 = vlaneseq
  %v3922 = vshrl.u32 %v3921, 7
  %v3923 = vsub.s32 5, %v3922
  %v3924 = vrot.slane %v3887, %v3923
  %v3925 = vlaneseq
  %v3926 = vshrl.u32 %v3925, 7
  %v3927 = vsub.s32 6, %v3926
  %v3928 = vrot.slane %v3887, %v3927
  %v3929 = vlaneseq
  %v3930 = vshrl.u32 %v3929, 7
  %v3931 = vsub.s32 7, %v3930
  %v3932 = vrot.slane %v3887, %v3931
  %v3933 = vlaneseq
  %v3934 = vshrl.u32 %v3933, 7
  %v3935 = vsub.s32 0, %v3934
  %v3936 = vrot.slane %v3888, %v3935
  %v3937 = vlaneseq
  %v3938 = vshrl.u32 %v3937, 7
  %v3939 = vsub.s32 1, %v3938
  %v3940 = vrot.slane %v3888, %v3939
  %v3941 = vlaneseq
  %v3942 = vshrl.u32 %v3941, 7
  %v3943 = vsub.s32 2, %v3942
  %v3944 = vrot.slane %v3888, %v3943
  %v3945 = vlaneseq
  %v3946 = vshrl.u32 %v3945, 7
  %v3947 = vsub.s32 3, %v3946
  %v3948 = vrot.slane %v3888, %v3947
  %v3949 = vlaneseq
  %v3950 = vshrl.u32 %v3949, 7
  %v3951 = vsub.s32 4, %v3950
  %v3952 = vrot.slane %v3888, %v3951
  %v3953 = vlaneseq
  %v3954 = vshrl.u32 %v3953, 7
  %v3955 = vsub.s32 5, %v3954
  %v3956 = vrot.slane %v3888, %v3955
  %v3957 = vlaneseq
  %v3958 = vshrl.u32 %v3957, 7
  %v3959 = vsub.s32 6, %v3958
  %v3960 = vrot.slane %v3888, %v3959
  %v3961 = vlaneseq
  %v3962 = vshrl.u32 %v3961, 7
  %v3963 = vsub.s32 7, %v3962
  %v3964 = vrot.slane %v3888, %v3963
  %v3965 = vlaneseq
  %v3966 = vshrl.u32 %v3965, 7
  %v3967 = vsub.s32 0, %v3966
  %v3968 = vrot.slane %v3889, %v3967
  %v3969 = vlaneseq
  %v3970 = vshrl.u32 %v3969, 7
  %v3971 = vsub.s32 1, %v3970
  %v3972 = vrot.slane %v3889, %v3971
  %v3973 = vlaneseq
  %v3974 = vshrl.u32 %v3973, 7
  %v3975 = vsub.s32 2, %v3974
  %v3976 = vrot.slane %v3889, %v3975
  %v3977 = vlaneseq
  %v3978 = vshrl.u32 %v3977, 7
  %v3979 = vsub.s32 3, %v3978
  %v3980 = vrot.slane %v3889, %v3979
  %v3981 = vlaneseq
  %v3982 = vshrl.u32 %v3981, 7
  %v3983 = vsub.s32 4, %v3982
  %v3984 = vrot.slane %v3889, %v3983
  %v3985 = vlaneseq
  %v3986 = vshrl.u32 %v3985, 7
  %v3987 = vsub.s32 5, %v3986
  %v3988 = vrot.slane %v3889, %v3987
  %v3989 = vlaneseq
  %v3990 = vshrl.u32 %v3989, 7
  %v3991 = vsub.s32 6, %v3990
  %v3992 = vrot.slane %v3889, %v3991
  %v3993 = vlaneseq
  %v3994 = vshrl.u32 %v3993, 7
  %v3995 = vsub.s32 7, %v3994
  %v3996 = vrot.slane %v3889, %v3995
  %v3997 = vlaneseq
  %v3998 = vshrl.u32 %v3997, 7
  %v3999 = vsub.s32 0, %v3998
  %v4000 = vrot.slane %v3890, %v3999
  %v4001 = vlaneseq
  %v4002 = vshrl.u32 %v4001, 7
  %v4003 = vsub.s32 1, %v4002
  %v4004 = vrot.slane %v3890, %v4003
  %v4005 = vlaneseq
  %v4006 = vshrl.u32 %v4005, 7
  %v4007 = vsub.s32 2, %v4006
  %v4008 = vrot.slane %v3890, %v4007
  %v4009 = vlaneseq
  %v4010 = vshrl.u32 %v4009, 7
  %v4011 = vsub.s32 3, %v4010
  %v4012 = vrot.slane %v3890, %v4011
  %v4013 = vlaneseq
  %v4014 = vshrl.u32 %v4013, 7
  %v4015 = vsub.s32 4, %v4014
  %v4016 = vrot.slane %v3890, %v4015
  %v4017 = vlaneseq
  %v4018 = vshrl.u32 %v4017, 7
  %v4019 = vsub.s32 5, %v4018
  %v4020 = vrot.slane %v3890, %v4019
  %v4021 = vlaneseq
  %v4022 = vshrl.u32 %v4021, 7
  %v4023 = vsub.s32 6, %v4022
  %v4024 = vrot.slane %v3890, %v4023
  %v4025 = vlaneseq
  %v4026 = vshrl.u32 %v4025, 7
  %v4027 = vsub.s32 7, %v4026
  %v4028 = vrot.slane %v3890, %v4027
  %v4029 = vlaneseq
  %v4030 = vshrl.u32 %v4029, 7
  %v4031 = vsub.s32 0, %v4030
  %v4032 = vrot.slane %v3891, %v4031
  %v4033 = vlaneseq
  %v4034 = vshrl.u32 %v4033, 7
  %v4035 = vsub.s32 1, %v4034
  %v4036 = vrot.slane %v3891, %v4035
  %v4037 = vlaneseq
  %v4038 = vshrl.u32 %v4037, 7
  %v4039 = vsub.s32 2, %v4038
  %v4040 = vrot.slane %v3891, %v4039
  %v4041 = vlaneseq
  %v4042 = vshrl.u32 %v4041, 7
  %v4043 = vsub.s32 3, %v4042
  %v4044 = vrot.slane %v3891, %v4043
  %v4045 = vlaneseq
  %v4046 = vshrl.u32 %v4045, 7
  %v4047 = vsub.s32 4, %v4046
  %v4048 = vrot.slane %v3891, %v4047
  %v4049 = vlaneseq
  %v4050 = vshrl.u32 %v4049, 7
  %v4051 = vsub.s32 5, %v4050
  %v4052 = vrot.slane %v3891, %v4051
  %v4053 = vlaneseq
  %v4054 = vshrl.u32 %v4053, 7
  %v4055 = vsub.s32 6, %v4054
  %v4056 = vrot.slane %v3891, %v4055
  %v4057 = vlaneseq
  %v4058 = vshrl.u32 %v4057, 7
  %v4059 = vsub.s32 7, %v4058
  %v4060 = vrot.slane %v3891, %v4059
  %v4061 = vlaneseq
  %v4062 = vshrl.u32 %v4061, 7
  %v4063 = vsub.s32 0, %v4062
  %v4064 = vrot.slane %v3892, %v4063
  %v4065 = vlaneseq
  %v4066 = vshrl.u32 %v4065, 7
  %v4067 = vsub.s32 1, %v4066
  %v4068 = vrot.slane %v3892, %v4067
  %v4069 = vlaneseq
  %v4070 = vshrl.u32 %v4069, 7
  %v4071 = vsub.s32 2, %v4070
  %v4072 = vrot.slane %v3892, %v4071
  %v4073 = vlaneseq
  %v4074 = vshrl.u32 %v4073, 7
  %v4075 = vsub.s32 3, %v4074
  %v4076 = vrot.slane %v3892, %v4075
  %v4077 = vlaneseq
  %v4078 = vshrl.u32 %v4077, 7
  %v4079 = vsub.s32 4, %v4078
  %v4080 = vrot.slane %v3892, %v4079
  %v4081 = vlaneseq
  %v4082 = vshrl.u32 %v4081, 7
  %v4083 = vsub.s32 5, %v4082
  %v4084 = vrot.slane %v3892, %v4083
  %v4085 = vlaneseq
  %v4086 = vshrl.u32 %v4085, 7
  %v4087 = vsub.s32 6, %v4086
  %v4088 = vrot.slane %v3892, %v4087
  %v4089 = vlaneseq
  %v4090 = vshrl.u32 %v4089, 7
  %v4091 = vsub.s32 7, %v4090
  %v4092 = vrot.slane %v3892, %v4091
  %v4093 = vlaneseq
  %v4094 = vshrl.u32 %v4093, 7
  %v4095 = vsub.s32 0, %v4094
  %v4096 = vrot.slane %v3893, %v4095
  %v4146 = vadd.f32 %v3838, %v3904
  %v4147 = vadd.f32 %v3839, %v3908
  %v4148 = vadd.f32 %v3840, %v3912
  %v4149 = vadd.f32 %v3841, %v3916
  %v4150 = vadd.f32 %v3842, %v3920
  %v4151 = vadd.f32 %v3843, %v3924
  %v4152 = vadd.f32 %v3844, %v3928
  %v4153 = vadd.f32 %v3845, %v3932
  %v4154 = vadd.f32 %v3846, %v3936
  %v4155 = vadd.f32 %v3847, %v3940
  %v4156 = vadd.f32 %v3848, %v3944
  %v4157 = vadd.f32 %v3849, %v3948
  %v4158 = vadd.f32 %v3850, %v3952
  %v4159 = vadd.f32 %v3851, %v3956
  %v4160 = vadd.f32 %v3852, %v3960
  %v4161 = vadd.f32 %v3853, %v3964
  %v4162 = vadd.f32 %v3854, %v3968
  %v4163 = vadd.f32 %v3855, %v3972
  %v4164 = vadd.f32 %v3856, %v3976
  %v4165 = vadd.f32 %v3857, %v3980
  %v4166 = vadd.f32 %v3858, %v3984
  %v4167 = vadd.f32 %v3859, %v3988
  %v4168 = vadd.f32 %v3860, %v3992
  %v4169 = vadd.f32 %v3861, %v3996
  %v4170 = vadd.f32 %v3862, %v4000
  %v4171 = vadd.f32 %v3863, %v4004
  %v4172 = vadd.f32 %v3864, %v4008
  %v4173 = vadd.f32 %v3865, %v4012
  %v4174 = vadd.f32 %v3866, %v4016
  %v4175 = vadd.f32 %v3867, %v4020
  %v4176 = vadd.f32 %v3868, %v4024
  %v4177 = vadd.f32 %v3869, %v4028
  %v4178 = vadd.f32 %v3870, %v4032
  %v4179 = vadd.f32 %v3871, %v4036
  %v4180 = vadd.f32 %v3872, %v4040
  %v4181 = vadd.f32 %v3873, %v4044
  %v4182 = vadd.f32 %v3874, %v4048
  %v4183 = vadd.f32 %v3875, %v4052
  %v4184 = vadd.f32 %v3876, %v4056
  %v4185 = vadd.f32 %v3877, %v4060
  %v4186 = vadd.f32 %v3878, %v4064
  %v4187 = vadd.f32 %v3879, %v4068
  %v4188 = vadd.f32 %v3880, %v4072
  %v4189 = vadd.f32 %v3881, %v4076
  %v4190 = vadd.f32 %v3882, %v4080
  %v4191 = vadd.f32 %v3883, %v4084
  %v4192 = vadd.f32 %v3884, %v4088
  %v4193 = vadd.f32 %v3885, %v4092
  %v4194 = vadd.f32 %v3886, %v4096
  %vm4195 = vcmp.gt.f32.partialorder %v4146, 0.0
  %vm4196 = vcmp.gt.f32.partialorder %v4147, 0.0
  %vm4197 = vcmp.gt.f32.partialorder %v4148, 0.0
  %vm4198 = vcmp.gt.f32.partialorder %v4149, 0.0
  %vm4199 = vcmp.gt.f32.partialorder %v4150, 0.0
  %vm4200 = vcmp.gt.f32.partialorder %v4151, 0.0
  %vm4201 = vcmp.gt.f32.partialorder %v4152, 0.0
  %vm4202 = vcmp.gt.f32.partialorder %v4153, 0.0
  %vm4203 = vcmp.gt.f32.partialorder %v4154, 0.0
  %vm4204 = vcmp.gt.f32.partialorder %v4155, 0.0
  %vm4205 = vcmp.gt.f32.partialorder %v4156, 0.0
  %vm4206 = vcmp.gt.f32.partialorder %v4157, 0.0
  %vm4207 = vcmp.gt.f32.partialorder %v4158, 0.0
  %vm4208 = vcmp.gt.f32.partialorder %v4159, 0.0
  %vm4209 = vcmp.gt.f32.partialorder %v4160, 0.0
  %vm4210 = vcmp.gt.f32.partialorder %v4161, 0.0
  %vm4211 = vcmp.gt.f32.partialorder %v4162, 0.0
  %vm4212 = vcmp.gt.f32.partialorder %v4163, 0.0
  %vm4213 = vcmp.gt.f32.partialorder %v4164, 0.0
  %vm4214 = vcmp.gt.f32.partialorder %v4165, 0.0
  %vm4215 = vcmp.gt.f32.partialorder %v4166, 0.0
  %vm4216 = vcmp.gt.f32.partialorder %v4167, 0.0
  %vm4217 = vcmp.gt.f32.partialorder %v4168, 0.0
  %vm4218 = vcmp.gt.f32.partialorder %v4169, 0.0
  %vm4219 = vcmp.gt.f32.partialorder %v4170, 0.0
  %vm4220 = vcmp.gt.f32.partialorder %v4171, 0.0
  %vm4221 = vcmp.gt.f32.partialorder %v4172, 0.0
  %vm4222 = vcmp.gt.f32.partialorder %v4173, 0.0
  %vm4223 = vcmp.gt.f32.partialorder %v4174, 0.0
  %vm4224 = vcmp.gt.f32.partialorder %v4175, 0.0
  %vm4225 = vcmp.gt.f32.partialorder %v4176, 0.0
  %vm4226 = vcmp.gt.f32.partialorder %v4177, 0.0
  %vm4227 = vcmp.gt.f32.partialorder %v4178, 0.0
  %vm4228 = vcmp.gt.f32.partialorder %v4179, 0.0
  %vm4229 = vcmp.gt.f32.partialorder %v4180, 0.0
  %vm4230 = vcmp.gt.f32.partialorder %v4181, 0.0
  %vm4231 = vcmp.gt.f32.partialorder %v4182, 0.0
  %vm4232 = vcmp.gt.f32.partialorder %v4183, 0.0
  %vm4233 = vcmp.gt.f32.partialorder %v4184, 0.0
  %vm4234 = vcmp.gt.f32.partialorder %v4185, 0.0
  %vm4235 = vcmp.gt.f32.partialorder %v4186, 0.0
  %vm4236 = vcmp.gt.f32.partialorder %v4187, 0.0
  %vm4237 = vcmp.gt.f32.partialorder %v4188, 0.0
  %vm4238 = vcmp.gt.f32.partialorder %v4189, 0.0
  %vm4239 = vcmp.gt.f32.partialorder %v4190, 0.0
  %vm4240 = vcmp.gt.f32.partialorder %v4191, 0.0
  %vm4241 = vcmp.gt.f32.partialorder %v4192, 0.0
  %vm4242 = vcmp.gt.f32.partialorder %v4193, 0.0
  %vm4243 = vcmp.gt.f32.partialorder %v4194, 0.0
  %v4244 = vmul.f32 %v4146, 0.2
  %v4245 = vmul.f32 %v4147, 0.2
  %v4246 = vmul.f32 %v4148, 0.2
  %v4247 = vmul.f32 %v4149, 0.2
  %v4248 = vmul.f32 %v4150, 0.2
  %v4249 = vmul.f32 %v4151, 0.2
  %v4250 = vmul.f32 %v4152, 0.2
  %v4251 = vmul.f32 %v4153, 0.2
  %v4252 = vmul.f32 %v4154, 0.2
  %v4253 = vmul.f32 %v4155, 0.2
  %v4254 = vmul.f32 %v4156, 0.2
  %v4255 = vmul.f32 %v4157, 0.2
  %v4256 = vmul.f32 %v4158, 0.2
  %v4257 = vmul.f32 %v4159, 0.2
  %v4258 = vmul.f32 %v4160, 0.2
  %v4259 = vmul.f32 %v4161, 0.2
  %v4260 = vmul.f32 %v4162, 0.2
  %v4261 = vmul.f32 %v4163, 0.2
  %v4262 = vmul.f32 %v4164, 0.2
  %v4263 = vmul.f32 %v4165, 0.2
  %v4264 = vmul.f32 %v4166, 0.2
  %v4265 = vmul.f32 %v4167, 0.2
  %v4266 = vmul.f32 %v4168, 0.2
  %v4267 = vmul.f32 %v4169, 0.2
  %v4268 = vmul.f32 %v4170, 0.2
  %v4269 = vmul.f32 %v4171, 0.2
  %v4270 = vmul.f32 %v4172, 0.2
  %v4271 = vmul.f32 %v4173, 0.2
  %v4272 = vmul.f32 %v4174, 0.2
  %v4273 = vmul.f32 %v4175, 0.2
  %v4274 = vmul.f32 %v4176, 0.2
  %v4275 = vmul.f32 %v4177, 0.2
  %v4276 = vmul.f32 %v4178, 0.2
  %v4277 = vmul.f32 %v4179, 0.2
  %v4278 = vmul.f32 %v4180, 0.2
  %v4279 = vmul.f32 %v4181, 0.2
  %v4280 = vmul.f32 %v4182, 0.2
  %v4281 = vmul.f32 %v4183, 0.2
  %v4282 = vmul.f32 %v4184, 0.2
  %v4283 = vmul.f32 %v4185, 0.2
  %v4284 = vmul.f32 %v4186, 0.2
  %v4285 = vmul.f32 %v4187, 0.2
  %v4286 = vmul.f32 %v4188, 0.2
  %v4287 = vmul.f32 %v4189, 0.2
  %v4288 = vmul.f32 %v4190, 0.2
  %v4289 = vmul.f32 %v4191, 0.2
  %v4290 = vmul.f32 %v4192, 0.2
  %v4291 = vmul.f32 %v4193, 0.2
  %v4292 = vmul.f32 %v4194, 0.2
  %v4293 = vsel %vm4195, %v4146, %v4244
  %v4294 = vsel %vm4196, %v4147, %v4245
  %v4295 = vsel %vm4197, %v4148, %v4246
  %v4296 = vsel %vm4198, %v4149, %v4247
  %v4297 = vsel %vm4199, %v4150, %v4248
  %v4298 = vsel %vm4200, %v4151, %v4249
  %v4299 = vsel %vm4201, %v4152, %v4250
  %v4300 = vsel %vm4202, %v4153, %v4251
  %v4301 = vsel %vm4203, %v4154, %v4252
  %v4302 = vsel %vm4204, %v4155, %v4253
  %v4303 = vsel %vm4205, %v4156, %v4254
  %v4304 = vsel %vm4206, %v4157, %v4255
  %v4305 = vsel %vm4207, %v4158, %v4256
  %v4306 = vsel %vm4208, %v4159, %v4257
  %v4307 = vsel %vm4209, %v4160, %v4258
  %v4308 = vsel %vm4210, %v4161, %v4259
  %v4309 = vsel %vm4211, %v4162, %v4260
  %v4310 = vsel %vm4212, %v4163, %v4261
  %v4311 = vsel %vm4213, %v4164, %v4262
  %v4312 = vsel %vm4214, %v4165, %v4263
  %v4313 = vsel %vm4215, %v4166, %v4264
  %v4314 = vsel %vm4216, %v4167, %v4265
  %v4315 = vsel %vm4217, %v4168, %v4266
  %v4316 = vsel %vm4218, %v4169, %v4267
  %v4317 = vsel %vm4219, %v4170, %v4268
  %v4318 = vsel %vm4220, %v4171, %v4269
  %v4319 = vsel %vm4221, %v4172, %v4270
  %v4320 = vsel %vm4222, %v4173, %v4271
  %v4321 = vsel %vm4223, %v4174, %v4272
  %v4322 = vsel %vm4224, %v4175, %v4273
  %v4323 = vsel %vm4225, %v4176, %v4274
  %v4324 = vsel %vm4226, %v4177, %v4275
  %v4325 = vsel %vm4227, %v4178, %v4276
  %v4326 = vsel %vm4228, %v4179, %v4277
  %v4327 = vsel %vm4229, %v4180, %v4278
  %v4328 = vsel %vm4230, %v4181, %v4279
  %v4329 = vsel %vm4231, %v4182, %v4280
  %v4330 = vsel %vm4232, %v4183, %v4281
  %v4331 = vsel %vm4233, %v4184, %v4282
  %v4332 = vsel %vm4234, %v4185, %v4283
  %v4333 = vsel %vm4235, %v4186, %v4284
  %v4334 = vsel %vm4236, %v4187, %v4285
  %v4335 = vsel %vm4237, %v4188, %v4286
  %v4336 = vsel %vm4238, %v4189, %v4287
  %v4337 = vsel %vm4239, %v4190, %v4288
  %v4338 = vsel %vm4240, %v4191, %v4289
  %v4339 = vsel %vm4241, %v4192, %v4290
  %v4340 = vsel %vm4242, %v4193, %v4291
  %v4341 = vsel %vm4243, %v4194, %v4292
  %v4390 = vcombine.low %v4293, %v4294
  %v4391 = vcombine.low %v4295, %v4296
  %v4392 = vcombine.low %v4297, %v4298
  %v4393 = vcombine.low %v4299, %v4300
  %v4394 = vcombine.low %v4301, %v4302
  %v4395 = vcombine.low %v4303, %v4304
  %v4396 = vcombine.low %v4305, %v4306
  %v4397 = vcombine.low %v4307, %v4308
  %v4398 = vcombine.low %v4309, %v4310
  %v4399 = vcombine.low %v4311, %v4312
  %v4400 = vcombine.low %v4313, %v4314
  %v4401 = vcombine.low %v4315, %v4316
  %v4402 = vcombine.low %v4317, %v4318
  %v4403 = vcombine.low %v4319, %v4320
  %v4404 = vcombine.low %v4321, %v4322
  %v4405 = vcombine.low %v4323, %v4324
  %v4406 = vcombine.low %v4325, %v4326
  %v4407 = vcombine.low %v4327, %v4328
  %v4408 = vcombine.low %v4329, %v4330
  %v4409 = vcombine.low %v4331, %v4332
  %v4410 = vcombine.low %v4333, %v4334
  %v4411 = vcombine.low %v4335, %v4336
  %v4412 = vcombine.low %v4337, %v4338
  %v4413 = vcombine.low %v4339, %v4340
  %4438 = vst [vmem:[%s5] sm:$0xff] %v4390
  %4439 = vst [vmem:[%s5 + $0x8] sm:$0xff] %v4391
  %4440 = vst [vmem:[%s5 + $0x10] sm:$0xff] %v4392
  %4441 = vst [vmem:[%s5 + $0x18] sm:$0xff] %v4393
  %4442 = vst [vmem:[%s5 + $0x20] sm:$0xff] %v4394
  %4443 = vst [vmem:[%s5 + $0x28] sm:$0xff] %v4395
  %4444 = vst [vmem:[%s5 + $0x30] sm:$0xff] %v4396
  %4445 = vst [vmem:[%s5 + $0x38] sm:$0xff] %v4397
  %4446 = vst [vmem:[%s5 + $0x40] sm:$0xff] %v4398
  %4447 = vst [vmem:[%s5 + $0x48] sm:$0xff] %v4399
  %4448 = vst [vmem:[%s5 + $0x50] sm:$0xff] %v4400
  %4449 = vst [vmem:[%s5 + $0x58] sm:$0xff] %v4401
  %4450 = vst [vmem:[%s5 + $0x60] sm:$0xff] %v4402
  %4451 = vst [vmem:[%s5 + $0x68] sm:$0xff] %v4403
  %4452 = vst [vmem:[%s5 + $0x70] sm:$0xff] %v4404
  %4453 = vst [vmem:[%s5 + $0x78] sm:$0xff] %v4405
  %4454 = vst [vmem:[%s5 + $0x80] sm:$0xff] %v4406
  %4455 = vst [vmem:[%s5 + $0x88] sm:$0xff] %v4407
  %4456 = vst [vmem:[%s5 + $0x90] sm:$0xff] %v4408
  %4457 = vst [vmem:[%s5 + $0x98] sm:$0xff] %v4409
  %4458 = vst [vmem:[%s5 + $0xa0] sm:$0xff] %v4410
  %4459 = vst [vmem:[%s5 + $0xa8] sm:$0xff] %v4411
  %4460 = vst [vmem:[%s5 + $0xb0] sm:$0xff] %v4412
  %4461 = vst [vmem:[%s5 + $0xb8] sm:$0xff] %v4413
  %4462 = vst [vmem:[%s5 + $0xc0] sm:$0xf] %v4341
  // Predicated region
  $region22: #{px_z_forward.2} parent=0 // pred_check
    _
  $region23: #{px_z_forward.2} parent=0 // pred_check_branch
    %4464 = sbr.rel (0) target = $region25
  $region24: #{px_z_forward.2} parent=0 // pred_region
    _
  $region25: #{px_z_forward.2} parent=0 // pred_fallthru
    _
  // Predicated region
  $region26: #{px_z_forward.2} parent=0 // pred_check
    _
  $region27: #{px_z_forward.2} parent=0 // pred_check_branch
    %4466 = sbr.rel (0) target = $region29
  $region28: #{px_z_forward.2} parent=0 // pred_region
    _
  $region29: #{px_z_forward.2} parent=0 // pred_fallthru
    _

// kernel: px_z_forward.3
$region0: #{px_z_forward.3}
  #allocation0 [shape = 'u32[]', space=smem, size = 0x4, offset = 0x4, fixed_abs, tag = 'smem constant byte address 0x4 - core index']
  #allocation1 [shape = 'u32[144,128]{1,0:T(1,128)}', space=vmem, size = 0x12000, scoped, tag = 'internal scratch']
  %s0 = inlined_call_operand.vmem [shape: f32[56,448], index: 0, kind: input, shape index: {}]
  %s1 = inlined_call_operand.vmem [shape: f32[3,56,56], index: 1, kind: input, shape index: {}]
  %s2 = inlined_call_operand.vmem [shape: f32[3,448,224], index: 2, kind: input, shape index: {}]
  %s3 = inlined_call_operand.vmem [shape: f32[224,224], index: 3, kind: input, shape index: {}]
  %s4 = inlined_call_operand.vmem [shape: f32[1,224], index: 4, kind: input, shape index: {}]
  %s5 = inlined_call_operand.vmem [shape: f32[1,224], index: 5, kind: input, shape index: {}]
  %s6 = inlined_call_operand.vmem [shape: f32[224,448], index: 6, kind: input, shape index: {}]
  %s7 = inlined_call_operand.vmem [shape: f32[112,56], index: 7, kind: input, shape index: {}]
  %s8 = inlined_call_operand.vmem [shape: f32[3,112,112], index: 8, kind: input, shape index: {}]
  %s9 = inlined_call_operand.vmem [shape: f32[3,448,224], index: 9, kind: input, shape index: {}]
  %s10 = inlined_call_operand.vmem [shape: f32[224,224], index: 10, kind: input, shape index: {}]
  %s11 = inlined_call_operand.vmem [shape: f32[1,224], index: 11, kind: input, shape index: {}]
  %s12 = inlined_call_operand.vmem [shape: f32[1,224], index: 12, kind: input, shape index: {}]
  %s13 = inlined_call_operand.vmem [shape: f32[3,224,128], index: 13, kind: input, shape index: {}]
  %s14 = inlined_call_operand.hbm [shape: f32[112,128], index: 14, kind: output, shape index: {}]
  %s15 = sld [smem:[#allocation0]]
  $region66: #{px_z_forward.3} parent=0
    _
  %s17 = ssub.s32 1, %s15
  %s18 = scalar_select 0, %s17, %s15
  $region1: #{px_z_forward.3} parent=0
    #allocation2 [shape = 'u8[57344]{0}', space=vmem, size = 0xe000, scoped, tag = 'output window, operand 0, single buffered']
    #allocation3 [shape = 's32[1]{0}', space=sflag, size = 0x4, scoped, tag = 'scoped memory for px_z_forward.3']
    %19 = vsyncpa [#allocation3], 0
    // Predicated region
    $region2: #{px_z_forward.3} parent=1 // pred_check
      _
    $region3: #{px_z_forward.3} parent=1 // pred_check_branch
      %21 = sbr.rel (0) target = $region5
    $region4: #{px_z_forward.3} parent=1 // pred_region
      _
    $region5: #{px_z_forward.3} parent=1 // pred_fallthru
      _
    // Predicated region
    $region6: #{px_z_forward.3} parent=1 // pred_check
      _
    $region7: #{px_z_forward.3} parent=1 // pred_check_branch
      %23 = sbr.rel (0) target = $region9
    $region8: #{px_z_forward.3} parent=1 // pred_region
      _
    $region9: #{px_z_forward.3} parent=1 // pred_fallthru
      _
    // Predicated region
    $region10: #{px_z_forward.3} parent=1 // pred_check
      _
    $region11: #{px_z_forward.3} parent=1 // pred_check_branch
      %25 = sbr.rel (0) target = $region13
    $region12: #{px_z_forward.3} parent=1 // pred_region
      _
    $region13: #{px_z_forward.3} parent=1 // pred_fallthru
      _
    // Predicated region
    $region14: #{px_z_forward.3} parent=1 // pred_check
      _
    $region15: #{px_z_forward.3} parent=1 // pred_check_branch
      %27 = sbr.rel (0) target = $region17
    $region16: #{px_z_forward.3} parent=1 // pred_region
      _
    $region17: #{px_z_forward.3} parent=1 // pred_fallthru
      _
    // Predicated region
    $region18: #{px_z_forward.3} parent=1 // pred_check
      _
    $region19: #{px_z_forward.3} parent=1 // pred_check_branch
      %29 = sbr.rel (0) target = $region21
    $region20: #{px_z_forward.3} parent=1 // pred_region
      _
    $region21: #{px_z_forward.3} parent=1 // pred_fallthru
      _
    // Predicated region
    $region22: #{px_z_forward.3} parent=1 // pred_check
      _
    $region23: #{px_z_forward.3} parent=1 // pred_check_branch
      %31 = sbr.rel (0) target = $region25
    $region24: #{px_z_forward.3} parent=1 // pred_region
      _
    $region25: #{px_z_forward.3} parent=1 // pred_fallthru
      _
    // Predicated region
    $region26: #{px_z_forward.3} parent=1 // pred_check
      _
    $region27: #{px_z_forward.3} parent=1 // pred_check_branch
      %33 = sbr.rel (0) target = $region29
    $region28: #{px_z_forward.3} parent=1 // pred_region
      _
    $region29: #{px_z_forward.3} parent=1 // pred_fallthru
      _
    // Predicated region
    $region30: #{px_z_forward.3} parent=1 // pred_check
      _
    $region31: #{px_z_forward.3} parent=1 // pred_check_branch
      %35 = sbr.rel (0) target = $region33
    $region32: #{px_z_forward.3} parent=1 // pred_region
      _
    $region33: #{px_z_forward.3} parent=1 // pred_fallthru
      _
    // Predicated region
    $region34: #{px_z_forward.3} parent=1 // pred_check
      _
    $region35: #{px_z_forward.3} parent=1 // pred_check_branch
      %37 = sbr.rel (0) target = $region37
    $region36: #{px_z_forward.3} parent=1 // pred_region
      _
    $region37: #{px_z_forward.3} parent=1 // pred_fallthru
      _
    // Predicated region
    $region38: #{px_z_forward.3} parent=1 // pred_check
      _
    $region39: #{px_z_forward.3} parent=1 // pred_check_branch
      %39 = sbr.rel (0) target = $region41
    $region40: #{px_z_forward.3} parent=1 // pred_region
      _
    $region41: #{px_z_forward.3} parent=1 // pred_fallthru
      _
    // Predicated region
    $region42: #{px_z_forward.3} parent=1 // pred_check
      _
    $region43: #{px_z_forward.3} parent=1 // pred_check_branch
      %41 = sbr.rel (0) target = $region45
    $region44: #{px_z_forward.3} parent=1 // pred_region
      _
    $region45: #{px_z_forward.3} parent=1 // pred_fallthru
      _
    // Predicated region
    $region46: #{px_z_forward.3} parent=1 // pred_check
      _
    $region47: #{px_z_forward.3} parent=1 // pred_check_branch
      %43 = sbr.rel (0) target = $region49
    $region48: #{px_z_forward.3} parent=1 // pred_region
      _
    $region49: #{px_z_forward.3} parent=1 // pred_fallthru
      _
    // Predicated region
    $region50: #{px_z_forward.3} parent=1 // pred_check
      _
    $region51: #{px_z_forward.3} parent=1 // pred_check_branch
      %45 = sbr.rel (0) target = $region53
    $region52: #{px_z_forward.3} parent=1 // pred_region
      _
    $region53: #{px_z_forward.3} parent=1 // pred_fallthru
      _
    // Predicated region
    $region54: #{px_z_forward.3} parent=1 // pred_check
      _
    $region55: #{px_z_forward.3} parent=1 // pred_check_branch
      %47 = sbr.rel (0) target = $region57
    $region56: #{px_z_forward.3} parent=1 // pred_region
      _
    $region57: #{px_z_forward.3} parent=1 // pred_fallthru
      _
    %v48 = vld [vmem:[%s0] sm:$0xff]
    %v49 = vld [vmem:[%s0 + $0x8] sm:$0xff]
    %v50 = vld [vmem:[%s0 + $0x10] sm:$0xff]
    %v51 = vld [vmem:[%s0 + $0x18] sm:$0xff]
    %v52 = vld [vmem:[%s0 + $0x20] sm:$0xff]
    %v53 = vld [vmem:[%s0 + $0x28] sm:$0xff]
    %v54 = vld [vmem:[%s0 + $0x30] sm:$0xff]
    %v55 = vld [vmem:[%s0 + $0x38] sm:$0xff]
    %v56 = vld [vmem:[%s0 + $0x40] sm:$0xff]
    %v57 = vld [vmem:[%s0 + $0x48] sm:$0xff]
    %v58 = vld [vmem:[%s0 + $0x50] sm:$0xff]
    %v59 = vld [vmem:[%s0 + $0x58] sm:$0xff]
    %v60 = vld [vmem:[%s0 + $0x60] sm:$0xff]
    %v61 = vld [vmem:[%s0 + $0x68] sm:$0xff]
    %v62 = vld [vmem:[%s0 + $0x70] sm:$0xff]
    %v63 = vld [vmem:[%s0 + $0x78] sm:$0xff]
    %v64 = vld [vmem:[%s0 + $0x80] sm:$0xff]
    %v65 = vld [vmem:[%s0 + $0x88] sm:$0xff]
    %v66 = vld [vmem:[%s0 + $0x90] sm:$0xff]
    %v67 = vld [vmem:[%s0 + $0x98] sm:$0xff]
    %v68 = vld [vmem:[%s0 + $0xa0] sm:$0xff]
    %v69 = vld [vmem:[%s0 + $0xa8] sm:$0xff]
    %v70 = vld [vmem:[%s0 + $0xb0] sm:$0xff]
    %v71 = vld [vmem:[%s0 + $0xb8] sm:$0xff]
    %v72 = vld [vmem:[%s0 + $0xc0] sm:$0xff]
    %v73 = vld [vmem:[%s0 + $0xc8] sm:$0xff]
    %v74 = vld [vmem:[%s0 + $0xd0] sm:$0xff]
    %v75 = vld [vmem:[%s0 + $0xd8] sm:$0xff]
    %v76 = vld [vmem:[%s1] sm:$0xff]
    %v77 = vld [vmem:[%s1 + $0x8] sm:$0xff]
    %v78 = vld [vmem:[%s1 + $0x10] sm:$0xff]
    %v79 = vld [vmem:[%s1 + $0x18] sm:$0xff]
    %v80 = vld [vmem:[%s1 + $0x20] sm:$0xff]
    %v81 = vld [vmem:[%s1 + $0x28] sm:$0xff]
    %v82 = vld [vmem:[%s1 + $0x30] sm:$0xff]
    %vm83 = vcmask 457728
    %v85 = vsel %vm83, %v76, 0
    %v88 = vsel %vm83, %v77, 0
    %v91 = vsel %vm83, %v78, 0
    %v94 = vsel %vm83, %v79, 0
    %v97 = vsel %vm83, %v80, 0
    %v100 = vsel %vm83, %v81, 0
    %v103 = vsel %vm83, %v82, 0
    %105 = vmatprep.subr.mxu0 0.0
    %106 = vmatpush1.msra.mxu0 0.0
    %107 = vmatprep.subr.mxu0 0.0
    %108 = vmatpush1.msra.mxu0 0.0
    %109 = vmatprep.subr.mxu0 0.0
    %110 = vmatpush1.msra.mxu0 0.0
    %111 = vmatprep.subr.mxu0 0.0
    %112 = vmatpush1.msra.mxu0 0.0
    %113 = vmatprep.subr.mxu0 0.0
    %114 = vmatpush1.msra.mxu0 0.0
    %115 = vmatprep.subr.mxu0 0.0
    %116 = vmatpush1.msra.mxu0 0.0
    %117 = vmatprep.subr.mxu0 0.0
    %118 = vmatpush1.msra.mxu0 0.0
    %119 = vmatprep.subr.mxu0 0.0
    %120 = vmatpush1.msra.mxu0 0.0
    %121 = vmatprep.subr.mxu0 0.0
    %122 = vmatpush1.msra.mxu0 0.0
    %123 = vmatprep.subr.mxu0 %v73
    %124 = vmatpush1.msra.mxu0 %v72
    %125 = vmatprep.subr.mxu0 %v69
    %126 = vmatpush1.msra.mxu0 %v68
    %127 = vmatprep.subr.mxu0 %v65
    %128 = vmatpush1.msra.mxu0 %v64
    %129 = vmatprep.subr.mxu0 %v61
    %130 = vmatpush1.msra.mxu0 %v60
    %131 = vmatprep.subr.mxu0 %v57
    %132 = vmatpush1.msra.mxu0 %v56
    %133 = vmatprep.subr.mxu0 %v53
    %134 = vmatpush1.msra.mxu0 %v52
    %135 = vmatprep.subr.mxu0 %v49
    %136 = vmatpush1.msra.mxu0 %v48
    %137 = vmatprep.subr.mxu0 0.0
    %138 = vmatpush2.msra.mxu0 0.0
    %139 = vmatprep.subr.mxu0 0.0
    %140 = vmatpush2.msra.mxu0 0.0
    %141 = vmatprep.subr.mxu0 0.0
    %142 = vmatpush2.msra.mxu0 0.0
    %143 = vmatprep.subr.mxu0 0.0
    %144 = vmatpush2.msra.mxu0 0.0
    %145 = vmatprep.subr.mxu0 0.0
    %146 = vmatpush2.msra.mxu0 0.0
    %147 = vmatprep.subr.mxu0 0.0
    %148 = vmatpush2.msra.mxu0 0.0
    %149 = vmatprep.subr.mxu0 0.0
    %150 = vmatpush2.msra.mxu0 0.0
    %151 = vmatprep.subr.mxu0 0.0
    %152 = vmatpush2.msra.mxu0 0.0
    %153 = vmatprep.subr.mxu0 0.0
    %154 = vmatpush2.msra.mxu0 0.0
    %155 = vmatprep.subr.mxu0 0.0
    %156 = vmatpush2.msra.mxu0 0.0
    %157 = vmatprep.subr.mxu0 0.0
    %158 = vmatpush2.msra.mxu0 0.0
    %159 = vmatprep.subr.mxu0 0.0
    %160 = vmatpush2.msra.mxu0 0.0
    %161 = vmatprep.subr.mxu0 0.0
    %162 = vmatpush2.msra.mxu0 0.0
    %163 = vmatprep.subr.mxu0 0.0
    %164 = vmatpush2.msra.mxu0 0.0
    %165 = vmatprep.subr.mxu0 0.0
    %166 = vmatpush2.msra.mxu0 0.0
    %167 = vmatprep.subr.mxu0 0.0
    %168 = vmatpush2.msra.mxu0 0.0
    %169 = vmatprep.mubr.f32.mxu0 0.0
    %170 = vmatmul.mubr.f32.gmra.mxu0 %v85
    %v171 = vpop.f32.mrf.mxu0
    %v172 = vadd.f32 0.0, %v171
    %v173 = vpop.f32.mrf.mxu0
    %v174 = vadd.f32 0.0, %v173
    %175 = vmatprep.mubr.f32.mxu0 0.0
    %176 = vmatmul.mubr.f32.gmra.mxu0 %v88
    %v177 = vpop.f32.mrf.mxu0
    %v178 = vadd.f32 0.0, %v177
    %v179 = vpop.f32.mrf.mxu0
    %v180 = vadd.f32 0.0, %v179
    %181 = vmatprep.mubr.f32.mxu0 0.0
    %182 = vmatmul.mubr.f32.gmra.mxu0 %v91
    %v183 = vpop.f32.mrf.mxu0
    %v184 = vadd.f32 0.0, %v183
    %v185 = vpop.f32.mrf.mxu0
    %v186 = vadd.f32 0.0, %v185
    %187 = vmatprep.mubr.f32.mxu0 0.0
    %188 = vmatmul.mubr.f32.gmra.mxu0 %v94
    %v189 = vpop.f32.mrf.mxu0
    %v190 = vadd.f32 0.0, %v189
    %v191 = vpop.f32.mrf.mxu0
    %v192 = vadd.f32 0.0, %v191
    %193 = vmatprep.mubr.f32.mxu0 0.0
    %194 = vmatmul.mubr.f32.gmra.mxu0 %v97
    %v195 = vpop.f32.mrf.mxu0
    %v196 = vadd.f32 0.0, %v195
    %v197 = vpop.f32.mrf.mxu0
    %v198 = vadd.f32 0.0, %v197
    %199 = vmatprep.mubr.f32.mxu0 0.0
    %200 = vmatmul.mubr.f32.gmra.mxu0 %v100
    %v201 = vpop.f32.mrf.mxu0
    %v202 = vadd.f32 0.0, %v201
    %v203 = vpop.f32.mrf.mxu0
    %v204 = vadd.f32 0.0, %v203
    %205 = vmatprep.mubr.f32.mxu0 0.0
    %206 = vmatmul.mubr.f32.gmra.mxu0 %v103
    %v207 = vpop.f32.mrf.mxu0
    %v208 = vadd.f32 0.0, %v207
    %v209 = vpop.f32.mrf.mxu0
    %v210 = vadd.f32 0.0, %v209
    %211 = vdwg.mxu0
    %212 = vmatprep.subr.mxu0 0.0
    %213 = vmatpush1.msra.mxu0 0.0
    %214 = vmatprep.subr.mxu0 0.0
    %215 = vmatpush1.msra.mxu0 0.0
    %216 = vmatprep.subr.mxu0 0.0
    %217 = vmatpush1.msra.mxu0 0.0
    %218 = vmatprep.subr.mxu0 0.0
    %219 = vmatpush1.msra.mxu0 0.0
    %220 = vmatprep.subr.mxu0 0.0
    %221 = vmatpush1.msra.mxu0 0.0
    %222 = vmatprep.subr.mxu0 0.0
    %223 = vmatpush1.msra.mxu0 0.0
    %224 = vmatprep.subr.mxu0 0.0
    %225 = vmatpush1.msra.mxu0 0.0
    %226 = vmatprep.subr.mxu0 0.0
    %227 = vmatpush1.msra.mxu0 0.0
    %228 = vmatprep.subr.mxu0 0.0
    %229 = vmatpush1.msra.mxu0 0.0
    %230 = vmatprep.subr.mxu0 %v75
    %231 = vmatpush1.msra.mxu0 %v74
    %232 = vmatprep.subr.mxu0 %v71
    %233 = vmatpush1.msra.mxu0 %v70
    %234 = vmatprep.subr.mxu0 %v67
    %235 = vmatpush1.msra.mxu0 %v66
    %236 = vmatprep.subr.mxu0 %v63
    %237 = vmatpush1.msra.mxu0 %v62
    %238 = vmatprep.subr.mxu0 %v59
    %239 = vmatpush1.msra.mxu0 %v58
    %240 = vmatprep.subr.mxu0 %v55
    %241 = vmatpush1.msra.mxu0 %v54
    %242 = vmatprep.subr.mxu0 %v51
    %243 = vmatpush1.msra.mxu0 %v50
    %244 = vmatprep.subr.mxu0 0.0
    %245 = vmatpush2.msra.mxu0 0.0
    %246 = vmatprep.subr.mxu0 0.0
    %247 = vmatpush2.msra.mxu0 0.0
    %248 = vmatprep.subr.mxu0 0.0
    %249 = vmatpush2.msra.mxu0 0.0
    %250 = vmatprep.subr.mxu0 0.0
    %251 = vmatpush2.msra.mxu0 0.0
    %252 = vmatprep.subr.mxu0 0.0
    %253 = vmatpush2.msra.mxu0 0.0
    %254 = vmatprep.subr.mxu0 0.0
    %255 = vmatpush2.msra.mxu0 0.0
    %256 = vmatprep.subr.mxu0 0.0
    %257 = vmatpush2.msra.mxu0 0.0
    %258 = vmatprep.subr.mxu0 0.0
    %259 = vmatpush2.msra.mxu0 0.0
    %260 = vmatprep.subr.mxu0 0.0
    %261 = vmatpush2.msra.mxu0 0.0
    %262 = vmatprep.subr.mxu0 0.0
    %263 = vmatpush2.msra.mxu0 0.0
    %264 = vmatprep.subr.mxu0 0.0
    %265 = vmatpush2.msra.mxu0 0.0
    %266 = vmatprep.subr.mxu0 0.0
    %267 = vmatpush2.msra.mxu0 0.0
    %268 = vmatprep.subr.mxu0 0.0
    %269 = vmatpush2.msra.mxu0 0.0
    %270 = vmatprep.subr.mxu0 0.0
    %271 = vmatpush2.msra.mxu0 0.0
    %272 = vmatprep.subr.mxu0 0.0
    %273 = vmatpush2.msra.mxu0 0.0
    %274 = vmatprep.subr.mxu0 0.0
    %275 = vmatpush2.msra.mxu0 0.0
    %276 = vmatprep.mubr.f32.mxu0 0.0
    %277 = vmatmul.mubr.f32.gmra.mxu0 %v85
    %v278 = vpop.f32.mrf.mxu0
    %v279 = vadd.f32 0.0, %v278
    %v280 = vpop.f32.mrf.mxu0
    %v281 = vadd.f32 0.0, %v280
    %282 = vmatprep.mubr.f32.mxu0 0.0
    %283 = vmatmul.mubr.f32.gmra.mxu0 %v88
    %v284 = vpop.f32.mrf.mxu0
    %v285 = vadd.f32 0.0, %v284
    %v286 = vpop.f32.mrf.mxu0
    %v287 = vadd.f32 0.0, %v286
    %288 = vmatprep.mubr.f32.mxu0 0.0
    %289 = vmatmul.mubr.f32.gmra.mxu0 %v91
    %v290 = vpop.f32.mrf.mxu0
    %v291 = vadd.f32 0.0, %v290
    %v292 = vpop.f32.mrf.mxu0
    %v293 = vadd.f32 0.0, %v292
    %294 = vmatprep.mubr.f32.mxu0 0.0
    %295 = vmatmul.mubr.f32.gmra.mxu0 %v94
    %v296 = vpop.f32.mrf.mxu0
    %v297 = vadd.f32 0.0, %v296
    %v298 = vpop.f32.mrf.mxu0
    %v299 = vadd.f32 0.0, %v298
    %300 = vmatprep.mubr.f32.mxu0 0.0
    %301 = vmatmul.mubr.f32.gmra.mxu0 %v97
    %v302 = vpop.f32.mrf.mxu0
    %v303 = vadd.f32 0.0, %v302
    %v304 = vpop.f32.mrf.mxu0
    %v305 = vadd.f32 0.0, %v304
    %306 = vmatprep.mubr.f32.mxu0 0.0
    %307 = vmatmul.mubr.f32.gmra.mxu0 %v100
    %v308 = vpop.f32.mrf.mxu0
    %v309 = vadd.f32 0.0, %v308
    %v310 = vpop.f32.mrf.mxu0
    %v311 = vadd.f32 0.0, %v310
    %312 = vmatprep.mubr.f32.mxu0 0.0
    %313 = vmatmul.mubr.f32.gmra.mxu0 %v103
    %v314 = vpop.f32.mrf.mxu0
    %v315 = vadd.f32 0.0, %v314
    %v316 = vpop.f32.mrf.mxu0
    %v317 = vadd.f32 0.0, %v316
    %318 = vdwg.mxu0
    %v319 = vld [vmem:[%s2] sm:$0xff]
    %v320 = vld [vmem:[%s2 + $0x8] sm:$0xff]
    %v321 = vld [vmem:[%s2 + $0x10] sm:$0xff]
    %v322 = vld [vmem:[%s2 + $0x18] sm:$0xff]
    %v323 = vld [vmem:[%s2 + $0x20] sm:$0xff]
    %v324 = vld [vmem:[%s2 + $0x28] sm:$0xff]
    %v325 = vld [vmem:[%s2 + $0x30] sm:$0xff]
    %v326 = vld [vmem:[%s2 + $0x38] sm:$0xff]
    %v327 = vld [vmem:[%s2 + $0x40] sm:$0xff]
    %v328 = vld [vmem:[%s2 + $0x48] sm:$0xff]
    %v329 = vld [vmem:[%s2 + $0x50] sm:$0xff]
    %v330 = vld [vmem:[%s2 + $0x58] sm:$0xff]
    %v331 = vld [vmem:[%s2 + $0x60] sm:$0xff]
    %v332 = vld [vmem:[%s2 + $0x68] sm:$0xff]
    %v333 = vld [vmem:[%s2 + $0x70] sm:$0xff]
    %v334 = vld [vmem:[%s2 + $0x78] sm:$0xff]
    %v335 = vld [vmem:[%s2 + $0x80] sm:$0xff]
    %v336 = vld [vmem:[%s2 + $0x88] sm:$0xff]
    %v337 = vld [vmem:[%s2 + $0x90] sm:$0xff]
    %v338 = vld [vmem:[%s2 + $0x98] sm:$0xff]
    %v339 = vld [vmem:[%s2 + $0xa0] sm:$0xff]
    %v340 = vld [vmem:[%s2 + $0xa8] sm:$0xff]
    %v341 = vld [vmem:[%s2 + $0xb0] sm:$0xff]
    %v342 = vld [vmem:[%s2 + $0xb8] sm:$0xff]
    %v343 = vld [vmem:[%s2 + $0xc0] sm:$0xff]
    %v344 = vld [vmem:[%s2 + $0xc8] sm:$0xff]
    %v345 = vld [vmem:[%s2 + $0xd0] sm:$0xff]
    %v346 = vld [vmem:[%s2 + $0xd8] sm:$0xff]
    %v347 = vld [vmem:[%s2 + $0xe0] sm:$0xff]
    %v348 = vld [vmem:[%s2 + $0xe8] sm:$0xff]
    %v349 = vld [vmem:[%s2 + $0xf0] sm:$0xff]
    %v350 = vld [vmem:[%s2 + $0xf8] sm:$0xff]
    %v351 = vld [vmem:[%s2 + $0x100] sm:$0xff]
    %v352 = vld [vmem:[%s2 + $0x108] sm:$0xff]
    %v353 = vld [vmem:[%s2 + $0x110] sm:$0xff]
    %v354 = vld [vmem:[%s2 + $0x118] sm:$0xff]
    %v355 = vld [vmem:[%s2 + $0x120] sm:$0xff]
    %v356 = vld [vmem:[%s2 + $0x128] sm:$0xff]
    %v357 = vld [vmem:[%s2 + $0x130] sm:$0xff]
    %v358 = vld [vmem:[%s2 + $0x138] sm:$0xff]
    %v359 = vld [vmem:[%s2 + $0x140] sm:$0xff]
    %v360 = vld [vmem:[%s2 + $0x148] sm:$0xff]
    %v361 = vld [vmem:[%s2 + $0x150] sm:$0xff]
    %v362 = vld [vmem:[%s2 + $0x158] sm:$0xff]
    %v363 = vld [vmem:[%s2 + $0x160] sm:$0xff]
    %v364 = vld [vmem:[%s2 + $0x168] sm:$0xff]
    %v365 = vld [vmem:[%s2 + $0x170] sm:$0xff]
    %v366 = vld [vmem:[%s2 + $0x178] sm:$0xff]
    %v367 = vld [vmem:[%s2 + $0x180] sm:$0xff]
    %v368 = vld [vmem:[%s2 + $0x188] sm:$0xff]
    %v369 = vld [vmem:[%s2 + $0x190] sm:$0xff]
    %v370 = vld [vmem:[%s2 + $0x198] sm:$0xff]
    %v371 = vld [vmem:[%s2 + $0x1a0] sm:$0xff]
    %v372 = vld [vmem:[%s2 + $0x1a8] sm:$0xff]
    %v373 = vld [vmem:[%s2 + $0x1b0] sm:$0xff]
    %v374 = vld [vmem:[%s2 + $0x1b8] sm:$0xff]
    %v375 = vld [vmem:[%s2 + $0x1c0] sm:$0xff]
    %v376 = vld [vmem:[%s2 + $0x1c8] sm:$0xff]
    %v377 = vld [vmem:[%s2 + $0x1d0] sm:$0xff]
    %v378 = vld [vmem:[%s2 + $0x1d8] sm:$0xff]
    %v379 = vld [vmem:[%s2 + $0x1e0] sm:$0xff]
    %v380 = vld [vmem:[%s2 + $0x1e8] sm:$0xff]
    %v381 = vld [vmem:[%s2 + $0x1f0] sm:$0xff]
    %v382 = vld [vmem:[%s2 + $0x1f8] sm:$0xff]
    %v383 = vld [vmem:[%s2 + $0x200] sm:$0xff]
    %v384 = vld [vmem:[%s2 + $0x208] sm:$0xff]
    %v385 = vld [vmem:[%s2 + $0x210] sm:$0xff]
    %v386 = vld [vmem:[%s2 + $0x218] sm:$0xff]
    %v387 = vld [vmem:[%s2 + $0x220] sm:$0xff]
    %v388 = vld [vmem:[%s2 + $0x228] sm:$0xff]
    %v389 = vld [vmem:[%s2 + $0x230] sm:$0xff]
    %v390 = vld [vmem:[%s2 + $0x238] sm:$0xff]
    %v391 = vld [vmem:[%s2 + $0x240] sm:$0xff]
    %v392 = vld [vmem:[%s2 + $0x248] sm:$0xff]
    %v393 = vld [vmem:[%s2 + $0x250] sm:$0xff]
    %v394 = vld [vmem:[%s2 + $0x258] sm:$0xff]
    %v395 = vld [vmem:[%s2 + $0x260] sm:$0xff]
    %v396 = vld [vmem:[%s2 + $0x268] sm:$0xff]
    %v397 = vld [vmem:[%s2 + $0x270] sm:$0xff]
    %v398 = vld [vmem:[%s2 + $0x278] sm:$0xff]
    %v399 = vld [vmem:[%s2 + $0x280] sm:$0xff]
    %v400 = vld [vmem:[%s2 + $0x288] sm:$0xff]
    %v401 = vld [vmem:[%s2 + $0x290] sm:$0xff]
    %v402 = vld [vmem:[%s2 + $0x298] sm:$0xff]
    %v403 = vld [vmem:[%s2 + $0x2a0] sm:$0xff]
    %v404 = vld [vmem:[%s2 + $0x2a8] sm:$0xff]
    %v405 = vld [vmem:[%s2 + $0x2b0] sm:$0xff]
    %v406 = vld [vmem:[%s2 + $0x2b8] sm:$0xff]
    %v407 = vld [vmem:[%s2 + $0x2c0] sm:$0xff]
    %v408 = vld [vmem:[%s2 + $0x2c8] sm:$0xff]
    %v409 = vld [vmem:[%s2 + $0x2d0] sm:$0xff]
    %v410 = vld [vmem:[%s2 + $0x2d8] sm:$0xff]
    %v411 = vld [vmem:[%s2 + $0x2e0] sm:$0xff]
    %v412 = vld [vmem:[%s2 + $0x2e8] sm:$0xff]
    %v413 = vld [vmem:[%s2 + $0x2f0] sm:$0xff]
    %v414 = vld [vmem:[%s2 + $0x2f8] sm:$0xff]
    %v415 = vld [vmem:[%s2 + $0x300] sm:$0xff]
    %v416 = vld [vmem:[%s2 + $0x308] sm:$0xff]
    %v417 = vld [vmem:[%s2 + $0x310] sm:$0xff]
    %v418 = vld [vmem:[%s2 + $0x318] sm:$0xff]
    %v419 = vld [vmem:[%s2 + $0x320] sm:$0xff]
    %v420 = vld [vmem:[%s2 + $0x328] sm:$0xff]
    %v421 = vld [vmem:[%s2 + $0x330] sm:$0xff]
    %v422 = vld [vmem:[%s2 + $0x338] sm:$0xff]
    %v423 = vld [vmem:[%s2 + $0x340] sm:$0xff]
    %v424 = vld [vmem:[%s2 + $0x348] sm:$0xff]
    %v425 = vld [vmem:[%s2 + $0x350] sm:$0xff]
    %v426 = vld [vmem:[%s2 + $0x358] sm:$0xff]
    %v427 = vld [vmem:[%s2 + $0x360] sm:$0xff]
    %v428 = vld [vmem:[%s2 + $0x368] sm:$0xff]
    %v429 = vld [vmem:[%s2 + $0x370] sm:$0xff]
    %v430 = vld [vmem:[%s2 + $0x378] sm:$0xff]
    %s431 = scalar_lea.vmem %s1, 56
    %v432 = vld [vmem:[%s431] sm:$0xff]
    %v433 = vld [vmem:[%s431 + $0x8] sm:$0xff]
    %v434 = vld [vmem:[%s431 + $0x10] sm:$0xff]
    %v435 = vld [vmem:[%s431 + $0x18] sm:$0xff]
    %v436 = vld [vmem:[%s431 + $0x20] sm:$0xff]
    %v437 = vld [vmem:[%s431 + $0x28] sm:$0xff]
    %v438 = vld [vmem:[%s431 + $0x30] sm:$0xff]
    %v440 = vsel %vm83, %v432, 0
    %v443 = vsel %vm83, %v433, 0
    %v446 = vsel %vm83, %v434, 0
    %v449 = vsel %vm83, %v435, 0
    %v452 = vsel %vm83, %v436, 0
    %v455 = vsel %vm83, %v437, 0
    %v458 = vsel %vm83, %v438, 0
    %460 = vmatprep.subr.mxu0 0.0
    %461 = vmatpush1.msra.mxu0 0.0
    %462 = vmatprep.subr.mxu0 0.0
    %463 = vmatpush1.msra.mxu0 0.0
    %464 = vmatprep.subr.mxu0 0.0
    %465 = vmatpush1.msra.mxu0 0.0
    %466 = vmatprep.subr.mxu0 0.0
    %467 = vmatpush1.msra.mxu0 0.0
    %468 = vmatprep.subr.mxu0 0.0
    %469 = vmatpush1.msra.mxu0 0.0
    %470 = vmatprep.subr.mxu0 0.0
    %471 = vmatpush1.msra.mxu0 0.0
    %472 = vmatprep.subr.mxu0 0.0
    %473 = vmatpush1.msra.mxu0 0.0
    %474 = vmatprep.subr.mxu0 0.0
    %475 = vmatpush1.msra.mxu0 0.0
    %476 = vmatprep.subr.mxu0 0.0
    %477 = vmatpush1.msra.mxu0 0.0
    %478 = vmatprep.subr.mxu0 %v73
    %479 = vmatpush1.msra.mxu0 %v72
    %480 = vmatprep.subr.mxu0 %v69
    %481 = vmatpush1.msra.mxu0 %v68
    %482 = vmatprep.subr.mxu0 %v65
    %483 = vmatpush1.msra.mxu0 %v64
    %484 = vmatprep.subr.mxu0 %v61
    %485 = vmatpush1.msra.mxu0 %v60
    %486 = vmatprep.subr.mxu0 %v57
    %487 = vmatpush1.msra.mxu0 %v56
    %488 = vmatprep.subr.mxu0 %v53
    %489 = vmatpush1.msra.mxu0 %v52
    %490 = vmatprep.subr.mxu0 %v49
    %491 = vmatpush1.msra.mxu0 %v48
    %492 = vmatprep.subr.mxu0 0.0
    %493 = vmatpush2.msra.mxu0 0.0
    %494 = vmatprep.subr.mxu0 0.0
    %495 = vmatpush2.msra.mxu0 0.0
    %496 = vmatprep.subr.mxu0 0.0
    %497 = vmatpush2.msra.mxu0 0.0
    %498 = vmatprep.subr.mxu0 0.0
    %499 = vmatpush2.msra.mxu0 0.0
    %500 = vmatprep.subr.mxu0 0.0
    %501 = vmatpush2.msra.mxu0 0.0
    %502 = vmatprep.subr.mxu0 0.0
    %503 = vmatpush2.msra.mxu0 0.0
    %504 = vmatprep.subr.mxu0 0.0
    %505 = vmatpush2.msra.mxu0 0.0
    %506 = vmatprep.subr.mxu0 0.0
    %507 = vmatpush2.msra.mxu0 0.0
    %508 = vmatprep.subr.mxu0 0.0
    %509 = vmatpush2.msra.mxu0 0.0
    %510 = vmatprep.subr.mxu0 0.0
    %511 = vmatpush2.msra.mxu0 0.0
    %512 = vmatprep.subr.mxu0 0.0
    %513 = vmatpush2.msra.mxu0 0.0
    %514 = vmatprep.subr.mxu0 0.0
    %515 = vmatpush2.msra.mxu0 0.0
    %516 = vmatprep.subr.mxu0 0.0
    %517 = vmatpush2.msra.mxu0 0.0
    %518 = vmatprep.subr.mxu0 0.0
    %519 = vmatpush2.msra.mxu0 0.0
    %520 = vmatprep.subr.mxu0 0.0
    %521 = vmatpush2.msra.mxu0 0.0
    %522 = vmatprep.subr.mxu0 0.0
    %523 = vmatpush2.msra.mxu0 0.0
    %524 = vmatprep.mubr.f32.mxu0 0.0
    %525 = vmatmul.mubr.f32.gmra.mxu0 %v440
    %v526 = vpop.f32.mrf.mxu0
    %v527 = vadd.f32 0.0, %v526
    %v528 = vpop.f32.mrf.mxu0
    %v529 = vadd.f32 0.0, %v528
    %530 = vmatprep.mubr.f32.mxu0 0.0
    %531 = vmatmul.mubr.f32.gmra.mxu0 %v443
    %v532 = vpop.f32.mrf.mxu0
    %v533 = vadd.f32 0.0, %v532
    %v534 = vpop.f32.mrf.mxu0
    %v535 = vadd.f32 0.0, %v534
    %536 = vmatprep.mubr.f32.mxu0 0.0
    %537 = vmatmul.mubr.f32.gmra.mxu0 %v446
    %v538 = vpop.f32.mrf.mxu0
    %v539 = vadd.f32 0.0, %v538
    %v540 = vpop.f32.mrf.mxu0
    %v541 = vadd.f32 0.0, %v540
    %542 = vmatprep.mubr.f32.mxu0 0.0
    %543 = vmatmul.mubr.f32.gmra.mxu0 %v449
    %v544 = vpop.f32.mrf.mxu0
    %v545 = vadd.f32 0.0, %v544
    %v546 = vpop.f32.mrf.mxu0
    %v547 = vadd.f32 0.0, %v546
    %548 = vmatprep.mubr.f32.mxu0 0.0
    %549 = vmatmul.mubr.f32.gmra.mxu0 %v452
    %v550 = vpop.f32.mrf.mxu0
    %v551 = vadd.f32 0.0, %v550
    %v552 = vpop.f32.mrf.mxu0
    %v553 = vadd.f32 0.0, %v552
    %554 = vmatprep.mubr.f32.mxu0 0.0
    %555 = vmatmul.mubr.f32.gmra.mxu0 %v455
    %v556 = vpop.f32.mrf.mxu0
    %v557 = vadd.f32 0.0, %v556
    %v558 = vpop.f32.mrf.mxu0
    %v559 = vadd.f32 0.0, %v558
    %560 = vmatprep.mubr.f32.mxu0 0.0
    %561 = vmatmul.mubr.f32.gmra.mxu0 %v458
    %v562 = vpop.f32.mrf.mxu0
    %v563 = vadd.f32 0.0, %v562
    %v564 = vpop.f32.mrf.mxu0
    %v565 = vadd.f32 0.0, %v564
    %566 = vdwg.mxu0
    %567 = vmatprep.subr.mxu0 0.0
    %568 = vmatpush1.msra.mxu0 0.0
    %569 = vmatprep.subr.mxu0 0.0
    %570 = vmatpush1.msra.mxu0 0.0
    %571 = vmatprep.subr.mxu0 0.0
    %572 = vmatpush1.msra.mxu0 0.0
    %573 = vmatprep.subr.mxu0 0.0
    %574 = vmatpush1.msra.mxu0 0.0
    %575 = vmatprep.subr.mxu0 0.0
    %576 = vmatpush1.msra.mxu0 0.0
    %577 = vmatprep.subr.mxu0 0.0
    %578 = vmatpush1.msra.mxu0 0.0
    %579 = vmatprep.subr.mxu0 0.0
    %580 = vmatpush1.msra.mxu0 0.0
    %581 = vmatprep.subr.mxu0 0.0
    %582 = vmatpush1.msra.mxu0 0.0
    %583 = vmatprep.subr.mxu0 0.0
    %584 = vmatpush1.msra.mxu0 0.0
    %585 = vmatprep.subr.mxu0 %v75
    %586 = vmatpush1.msra.mxu0 %v74
    %587 = vmatprep.subr.mxu0 %v71
    %588 = vmatpush1.msra.mxu0 %v70
    %589 = vmatprep.subr.mxu0 %v67
    %590 = vmatpush1.msra.mxu0 %v66
    %591 = vmatprep.subr.mxu0 %v63
    %592 = vmatpush1.msra.mxu0 %v62
    %593 = vmatprep.subr.mxu0 %v59
    %594 = vmatpush1.msra.mxu0 %v58
    %595 = vmatprep.subr.mxu0 %v55
    %596 = vmatpush1.msra.mxu0 %v54
    %597 = vmatprep.subr.mxu0 %v51
    %598 = vmatpush1.msra.mxu0 %v50
    %599 = vmatprep.subr.mxu0 0.0
    %600 = vmatpush2.msra.mxu0 0.0
    %601 = vmatprep.subr.mxu0 0.0
    %602 = vmatpush2.msra.mxu0 0.0
    %603 = vmatprep.subr.mxu0 0.0
    %604 = vmatpush2.msra.mxu0 0.0
    %605 = vmatprep.subr.mxu0 0.0
    %606 = vmatpush2.msra.mxu0 0.0
    %607 = vmatprep.subr.mxu0 0.0
    %608 = vmatpush2.msra.mxu0 0.0
    %609 = vmatprep.subr.mxu0 0.0
    %610 = vmatpush2.msra.mxu0 0.0
    %611 = vmatprep.subr.mxu0 0.0
    %612 = vmatpush2.msra.mxu0 0.0
    %613 = vmatprep.subr.mxu0 0.0
    %614 = vmatpush2.msra.mxu0 0.0
    %615 = vmatprep.subr.mxu0 0.0
    %616 = vmatpush2.msra.mxu0 0.0
    %617 = vmatprep.subr.mxu0 0.0
    %618 = vmatpush2.msra.mxu0 0.0
    %619 = vmatprep.subr.mxu0 0.0
    %620 = vmatpush2.msra.mxu0 0.0
    %621 = vmatprep.subr.mxu0 0.0
    %622 = vmatpush2.msra.mxu0 0.0
    %623 = vmatprep.subr.mxu0 0.0
    %624 = vmatpush2.msra.mxu0 0.0
    %625 = vmatprep.subr.mxu0 0.0
    %626 = vmatpush2.msra.mxu0 0.0
    %627 = vmatprep.subr.mxu0 0.0
    %628 = vmatpush2.msra.mxu0 0.0
    %629 = vmatprep.subr.mxu0 0.0
    %630 = vmatpush2.msra.mxu0 0.0
    %631 = vmatprep.mubr.f32.mxu0 0.0
    %632 = vmatmul.mubr.f32.gmra.mxu0 %v440
    %v633 = vpop.f32.mrf.mxu0
    %v634 = vadd.f32 0.0, %v633
    %v635 = vpop.f32.mrf.mxu0
    %v636 = vadd.f32 0.0, %v635
    %637 = vmatprep.mubr.f32.mxu0 0.0
    %638 = vmatmul.mubr.f32.gmra.mxu0 %v443
    %v639 = vpop.f32.mrf.mxu0
    %v640 = vadd.f32 0.0, %v639
    %v641 = vpop.f32.mrf.mxu0
    %v642 = vadd.f32 0.0, %v641
    %643 = vmatprep.mubr.f32.mxu0 0.0
    %644 = vmatmul.mubr.f32.gmra.mxu0 %v446
    %v645 = vpop.f32.mrf.mxu0
    %v646 = vadd.f32 0.0, %v645
    %v647 = vpop.f32.mrf.mxu0
    %v648 = vadd.f32 0.0, %v647
    %649 = vmatprep.mubr.f32.mxu0 0.0
    %650 = vmatmul.mubr.f32.gmra.mxu0 %v449
    %v651 = vpop.f32.mrf.mxu0
    %v652 = vadd.f32 0.0, %v651
    %v653 = vpop.f32.mrf.mxu0
    %v654 = vadd.f32 0.0, %v653
    %655 = vmatprep.mubr.f32.mxu0 0.0
    %656 = vmatmul.mubr.f32.gmra.mxu0 %v452
    %v657 = vpop.f32.mrf.mxu0
    %v658 = vadd.f32 0.0, %v657
    %v659 = vpop.f32.mrf.mxu0
    %v660 = vadd.f32 0.0, %v659
    %661 = vmatprep.mubr.f32.mxu0 0.0
    %662 = vmatmul.mubr.f32.gmra.mxu0 %v455
    %v663 = vpop.f32.mrf.mxu0
    %v664 = vadd.f32 0.0, %v663
    %v665 = vpop.f32.mrf.mxu0
    %v666 = vadd.f32 0.0, %v665
    %667 = vmatprep.mubr.f32.mxu0 0.0
    %668 = vmatmul.mubr.f32.gmra.mxu0 %v458
    %v669 = vpop.f32.mrf.mxu0
    %v670 = vadd.f32 0.0, %v669
    %v671 = vpop.f32.mrf.mxu0
    %v672 = vadd.f32 0.0, %v671
    %673 = vdwg.mxu0
    %s674 = scalar_lea.vmem %s2, 896
    %v675 = vld [vmem:[%s674] sm:$0xff]
    %v676 = vld [vmem:[%s674 + $0x8] sm:$0xff]
    %v677 = vld [vmem:[%s674 + $0x10] sm:$0xff]
    %v678 = vld [vmem:[%s674 + $0x18] sm:$0xff]
    %v679 = vld [vmem:[%s674 + $0x20] sm:$0xff]
    %v680 = vld [vmem:[%s674 + $0x28] sm:$0xff]
    %v681 = vld [vmem:[%s674 + $0x30] sm:$0xff]
    %v682 = vld [vmem:[%s674 + $0x38] sm:$0xff]
    %v683 = vld [vmem:[%s674 + $0x40] sm:$0xff]
    %v684 = vld [vmem:[%s674 + $0x48] sm:$0xff]
    %v685 = vld [vmem:[%s674 + $0x50] sm:$0xff]
    %v686 = vld [vmem:[%s674 + $0x58] sm:$0xff]
    %v687 = vld [vmem:[%s674 + $0x60] sm:$0xff]
    %v688 = vld [vmem:[%s674 + $0x68] sm:$0xff]
    %v689 = vld [vmem:[%s674 + $0x70] sm:$0xff]
    %v690 = vld [vmem:[%s674 + $0x78] sm:$0xff]
    %v691 = vld [vmem:[%s674 + $0x80] sm:$0xff]
    %v692 = vld [vmem:[%s674 + $0x88] sm:$0xff]
    %v693 = vld [vmem:[%s674 + $0x90] sm:$0xff]
    %v694 = vld [vmem:[%s674 + $0x98] sm:$0xff]
    %v695 = vld [vmem:[%s674 + $0xa0] sm:$0xff]
    %v696 = vld [vmem:[%s674 + $0xa8] sm:$0xff]
    %v697 = vld [vmem:[%s674 + $0xb0] sm:$0xff]
    %v698 = vld [vmem:[%s674 + $0xb8] sm:$0xff]
    %v699 = vld [vmem:[%s674 + $0xc0] sm:$0xff]
    %v700 = vld [vmem:[%s674 + $0xc8] sm:$0xff]
    %v701 = vld [vmem:[%s674 + $0xd0] sm:$0xff]
    %v702 = vld [vmem:[%s674 + $0xd8] sm:$0xff]
    %v703 = vld [vmem:[%s674 + $0xe0] sm:$0xff]
    %v704 = vld [vmem:[%s674 + $0xe8] sm:$0xff]
    %v705 = vld [vmem:[%s674 + $0xf0] sm:$0xff]
    %v706 = vld [vmem:[%s674 + $0xf8] sm:$0xff]
    %v707 = vld [vmem:[%s674 + $0x100] sm:$0xff]
    %v708 = vld [vmem:[%s674 + $0x108] sm:$0xff]
    %v709 = vld [vmem:[%s674 + $0x110] sm:$0xff]
    %v710 = vld [vmem:[%s674 + $0x118] sm:$0xff]
    %v711 = vld [vmem:[%s674 + $0x120] sm:$0xff]
    %v712 = vld [vmem:[%s674 + $0x128] sm:$0xff]
    %v713 = vld [vmem:[%s674 + $0x130] sm:$0xff]
    %v714 = vld [vmem:[%s674 + $0x138] sm:$0xff]
    %v715 = vld [vmem:[%s674 + $0x140] sm:$0xff]
    %v716 = vld [vmem:[%s674 + $0x148] sm:$0xff]
    %v717 = vld [vmem:[%s674 + $0x150] sm:$0xff]
    %v718 = vld [vmem:[%s674 + $0x158] sm:$0xff]
    %v719 = vld [vmem:[%s674 + $0x160] sm:$0xff]
    %v720 = vld [vmem:[%s674 + $0x168] sm:$0xff]
    %v721 = vld [vmem:[%s674 + $0x170] sm:$0xff]
    %v722 = vld [vmem:[%s674 + $0x178] sm:$0xff]
    %v723 = vld [vmem:[%s674 + $0x180] sm:$0xff]
    %v724 = vld [vmem:[%s674 + $0x188] sm:$0xff]
    %v725 = vld [vmem:[%s674 + $0x190] sm:$0xff]
    %v726 = vld [vmem:[%s674 + $0x198] sm:$0xff]
    %v727 = vld [vmem:[%s674 + $0x1a0] sm:$0xff]
    %v728 = vld [vmem:[%s674 + $0x1a8] sm:$0xff]
    %v729 = vld [vmem:[%s674 + $0x1b0] sm:$0xff]
    %v730 = vld [vmem:[%s674 + $0x1b8] sm:$0xff]
    %v731 = vld [vmem:[%s674 + $0x1c0] sm:$0xff]
    %v732 = vld [vmem:[%s674 + $0x1c8] sm:$0xff]
    %v733 = vld [vmem:[%s674 + $0x1d0] sm:$0xff]
    %v734 = vld [vmem:[%s674 + $0x1d8] sm:$0xff]
    %v735 = vld [vmem:[%s674 + $0x1e0] sm:$0xff]
    %v736 = vld [vmem:[%s674 + $0x1e8] sm:$0xff]
    %v737 = vld [vmem:[%s674 + $0x1f0] sm:$0xff]
    %v738 = vld [vmem:[%s674 + $0x1f8] sm:$0xff]
    %v739 = vld [vmem:[%s674 + $0x200] sm:$0xff]
    %v740 = vld [vmem:[%s674 + $0x208] sm:$0xff]
    %v741 = vld [vmem:[%s674 + $0x210] sm:$0xff]
    %v742 = vld [vmem:[%s674 + $0x218] sm:$0xff]
    %v743 = vld [vmem:[%s674 + $0x220] sm:$0xff]
    %v744 = vld [vmem:[%s674 + $0x228] sm:$0xff]
    %v745 = vld [vmem:[%s674 + $0x230] sm:$0xff]
    %v746 = vld [vmem:[%s674 + $0x238] sm:$0xff]
    %v747 = vld [vmem:[%s674 + $0x240] sm:$0xff]
    %v748 = vld [vmem:[%s674 + $0x248] sm:$0xff]
    %v749 = vld [vmem:[%s674 + $0x250] sm:$0xff]
    %v750 = vld [vmem:[%s674 + $0x258] sm:$0xff]
    %v751 = vld [vmem:[%s674 + $0x260] sm:$0xff]
    %v752 = vld [vmem:[%s674 + $0x268] sm:$0xff]
    %v753 = vld [vmem:[%s674 + $0x270] sm:$0xff]
    %v754 = vld [vmem:[%s674 + $0x278] sm:$0xff]
    %v755 = vld [vmem:[%s674 + $0x280] sm:$0xff]
    %v756 = vld [vmem:[%s674 + $0x288] sm:$0xff]
    %v757 = vld [vmem:[%s674 + $0x290] sm:$0xff]
    %v758 = vld [vmem:[%s674 + $0x298] sm:$0xff]
    %v759 = vld [vmem:[%s674 + $0x2a0] sm:$0xff]
    %v760 = vld [vmem:[%s674 + $0x2a8] sm:$0xff]
    %v761 = vld [vmem:[%s674 + $0x2b0] sm:$0xff]
    %v762 = vld [vmem:[%s674 + $0x2b8] sm:$0xff]
    %v763 = vld [vmem:[%s674 + $0x2c0] sm:$0xff]
    %v764 = vld [vmem:[%s674 + $0x2c8] sm:$0xff]
    %v765 = vld [vmem:[%s674 + $0x2d0] sm:$0xff]
    %v766 = vld [vmem:[%s674 + $0x2d8] sm:$0xff]
    %v767 = vld [vmem:[%s674 + $0x2e0] sm:$0xff]
    %v768 = vld [vmem:[%s674 + $0x2e8] sm:$0xff]
    %v769 = vld [vmem:[%s674 + $0x2f0] sm:$0xff]
    %v770 = vld [vmem:[%s674 + $0x2f8] sm:$0xff]
    %v771 = vld [vmem:[%s674 + $0x300] sm:$0xff]
    %v772 = vld [vmem:[%s674 + $0x308] sm:$0xff]
    %v773 = vld [vmem:[%s674 + $0x310] sm:$0xff]
    %v774 = vld [vmem:[%s674 + $0x318] sm:$0xff]
    %v775 = vld [vmem:[%s674 + $0x320] sm:$0xff]
    %v776 = vld [vmem:[%s674 + $0x328] sm:$0xff]
    %v777 = vld [vmem:[%s674 + $0x330] sm:$0xff]
    %v778 = vld [vmem:[%s674 + $0x338] sm:$0xff]
    %v779 = vld [vmem:[%s674 + $0x340] sm:$0xff]
    %v780 = vld [vmem:[%s674 + $0x348] sm:$0xff]
    %v781 = vld [vmem:[%s674 + $0x350] sm:$0xff]
    %v782 = vld [vmem:[%s674 + $0x358] sm:$0xff]
    %v783 = vld [vmem:[%s674 + $0x360] sm:$0xff]
    %v784 = vld [vmem:[%s674 + $0x368] sm:$0xff]
    %v785 = vld [vmem:[%s674 + $0x370] sm:$0xff]
    %v786 = vld [vmem:[%s674 + $0x378] sm:$0xff]
    %vm787 = vcmask 523264
    %v789 = vsel %vm787, %v636, 0
    %v792 = vsel %vm787, %v642, 0
    %v795 = vsel %vm787, %v648, 0
    %v798 = vsel %vm787, %v654, 0
    %v801 = vsel %vm787, %v660, 0
    %v804 = vsel %vm787, %v666, 0
    %v807 = vsel %vm787, %v672, 0
    %809 = vmatprep.subr.mxu0 %v706
    %810 = vmatpush1.msra.mxu0 %v705
    %811 = vmatprep.subr.mxu0 %v704
    %812 = vmatpush1.msra.mxu0 %v703
    %813 = vmatprep.subr.mxu0 %v702
    %814 = vmatpush1.msra.mxu0 %v701
    %815 = vmatprep.subr.mxu0 %v700
    %816 = vmatpush1.msra.mxu0 %v699
    %817 = vmatprep.subr.mxu0 %v698
    %818 = vmatpush1.msra.mxu0 %v697
    %819 = vmatprep.subr.mxu0 %v696
    %820 = vmatpush1.msra.mxu0 %v695
    %821 = vmatprep.subr.mxu0 %v694
    %822 = vmatpush1.msra.mxu0 %v693
    %823 = vmatprep.subr.mxu0 %v692
    %824 = vmatpush1.msra.mxu0 %v691
    %825 = vmatprep.subr.mxu0 %v690
    %826 = vmatpush1.msra.mxu0 %v689
    %827 = vmatprep.subr.mxu0 %v688
    %828 = vmatpush1.msra.mxu0 %v687
    %829 = vmatprep.subr.mxu0 %v686
    %830 = vmatpush1.msra.mxu0 %v685
    %831 = vmatprep.subr.mxu0 %v684
    %832 = vmatpush1.msra.mxu0 %v683
    %833 = vmatprep.subr.mxu0 %v682
    %834 = vmatpush1.msra.mxu0 %v681
    %835 = vmatprep.subr.mxu0 %v680
    %836 = vmatpush1.msra.mxu0 %v679
    %837 = vmatprep.subr.mxu0 %v678
    %838 = vmatpush1.msra.mxu0 %v677
    %839 = vmatprep.subr.mxu0 %v676
    %840 = vmatpush1.msra.mxu0 %v675
    %841 = vmatprep.subr.mxu0 %v738
    %842 = vmatpush2.msra.mxu0 %v737
    %843 = vmatprep.subr.mxu0 %v736
    %844 = vmatpush2.msra.mxu0 %v735
    %845 = vmatprep.subr.mxu0 %v734
    %846 = vmatpush2.msra.mxu0 %v733
    %847 = vmatprep.subr.mxu0 %v732
    %848 = vmatpush2.msra.mxu0 %v731
    %849 = vmatprep.subr.mxu0 %v730
    %850 = vmatpush2.msra.mxu0 %v729
    %851 = vmatprep.subr.mxu0 %v728
    %852 = vmatpush2.msra.mxu0 %v727
    %853 = vmatprep.subr.mxu0 %v726
    %854 = vmatpush2.msra.mxu0 %v725
    %855 = vmatprep.subr.mxu0 %v724
    %856 = vmatpush2.msra.mxu0 %v723
    %857 = vmatprep.subr.mxu0 %v722
    %858 = vmatpush2.msra.mxu0 %v721
    %859 = vmatprep.subr.mxu0 %v720
    %860 = vmatpush2.msra.mxu0 %v719
    %861 = vmatprep.subr.mxu0 %v718
    %862 = vmatpush2.msra.mxu0 %v717
    %863 = vmatprep.subr.mxu0 %v716
    %864 = vmatpush2.msra.mxu0 %v715
    %865 = vmatprep.subr.mxu0 %v714
    %866 = vmatpush2.msra.mxu0 %v713
    %867 = vmatprep.subr.mxu0 %v712
    %868 = vmatpush2.msra.mxu0 %v711
    %869 = vmatprep.subr.mxu0 %v710
    %870 = vmatpush2.msra.mxu0 %v709
    %871 = vmatprep.subr.mxu0 %v708
    %872 = vmatpush2.msra.mxu0 %v707
    %873 = vmatprep.mubr.f32.mxu0 %v529
    %874 = vmatmul.mubr.f32.gmra.mxu0 %v527
    %v875 = vpop.f32.mrf.mxu0
    %v876 = vadd.f32 0.0, %v875
    %v877 = vpop.f32.mrf.mxu0
    %v878 = vadd.f32 0.0, %v877
    %879 = vmatprep.mubr.f32.mxu0 %v535
    %880 = vmatmul.mubr.f32.gmra.mxu0 %v533
    %v881 = vpop.f32.mrf.mxu0
    %v882 = vadd.f32 0.0, %v881
    %v883 = vpop.f32.mrf.mxu0
    %v884 = vadd.f32 0.0, %v883
    %885 = vmatprep.mubr.f32.mxu0 %v541
    %886 = vmatmul.mubr.f32.gmra.mxu0 %v539
    %v887 = vpop.f32.mrf.mxu0
    %v888 = vadd.f32 0.0, %v887
    %v889 = vpop.f32.mrf.mxu0
    %v890 = vadd.f32 0.0, %v889
    %891 = vmatprep.mubr.f32.mxu0 %v547
    %892 = vmatmul.mubr.f32.gmra.mxu0 %v545
    %v893 = vpop.f32.mrf.mxu0
    %v894 = vadd.f32 0.0, %v893
    %v895 = vpop.f32.mrf.mxu0
    %v896 = vadd.f32 0.0, %v895
    %897 = vmatprep.mubr.f32.mxu0 %v553
    %898 = vmatmul.mubr.f32.gmra.mxu0 %v551
    %v899 = vpop.f32.mrf.mxu0
    %v900 = vadd.f32 0.0, %v899
    %v901 = vpop.f32.mrf.mxu0
    %v902 = vadd.f32 0.0, %v901
    %903 = vmatprep.mubr.f32.mxu0 %v559
    %904 = vmatmul.mubr.f32.gmra.mxu0 %v557
    %v905 = vpop.f32.mrf.mxu0
    %v906 = vadd.f32 0.0, %v905
    %v907 = vpop.f32.mrf.mxu0
    %v908 = vadd.f32 0.0, %v907
    %909 = vmatprep.mubr.f32.mxu0 %v565
    %910 = vmatmul.mubr.f32.gmra.mxu0 %v563
    %v911 = vpop.f32.mrf.mxu0
    %v912 = vadd.f32 0.0, %v911
    %v913 = vpop.f32.mrf.mxu0
    %v914 = vadd.f32 0.0, %v913
    %915 = vdwg.mxu0
    %916 = vmatprep.subr.mxu0 %v770
    %917 = vmatpush1.msra.mxu0 %v769
    %918 = vmatprep.subr.mxu0 %v768
    %919 = vmatpush1.msra.mxu0 %v767
    %920 = vmatprep.subr.mxu0 %v766
    %921 = vmatpush1.msra.mxu0 %v765
    %922 = vmatprep.subr.mxu0 %v764
    %923 = vmatpush1.msra.mxu0 %v763
    %924 = vmatprep.subr.mxu0 %v762
    %925 = vmatpush1.msra.mxu0 %v761
    %926 = vmatprep.subr.mxu0 %v760
    %927 = vmatpush1.msra.mxu0 %v759
    %928 = vmatprep.subr.mxu0 %v758
    %929 = vmatpush1.msra.mxu0 %v757
    %930 = vmatprep.subr.mxu0 %v756
    %931 = vmatpush1.msra.mxu0 %v755
    %932 = vmatprep.subr.mxu0 %v754
    %933 = vmatpush1.msra.mxu0 %v753
    %934 = vmatprep.subr.mxu0 %v752
    %935 = vmatpush1.msra.mxu0 %v751
    %936 = vmatprep.subr.mxu0 %v750
    %937 = vmatpush1.msra.mxu0 %v749
    %938 = vmatprep.subr.mxu0 %v748
    %939 = vmatpush1.msra.mxu0 %v747
    %940 = vmatprep.subr.mxu0 %v746
    %941 = vmatpush1.msra.mxu0 %v745
    %942 = vmatprep.subr.mxu0 %v744
    %943 = vmatpush1.msra.mxu0 %v743
    %944 = vmatprep.subr.mxu0 %v742
    %945 = vmatpush1.msra.mxu0 %v741
    %946 = vmatprep.subr.mxu0 %v740
    %947 = vmatpush1.msra.mxu0 %v739
    %948 = vmatprep.subr.mxu0 0.0
    %949 = vmatpush2.msra.mxu0 0.0
    %950 = vmatprep.subr.mxu0 0.0
    %951 = vmatpush2.msra.mxu0 0.0
    %952 = vmatprep.subr.mxu0 0.0
    %953 = vmatpush2.msra.mxu0 0.0
    %954 = vmatprep.subr.mxu0 0.0
    %955 = vmatpush2.msra.mxu0 0.0
    %956 = vmatprep.subr.mxu0 0.0
    %957 = vmatpush2.msra.mxu0 0.0
    %958 = vmatprep.subr.mxu0 0.0
    %959 = vmatpush2.msra.mxu0 0.0
    %960 = vmatprep.subr.mxu0 0.0
    %961 = vmatpush2.msra.mxu0 0.0
    %962 = vmatprep.subr.mxu0 0.0
    %963 = vmatpush2.msra.mxu0 0.0
    %964 = vmatprep.subr.mxu0 %v786
    %965 = vmatpush2.msra.mxu0 %v785
    %966 = vmatprep.subr.mxu0 %v784
    %967 = vmatpush2.msra.mxu0 %v783
    %968 = vmatprep.subr.mxu0 %v782
    %969 = vmatpush2.msra.mxu0 %v781
    %970 = vmatprep.subr.mxu0 %v780
    %971 = vmatpush2.msra.mxu0 %v779
    %972 = vmatprep.subr.mxu0 %v778
    %973 = vmatpush2.msra.mxu0 %v777
    %974 = vmatprep.subr.mxu0 %v776
    %975 = vmatpush2.msra.mxu0 %v775
    %976 = vmatprep.subr.mxu0 %v774
    %977 = vmatpush2.msra.mxu0 %v773
    %978 = vmatprep.subr.mxu0 %v772
    %979 = vmatpush2.msra.mxu0 %v771
    %980 = vmatprep.mubr.f32.mxu0 %v789
    %981 = vmatmul.mubr.f32.gmra.mxu0 %v634
    %v982 = vpop.f32.mrf.mxu0
    %v983 = vadd.f32 %v876, %v982
    %v984 = vpop.f32.mrf.mxu0
    %v985 = vadd.f32 %v878, %v984
    %986 = vmatprep.mubr.f32.mxu0 %v792
    %987 = vmatmul.mubr.f32.gmra.mxu0 %v640
    %v988 = vpop.f32.mrf.mxu0
    %v989 = vadd.f32 %v882, %v988
    %v990 = vpop.f32.mrf.mxu0
    %v991 = vadd.f32 %v884, %v990
    %992 = vmatprep.mubr.f32.mxu0 %v795
    %993 = vmatmul.mubr.f32.gmra.mxu0 %v646
    %v994 = vpop.f32.mrf.mxu0
    %v995 = vadd.f32 %v888, %v994
    %v996 = vpop.f32.mrf.mxu0
    %v997 = vadd.f32 %v890, %v996
    %998 = vmatprep.mubr.f32.mxu0 %v798
    %999 = vmatmul.mubr.f32.gmra.mxu0 %v652
    %v1000 = vpop.f32.mrf.mxu0
    %v1001 = vadd.f32 %v894, %v1000
    %v1002 = vpop.f32.mrf.mxu0
    %v1003 = vadd.f32 %v896, %v1002
    %1004 = vmatprep.mubr.f32.mxu0 %v801
    %1005 = vmatmul.mubr.f32.gmra.mxu0 %v658
    %v1006 = vpop.f32.mrf.mxu0
    %v1007 = vadd.f32 %v900, %v1006
    %v1008 = vpop.f32.mrf.mxu0
    %v1009 = vadd.f32 %v902, %v1008
    %1010 = vmatprep.mubr.f32.mxu0 %v804
    %1011 = vmatmul.mubr.f32.gmra.mxu0 %v664
    %v1012 = vpop.f32.mrf.mxu0
    %v1013 = vadd.f32 %v906, %v1012
    %v1014 = vpop.f32.mrf.mxu0
    %v1015 = vadd.f32 %v908, %v1014
    %1016 = vmatprep.mubr.f32.mxu0 %v807
    %1017 = vmatmul.mubr.f32.gmra.mxu0 %v670
    %v1018 = vpop.f32.mrf.mxu0
    %v1019 = vadd.f32 %v912, %v1018
    %v1020 = vpop.f32.mrf.mxu0
    %v1021 = vadd.f32 %v914, %v1020
    %1022 = vdwg.mxu0
    %v1024 = vsel %vm787, %v281, 0
    %v1027 = vsel %vm787, %v287, 0
    %v1030 = vsel %vm787, %v293, 0
    %v1033 = vsel %vm787, %v299, 0
    %v1036 = vsel %vm787, %v305, 0
    %v1039 = vsel %vm787, %v311, 0
    %v1042 = vsel %vm787, %v317, 0
    %1044 = vmatprep.subr.mxu0 %v350
    %1045 = vmatpush1.msra.mxu0 %v349
    %1046 = vmatprep.subr.mxu0 %v348
    %1047 = vmatpush1.msra.mxu0 %v347
    %1048 = vmatprep.subr.mxu0 %v346
    %1049 = vmatpush1.msra.mxu0 %v345
    %1050 = vmatprep.subr.mxu0 %v344
    %1051 = vmatpush1.msra.mxu0 %v343
    %1052 = vmatprep.subr.mxu0 %v342
    %1053 = vmatpush1.msra.mxu0 %v341
    %1054 = vmatprep.subr.mxu0 %v340
    %1055 = vmatpush1.msra.mxu0 %v339
    %1056 = vmatprep.subr.mxu0 %v338
    %1057 = vmatpush1.msra.mxu0 %v337
    %1058 = vmatprep.subr.mxu0 %v336
    %1059 = vmatpush1.msra.mxu0 %v335
    %1060 = vmatprep.subr.mxu0 %v334
    %1061 = vmatpush1.msra.mxu0 %v333
    %1062 = vmatprep.subr.mxu0 %v332
    %1063 = vmatpush1.msra.mxu0 %v331
    %1064 = vmatprep.subr.mxu0 %v330
    %1065 = vmatpush1.msra.mxu0 %v329
    %1066 = vmatprep.subr.mxu0 %v328
    %1067 = vmatpush1.msra.mxu0 %v327
    %1068 = vmatprep.subr.mxu0 %v326
    %1069 = vmatpush1.msra.mxu0 %v325
    %1070 = vmatprep.subr.mxu0 %v324
    %1071 = vmatpush1.msra.mxu0 %v323
    %1072 = vmatprep.subr.mxu0 %v322
    %1073 = vmatpush1.msra.mxu0 %v321
    %1074 = vmatprep.subr.mxu0 %v320
    %1075 = vmatpush1.msra.mxu0 %v319
    %1076 = vmatprep.subr.mxu0 %v382
    %1077 = vmatpush2.msra.mxu0 %v381
    %1078 = vmatprep.subr.mxu0 %v380
    %1079 = vmatpush2.msra.mxu0 %v379
    %1080 = vmatprep.subr.mxu0 %v378
    %1081 = vmatpush2.msra.mxu0 %v377
    %1082 = vmatprep.subr.mxu0 %v376
    %1083 = vmatpush2.msra.mxu0 %v375
    %1084 = vmatprep.subr.mxu0 %v374
    %1085 = vmatpush2.msra.mxu0 %v373
    %1086 = vmatprep.subr.mxu0 %v372
    %1087 = vmatpush2.msra.mxu0 %v371
    %1088 = vmatprep.subr.mxu0 %v370
    %1089 = vmatpush2.msra.mxu0 %v369
    %1090 = vmatprep.subr.mxu0 %v368
    %1091 = vmatpush2.msra.mxu0 %v367
    %1092 = vmatprep.subr.mxu0 %v366
    %1093 = vmatpush2.msra.mxu0 %v365
    %1094 = vmatprep.subr.mxu0 %v364
    %1095 = vmatpush2.msra.mxu0 %v363
    %1096 = vmatprep.subr.mxu0 %v362
    %1097 = vmatpush2.msra.mxu0 %v361
    %1098 = vmatprep.subr.mxu0 %v360
    %1099 = vmatpush2.msra.mxu0 %v359
    %1100 = vmatprep.subr.mxu0 %v358
    %1101 = vmatpush2.msra.mxu0 %v357
    %1102 = vmatprep.subr.mxu0 %v356
    %1103 = vmatpush2.msra.mxu0 %v355
    %1104 = vmatprep.subr.mxu0 %v354
    %1105 = vmatpush2.msra.mxu0 %v353
    %1106 = vmatprep.subr.mxu0 %v352
    %1107 = vmatpush2.msra.mxu0 %v351
    %1108 = vmatprep.mubr.f32.mxu0 %v174
    %1109 = vmatmul.mubr.f32.gmra.mxu0 %v172
    %v1110 = vpop.f32.mrf.mxu0
    %v1111 = vadd.f32 %v983, %v1110
    %v1112 = vpop.f32.mrf.mxu0
    %v1113 = vadd.f32 %v985, %v1112
    %1114 = vmatprep.mubr.f32.mxu0 %v180
    %1115 = vmatmul.mubr.f32.gmra.mxu0 %v178
    %v1116 = vpop.f32.mrf.mxu0
    %v1117 = vadd.f32 %v989, %v1116
    %v1118 = vpop.f32.mrf.mxu0
    %v1119 = vadd.f32 %v991, %v1118
    %1120 = vmatprep.mubr.f32.mxu0 %v186
    %1121 = vmatmul.mubr.f32.gmra.mxu0 %v184
    %v1122 = vpop.f32.mrf.mxu0
    %v1123 = vadd.f32 %v995, %v1122
    %v1124 = vpop.f32.mrf.mxu0
    %v1125 = vadd.f32 %v997, %v1124
    %1126 = vmatprep.mubr.f32.mxu0 %v192
    %1127 = vmatmul.mubr.f32.gmra.mxu0 %v190
    %v1128 = vpop.f32.mrf.mxu0
    %v1129 = vadd.f32 %v1001, %v1128
    %v1130 = vpop.f32.mrf.mxu0
    %v1131 = vadd.f32 %v1003, %v1130
    %1132 = vmatprep.mubr.f32.mxu0 %v198
    %1133 = vmatmul.mubr.f32.gmra.mxu0 %v196
    %v1134 = vpop.f32.mrf.mxu0
    %v1135 = vadd.f32 %v1007, %v1134
    %v1136 = vpop.f32.mrf.mxu0
    %v1137 = vadd.f32 %v1009, %v1136
    %1138 = vmatprep.mubr.f32.mxu0 %v204
    %1139 = vmatmul.mubr.f32.gmra.mxu0 %v202
    %v1140 = vpop.f32.mrf.mxu0
    %v1141 = vadd.f32 %v1013, %v1140
    %v1142 = vpop.f32.mrf.mxu0
    %v1143 = vadd.f32 %v1015, %v1142
    %1144 = vmatprep.mubr.f32.mxu0 %v210
    %1145 = vmatmul.mubr.f32.gmra.mxu0 %v208
    %v1146 = vpop.f32.mrf.mxu0
    %v1147 = vadd.f32 %v1019, %v1146
    %v1148 = vpop.f32.mrf.mxu0
    %v1149 = vadd.f32 %v1021, %v1148
    %1150 = vdwg.mxu0
    %1151 = vmatprep.subr.mxu0 %v414
    %1152 = vmatpush1.msra.mxu0 %v413
    %1153 = vmatprep.subr.mxu0 %v412
    %1154 = vmatpush1.msra.mxu0 %v411
    %1155 = vmatprep.subr.mxu0 %v410
    %1156 = vmatpush1.msra.mxu0 %v409
    %1157 = vmatprep.subr.mxu0 %v408
    %1158 = vmatpush1.msra.mxu0 %v407
    %1159 = vmatprep.subr.mxu0 %v406
    %1160 = vmatpush1.msra.mxu0 %v405
    %1161 = vmatprep.subr.mxu0 %v404
    %1162 = vmatpush1.msra.mxu0 %v403
    %1163 = vmatprep.subr.mxu0 %v402
    %1164 = vmatpush1.msra.mxu0 %v401
    %1165 = vmatprep.subr.mxu0 %v400
    %1166 = vmatpush1.msra.mxu0 %v399
    %1167 = vmatprep.subr.mxu0 %v398
    %1168 = vmatpush1.msra.mxu0 %v397
    %1169 = vmatprep.subr.mxu0 %v396
    %1170 = vmatpush1.msra.mxu0 %v395
    %1171 = vmatprep.subr.mxu0 %v394
    %1172 = vmatpush1.msra.mxu0 %v393
    %1173 = vmatprep.subr.mxu0 %v392
    %1174 = vmatpush1.msra.mxu0 %v391
    %1175 = vmatprep.subr.mxu0 %v390
    %1176 = vmatpush1.msra.mxu0 %v389
    %1177 = vmatprep.subr.mxu0 %v388
    %1178 = vmatpush1.msra.mxu0 %v387
    %1179 = vmatprep.subr.mxu0 %v386
    %1180 = vmatpush1.msra.mxu0 %v385
    %1181 = vmatprep.subr.mxu0 %v384
    %1182 = vmatpush1.msra.mxu0 %v383
    %1183 = vmatprep.subr.mxu0 0.0
    %1184 = vmatpush2.msra.mxu0 0.0
    %1185 = vmatprep.subr.mxu0 0.0
    %1186 = vmatpush2.msra.mxu0 0.0
    %1187 = vmatprep.subr.mxu0 0.0
    %1188 = vmatpush2.msra.mxu0 0.0
    %1189 = vmatprep.subr.mxu0 0.0
    %1190 = vmatpush2.msra.mxu0 0.0
    %1191 = vmatprep.subr.mxu0 0.0
    %1192 = vmatpush2.msra.mxu0 0.0
    %1193 = vmatprep.subr.mxu0 0.0
    %1194 = vmatpush2.msra.mxu0 0.0
    %1195 = vmatprep.subr.mxu0 0.0
    %1196 = vmatpush2.msra.mxu0 0.0
    %1197 = vmatprep.subr.mxu0 0.0
    %1198 = vmatpush2.msra.mxu0 0.0
    %1199 = vmatprep.subr.mxu0 %v430
    %1200 = vmatpush2.msra.mxu0 %v429
    %1201 = vmatprep.subr.mxu0 %v428
    %1202 = vmatpush2.msra.mxu0 %v427
    %1203 = vmatprep.subr.mxu0 %v426
    %1204 = vmatpush2.msra.mxu0 %v425
    %1205 = vmatprep.subr.mxu0 %v424
    %1206 = vmatpush2.msra.mxu0 %v423
    %1207 = vmatprep.subr.mxu0 %v422
    %1208 = vmatpush2.msra.mxu0 %v421
    %1209 = vmatprep.subr.mxu0 %v420
    %1210 = vmatpush2.msra.mxu0 %v419
    %1211 = vmatprep.subr.mxu0 %v418
    %1212 = vmatpush2.msra.mxu0 %v417
    %1213 = vmatprep.subr.mxu0 %v416
    %1214 = vmatpush2.msra.mxu0 %v415
    %1215 = vmatprep.mubr.f32.mxu0 %v1024
    %1216 = vmatmul.mubr.f32.gmra.mxu0 %v279
    %v1217 = vpop.f32.mrf.mxu0
    %v1218 = vadd.f32 %v1111, %v1217
    %v1219 = vpop.f32.mrf.mxu0
    %v1220 = vadd.f32 %v1113, %v1219
    %1221 = vmatprep.mubr.f32.mxu0 %v1027
    %1222 = vmatmul.mubr.f32.gmra.mxu0 %v285
    %v1223 = vpop.f32.mrf.mxu0
    %v1224 = vadd.f32 %v1117, %v1223
    %v1225 = vpop.f32.mrf.mxu0
    %v1226 = vadd.f32 %v1119, %v1225
    %1227 = vmatprep.mubr.f32.mxu0 %v1030
    %1228 = vmatmul.mubr.f32.gmra.mxu0 %v291
    %v1229 = vpop.f32.mrf.mxu0
    %v1230 = vadd.f32 %v1123, %v1229
    %v1231 = vpop.f32.mrf.mxu0
    %v1232 = vadd.f32 %v1125, %v1231
    %1233 = vmatprep.mubr.f32.mxu0 %v1033
    %1234 = vmatmul.mubr.f32.gmra.mxu0 %v297
    %v1235 = vpop.f32.mrf.mxu0
    %v1236 = vadd.f32 %v1129, %v1235
    %v1237 = vpop.f32.mrf.mxu0
    %v1238 = vadd.f32 %v1131, %v1237
    %1239 = vmatprep.mubr.f32.mxu0 %v1036
    %1240 = vmatmul.mubr.f32.gmra.mxu0 %v303
    %v1241 = vpop.f32.mrf.mxu0
    %v1242 = vadd.f32 %v1135, %v1241
    %v1243 = vpop.f32.mrf.mxu0
    %v1244 = vadd.f32 %v1137, %v1243
    %1245 = vmatprep.mubr.f32.mxu0 %v1039
    %1246 = vmatmul.mubr.f32.gmra.mxu0 %v309
    %v1247 = vpop.f32.mrf.mxu0
    %v1248 = vadd.f32 %v1141, %v1247
    %v1249 = vpop.f32.mrf.mxu0
    %v1250 = vadd.f32 %v1143, %v1249
    %1251 = vmatprep.mubr.f32.mxu0 %v1042
    %1252 = vmatmul.mubr.f32.gmra.mxu0 %v315
    %v1253 = vpop.f32.mrf.mxu0
    %v1254 = vadd.f32 %v1147, %v1253
    %v1255 = vpop.f32.mrf.mxu0
    %v1256 = vadd.f32 %v1149, %v1255
    %1257 = vdwg.mxu0
    %s1258 = scalar_lea.vmem %s1, 112
    %v1259 = vld [vmem:[%s1258] sm:$0xff]
    %v1260 = vld [vmem:[%s1258 + $0x8] sm:$0xff]
    %v1261 = vld [vmem:[%s1258 + $0x10] sm:$0xff]
    %v1262 = vld [vmem:[%s1258 + $0x18] sm:$0xff]
    %v1263 = vld [vmem:[%s1258 + $0x20] sm:$0xff]
    %v1264 = vld [vmem:[%s1258 + $0x28] sm:$0xff]
    %v1265 = vld [vmem:[%s1258 + $0x30] sm:$0xff]
    %v1267 = vsel %vm83, %v1259, 0
    %v1270 = vsel %vm83, %v1260, 0
    %v1273 = vsel %vm83, %v1261, 0
    %v1276 = vsel %vm83, %v1262, 0
    %v1279 = vsel %vm83, %v1263, 0
    %v1282 = vsel %vm83, %v1264, 0
    %v1285 = vsel %vm83, %v1265, 0
    %1287 = vmatprep.subr.mxu0 0.0
    %1288 = vmatpush1.msra.mxu0 0.0
    %1289 = vmatprep.subr.mxu0 0.0
    %1290 = vmatpush1.msra.mxu0 0.0
    %1291 = vmatprep.subr.mxu0 0.0
    %1292 = vmatpush1.msra.mxu0 0.0
    %1293 = vmatprep.subr.mxu0 0.0
    %1294 = vmatpush1.msra.mxu0 0.0
    %1295 = vmatprep.subr.mxu0 0.0
    %1296 = vmatpush1.msra.mxu0 0.0
    %1297 = vmatprep.subr.mxu0 0.0
    %1298 = vmatpush1.msra.mxu0 0.0
    %1299 = vmatprep.subr.mxu0 0.0
    %1300 = vmatpush1.msra.mxu0 0.0
    %1301 = vmatprep.subr.mxu0 0.0
    %1302 = vmatpush1.msra.mxu0 0.0
    %1303 = vmatprep.subr.mxu0 0.0
    %1304 = vmatpush1.msra.mxu0 0.0
    %1305 = vmatprep.subr.mxu0 %v73
    %1306 = vmatpush1.msra.mxu0 %v72
    %1307 = vmatprep.subr.mxu0 %v69
    %1308 = vmatpush1.msra.mxu0 %v68
    %1309 = vmatprep.subr.mxu0 %v65
    %1310 = vmatpush1.msra.mxu0 %v64
    %1311 = vmatprep.subr.mxu0 %v61
    %1312 = vmatpush1.msra.mxu0 %v60
    %1313 = vmatprep.subr.mxu0 %v57
    %1314 = vmatpush1.msra.mxu0 %v56
    %1315 = vmatprep.subr.mxu0 %v53
    %1316 = vmatpush1.msra.mxu0 %v52
    %1317 = vmatprep.subr.mxu0 %v49
    %1318 = vmatpush1.msra.mxu0 %v48
    %1319 = vmatprep.subr.mxu0 0.0
    %1320 = vmatpush2.msra.mxu0 0.0
    %1321 = vmatprep.subr.mxu0 0.0
    %1322 = vmatpush2.msra.mxu0 0.0
    %1323 = vmatprep.subr.mxu0 0.0
    %1324 = vmatpush2.msra.mxu0 0.0
    %1325 = vmatprep.subr.mxu0 0.0
    %1326 = vmatpush2.msra.mxu0 0.0
    %1327 = vmatprep.subr.mxu0 0.0
    %1328 = vmatpush2.msra.mxu0 0.0
    %1329 = vmatprep.subr.mxu0 0.0
    %1330 = vmatpush2.msra.mxu0 0.0
    %1331 = vmatprep.subr.mxu0 0.0
    %1332 = vmatpush2.msra.mxu0 0.0
    %1333 = vmatprep.subr.mxu0 0.0
    %1334 = vmatpush2.msra.mxu0 0.0
    %1335 = vmatprep.subr.mxu0 0.0
    %1336 = vmatpush2.msra.mxu0 0.0
    %1337 = vmatprep.subr.mxu0 0.0
    %1338 = vmatpush2.msra.mxu0 0.0
    %1339 = vmatprep.subr.mxu0 0.0
    %1340 = vmatpush2.msra.mxu0 0.0
    %1341 = vmatprep.subr.mxu0 0.0
    %1342 = vmatpush2.msra.mxu0 0.0
    %1343 = vmatprep.subr.mxu0 0.0
    %1344 = vmatpush2.msra.mxu0 0.0
    %1345 = vmatprep.subr.mxu0 0.0
    %1346 = vmatpush2.msra.mxu0 0.0
    %1347 = vmatprep.subr.mxu0 0.0
    %1348 = vmatpush2.msra.mxu0 0.0
    %1349 = vmatprep.subr.mxu0 0.0
    %1350 = vmatpush2.msra.mxu0 0.0
    %1351 = vmatprep.mubr.f32.mxu0 0.0
    %1352 = vmatmul.mubr.f32.gmra.mxu0 %v1267
    %v1353 = vpop.f32.mrf.mxu0
    %v1354 = vadd.f32 0.0, %v1353
    %v1355 = vpop.f32.mrf.mxu0
    %v1356 = vadd.f32 0.0, %v1355
    %1357 = vmatprep.mubr.f32.mxu0 0.0
    %1358 = vmatmul.mubr.f32.gmra.mxu0 %v1270
    %v1359 = vpop.f32.mrf.mxu0
    %v1360 = vadd.f32 0.0, %v1359
    %v1361 = vpop.f32.mrf.mxu0
    %v1362 = vadd.f32 0.0, %v1361
    %1363 = vmatprep.mubr.f32.mxu0 0.0
    %1364 = vmatmul.mubr.f32.gmra.mxu0 %v1273
    %v1365 = vpop.f32.mrf.mxu0
    %v1366 = vadd.f32 0.0, %v1365
    %v1367 = vpop.f32.mrf.mxu0
    %v1368 = vadd.f32 0.0, %v1367
    %1369 = vmatprep.mubr.f32.mxu0 0.0
    %1370 = vmatmul.mubr.f32.gmra.mxu0 %v1276
    %v1371 = vpop.f32.mrf.mxu0
    %v1372 = vadd.f32 0.0, %v1371
    %v1373 = vpop.f32.mrf.mxu0
    %v1374 = vadd.f32 0.0, %v1373
    %1375 = vmatprep.mubr.f32.mxu0 0.0
    %1376 = vmatmul.mubr.f32.gmra.mxu0 %v1279
    %v1377 = vpop.f32.mrf.mxu0
    %v1378 = vadd.f32 0.0, %v1377
    %v1379 = vpop.f32.mrf.mxu0
    %v1380 = vadd.f32 0.0, %v1379
    %1381 = vmatprep.mubr.f32.mxu0 0.0
    %1382 = vmatmul.mubr.f32.gmra.mxu0 %v1282
    %v1383 = vpop.f32.mrf.mxu0
    %v1384 = vadd.f32 0.0, %v1383
    %v1385 = vpop.f32.mrf.mxu0
    %v1386 = vadd.f32 0.0, %v1385
    %1387 = vmatprep.mubr.f32.mxu0 0.0
    %1388 = vmatmul.mubr.f32.gmra.mxu0 %v1285
    %v1389 = vpop.f32.mrf.mxu0
    %v1390 = vadd.f32 0.0, %v1389
    %v1391 = vpop.f32.mrf.mxu0
    %v1392 = vadd.f32 0.0, %v1391
    %1393 = vdwg.mxu0
    %1394 = vmatprep.subr.mxu0 0.0
    %1395 = vmatpush1.msra.mxu0 0.0
    %1396 = vmatprep.subr.mxu0 0.0
    %1397 = vmatpush1.msra.mxu0 0.0
    %1398 = vmatprep.subr.mxu0 0.0
    %1399 = vmatpush1.msra.mxu0 0.0
    %1400 = vmatprep.subr.mxu0 0.0
    %1401 = vmatpush1.msra.mxu0 0.0
    %1402 = vmatprep.subr.mxu0 0.0
    %1403 = vmatpush1.msra.mxu0 0.0
    %1404 = vmatprep.subr.mxu0 0.0
    %1405 = vmatpush1.msra.mxu0 0.0
    %1406 = vmatprep.subr.mxu0 0.0
    %1407 = vmatpush1.msra.mxu0 0.0
    %1408 = vmatprep.subr.mxu0 0.0
    %1409 = vmatpush1.msra.mxu0 0.0
    %1410 = vmatprep.subr.mxu0 0.0
    %1411 = vmatpush1.msra.mxu0 0.0
    %1412 = vmatprep.subr.mxu0 %v75
    %1413 = vmatpush1.msra.mxu0 %v74
    %1414 = vmatprep.subr.mxu0 %v71
    %1415 = vmatpush1.msra.mxu0 %v70
    %1416 = vmatprep.subr.mxu0 %v67
    %1417 = vmatpush1.msra.mxu0 %v66
    %1418 = vmatprep.subr.mxu0 %v63
    %1419 = vmatpush1.msra.mxu0 %v62
    %1420 = vmatprep.subr.mxu0 %v59
    %1421 = vmatpush1.msra.mxu0 %v58
    %1422 = vmatprep.subr.mxu0 %v55
    %1423 = vmatpush1.msra.mxu0 %v54
    %1424 = vmatprep.subr.mxu0 %v51
    %1425 = vmatpush1.msra.mxu0 %v50
    %1426 = vmatprep.subr.mxu0 0.0
    %1427 = vmatpush2.msra.mxu0 0.0
    %1428 = vmatprep.subr.mxu0 0.0
    %1429 = vmatpush2.msra.mxu0 0.0
    %1430 = vmatprep.subr.mxu0 0.0
    %1431 = vmatpush2.msra.mxu0 0.0
    %1432 = vmatprep.subr.mxu0 0.0
    %1433 = vmatpush2.msra.mxu0 0.0
    %1434 = vmatprep.subr.mxu0 0.0
    %1435 = vmatpush2.msra.mxu0 0.0
    %1436 = vmatprep.subr.mxu0 0.0
    %1437 = vmatpush2.msra.mxu0 0.0
    %1438 = vmatprep.subr.mxu0 0.0
    %1439 = vmatpush2.msra.mxu0 0.0
    %1440 = vmatprep.subr.mxu0 0.0
    %1441 = vmatpush2.msra.mxu0 0.0
    %1442 = vmatprep.subr.mxu0 0.0
    %1443 = vmatpush2.msra.mxu0 0.0
    %1444 = vmatprep.subr.mxu0 0.0
    %1445 = vmatpush2.msra.mxu0 0.0
    %1446 = vmatprep.subr.mxu0 0.0
    %1447 = vmatpush2.msra.mxu0 0.0
    %1448 = vmatprep.subr.mxu0 0.0
    %1449 = vmatpush2.msra.mxu0 0.0
    %1450 = vmatprep.subr.mxu0 0.0
    %1451 = vmatpush2.msra.mxu0 0.0
    %1452 = vmatprep.subr.mxu0 0.0
    %1453 = vmatpush2.msra.mxu0 0.0
    %1454 = vmatprep.subr.mxu0 0.0
    %1455 = vmatpush2.msra.mxu0 0.0
    %1456 = vmatprep.subr.mxu0 0.0
    %1457 = vmatpush2.msra.mxu0 0.0
    %1458 = vmatprep.mubr.f32.mxu0 0.0
    %1459 = vmatmul.mubr.f32.gmra.mxu0 %v1267
    %v1460 = vpop.f32.mrf.mxu0
    %v1461 = vadd.f32 0.0, %v1460
    %v1462 = vpop.f32.mrf.mxu0
    %v1463 = vadd.f32 0.0, %v1462
    %1464 = vmatprep.mubr.f32.mxu0 0.0
    %1465 = vmatmul.mubr.f32.gmra.mxu0 %v1270
    %v1466 = vpop.f32.mrf.mxu0
    %v1467 = vadd.f32 0.0, %v1466
    %v1468 = vpop.f32.mrf.mxu0
    %v1469 = vadd.f32 0.0, %v1468
    %1470 = vmatprep.mubr.f32.mxu0 0.0
    %1471 = vmatmul.mubr.f32.gmra.mxu0 %v1273
    %v1472 = vpop.f32.mrf.mxu0
    %v1473 = vadd.f32 0.0, %v1472
    %v1474 = vpop.f32.mrf.mxu0
    %v1475 = vadd.f32 0.0, %v1474
    %1476 = vmatprep.mubr.f32.mxu0 0.0
    %1477 = vmatmul.mubr.f32.gmra.mxu0 %v1276
    %v1478 = vpop.f32.mrf.mxu0
    %v1479 = vadd.f32 0.0, %v1478
    %v1480 = vpop.f32.mrf.mxu0
    %v1481 = vadd.f32 0.0, %v1480
    %1482 = vmatprep.mubr.f32.mxu0 0.0
    %1483 = vmatmul.mubr.f32.gmra.mxu0 %v1279
    %v1484 = vpop.f32.mrf.mxu0
    %v1485 = vadd.f32 0.0, %v1484
    %v1486 = vpop.f32.mrf.mxu0
    %v1487 = vadd.f32 0.0, %v1486
    %1488 = vmatprep.mubr.f32.mxu0 0.0
    %1489 = vmatmul.mubr.f32.gmra.mxu0 %v1282
    %v1490 = vpop.f32.mrf.mxu0
    %v1491 = vadd.f32 0.0, %v1490
    %v1492 = vpop.f32.mrf.mxu0
    %v1493 = vadd.f32 0.0, %v1492
    %1494 = vmatprep.mubr.f32.mxu0 0.0
    %1495 = vmatmul.mubr.f32.gmra.mxu0 %v1285
    %v1496 = vpop.f32.mrf.mxu0
    %v1497 = vadd.f32 0.0, %v1496
    %v1498 = vpop.f32.mrf.mxu0
    %v1499 = vadd.f32 0.0, %v1498
    %1500 = vdwg.mxu0
    %s1501 = scalar_lea.vmem %s2, 1792
    %v1502 = vld [vmem:[%s1501] sm:$0xff]
    %v1503 = vld [vmem:[%s1501 + $0x8] sm:$0xff]
    %v1504 = vld [vmem:[%s1501 + $0x10] sm:$0xff]
    %v1505 = vld [vmem:[%s1501 + $0x18] sm:$0xff]
    %v1506 = vld [vmem:[%s1501 + $0x20] sm:$0xff]
    %v1507 = vld [vmem:[%s1501 + $0x28] sm:$0xff]
    %v1508 = vld [vmem:[%s1501 + $0x30] sm:$0xff]
    %v1509 = vld [vmem:[%s1501 + $0x38] sm:$0xff]
    %v1510 = vld [vmem:[%s1501 + $0x40] sm:$0xff]
    %v1511 = vld [vmem:[%s1501 + $0x48] sm:$0xff]
    %v1512 = vld [vmem:[%s1501 + $0x50] sm:$0xff]
    %v1513 = vld [vmem:[%s1501 + $0x58] sm:$0xff]
    %v1514 = vld [vmem:[%s1501 + $0x60] sm:$0xff]
    %v1515 = vld [vmem:[%s1501 + $0x68] sm:$0xff]
    %v1516 = vld [vmem:[%s1501 + $0x70] sm:$0xff]
    %v1517 = vld [vmem:[%s1501 + $0x78] sm:$0xff]
    %v1518 = vld [vmem:[%s1501 + $0x80] sm:$0xff]
    %v1519 = vld [vmem:[%s1501 + $0x88] sm:$0xff]
    %v1520 = vld [vmem:[%s1501 + $0x90] sm:$0xff]
    %v1521 = vld [vmem:[%s1501 + $0x98] sm:$0xff]
    %v1522 = vld [vmem:[%s1501 + $0xa0] sm:$0xff]
    %v1523 = vld [vmem:[%s1501 + $0xa8] sm:$0xff]
    %v1524 = vld [vmem:[%s1501 + $0xb0] sm:$0xff]
    %v1525 = vld [vmem:[%s1501 + $0xb8] sm:$0xff]
    %v1526 = vld [vmem:[%s1501 + $0xc0] sm:$0xff]
    %v1527 = vld [vmem:[%s1501 + $0xc8] sm:$0xff]
    %v1528 = vld [vmem:[%s1501 + $0xd0] sm:$0xff]
    %v1529 = vld [vmem:[%s1501 + $0xd8] sm:$0xff]
    %v1530 = vld [vmem:[%s1501 + $0xe0] sm:$0xff]
    %v1531 = vld [vmem:[%s1501 + $0xe8] sm:$0xff]
    %v1532 = vld [vmem:[%s1501 + $0xf0] sm:$0xff]
    %v1533 = vld [vmem:[%s1501 + $0xf8] sm:$0xff]
    %v1534 = vld [vmem:[%s1501 + $0x100] sm:$0xff]
    %v1535 = vld [vmem:[%s1501 + $0x108] sm:$0xff]
    %v1536 = vld [vmem:[%s1501 + $0x110] sm:$0xff]
    %v1537 = vld [vmem:[%s1501 + $0x118] sm:$0xff]
    %v1538 = vld [vmem:[%s1501 + $0x120] sm:$0xff]
    %v1539 = vld [vmem:[%s1501 + $0x128] sm:$0xff]
    %v1540 = vld [vmem:[%s1501 + $0x130] sm:$0xff]
    %v1541 = vld [vmem:[%s1501 + $0x138] sm:$0xff]
    %v1542 = vld [vmem:[%s1501 + $0x140] sm:$0xff]
    %v1543 = vld [vmem:[%s1501 + $0x148] sm:$0xff]
    %v1544 = vld [vmem:[%s1501 + $0x150] sm:$0xff]
    %v1545 = vld [vmem:[%s1501 + $0x158] sm:$0xff]
    %v1546 = vld [vmem:[%s1501 + $0x160] sm:$0xff]
    %v1547 = vld [vmem:[%s1501 + $0x168] sm:$0xff]
    %v1548 = vld [vmem:[%s1501 + $0x170] sm:$0xff]
    %v1549 = vld [vmem:[%s1501 + $0x178] sm:$0xff]
    %v1550 = vld [vmem:[%s1501 + $0x180] sm:$0xff]
    %v1551 = vld [vmem:[%s1501 + $0x188] sm:$0xff]
    %v1552 = vld [vmem:[%s1501 + $0x190] sm:$0xff]
    %v1553 = vld [vmem:[%s1501 + $0x198] sm:$0xff]
    %v1554 = vld [vmem:[%s1501 + $0x1a0] sm:$0xff]
    %v1555 = vld [vmem:[%s1501 + $0x1a8] sm:$0xff]
    %v1556 = vld [vmem:[%s1501 + $0x1b0] sm:$0xff]
    %v1557 = vld [vmem:[%s1501 + $0x1b8] sm:$0xff]
    %v1558 = vld [vmem:[%s1501 + $0x1c0] sm:$0xff]
    %v1559 = vld [vmem:[%s1501 + $0x1c8] sm:$0xff]
    %v1560 = vld [vmem:[%s1501 + $0x1d0] sm:$0xff]
    %v1561 = vld [vmem:[%s1501 + $0x1d8] sm:$0xff]
    %v1562 = vld [vmem:[%s1501 + $0x1e0] sm:$0xff]
    %v1563 = vld [vmem:[%s1501 + $0x1e8] sm:$0xff]
    %v1564 = vld [vmem:[%s1501 + $0x1f0] sm:$0xff]
    %v1565 = vld [vmem:[%s1501 + $0x1f8] sm:$0xff]
    %v1566 = vld [vmem:[%s1501 + $0x200] sm:$0xff]
    %v1567 = vld [vmem:[%s1501 + $0x208] sm:$0xff]
    %v1568 = vld [vmem:[%s1501 + $0x210] sm:$0xff]
    %v1569 = vld [vmem:[%s1501 + $0x218] sm:$0xff]
    %v1570 = vld [vmem:[%s1501 + $0x220] sm:$0xff]
    %v1571 = vld [vmem:[%s1501 + $0x228] sm:$0xff]
    %v1572 = vld [vmem:[%s1501 + $0x230] sm:$0xff]
    %v1573 = vld [vmem:[%s1501 + $0x238] sm:$0xff]
    %v1574 = vld [vmem:[%s1501 + $0x240] sm:$0xff]
    %v1575 = vld [vmem:[%s1501 + $0x248] sm:$0xff]
    %v1576 = vld [vmem:[%s1501 + $0x250] sm:$0xff]
    %v1577 = vld [vmem:[%s1501 + $0x258] sm:$0xff]
    %v1578 = vld [vmem:[%s1501 + $0x260] sm:$0xff]
    %v1579 = vld [vmem:[%s1501 + $0x268] sm:$0xff]
    %v1580 = vld [vmem:[%s1501 + $0x270] sm:$0xff]
    %v1581 = vld [vmem:[%s1501 + $0x278] sm:$0xff]
    %v1582 = vld [vmem:[%s1501 + $0x280] sm:$0xff]
    %v1583 = vld [vmem:[%s1501 + $0x288] sm:$0xff]
    %v1584 = vld [vmem:[%s1501 + $0x290] sm:$0xff]
    %v1585 = vld [vmem:[%s1501 + $0x298] sm:$0xff]
    %v1586 = vld [vmem:[%s1501 + $0x2a0] sm:$0xff]
    %v1587 = vld [vmem:[%s1501 + $0x2a8] sm:$0xff]
    %v1588 = vld [vmem:[%s1501 + $0x2b0] sm:$0xff]
    %v1589 = vld [vmem:[%s1501 + $0x2b8] sm:$0xff]
    %v1590 = vld [vmem:[%s1501 + $0x2c0] sm:$0xff]
    %v1591 = vld [vmem:[%s1501 + $0x2c8] sm:$0xff]
    %v1592 = vld [vmem:[%s1501 + $0x2d0] sm:$0xff]
    %v1593 = vld [vmem:[%s1501 + $0x2d8] sm:$0xff]
    %v1594 = vld [vmem:[%s1501 + $0x2e0] sm:$0xff]
    %v1595 = vld [vmem:[%s1501 + $0x2e8] sm:$0xff]
    %v1596 = vld [vmem:[%s1501 + $0x2f0] sm:$0xff]
    %v1597 = vld [vmem:[%s1501 + $0x2f8] sm:$0xff]
    %v1598 = vld [vmem:[%s1501 + $0x300] sm:$0xff]
    %v1599 = vld [vmem:[%s1501 + $0x308] sm:$0xff]
    %v1600 = vld [vmem:[%s1501 + $0x310] sm:$0xff]
    %v1601 = vld [vmem:[%s1501 + $0x318] sm:$0xff]
    %v1602 = vld [vmem:[%s1501 + $0x320] sm:$0xff]
    %v1603 = vld [vmem:[%s1501 + $0x328] sm:$0xff]
    %v1604 = vld [vmem:[%s1501 + $0x330] sm:$0xff]
    %v1605 = vld [vmem:[%s1501 + $0x338] sm:$0xff]
    %v1606 = vld [vmem:[%s1501 + $0x340] sm:$0xff]
    %v1607 = vld [vmem:[%s1501 + $0x348] sm:$0xff]
    %v1608 = vld [vmem:[%s1501 + $0x350] sm:$0xff]
    %v1609 = vld [vmem:[%s1501 + $0x358] sm:$0xff]
    %v1610 = vld [vmem:[%s1501 + $0x360] sm:$0xff]
    %v1611 = vld [vmem:[%s1501 + $0x368] sm:$0xff]
    %v1612 = vld [vmem:[%s1501 + $0x370] sm:$0xff]
    %v1613 = vld [vmem:[%s1501 + $0x378] sm:$0xff]
    %v1615 = vsel %vm787, %v1463, 0
    %v1618 = vsel %vm787, %v1469, 0
    %v1621 = vsel %vm787, %v1475, 0
    %v1624 = vsel %vm787, %v1481, 0
    %v1627 = vsel %vm787, %v1487, 0
    %v1630 = vsel %vm787, %v1493, 0
    %v1633 = vsel %vm787, %v1499, 0
    %1635 = vmatprep.subr.mxu0 %v1533
    %1636 = vmatpush1.msra.mxu0 %v1532
    %1637 = vmatprep.subr.mxu0 %v1531
    %1638 = vmatpush1.msra.mxu0 %v1530
    %1639 = vmatprep.subr.mxu0 %v1529
    %1640 = vmatpush1.msra.mxu0 %v1528
    %1641 = vmatprep.subr.mxu0 %v1527
    %1642 = vmatpush1.msra.mxu0 %v1526
    %1643 = vmatprep.subr.mxu0 %v1525
    %1644 = vmatpush1.msra.mxu0 %v1524
    %1645 = vmatprep.subr.mxu0 %v1523
    %1646 = vmatpush1.msra.mxu0 %v1522
    %1647 = vmatprep.subr.mxu0 %v1521
    %1648 = vmatpush1.msra.mxu0 %v1520
    %1649 = vmatprep.subr.mxu0 %v1519
    %1650 = vmatpush1.msra.mxu0 %v1518
    %1651 = vmatprep.subr.mxu0 %v1517
    %1652 = vmatpush1.msra.mxu0 %v1516
    %1653 = vmatprep.subr.mxu0 %v1515
    %1654 = vmatpush1.msra.mxu0 %v1514
    %1655 = vmatprep.subr.mxu0 %v1513
    %1656 = vmatpush1.msra.mxu0 %v1512
    %1657 = vmatprep.subr.mxu0 %v1511
    %1658 = vmatpush1.msra.mxu0 %v1510
    %1659 = vmatprep.subr.mxu0 %v1509
    %1660 = vmatpush1.msra.mxu0 %v1508
    %1661 = vmatprep.subr.mxu0 %v1507
    %1662 = vmatpush1.msra.mxu0 %v1506
    %1663 = vmatprep.subr.mxu0 %v1505
    %1664 = vmatpush1.msra.mxu0 %v1504
    %1665 = vmatprep.subr.mxu0 %v1503
    %1666 = vmatpush1.msra.mxu0 %v1502
    %1667 = vmatprep.subr.mxu0 %v1565
    %1668 = vmatpush2.msra.mxu0 %v1564
    %1669 = vmatprep.subr.mxu0 %v1563
    %1670 = vmatpush2.msra.mxu0 %v1562
    %1671 = vmatprep.subr.mxu0 %v1561
    %1672 = vmatpush2.msra.mxu0 %v1560
    %1673 = vmatprep.subr.mxu0 %v1559
    %1674 = vmatpush2.msra.mxu0 %v1558
    %1675 = vmatprep.subr.mxu0 %v1557
    %1676 = vmatpush2.msra.mxu0 %v1556
    %1677 = vmatprep.subr.mxu0 %v1555
    %1678 = vmatpush2.msra.mxu0 %v1554
    %1679 = vmatprep.subr.mxu0 %v1553
    %1680 = vmatpush2.msra.mxu0 %v1552
    %1681 = vmatprep.subr.mxu0 %v1551
    %1682 = vmatpush2.msra.mxu0 %v1550
    %1683 = vmatprep.subr.mxu0 %v1549
    %1684 = vmatpush2.msra.mxu0 %v1548
    %1685 = vmatprep.subr.mxu0 %v1547
    %1686 = vmatpush2.msra.mxu0 %v1546
    %1687 = vmatprep.subr.mxu0 %v1545
    %1688 = vmatpush2.msra.mxu0 %v1544
    %1689 = vmatprep.subr.mxu0 %v1543
    %1690 = vmatpush2.msra.mxu0 %v1542
    %1691 = vmatprep.subr.mxu0 %v1541
    %1692 = vmatpush2.msra.mxu0 %v1540
    %1693 = vmatprep.subr.mxu0 %v1539
    %1694 = vmatpush2.msra.mxu0 %v1538
    %1695 = vmatprep.subr.mxu0 %v1537
    %1696 = vmatpush2.msra.mxu0 %v1536
    %1697 = vmatprep.subr.mxu0 %v1535
    %1698 = vmatpush2.msra.mxu0 %v1534
    %1699 = vmatprep.mubr.f32.mxu0 %v1356
    %1700 = vmatmul.mubr.f32.gmra.mxu0 %v1354
    %v1701 = vpop.f32.mrf.mxu0
    %v1702 = vadd.f32 0.0, %v1701
    %v1703 = vpop.f32.mrf.mxu0
    %v1704 = vadd.f32 0.0, %v1703
    %1705 = vmatprep.mubr.f32.mxu0 %v1362
    %1706 = vmatmul.mubr.f32.gmra.mxu0 %v1360
    %v1707 = vpop.f32.mrf.mxu0
    %v1708 = vadd.f32 0.0, %v1707
    %v1709 = vpop.f32.mrf.mxu0
    %v1710 = vadd.f32 0.0, %v1709
    %1711 = vmatprep.mubr.f32.mxu0 %v1368
    %1712 = vmatmul.mubr.f32.gmra.mxu0 %v1366
    %v1713 = vpop.f32.mrf.mxu0
    %v1714 = vadd.f32 0.0, %v1713
    %v1715 = vpop.f32.mrf.mxu0
    %v1716 = vadd.f32 0.0, %v1715
    %1717 = vmatprep.mubr.f32.mxu0 %v1374
    %1718 = vmatmul.mubr.f32.gmra.mxu0 %v1372
    %v1719 = vpop.f32.mrf.mxu0
    %v1720 = vadd.f32 0.0, %v1719
    %v1721 = vpop.f32.mrf.mxu0
    %v1722 = vadd.f32 0.0, %v1721
    %1723 = vmatprep.mubr.f32.mxu0 %v1380
    %1724 = vmatmul.mubr.f32.gmra.mxu0 %v1378
    %v1725 = vpop.f32.mrf.mxu0
    %v1726 = vadd.f32 0.0, %v1725
    %v1727 = vpop.f32.mrf.mxu0
    %v1728 = vadd.f32 0.0, %v1727
    %1729 = vmatprep.mubr.f32.mxu0 %v1386
    %1730 = vmatmul.mubr.f32.gmra.mxu0 %v1384
    %v1731 = vpop.f32.mrf.mxu0
    %v1732 = vadd.f32 0.0, %v1731
    %v1733 = vpop.f32.mrf.mxu0
    %v1734 = vadd.f32 0.0, %v1733
    %1735 = vmatprep.mubr.f32.mxu0 %v1392
    %1736 = vmatmul.mubr.f32.gmra.mxu0 %v1390
    %v1737 = vpop.f32.mrf.mxu0
    %v1738 = vadd.f32 0.0, %v1737
    %v1739 = vpop.f32.mrf.mxu0
    %v1740 = vadd.f32 0.0, %v1739
    %1741 = vdwg.mxu0
    %1742 = vmatprep.subr.mxu0 %v1597
    %1743 = vmatpush1.msra.mxu0 %v1596
    %1744 = vmatprep.subr.mxu0 %v1595
    %1745 = vmatpush1.msra.mxu0 %v1594
    %1746 = vmatprep.subr.mxu0 %v1593
    %1747 = vmatpush1.msra.mxu0 %v1592
    %1748 = vmatprep.subr.mxu0 %v1591
    %1749 = vmatpush1.msra.mxu0 %v1590
    %1750 = vmatprep.subr.mxu0 %v1589
    %1751 = vmatpush1.msra.mxu0 %v1588
    %1752 = vmatprep.subr.mxu0 %v1587
    %1753 = vmatpush1.msra.mxu0 %v1586
    %1754 = vmatprep.subr.mxu0 %v1585
    %1755 = vmatpush1.msra.mxu0 %v1584
    %1756 = vmatprep.subr.mxu0 %v1583
    %1757 = vmatpush1.msra.mxu0 %v1582
    %1758 = vmatprep.subr.mxu0 %v1581
    %1759 = vmatpush1.msra.mxu0 %v1580
    %1760 = vmatprep.subr.mxu0 %v1579
    %1761 = vmatpush1.msra.mxu0 %v1578
    %1762 = vmatprep.subr.mxu0 %v1577
    %1763 = vmatpush1.msra.mxu0 %v1576
    %1764 = vmatprep.subr.mxu0 %v1575
    %1765 = vmatpush1.msra.mxu0 %v1574
    %1766 = vmatprep.subr.mxu0 %v1573
    %1767 = vmatpush1.msra.mxu0 %v1572
    %1768 = vmatprep.subr.mxu0 %v1571
    %1769 = vmatpush1.msra.mxu0 %v1570
    %1770 = vmatprep.subr.mxu0 %v1569
    %1771 = vmatpush1.msra.mxu0 %v1568
    %1772 = vmatprep.subr.mxu0 %v1567
    %1773 = vmatpush1.msra.mxu0 %v1566
    %1774 = vmatprep.subr.mxu0 0.0
    %1775 = vmatpush2.msra.mxu0 0.0
    %1776 = vmatprep.subr.mxu0 0.0
    %1777 = vmatpush2.msra.mxu0 0.0
    %1778 = vmatprep.subr.mxu0 0.0
    %1779 = vmatpush2.msra.mxu0 0.0
    %1780 = vmatprep.subr.mxu0 0.0
    %1781 = vmatpush2.msra.mxu0 0.0
    %1782 = vmatprep.subr.mxu0 0.0
    %1783 = vmatpush2.msra.mxu0 0.0
    %1784 = vmatprep.subr.mxu0 0.0
    %1785 = vmatpush2.msra.mxu0 0.0
    %1786 = vmatprep.subr.mxu0 0.0
    %1787 = vmatpush2.msra.mxu0 0.0
    %1788 = vmatprep.subr.mxu0 0.0
    %1789 = vmatpush2.msra.mxu0 0.0
    %1790 = vmatprep.subr.mxu0 %v1613
    %1791 = vmatpush2.msra.mxu0 %v1612
    %1792 = vmatprep.subr.mxu0 %v1611
    %1793 = vmatpush2.msra.mxu0 %v1610
    %1794 = vmatprep.subr.mxu0 %v1609
    %1795 = vmatpush2.msra.mxu0 %v1608
    %1796 = vmatprep.subr.mxu0 %v1607
    %1797 = vmatpush2.msra.mxu0 %v1606
    %1798 = vmatprep.subr.mxu0 %v1605
    %1799 = vmatpush2.msra.mxu0 %v1604
    %1800 = vmatprep.subr.mxu0 %v1603
    %1801 = vmatpush2.msra.mxu0 %v1602
    %1802 = vmatprep.subr.mxu0 %v1601
    %1803 = vmatpush2.msra.mxu0 %v1600
    %1804 = vmatprep.subr.mxu0 %v1599
    %1805 = vmatpush2.msra.mxu0 %v1598
    %1806 = vmatprep.mubr.f32.mxu0 %v1615
    %1807 = vmatmul.mubr.f32.gmra.mxu0 %v1461
    %v1808 = vpop.f32.mrf.mxu0
    %v1809 = vadd.f32 %v1702, %v1808
    %v1810 = vpop.f32.mrf.mxu0
    %v1811 = vadd.f32 %v1704, %v1810
    %1812 = vmatprep.mubr.f32.mxu0 %v1618
    %1813 = vmatmul.mubr.f32.gmra.mxu0 %v1467
    %v1814 = vpop.f32.mrf.mxu0
    %v1815 = vadd.f32 %v1708, %v1814
    %v1816 = vpop.f32.mrf.mxu0
    %v1817 = vadd.f32 %v1710, %v1816
    %1818 = vmatprep.mubr.f32.mxu0 %v1621
    %1819 = vmatmul.mubr.f32.gmra.mxu0 %v1473
    %v1820 = vpop.f32.mrf.mxu0
    %v1821 = vadd.f32 %v1714, %v1820
    %v1822 = vpop.f32.mrf.mxu0
    %v1823 = vadd.f32 %v1716, %v1822
    %1824 = vmatprep.mubr.f32.mxu0 %v1624
    %1825 = vmatmul.mubr.f32.gmra.mxu0 %v1479
    %v1826 = vpop.f32.mrf.mxu0
    %v1827 = vadd.f32 %v1720, %v1826
    %v1828 = vpop.f32.mrf.mxu0
    %v1829 = vadd.f32 %v1722, %v1828
    %1830 = vmatprep.mubr.f32.mxu0 %v1627
    %1831 = vmatmul.mubr.f32.gmra.mxu0 %v1485
    %v1832 = vpop.f32.mrf.mxu0
    %v1833 = vadd.f32 %v1726, %v1832
    %v1834 = vpop.f32.mrf.mxu0
    %v1835 = vadd.f32 %v1728, %v1834
    %1836 = vmatprep.mubr.f32.mxu0 %v1630
    %1837 = vmatmul.mubr.f32.gmra.mxu0 %v1491
    %v1838 = vpop.f32.mrf.mxu0
    %v1839 = vadd.f32 %v1732, %v1838
    %v1840 = vpop.f32.mrf.mxu0
    %v1841 = vadd.f32 %v1734, %v1840
    %1842 = vmatprep.mubr.f32.mxu0 %v1633
    %1843 = vmatmul.mubr.f32.gmra.mxu0 %v1497
    %v1844 = vpop.f32.mrf.mxu0
    %v1845 = vadd.f32 %v1738, %v1844
    %v1846 = vpop.f32.mrf.mxu0
    %v1847 = vadd.f32 %v1740, %v1846
    %1848 = vdwg.mxu0
    %v1849 = vadd.f32 %v1218, %v1809
    %v1850 = vadd.f32 %v1220, %v1811
    %v1851 = vadd.f32 %v1224, %v1815
    %v1852 = vadd.f32 %v1226, %v1817
    %v1853 = vadd.f32 %v1230, %v1821
    %v1854 = vadd.f32 %v1232, %v1823
    %v1855 = vadd.f32 %v1236, %v1827
    %v1856 = vadd.f32 %v1238, %v1829
    %v1857 = vadd.f32 %v1242, %v1833
    %v1858 = vadd.f32 %v1244, %v1835
    %v1859 = vadd.f32 %v1248, %v1839
    %v1860 = vadd.f32 %v1250, %v1841
    %v1861 = vadd.f32 %v1254, %v1845
    %v1862 = vadd.f32 %v1256, %v1847
    %v1864 = vsel %vm83, 0.017857144, 0
    %1866 = vmatprep.subr.mxu0 0.0
    %1867 = vmatpush1.msra.mxu0 0.0
    %1868 = vmatprep.subr.mxu0 0.0
    %1869 = vmatpush1.msra.mxu0 0.0
    %1870 = vmatprep.subr.mxu0 0.0
    %1871 = vmatpush1.msra.mxu0 0.0
    %1872 = vmatprep.subr.mxu0 0.0
    %1873 = vmatpush1.msra.mxu0 0.0
    %1874 = vmatprep.subr.mxu0 0.0
    %1875 = vmatpush1.msra.mxu0 0.0
    %1876 = vmatprep.subr.mxu0 0.0
    %1877 = vmatpush1.msra.mxu0 0.0
    %1878 = vmatprep.subr.mxu0 0.0
    %1879 = vmatpush1.msra.mxu0 0.0
    %1880 = vmatprep.subr.mxu0 0.0
    %1881 = vmatpush1.msra.mxu0 0.0
    %1882 = vmatprep.subr.mxu0 0.0
    %1883 = vmatpush1.msra.mxu0 0.0
    %1884 = vmatprep.subr.mxu0 %v1862
    %1885 = vmatpush1.msra.mxu0 %v1861
    %1886 = vmatprep.subr.mxu0 %v1860
    %1887 = vmatpush1.msra.mxu0 %v1859
    %1888 = vmatprep.subr.mxu0 %v1858
    %1889 = vmatpush1.msra.mxu0 %v1857
    %1890 = vmatprep.subr.mxu0 %v1856
    %1891 = vmatpush1.msra.mxu0 %v1855
    %1892 = vmatprep.subr.mxu0 %v1854
    %1893 = vmatpush1.msra.mxu0 %v1853
    %1894 = vmatprep.subr.mxu0 %v1852
    %1895 = vmatpush1.msra.mxu0 %v1851
    %1896 = vmatprep.subr.mxu0 %v1850
    %1897 = vmatpush1.msra.mxu0 %v1849
    %1898 = vmatprep.subr.mxu0 0.0
    %1899 = vmatpush2.msra.mxu0 0.0
    %1900 = vmatprep.subr.mxu0 0.0
    %1901 = vmatpush2.msra.mxu0 0.0
    %1902 = vmatprep.subr.mxu0 0.0
    %1903 = vmatpush2.msra.mxu0 0.0
    %1904 = vmatprep.subr.mxu0 0.0
    %1905 = vmatpush2.msra.mxu0 0.0
    %1906 = vmatprep.subr.mxu0 0.0
    %1907 = vmatpush2.msra.mxu0 0.0
    %1908 = vmatprep.subr.mxu0 0.0
    %1909 = vmatpush2.msra.mxu0 0.0
    %1910 = vmatprep.subr.mxu0 0.0
    %1911 = vmatpush2.msra.mxu0 0.0
    %1912 = vmatprep.subr.mxu0 0.0
    %1913 = vmatpush2.msra.mxu0 0.0
    %1914 = vmatprep.subr.mxu0 0.0
    %1915 = vmatpush2.msra.mxu0 0.0
    %1916 = vmatprep.subr.mxu0 0.0
    %1917 = vmatpush2.msra.mxu0 0.0
    %1918 = vmatprep.subr.mxu0 0.0
    %1919 = vmatpush2.msra.mxu0 0.0
    %1920 = vmatprep.subr.mxu0 0.0
    %1921 = vmatpush2.msra.mxu0 0.0
    %1922 = vmatprep.subr.mxu0 0.0
    %1923 = vmatpush2.msra.mxu0 0.0
    %1924 = vmatprep.subr.mxu0 0.0
    %1925 = vmatpush2.msra.mxu0 0.0
    %1926 = vmatprep.subr.mxu0 0.0
    %1927 = vmatpush2.msra.mxu0 0.0
    %1928 = vmatprep.subr.mxu0 0.0
    %1929 = vmatpush2.msra.mxu0 0.0
    %1930 = vmatprep.mubr.f32.mxu0 0.0
    %1931 = vmatmul.mubr.f32.gmra.mxu0 %v1864
    %v1932 = vpop.f32.mrf.mxu0
    %v1933 = vadd.f32 0.0, %v1932
    %v1934 = vpop.f32.mrf.mxu0
    %v1935 = vadd.f32 0.0, %v1934
    %1936 = vmatprep.mubr.f32.mxu0 0.0
    %1937 = vmatmul.mubr.f32.gmra.mxu0 %v1864
    %v1938 = vpop.f32.mrf.mxu0
    %v1939 = vadd.f32 0.0, %v1938
    %v1940 = vpop.f32.mrf.mxu0
    %v1941 = vadd.f32 0.0, %v1940
    %1942 = vmatprep.mubr.f32.mxu0 0.0
    %1943 = vmatmul.mubr.f32.gmra.mxu0 %v1864
    %v1944 = vpop.f32.mrf.mxu0
    %v1945 = vadd.f32 0.0, %v1944
    %v1946 = vpop.f32.mrf.mxu0
    %v1947 = vadd.f32 0.0, %v1946
    %1948 = vmatprep.mubr.f32.mxu0 0.0
    %1949 = vmatmul.mubr.f32.gmra.mxu0 %v1864
    %v1950 = vpop.f32.mrf.mxu0
    %v1951 = vadd.f32 0.0, %v1950
    %v1952 = vpop.f32.mrf.mxu0
    %v1953 = vadd.f32 0.0, %v1952
    %1954 = vmatprep.mubr.f32.mxu0 0.0
    %1955 = vmatmul.mubr.f32.gmra.mxu0 %v1864
    %v1956 = vpop.f32.mrf.mxu0
    %v1957 = vadd.f32 0.0, %v1956
    %v1958 = vpop.f32.mrf.mxu0
    %v1959 = vadd.f32 0.0, %v1958
    %1960 = vmatprep.mubr.f32.mxu0 0.0
    %1961 = vmatmul.mubr.f32.gmra.mxu0 %v1864
    %v1962 = vpop.f32.mrf.mxu0
    %v1963 = vadd.f32 0.0, %v1962
    %v1964 = vpop.f32.mrf.mxu0
    %v1965 = vadd.f32 0.0, %v1964
    %1966 = vmatprep.mubr.f32.mxu0 0.0
    %1967 = vmatmul.mubr.f32.gmra.mxu0 %v1864
    %v1968 = vpop.f32.mrf.mxu0
    %v1969 = vadd.f32 0.0, %v1968
    %v1970 = vpop.f32.mrf.mxu0
    %v1971 = vadd.f32 0.0, %v1970
    %1972 = vdwg.mxu0
    %v1973 = vld [vmem:[%s3] sm:$0xff]
    %v1974 = vld [vmem:[%s3 + $0x8] sm:$0xff]
    %v1975 = vld [vmem:[%s3 + $0x10] sm:$0xff]
    %v1976 = vld [vmem:[%s3 + $0x18] sm:$0xff]
    %v1977 = vld [vmem:[%s3 + $0x20] sm:$0xff]
    %v1978 = vld [vmem:[%s3 + $0x28] sm:$0xff]
    %v1979 = vld [vmem:[%s3 + $0x30] sm:$0xff]
    %v1980 = vld [vmem:[%s3 + $0x38] sm:$0xff]
    %v1981 = vld [vmem:[%s3 + $0x40] sm:$0xff]
    %v1982 = vld [vmem:[%s3 + $0x48] sm:$0xff]
    %v1983 = vld [vmem:[%s3 + $0x50] sm:$0xff]
    %v1984 = vld [vmem:[%s3 + $0x58] sm:$0xff]
    %v1985 = vld [vmem:[%s3 + $0x60] sm:$0xff]
    %v1986 = vld [vmem:[%s3 + $0x68] sm:$0xff]
    %v1987 = vld [vmem:[%s3 + $0x70] sm:$0xff]
    %v1988 = vld [vmem:[%s3 + $0x78] sm:$0xff]
    %v1989 = vld [vmem:[%s3 + $0x80] sm:$0xff]
    %v1990 = vld [vmem:[%s3 + $0x88] sm:$0xff]
    %v1991 = vld [vmem:[%s3 + $0x90] sm:$0xff]
    %v1992 = vld [vmem:[%s3 + $0x98] sm:$0xff]
    %v1993 = vld [vmem:[%s3 + $0xa0] sm:$0xff]
    %v1994 = vld [vmem:[%s3 + $0xa8] sm:$0xff]
    %v1995 = vld [vmem:[%s3 + $0xb0] sm:$0xff]
    %v1996 = vld [vmem:[%s3 + $0xb8] sm:$0xff]
    %v1997 = vld [vmem:[%s3 + $0xc0] sm:$0xff]
    %v1998 = vld [vmem:[%s3 + $0xc8] sm:$0xff]
    %v1999 = vld [vmem:[%s3 + $0xd0] sm:$0xff]
    %v2000 = vld [vmem:[%s3 + $0xd8] sm:$0xff]
    %v2001 = vld [vmem:[%s3 + $0xe0] sm:$0xff]
    %v2002 = vld [vmem:[%s3 + $0xe8] sm:$0xff]
    %v2003 = vld [vmem:[%s3 + $0xf0] sm:$0xff]
    %v2004 = vld [vmem:[%s3 + $0xf8] sm:$0xff]
    %v2005 = vld [vmem:[%s3 + $0x100] sm:$0xff]
    %v2006 = vld [vmem:[%s3 + $0x108] sm:$0xff]
    %v2007 = vld [vmem:[%s3 + $0x110] sm:$0xff]
    %v2008 = vld [vmem:[%s3 + $0x118] sm:$0xff]
    %v2009 = vld [vmem:[%s3 + $0x120] sm:$0xff]
    %v2010 = vld [vmem:[%s3 + $0x128] sm:$0xff]
    %v2011 = vld [vmem:[%s3 + $0x130] sm:$0xff]
    %v2012 = vld [vmem:[%s3 + $0x138] sm:$0xff]
    %v2013 = vld [vmem:[%s3 + $0x140] sm:$0xff]
    %v2014 = vld [vmem:[%s3 + $0x148] sm:$0xff]
    %v2015 = vld [vmem:[%s3 + $0x150] sm:$0xff]
    %v2016 = vld [vmem:[%s3 + $0x158] sm:$0xff]
    %v2017 = vld [vmem:[%s3 + $0x160] sm:$0xff]
    %v2018 = vld [vmem:[%s3 + $0x168] sm:$0xff]
    %v2019 = vld [vmem:[%s3 + $0x170] sm:$0xff]
    %v2020 = vld [vmem:[%s3 + $0x178] sm:$0xff]
    %v2021 = vld [vmem:[%s3 + $0x180] sm:$0xff]
    %v2022 = vld [vmem:[%s3 + $0x188] sm:$0xff]
    %v2023 = vld [vmem:[%s3 + $0x190] sm:$0xff]
    %v2024 = vld [vmem:[%s3 + $0x198] sm:$0xff]
    %v2025 = vld [vmem:[%s3 + $0x1a0] sm:$0xff]
    %v2026 = vld [vmem:[%s3 + $0x1a8] sm:$0xff]
    %v2027 = vld [vmem:[%s3 + $0x1b0] sm:$0xff]
    %v2028 = vld [vmem:[%s3 + $0x1b8] sm:$0xff]
    %vm2029 = vcmask 785408
    %v2031 = vsel %vm2029, %v1935, 0
    %v2034 = vsel %vm2029, %v1941, 0
    %v2037 = vsel %vm2029, %v1947, 0
    %v2040 = vsel %vm2029, %v1953, 0
    %v2043 = vsel %vm2029, %v1959, 0
    %v2046 = vsel %vm2029, %v1965, 0
    %v2049 = vsel %vm2029, %v1971, 0
    %2051 = vmatprep.subr.mxu0 %v2004
    %2052 = vmatpush1.msra.mxu0 %v2003
    %2053 = vmatprep.subr.mxu0 %v2002
    %2054 = vmatpush1.msra.mxu0 %v2001
    %2055 = vmatprep.subr.mxu0 %v2000
    %2056 = vmatpush1.msra.mxu0 %v1999
    %2057 = vmatprep.subr.mxu0 %v1998
    %2058 = vmatpush1.msra.mxu0 %v1997
    %2059 = vmatprep.subr.mxu0 %v1996
    %2060 = vmatpush1.msra.mxu0 %v1995
    %2061 = vmatprep.subr.mxu0 %v1994
    %2062 = vmatpush1.msra.mxu0 %v1993
    %2063 = vmatprep.subr.mxu0 %v1992
    %2064 = vmatpush1.msra.mxu0 %v1991
    %2065 = vmatprep.subr.mxu0 %v1990
    %2066 = vmatpush1.msra.mxu0 %v1989
    %2067 = vmatprep.subr.mxu0 %v1988
    %2068 = vmatpush1.msra.mxu0 %v1987
    %2069 = vmatprep.subr.mxu0 %v1986
    %2070 = vmatpush1.msra.mxu0 %v1985
    %2071 = vmatprep.subr.mxu0 %v1984
    %2072 = vmatpush1.msra.mxu0 %v1983
    %2073 = vmatprep.subr.mxu0 %v1982
    %2074 = vmatpush1.msra.mxu0 %v1981
    %2075 = vmatprep.subr.mxu0 %v1980
    %2076 = vmatpush1.msra.mxu0 %v1979
    %2077 = vmatprep.subr.mxu0 %v1978
    %2078 = vmatpush1.msra.mxu0 %v1977
    %2079 = vmatprep.subr.mxu0 %v1976
    %2080 = vmatpush1.msra.mxu0 %v1975
    %2081 = vmatprep.subr.mxu0 %v1974
    %2082 = vmatpush1.msra.mxu0 %v1973
    %2083 = vmatprep.subr.mxu0 0.0
    %2084 = vmatpush2.msra.mxu0 0.0
    %2085 = vmatprep.subr.mxu0 0.0
    %2086 = vmatpush2.msra.mxu0 0.0
    %2087 = vmatprep.subr.mxu0 0.0
    %2088 = vmatpush2.msra.mxu0 0.0
    %2089 = vmatprep.subr.mxu0 0.0
    %2090 = vmatpush2.msra.mxu0 0.0
    %2091 = vmatprep.subr.mxu0 %v2028
    %2092 = vmatpush2.msra.mxu0 %v2027
    %2093 = vmatprep.subr.mxu0 %v2026
    %2094 = vmatpush2.msra.mxu0 %v2025
    %2095 = vmatprep.subr.mxu0 %v2024
    %2096 = vmatpush2.msra.mxu0 %v2023
    %2097 = vmatprep.subr.mxu0 %v2022
    %2098 = vmatpush2.msra.mxu0 %v2021
    %2099 = vmatprep.subr.mxu0 %v2020
    %2100 = vmatpush2.msra.mxu0 %v2019
    %2101 = vmatprep.subr.mxu0 %v2018
    %2102 = vmatpush2.msra.mxu0 %v2017
    %2103 = vmatprep.subr.mxu0 %v2016
    %2104 = vmatpush2.msra.mxu0 %v2015
    %2105 = vmatprep.subr.mxu0 %v2014
    %2106 = vmatpush2.msra.mxu0 %v2013
    %2107 = vmatprep.subr.mxu0 %v2012
    %2108 = vmatpush2.msra.mxu0 %v2011
    %2109 = vmatprep.subr.mxu0 %v2010
    %2110 = vmatpush2.msra.mxu0 %v2009
    %2111 = vmatprep.subr.mxu0 %v2008
    %2112 = vmatpush2.msra.mxu0 %v2007
    %2113 = vmatprep.subr.mxu0 %v2006
    %2114 = vmatpush2.msra.mxu0 %v2005
    %2115 = vmatprep.mubr.f32.mxu0 %v2031
    %2116 = vmatmul.mubr.f32.gmra.mxu0 %v1933
    %v2117 = vpop.f32.mrf.mxu0
    %v2118 = vadd.f32 0.0, %v2117
    %v2119 = vpop.f32.mrf.mxu0
    %v2120 = vadd.f32 0.0, %v2119
    %2121 = vmatprep.mubr.f32.mxu0 %v2034
    %2122 = vmatmul.mubr.f32.gmra.mxu0 %v1939
    %v2123 = vpop.f32.mrf.mxu0
    %v2124 = vadd.f32 0.0, %v2123
    %v2125 = vpop.f32.mrf.mxu0
    %v2126 = vadd.f32 0.0, %v2125
    %2127 = vmatprep.mubr.f32.mxu0 %v2037
    %2128 = vmatmul.mubr.f32.gmra.mxu0 %v1945
    %v2129 = vpop.f32.mrf.mxu0
    %v2130 = vadd.f32 0.0, %v2129
    %v2131 = vpop.f32.mrf.mxu0
    %v2132 = vadd.f32 0.0, %v2131
    %2133 = vmatprep.mubr.f32.mxu0 %v2040
    %2134 = vmatmul.mubr.f32.gmra.mxu0 %v1951
    %v2135 = vpop.f32.mrf.mxu0
    %v2136 = vadd.f32 0.0, %v2135
    %v2137 = vpop.f32.mrf.mxu0
    %v2138 = vadd.f32 0.0, %v2137
    %2139 = vmatprep.mubr.f32.mxu0 %v2043
    %2140 = vmatmul.mubr.f32.gmra.mxu0 %v1957
    %v2141 = vpop.f32.mrf.mxu0
    %v2142 = vadd.f32 0.0, %v2141
    %v2143 = vpop.f32.mrf.mxu0
    %v2144 = vadd.f32 0.0, %v2143
    %2145 = vmatprep.mubr.f32.mxu0 %v2046
    %2146 = vmatmul.mubr.f32.gmra.mxu0 %v1963
    %v2147 = vpop.f32.mrf.mxu0
    %v2148 = vadd.f32 0.0, %v2147
    %v2149 = vpop.f32.mrf.mxu0
    %v2150 = vadd.f32 0.0, %v2149
    %2151 = vmatprep.mubr.f32.mxu0 %v2049
    %2152 = vmatmul.mubr.f32.gmra.mxu0 %v1969
    %v2153 = vpop.f32.mrf.mxu0
    %v2154 = vadd.f32 0.0, %v2153
    %v2155 = vpop.f32.mrf.mxu0
    %v2156 = vadd.f32 0.0, %v2155
    %2157 = vdwg.mxu0
    %v2158 = vmul.f32 %v1849, %v1849
    %v2159 = vmul.f32 %v1850, %v1850
    %v2160 = vmul.f32 %v1851, %v1851
    %v2161 = vmul.f32 %v1852, %v1852
    %v2162 = vmul.f32 %v1853, %v1853
    %v2163 = vmul.f32 %v1854, %v1854
    %v2164 = vmul.f32 %v1855, %v1855
    %v2165 = vmul.f32 %v1856, %v1856
    %v2166 = vmul.f32 %v1857, %v1857
    %v2167 = vmul.f32 %v1858, %v1858
    %v2168 = vmul.f32 %v1859, %v1859
    %v2169 = vmul.f32 %v1860, %v1860
    %v2170 = vmul.f32 %v1861, %v1861
    %v2171 = vmul.f32 %v1862, %v1862
    %2172 = vmatprep.subr.mxu0 0.0
    %2173 = vmatpush1.msra.mxu0 0.0
    %2174 = vmatprep.subr.mxu0 0.0
    %2175 = vmatpush1.msra.mxu0 0.0
    %2176 = vmatprep.subr.mxu0 0.0
    %2177 = vmatpush1.msra.mxu0 0.0
    %2178 = vmatprep.subr.mxu0 0.0
    %2179 = vmatpush1.msra.mxu0 0.0
    %2180 = vmatprep.subr.mxu0 0.0
    %2181 = vmatpush1.msra.mxu0 0.0
    %2182 = vmatprep.subr.mxu0 0.0
    %2183 = vmatpush1.msra.mxu0 0.0
    %2184 = vmatprep.subr.mxu0 0.0
    %2185 = vmatpush1.msra.mxu0 0.0
    %2186 = vmatprep.subr.mxu0 0.0
    %2187 = vmatpush1.msra.mxu0 0.0
    %2188 = vmatprep.subr.mxu0 0.0
    %2189 = vmatpush1.msra.mxu0 0.0
    %2190 = vmatprep.subr.mxu0 %v2171
    %2191 = vmatpush1.msra.mxu0 %v2170
    %2192 = vmatprep.subr.mxu0 %v2169
    %2193 = vmatpush1.msra.mxu0 %v2168
    %2194 = vmatprep.subr.mxu0 %v2167
    %2195 = vmatpush1.msra.mxu0 %v2166
    %2196 = vmatprep.subr.mxu0 %v2165
    %2197 = vmatpush1.msra.mxu0 %v2164
    %2198 = vmatprep.subr.mxu0 %v2163
    %2199 = vmatpush1.msra.mxu0 %v2162
    %2200 = vmatprep.subr.mxu0 %v2161
    %2201 = vmatpush1.msra.mxu0 %v2160
    %2202 = vmatprep.subr.mxu0 %v2159
    %2203 = vmatpush1.msra.mxu0 %v2158
    %2204 = vmatprep.subr.mxu0 0.0
    %2205 = vmatpush2.msra.mxu0 0.0
    %2206 = vmatprep.subr.mxu0 0.0
    %2207 = vmatpush2.msra.mxu0 0.0
    %2208 = vmatprep.subr.mxu0 0.0
    %2209 = vmatpush2.msra.mxu0 0.0
    %2210 = vmatprep.subr.mxu0 0.0
    %2211 = vmatpush2.msra.mxu0 0.0
    %2212 = vmatprep.subr.mxu0 0.0
    %2213 = vmatpush2.msra.mxu0 0.0
    %2214 = vmatprep.subr.mxu0 0.0
    %2215 = vmatpush2.msra.mxu0 0.0
    %2216 = vmatprep.subr.mxu0 0.0
    %2217 = vmatpush2.msra.mxu0 0.0
    %2218 = vmatprep.subr.mxu0 0.0
    %2219 = vmatpush2.msra.mxu0 0.0
    %2220 = vmatprep.subr.mxu0 0.0
    %2221 = vmatpush2.msra.mxu0 0.0
    %2222 = vmatprep.subr.mxu0 0.0
    %2223 = vmatpush2.msra.mxu0 0.0
    %2224 = vmatprep.subr.mxu0 0.0
    %2225 = vmatpush2.msra.mxu0 0.0
    %2226 = vmatprep.subr.mxu0 0.0
    %2227 = vmatpush2.msra.mxu0 0.0
    %2228 = vmatprep.subr.mxu0 0.0
    %2229 = vmatpush2.msra.mxu0 0.0
    %2230 = vmatprep.subr.mxu0 0.0
    %2231 = vmatpush2.msra.mxu0 0.0
    %2232 = vmatprep.subr.mxu0 0.0
    %2233 = vmatpush2.msra.mxu0 0.0
    %2234 = vmatprep.subr.mxu0 0.0
    %2235 = vmatpush2.msra.mxu0 0.0
    %2236 = vmatprep.mubr.f32.mxu0 0.0
    %2237 = vmatmul.mubr.f32.gmra.mxu0 %v1864
    %v2238 = vpop.f32.mrf.mxu0
    %v2239 = vadd.f32 0.0, %v2238
    %v2240 = vpop.f32.mrf.mxu0
    %v2241 = vadd.f32 0.0, %v2240
    %2242 = vmatprep.mubr.f32.mxu0 0.0
    %2243 = vmatmul.mubr.f32.gmra.mxu0 %v1864
    %v2244 = vpop.f32.mrf.mxu0
    %v2245 = vadd.f32 0.0, %v2244
    %v2246 = vpop.f32.mrf.mxu0
    %v2247 = vadd.f32 0.0, %v2246
    %2248 = vmatprep.mubr.f32.mxu0 0.0
    %2249 = vmatmul.mubr.f32.gmra.mxu0 %v1864
    %v2250 = vpop.f32.mrf.mxu0
    %v2251 = vadd.f32 0.0, %v2250
    %v2252 = vpop.f32.mrf.mxu0
    %v2253 = vadd.f32 0.0, %v2252
    %2254 = vmatprep.mubr.f32.mxu0 0.0
    %2255 = vmatmul.mubr.f32.gmra.mxu0 %v1864
    %v2256 = vpop.f32.mrf.mxu0
    %v2257 = vadd.f32 0.0, %v2256
    %v2258 = vpop.f32.mrf.mxu0
    %v2259 = vadd.f32 0.0, %v2258
    %2260 = vmatprep.mubr.f32.mxu0 0.0
    %2261 = vmatmul.mubr.f32.gmra.mxu0 %v1864
    %v2262 = vpop.f32.mrf.mxu0
    %v2263 = vadd.f32 0.0, %v2262
    %v2264 = vpop.f32.mrf.mxu0
    %v2265 = vadd.f32 0.0, %v2264
    %2266 = vmatprep.mubr.f32.mxu0 0.0
    %2267 = vmatmul.mubr.f32.gmra.mxu0 %v1864
    %v2268 = vpop.f32.mrf.mxu0
    %v2269 = vadd.f32 0.0, %v2268
    %v2270 = vpop.f32.mrf.mxu0
    %v2271 = vadd.f32 0.0, %v2270
    %2272 = vmatprep.mubr.f32.mxu0 0.0
    %2273 = vmatmul.mubr.f32.gmra.mxu0 %v1864
    %v2274 = vpop.f32.mrf.mxu0
    %v2275 = vadd.f32 0.0, %v2274
    %v2276 = vpop.f32.mrf.mxu0
    %v2277 = vadd.f32 0.0, %v2276
    %2278 = vdwg.mxu0
    %v2280 = vsel %vm2029, %v2241, 0
    %v2283 = vsel %vm2029, %v2247, 0
    %v2286 = vsel %vm2029, %v2253, 0
    %v2289 = vsel %vm2029, %v2259, 0
    %v2292 = vsel %vm2029, %v2265, 0
    %v2295 = vsel %vm2029, %v2271, 0
    %v2298 = vsel %vm2029, %v2277, 0
    %2300 = vmatprep.subr.mxu0 %v2004
    %2301 = vmatpush1.msra.mxu0 %v2003
    %2302 = vmatprep.subr.mxu0 %v2002
    %2303 = vmatpush1.msra.mxu0 %v2001
    %2304 = vmatprep.subr.mxu0 %v2000
    %2305 = vmatpush1.msra.mxu0 %v1999
    %2306 = vmatprep.subr.mxu0 %v1998
    %2307 = vmatpush1.msra.mxu0 %v1997
    %2308 = vmatprep.subr.mxu0 %v1996
    %2309 = vmatpush1.msra.mxu0 %v1995
    %2310 = vmatprep.subr.mxu0 %v1994
    %2311 = vmatpush1.msra.mxu0 %v1993
    %2312 = vmatprep.subr.mxu0 %v1992
    %2313 = vmatpush1.msra.mxu0 %v1991
    %2314 = vmatprep.subr.mxu0 %v1990
    %2315 = vmatpush1.msra.mxu0 %v1989
    %2316 = vmatprep.subr.mxu0 %v1988
    %2317 = vmatpush1.msra.mxu0 %v1987
    %2318 = vmatprep.subr.mxu0 %v1986
    %2319 = vmatpush1.msra.mxu0 %v1985
    %2320 = vmatprep.subr.mxu0 %v1984
    %2321 = vmatpush1.msra.mxu0 %v1983
    %2322 = vmatprep.subr.mxu0 %v1982
    %2323 = vmatpush1.msra.mxu0 %v1981
    %2324 = vmatprep.subr.mxu0 %v1980
    %2325 = vmatpush1.msra.mxu0 %v1979
    %2326 = vmatprep.subr.mxu0 %v1978
    %2327 = vmatpush1.msra.mxu0 %v1977
    %2328 = vmatprep.subr.mxu0 %v1976
    %2329 = vmatpush1.msra.mxu0 %v1975
    %2330 = vmatprep.subr.mxu0 %v1974
    %2331 = vmatpush1.msra.mxu0 %v1973
    %2332 = vmatprep.subr.mxu0 0.0
    %2333 = vmatpush2.msra.mxu0 0.0
    %2334 = vmatprep.subr.mxu0 0.0
    %2335 = vmatpush2.msra.mxu0 0.0
    %2336 = vmatprep.subr.mxu0 0.0
    %2337 = vmatpush2.msra.mxu0 0.0
    %2338 = vmatprep.subr.mxu0 0.0
    %2339 = vmatpush2.msra.mxu0 0.0
    %2340 = vmatprep.subr.mxu0 %v2028
    %2341 = vmatpush2.msra.mxu0 %v2027
    %2342 = vmatprep.subr.mxu0 %v2026
    %2343 = vmatpush2.msra.mxu0 %v2025
    %2344 = vmatprep.subr.mxu0 %v2024
    %2345 = vmatpush2.msra.mxu0 %v2023
    %2346 = vmatprep.subr.mxu0 %v2022
    %2347 = vmatpush2.msra.mxu0 %v2021
    %2348 = vmatprep.subr.mxu0 %v2020
    %2349 = vmatpush2.msra.mxu0 %v2019
    %2350 = vmatprep.subr.mxu0 %v2018
    %2351 = vmatpush2.msra.mxu0 %v2017
    %2352 = vmatprep.subr.mxu0 %v2016
    %2353 = vmatpush2.msra.mxu0 %v2015
    %2354 = vmatprep.subr.mxu0 %v2014
    %2355 = vmatpush2.msra.mxu0 %v2013
    %2356 = vmatprep.subr.mxu0 %v2012
    %2357 = vmatpush2.msra.mxu0 %v2011
    %2358 = vmatprep.subr.mxu0 %v2010
    %2359 = vmatpush2.msra.mxu0 %v2009
    %2360 = vmatprep.subr.mxu0 %v2008
    %2361 = vmatpush2.msra.mxu0 %v2007
    %2362 = vmatprep.subr.mxu0 %v2006
    %2363 = vmatpush2.msra.mxu0 %v2005
    %2364 = vmatprep.mubr.f32.mxu0 %v2280
    %2365 = vmatmul.mubr.f32.gmra.mxu0 %v2239
    %v2366 = vpop.f32.mrf.mxu0
    %v2367 = vadd.f32 0.0, %v2366
    %v2368 = vpop.f32.mrf.mxu0
    %v2369 = vadd.f32 0.0, %v2368
    %2370 = vmatprep.mubr.f32.mxu0 %v2283
    %2371 = vmatmul.mubr.f32.gmra.mxu0 %v2245
    %v2372 = vpop.f32.mrf.mxu0
    %v2373 = vadd.f32 0.0, %v2372
    %v2374 = vpop.f32.mrf.mxu0
    %v2375 = vadd.f32 0.0, %v2374
    %2376 = vmatprep.mubr.f32.mxu0 %v2286
    %2377 = vmatmul.mubr.f32.gmra.mxu0 %v2251
    %v2378 = vpop.f32.mrf.mxu0
    %v2379 = vadd.f32 0.0, %v2378
    %v2380 = vpop.f32.mrf.mxu0
    %v2381 = vadd.f32 0.0, %v2380
    %2382 = vmatprep.mubr.f32.mxu0 %v2289
    %2383 = vmatmul.mubr.f32.gmra.mxu0 %v2257
    %v2384 = vpop.f32.mrf.mxu0
    %v2385 = vadd.f32 0.0, %v2384
    %v2386 = vpop.f32.mrf.mxu0
    %v2387 = vadd.f32 0.0, %v2386
    %2388 = vmatprep.mubr.f32.mxu0 %v2292
    %2389 = vmatmul.mubr.f32.gmra.mxu0 %v2263
    %v2390 = vpop.f32.mrf.mxu0
    %v2391 = vadd.f32 0.0, %v2390
    %v2392 = vpop.f32.mrf.mxu0
    %v2393 = vadd.f32 0.0, %v2392
    %2394 = vmatprep.mubr.f32.mxu0 %v2295
    %2395 = vmatmul.mubr.f32.gmra.mxu0 %v2269
    %v2396 = vpop.f32.mrf.mxu0
    %v2397 = vadd.f32 0.0, %v2396
    %v2398 = vpop.f32.mrf.mxu0
    %v2399 = vadd.f32 0.0, %v2398
    %2400 = vmatprep.mubr.f32.mxu0 %v2298
    %2401 = vmatmul.mubr.f32.gmra.mxu0 %v2275
    %v2402 = vpop.f32.mrf.mxu0
    %v2403 = vadd.f32 0.0, %v2402
    %v2404 = vpop.f32.mrf.mxu0
    %v2405 = vadd.f32 0.0, %v2404
    %2406 = vdwg.mxu0
    %v2407 = vmul.f32 %v2118, %v2118
    %v2408 = vmul.f32 %v2120, %v2120
    %v2409 = vmul.f32 %v2124, %v2124
    %v2410 = vmul.f32 %v2126, %v2126
    %v2411 = vmul.f32 %v2130, %v2130
    %v2412 = vmul.f32 %v2132, %v2132
    %v2413 = vmul.f32 %v2136, %v2136
    %v2414 = vmul.f32 %v2138, %v2138
    %v2415 = vmul.f32 %v2142, %v2142
    %v2416 = vmul.f32 %v2144, %v2144
    %v2417 = vmul.f32 %v2148, %v2148
    %v2418 = vmul.f32 %v2150, %v2150
    %v2419 = vmul.f32 %v2154, %v2154
    %v2420 = vmul.f32 %v2156, %v2156
    %v2421 = vsub.f32 %v2367, %v2407
    %v2422 = vsub.f32 %v2369, %v2408
    %v2423 = vsub.f32 %v2373, %v2409
    %v2424 = vsub.f32 %v2375, %v2410
    %v2425 = vsub.f32 %v2379, %v2411
    %v2426 = vsub.f32 %v2381, %v2412
    %v2427 = vsub.f32 %v2385, %v2413
    %v2428 = vsub.f32 %v2387, %v2414
    %v2429 = vsub.f32 %v2391, %v2415
    %v2430 = vsub.f32 %v2393, %v2416
    %v2431 = vsub.f32 %v2397, %v2417
    %v2432 = vsub.f32 %v2399, %v2418
    %v2433 = vsub.f32 %v2403, %v2419
    %v2434 = vsub.f32 %v2405, %v2420
    %v2435 = vsub.f32 %v1849, %v2118
    %v2436 = vsub.f32 %v1850, %v2120
    %v2437 = vsub.f32 %v1851, %v2124
    %v2438 = vsub.f32 %v1852, %v2126
    %v2439 = vsub.f32 %v1853, %v2130
    %v2440 = vsub.f32 %v1854, %v2132
    %v2441 = vsub.f32 %v1855, %v2136
    %v2442 = vsub.f32 %v1856, %v2138
    %v2443 = vsub.f32 %v1857, %v2142
    %v2444 = vsub.f32 %v1858, %v2144
    %v2445 = vsub.f32 %v1859, %v2148
    %v2446 = vsub.f32 %v1860, %v2150
    %v2447 = vsub.f32 %v1861, %v2154
    %v2448 = vsub.f32 %v1862, %v2156
    %v2449 = vadd.f32 %v2421, 1e-05
    %v2450 = vadd.f32 %v2422, 1e-05
    %v2451 = vadd.f32 %v2423, 1e-05
    %v2452 = vadd.f32 %v2424, 1e-05
    %v2453 = vadd.f32 %v2425, 1e-05
    %v2454 = vadd.f32 %v2426, 1e-05
    %v2455 = vadd.f32 %v2427, 1e-05
    %v2456 = vadd.f32 %v2428, 1e-05
    %v2457 = vadd.f32 %v2429, 1e-05
    %v2458 = vadd.f32 %v2430, 1e-05
    %v2459 = vadd.f32 %v2431, 1e-05
    %v2460 = vadd.f32 %v2432, 1e-05
    %v2461 = vadd.f32 %v2433, 1e-05
    %v2462 = vadd.f32 %v2434, 1e-05
    %v2463 = vrsqrt.pop %v2449
    %v2464 = vrsqrt.pop %v2450
    %v2465 = vrsqrt.pop %v2451
    %v2466 = vrsqrt.pop %v2452
    %v2467 = vrsqrt.pop %v2453
    %v2468 = vrsqrt.pop %v2454
    %v2469 = vrsqrt.pop %v2455
    %v2470 = vrsqrt.pop %v2456
    %v2471 = vrsqrt.pop %v2457
    %v2472 = vrsqrt.pop %v2458
    %v2473 = vrsqrt.pop %v2459
    %v2474 = vrsqrt.pop %v2460
    %v2475 = vrsqrt.pop %v2461
    %v2476 = vrsqrt.pop %v2462
    %v2477 = vmul.f32 %v2435, %v2463
    %v2478 = vmul.f32 %v2436, %v2464
    %v2479 = vmul.f32 %v2437, %v2465
    %v2480 = vmul.f32 %v2438, %v2466
    %v2481 = vmul.f32 %v2439, %v2467
    %v2482 = vmul.f32 %v2440, %v2468
    %v2483 = vmul.f32 %v2441, %v2469
    %v2484 = vmul.f32 %v2442, %v2470
    %v2485 = vmul.f32 %v2443, %v2471
    %v2486 = vmul.f32 %v2444, %v2472
    %v2487 = vmul.f32 %v2445, %v2473
    %v2488 = vmul.f32 %v2446, %v2474
    %v2489 = vmul.f32 %v2447, %v2475
    %v2490 = vmul.f32 %v2448, %v2476
    %v2491 = vld [vmem:[%s4] sm:$0x3]
    %v2493 = vlaneseq
    %v2494 = vshrl.u32 %v2493, 7
    %v2495 = vsub.s32 0, %v2494
    %v2496 = vrot.slane %v2491, %v2495
    %v2497 = vlaneseq
    %v2498 = vshrl.u32 %v2497, 7
    %v2499 = vsub.s32 1, %v2498
    %v2500 = vrot.slane %v2491, %v2499
    %v2503 = vmul.f32 %v2477, %v2496
    %v2504 = vmul.f32 %v2478, %v2500
    %v2505 = vmul.f32 %v2479, %v2496
    %v2506 = vmul.f32 %v2480, %v2500
    %v2507 = vmul.f32 %v2481, %v2496
    %v2508 = vmul.f32 %v2482, %v2500
    %v2509 = vmul.f32 %v2483, %v2496
    %v2510 = vmul.f32 %v2484, %v2500
    %v2511 = vmul.f32 %v2485, %v2496
    %v2512 = vmul.f32 %v2486, %v2500
    %v2513 = vmul.f32 %v2487, %v2496
    %v2514 = vmul.f32 %v2488, %v2500
    %v2515 = vmul.f32 %v2489, %v2496
    %v2516 = vmul.f32 %v2490, %v2500
    %v2517 = vld [vmem:[%s5] sm:$0x3]
    %v2519 = vlaneseq
    %v2520 = vshrl.u32 %v2519, 7
    %v2521 = vsub.s32 0, %v2520
    %v2522 = vrot.slane %v2517, %v2521
    %v2523 = vlaneseq
    %v2524 = vshrl.u32 %v2523, 7
    %v2525 = vsub.s32 1, %v2524
    %v2526 = vrot.slane %v2517, %v2525
    %v2529 = vadd.f32 %v2503, %v2522
    %v2530 = vadd.f32 %v2504, %v2526
    %v2531 = vadd.f32 %v2505, %v2522
    %v2532 = vadd.f32 %v2506, %v2526
    %v2533 = vadd.f32 %v2507, %v2522
    %v2534 = vadd.f32 %v2508, %v2526
    %v2535 = vadd.f32 %v2509, %v2522
    %v2536 = vadd.f32 %v2510, %v2526
    %v2537 = vadd.f32 %v2511, %v2522
    %v2538 = vadd.f32 %v2512, %v2526
    %v2539 = vadd.f32 %v2513, %v2522
    %v2540 = vadd.f32 %v2514, %v2526
    %v2541 = vadd.f32 %v2515, %v2522
    %v2542 = vadd.f32 %v2516, %v2526
    %vm2543 = vcmp.gt.f32.partialorder %v2529, 0.0
    %vm2544 = vcmp.gt.f32.partialorder %v2530, 0.0
    %vm2545 = vcmp.gt.f32.partialorder %v2531, 0.0
    %vm2546 = vcmp.gt.f32.partialorder %v2532, 0.0
    %vm2547 = vcmp.gt.f32.partialorder %v2533, 0.0
    %vm2548 = vcmp.gt.f32.partialorder %v2534, 0.0
    %vm2549 = vcmp.gt.f32.partialorder %v2535, 0.0
    %vm2550 = vcmp.gt.f32.partialorder %v2536, 0.0
    %vm2551 = vcmp.gt.f32.partialorder %v2537, 0.0
    %vm2552 = vcmp.gt.f32.partialorder %v2538, 0.0
    %vm2553 = vcmp.gt.f32.partialorder %v2539, 0.0
    %vm2554 = vcmp.gt.f32.partialorder %v2540, 0.0
    %vm2555 = vcmp.gt.f32.partialorder %v2541, 0.0
    %vm2556 = vcmp.gt.f32.partialorder %v2542, 0.0
    %v2557 = vmul.f32 %v2529, 0.2
    %v2558 = vmul.f32 %v2530, 0.2
    %v2559 = vmul.f32 %v2531, 0.2
    %v2560 = vmul.f32 %v2532, 0.2
    %v2561 = vmul.f32 %v2533, 0.2
    %v2562 = vmul.f32 %v2534, 0.2
    %v2563 = vmul.f32 %v2535, 0.2
    %v2564 = vmul.f32 %v2536, 0.2
    %v2565 = vmul.f32 %v2537, 0.2
    %v2566 = vmul.f32 %v2538, 0.2
    %v2567 = vmul.f32 %v2539, 0.2
    %v2568 = vmul.f32 %v2540, 0.2
    %v2569 = vmul.f32 %v2541, 0.2
    %v2570 = vmul.f32 %v2542, 0.2
    %v2571 = vsel %vm2543, %v2529, %v2557
    %v2572 = vsel %vm2544, %v2530, %v2558
    %v2573 = vsel %vm2545, %v2531, %v2559
    %v2574 = vsel %vm2546, %v2532, %v2560
    %v2575 = vsel %vm2547, %v2533, %v2561
    %v2576 = vsel %vm2548, %v2534, %v2562
    %v2577 = vsel %vm2549, %v2535, %v2563
    %v2578 = vsel %vm2550, %v2536, %v2564
    %v2579 = vsel %vm2551, %v2537, %v2565
    %v2580 = vsel %vm2552, %v2538, %v2566
    %v2581 = vsel %vm2553, %v2539, %v2567
    %v2582 = vsel %vm2554, %v2540, %v2568
    %v2583 = vsel %vm2555, %v2541, %v2569
    %v2584 = vsel %vm2556, %v2542, %v2570
    %v2585 = vld [vmem:[%s6] sm:$0xff]
    %v2586 = vld [vmem:[%s6 + $0x8] sm:$0xff]
    %v2587 = vld [vmem:[%s6 + $0x10] sm:$0xff]
    %v2588 = vld [vmem:[%s6 + $0x18] sm:$0xff]
    %v2589 = vld [vmem:[%s6 + $0x20] sm:$0xff]
    %v2590 = vld [vmem:[%s6 + $0x28] sm:$0xff]
    %v2591 = vld [vmem:[%s6 + $0x30] sm:$0xff]
    %v2592 = vld [vmem:[%s6 + $0x38] sm:$0xff]
    %v2593 = vld [vmem:[%s6 + $0x40] sm:$0xff]
    %v2594 = vld [vmem:[%s6 + $0x48] sm:$0xff]
    %v2595 = vld [vmem:[%s6 + $0x50] sm:$0xff]
    %v2596 = vld [vmem:[%s6 + $0x58] sm:$0xff]
    %v2597 = vld [vmem:[%s6 + $0x60] sm:$0xff]
    %v2598 = vld [vmem:[%s6 + $0x68] sm:$0xff]
    %v2599 = vld [vmem:[%s6 + $0x70] sm:$0xff]
    %v2600 = vld [vmem:[%s6 + $0x78] sm:$0xff]
    %v2601 = vld [vmem:[%s6 + $0x80] sm:$0xff]
    %v2602 = vld [vmem:[%s6 + $0x88] sm:$0xff]
    %v2603 = vld [vmem:[%s6 + $0x90] sm:$0xff]
    %v2604 = vld [vmem:[%s6 + $0x98] sm:$0xff]
    %v2605 = vld [vmem:[%s6 + $0xa0] sm:$0xff]
    %v2606 = vld [vmem:[%s6 + $0xa8] sm:$0xff]
    %v2607 = vld [vmem:[%s6 + $0xb0] sm:$0xff]
    %v2608 = vld [vmem:[%s6 + $0xb8] sm:$0xff]
    %v2609 = vld [vmem:[%s6 + $0xc0] sm:$0xff]
    %v2610 = vld [vmem:[%s6 + $0xc8] sm:$0xff]
    %v2611 = vld [vmem:[%s6 + $0xd0] sm:$0xff]
    %v2612 = vld [vmem:[%s6 + $0xd8] sm:$0xff]
    %v2613 = vld [vmem:[%s6 + $0xe0] sm:$0xff]
    %v2614 = vld [vmem:[%s6 + $0xe8] sm:$0xff]
    %v2615 = vld [vmem:[%s6 + $0xf0] sm:$0xff]
    %v2616 = vld [vmem:[%s6 + $0xf8] sm:$0xff]
    %v2617 = vld [vmem:[%s6 + $0x100] sm:$0xff]
    %v2618 = vld [vmem:[%s6 + $0x108] sm:$0xff]
    %v2619 = vld [vmem:[%s6 + $0x110] sm:$0xff]
    %v2620 = vld [vmem:[%s6 + $0x118] sm:$0xff]
    %v2621 = vld [vmem:[%s6 + $0x120] sm:$0xff]
    %v2622 = vld [vmem:[%s6 + $0x128] sm:$0xff]
    %v2623 = vld [vmem:[%s6 + $0x130] sm:$0xff]
    %v2624 = vld [vmem:[%s6 + $0x138] sm:$0xff]
    %v2625 = vld [vmem:[%s6 + $0x140] sm:$0xff]
    %v2626 = vld [vmem:[%s6 + $0x148] sm:$0xff]
    %v2627 = vld [vmem:[%s6 + $0x150] sm:$0xff]
    %v2628 = vld [vmem:[%s6 + $0x158] sm:$0xff]
    %v2629 = vld [vmem:[%s6 + $0x160] sm:$0xff]
    %v2630 = vld [vmem:[%s6 + $0x168] sm:$0xff]
    %v2631 = vld [vmem:[%s6 + $0x170] sm:$0xff]
    %v2632 = vld [vmem:[%s6 + $0x178] sm:$0xff]
    %v2633 = vld [vmem:[%s6 + $0x180] sm:$0xff]
    %v2634 = vld [vmem:[%s6 + $0x188] sm:$0xff]
    %v2635 = vld [vmem:[%s6 + $0x190] sm:$0xff]
    %v2636 = vld [vmem:[%s6 + $0x198] sm:$0xff]
    %v2637 = vld [vmem:[%s6 + $0x1a0] sm:$0xff]
    %v2638 = vld [vmem:[%s6 + $0x1a8] sm:$0xff]
    %v2639 = vld [vmem:[%s6 + $0x1b0] sm:$0xff]
    %v2640 = vld [vmem:[%s6 + $0x1b8] sm:$0xff]
    %v2641 = vld [vmem:[%s6 + $0x1c0] sm:$0xff]
    %v2642 = vld [vmem:[%s6 + $0x1c8] sm:$0xff]
    %v2643 = vld [vmem:[%s6 + $0x1d0] sm:$0xff]
    %v2644 = vld [vmem:[%s6 + $0x1d8] sm:$0xff]
    %v2645 = vld [vmem:[%s6 + $0x1e0] sm:$0xff]
    %v2646 = vld [vmem:[%s6 + $0x1e8] sm:$0xff]
    %v2647 = vld [vmem:[%s6 + $0x1f0] sm:$0xff]
    %v2648 = vld [vmem:[%s6 + $0x1f8] sm:$0xff]
    %v2649 = vld [vmem:[%s6 + $0x200] sm:$0xff]
    %v2650 = vld [vmem:[%s6 + $0x208] sm:$0xff]
    %v2651 = vld [vmem:[%s6 + $0x210] sm:$0xff]
    %v2652 = vld [vmem:[%s6 + $0x218] sm:$0xff]
    %v2653 = vld [vmem:[%s6 + $0x220] sm:$0xff]
    %v2654 = vld [vmem:[%s6 + $0x228] sm:$0xff]
    %v2655 = vld [vmem:[%s6 + $0x230] sm:$0xff]
    %v2656 = vld [vmem:[%s6 + $0x238] sm:$0xff]
    %v2657 = vld [vmem:[%s6 + $0x240] sm:$0xff]
    %v2658 = vld [vmem:[%s6 + $0x248] sm:$0xff]
    %v2659 = vld [vmem:[%s6 + $0x250] sm:$0xff]
    %v2660 = vld [vmem:[%s6 + $0x258] sm:$0xff]
    %v2661 = vld [vmem:[%s6 + $0x260] sm:$0xff]
    %v2662 = vld [vmem:[%s6 + $0x268] sm:$0xff]
    %v2663 = vld [vmem:[%s6 + $0x270] sm:$0xff]
    %v2664 = vld [vmem:[%s6 + $0x278] sm:$0xff]
    %v2665 = vld [vmem:[%s6 + $0x280] sm:$0xff]
    %v2666 = vld [vmem:[%s6 + $0x288] sm:$0xff]
    %v2667 = vld [vmem:[%s6 + $0x290] sm:$0xff]
    %v2668 = vld [vmem:[%s6 + $0x298] sm:$0xff]
    %v2669 = vld [vmem:[%s6 + $0x2a0] sm:$0xff]
    %v2670 = vld [vmem:[%s6 + $0x2a8] sm:$0xff]
    %v2671 = vld [vmem:[%s6 + $0x2b0] sm:$0xff]
    %v2672 = vld [vmem:[%s6 + $0x2b8] sm:$0xff]
    %v2673 = vld [vmem:[%s6 + $0x2c0] sm:$0xff]
    %v2674 = vld [vmem:[%s6 + $0x2c8] sm:$0xff]
    %v2675 = vld [vmem:[%s6 + $0x2d0] sm:$0xff]
    %v2676 = vld [vmem:[%s6 + $0x2d8] sm:$0xff]
    %v2677 = vld [vmem:[%s6 + $0x2e0] sm:$0xff]
    %v2678 = vld [vmem:[%s6 + $0x2e8] sm:$0xff]
    %v2679 = vld [vmem:[%s6 + $0x2f0] sm:$0xff]
    %v2680 = vld [vmem:[%s6 + $0x2f8] sm:$0xff]
    %v2681 = vld [vmem:[%s6 + $0x300] sm:$0xff]
    %v2682 = vld [vmem:[%s6 + $0x308] sm:$0xff]
    %v2683 = vld [vmem:[%s6 + $0x310] sm:$0xff]
    %v2684 = vld [vmem:[%s6 + $0x318] sm:$0xff]
    %v2685 = vld [vmem:[%s6 + $0x320] sm:$0xff]
    %v2686 = vld [vmem:[%s6 + $0x328] sm:$0xff]
    %v2687 = vld [vmem:[%s6 + $0x330] sm:$0xff]
    %v2688 = vld [vmem:[%s6 + $0x338] sm:$0xff]
    %v2689 = vld [vmem:[%s6 + $0x340] sm:$0xff]
    %v2690 = vld [vmem:[%s6 + $0x348] sm:$0xff]
    %v2691 = vld [vmem:[%s6 + $0x350] sm:$0xff]
    %v2692 = vld [vmem:[%s6 + $0x358] sm:$0xff]
    %v2693 = vld [vmem:[%s6 + $0x360] sm:$0xff]
    %v2694 = vld [vmem:[%s6 + $0x368] sm:$0xff]
    %v2695 = vld [vmem:[%s6 + $0x370] sm:$0xff]
    %v2696 = vld [vmem:[%s6 + $0x378] sm:$0xff]
    %v2698 = vsel %vm2029, %v2572, 0
    %v2701 = vsel %vm2029, %v2574, 0
    %v2704 = vsel %vm2029, %v2576, 0
    %v2707 = vsel %vm2029, %v2578, 0
    %v2710 = vsel %vm2029, %v2580, 0
    %v2713 = vsel %vm2029, %v2582, 0
    %v2716 = vsel %vm2029, %v2584, 0
    %2718 = vmatprep.subr.mxu0 %v2646
    %2719 = vmatpush1.msra.mxu0 %v2645
    %2720 = vmatprep.subr.mxu0 %v2642
    %2721 = vmatpush1.msra.mxu0 %v2641
    %2722 = vmatprep.subr.mxu0 %v2638
    %2723 = vmatpush1.msra.mxu0 %v2637
    %2724 = vmatprep.subr.mxu0 %v2634
    %2725 = vmatpush1.msra.mxu0 %v2633
    %2726 = vmatprep.subr.mxu0 %v2630
    %2727 = vmatpush1.msra.mxu0 %v2629
    %2728 = vmatprep.subr.mxu0 %v2626
    %2729 = vmatpush1.msra.mxu0 %v2625
    %2730 = vmatprep.subr.mxu0 %v2622
    %2731 = vmatpush1.msra.mxu0 %v2621
    %2732 = vmatprep.subr.mxu0 %v2618
    %2733 = vmatpush1.msra.mxu0 %v2617
    %2734 = vmatprep.subr.mxu0 %v2614
    %2735 = vmatpush1.msra.mxu0 %v2613
    %2736 = vmatprep.subr.mxu0 %v2610
    %2737 = vmatpush1.msra.mxu0 %v2609
    %2738 = vmatprep.subr.mxu0 %v2606
    %2739 = vmatpush1.msra.mxu0 %v2605
    %2740 = vmatprep.subr.mxu0 %v2602
    %2741 = vmatpush1.msra.mxu0 %v2601
    %2742 = vmatprep.subr.mxu0 %v2598
    %2743 = vmatpush1.msra.mxu0 %v2597
    %2744 = vmatprep.subr.mxu0 %v2594
    %2745 = vmatpush1.msra.mxu0 %v2593
    %2746 = vmatprep.subr.mxu0 %v2590
    %2747 = vmatpush1.msra.mxu0 %v2589
    %2748 = vmatprep.subr.mxu0 %v2586
    %2749 = vmatpush1.msra.mxu0 %v2585
    %2750 = vmatprep.subr.mxu0 0.0
    %2751 = vmatpush2.msra.mxu0 0.0
    %2752 = vmatprep.subr.mxu0 0.0
    %2753 = vmatpush2.msra.mxu0 0.0
    %2754 = vmatprep.subr.mxu0 0.0
    %2755 = vmatpush2.msra.mxu0 0.0
    %2756 = vmatprep.subr.mxu0 0.0
    %2757 = vmatpush2.msra.mxu0 0.0
    %2758 = vmatprep.subr.mxu0 %v2694
    %2759 = vmatpush2.msra.mxu0 %v2693
    %2760 = vmatprep.subr.mxu0 %v2690
    %2761 = vmatpush2.msra.mxu0 %v2689
    %2762 = vmatprep.subr.mxu0 %v2686
    %2763 = vmatpush2.msra.mxu0 %v2685
    %2764 = vmatprep.subr.mxu0 %v2682
    %2765 = vmatpush2.msra.mxu0 %v2681
    %2766 = vmatprep.subr.mxu0 %v2678
    %2767 = vmatpush2.msra.mxu0 %v2677
    %2768 = vmatprep.subr.mxu0 %v2674
    %2769 = vmatpush2.msra.mxu0 %v2673
    %2770 = vmatprep.subr.mxu0 %v2670
    %2771 = vmatpush2.msra.mxu0 %v2669
    %2772 = vmatprep.subr.mxu0 %v2666
    %2773 = vmatpush2.msra.mxu0 %v2665
    %2774 = vmatprep.subr.mxu0 %v2662
    %2775 = vmatpush2.msra.mxu0 %v2661
    %2776 = vmatprep.subr.mxu0 %v2658
    %2777 = vmatpush2.msra.mxu0 %v2657
    %2778 = vmatprep.subr.mxu0 %v2654
    %2779 = vmatpush2.msra.mxu0 %v2653
    %2780 = vmatprep.subr.mxu0 %v2650
    %2781 = vmatpush2.msra.mxu0 %v2649
    %2782 = vmatprep.mubr.f32.mxu0 %v2698
    %2783 = vmatmul.mubr.f32.gmra.mxu0 %v2571
    %v2784 = vpop.f32.mrf.mxu0
    %v2785 = vadd.f32 0.0, %v2784
    %v2786 = vpop.f32.mrf.mxu0
    %v2787 = vadd.f32 0.0, %v2786
    %2788 = vmatprep.mubr.f32.mxu0 %v2701
    %2789 = vmatmul.mubr.f32.gmra.mxu0 %v2573
    %v2790 = vpop.f32.mrf.mxu0
    %v2791 = vadd.f32 0.0, %v2790
    %v2792 = vpop.f32.mrf.mxu0
    %v2793 = vadd.f32 0.0, %v2792
    %2794 = vmatprep.mubr.f32.mxu0 %v2704
    %2795 = vmatmul.mubr.f32.gmra.mxu0 %v2575
    %v2796 = vpop.f32.mrf.mxu0
    %v2797 = vadd.f32 0.0, %v2796
    %v2798 = vpop.f32.mrf.mxu0
    %v2799 = vadd.f32 0.0, %v2798
    %2800 = vmatprep.mubr.f32.mxu0 %v2707
    %2801 = vmatmul.mubr.f32.gmra.mxu0 %v2577
    %v2802 = vpop.f32.mrf.mxu0
    %v2803 = vadd.f32 0.0, %v2802
    %v2804 = vpop.f32.mrf.mxu0
    %v2805 = vadd.f32 0.0, %v2804
    %2806 = vmatprep.mubr.f32.mxu0 %v2710
    %2807 = vmatmul.mubr.f32.gmra.mxu0 %v2579
    %v2808 = vpop.f32.mrf.mxu0
    %v2809 = vadd.f32 0.0, %v2808
    %v2810 = vpop.f32.mrf.mxu0
    %v2811 = vadd.f32 0.0, %v2810
    %2812 = vmatprep.mubr.f32.mxu0 %v2713
    %2813 = vmatmul.mubr.f32.gmra.mxu0 %v2581
    %v2814 = vpop.f32.mrf.mxu0
    %v2815 = vadd.f32 0.0, %v2814
    %v2816 = vpop.f32.mrf.mxu0
    %v2817 = vadd.f32 0.0, %v2816
    %2818 = vmatprep.mubr.f32.mxu0 %v2716
    %2819 = vmatmul.mubr.f32.gmra.mxu0 %v2583
    %v2820 = vpop.f32.mrf.mxu0
    %v2821 = vadd.f32 0.0, %v2820
    %v2822 = vpop.f32.mrf.mxu0
    %v2823 = vadd.f32 0.0, %v2822
    %2824 = vdwg.mxu0
    %2825 = vmatprep.subr.mxu0 %v2648
    %2826 = vmatpush1.msra.mxu0 %v2647
    %2827 = vmatprep.subr.mxu0 %v2644
    %2828 = vmatpush1.msra.mxu0 %v2643
    %2829 = vmatprep.subr.mxu0 %v2640
    %2830 = vmatpush1.msra.mxu0 %v2639
    %2831 = vmatprep.subr.mxu0 %v2636
    %2832 = vmatpush1.msra.mxu0 %v2635
    %2833 = vmatprep.subr.mxu0 %v2632
    %2834 = vmatpush1.msra.mxu0 %v2631
    %2835 = vmatprep.subr.mxu0 %v2628
    %2836 = vmatpush1.msra.mxu0 %v2627
    %2837 = vmatprep.subr.mxu0 %v2624
    %2838 = vmatpush1.msra.mxu0 %v2623
    %2839 = vmatprep.subr.mxu0 %v2620
    %2840 = vmatpush1.msra.mxu0 %v2619
    %2841 = vmatprep.subr.mxu0 %v2616
    %2842 = vmatpush1.msra.mxu0 %v2615
    %2843 = vmatprep.subr.mxu0 %v2612
    %2844 = vmatpush1.msra.mxu0 %v2611
    %2845 = vmatprep.subr.mxu0 %v2608
    %2846 = vmatpush1.msra.mxu0 %v2607
    %2847 = vmatprep.subr.mxu0 %v2604
    %2848 = vmatpush1.msra.mxu0 %v2603
    %2849 = vmatprep.subr.mxu0 %v2600
    %2850 = vmatpush1.msra.mxu0 %v2599
    %2851 = vmatprep.subr.mxu0 %v2596
    %2852 = vmatpush1.msra.mxu0 %v2595
    %2853 = vmatprep.subr.mxu0 %v2592
    %2854 = vmatpush1.msra.mxu0 %v2591
    %2855 = vmatprep.subr.mxu0 %v2588
    %2856 = vmatpush1.msra.mxu0 %v2587
    %2857 = vmatprep.subr.mxu0 0.0
    %2858 = vmatpush2.msra.mxu0 0.0
    %2859 = vmatprep.subr.mxu0 0.0
    %2860 = vmatpush2.msra.mxu0 0.0
    %2861 = vmatprep.subr.mxu0 0.0
    %2862 = vmatpush2.msra.mxu0 0.0
    %2863 = vmatprep.subr.mxu0 0.0
    %2864 = vmatpush2.msra.mxu0 0.0
    %2865 = vmatprep.subr.mxu0 %v2696
    %2866 = vmatpush2.msra.mxu0 %v2695
    %2867 = vmatprep.subr.mxu0 %v2692
    %2868 = vmatpush2.msra.mxu0 %v2691
    %2869 = vmatprep.subr.mxu0 %v2688
    %2870 = vmatpush2.msra.mxu0 %v2687
    %2871 = vmatprep.subr.mxu0 %v2684
    %2872 = vmatpush2.msra.mxu0 %v2683
    %2873 = vmatprep.subr.mxu0 %v2680
    %2874 = vmatpush2.msra.mxu0 %v2679
    %2875 = vmatprep.subr.mxu0 %v2676
    %2876 = vmatpush2.msra.mxu0 %v2675
    %2877 = vmatprep.subr.mxu0 %v2672
    %2878 = vmatpush2.msra.mxu0 %v2671
    %2879 = vmatprep.subr.mxu0 %v2668
    %2880 = vmatpush2.msra.mxu0 %v2667
    %2881 = vmatprep.subr.mxu0 %v2664
    %2882 = vmatpush2.msra.mxu0 %v2663
    %2883 = vmatprep.subr.mxu0 %v2660
    %2884 = vmatpush2.msra.mxu0 %v2659
    %2885 = vmatprep.subr.mxu0 %v2656
    %2886 = vmatpush2.msra.mxu0 %v2655
    %2887 = vmatprep.subr.mxu0 %v2652
    %2888 = vmatpush2.msra.mxu0 %v2651
    %2889 = vmatprep.mubr.f32.mxu0 %v2698
    %2890 = vmatmul.mubr.f32.gmra.mxu0 %v2571
    %v2891 = vpop.f32.mrf.mxu0
    %v2892 = vadd.f32 0.0, %v2891
    %v2893 = vpop.f32.mrf.mxu0
    %v2894 = vadd.f32 0.0, %v2893
    %2895 = vmatprep.mubr.f32.mxu0 %v2701
    %2896 = vmatmul.mubr.f32.gmra.mxu0 %v2573
    %v2897 = vpop.f32.mrf.mxu0
    %v2898 = vadd.f32 0.0, %v2897
    %v2899 = vpop.f32.mrf.mxu0
    %v2900 = vadd.f32 0.0, %v2899
    %2901 = vmatprep.mubr.f32.mxu0 %v2704
    %2902 = vmatmul.mubr.f32.gmra.mxu0 %v2575
    %v2903 = vpop.f32.mrf.mxu0
    %v2904 = vadd.f32 0.0, %v2903
    %v2905 = vpop.f32.mrf.mxu0
    %v2906 = vadd.f32 0.0, %v2905
    %2907 = vmatprep.mubr.f32.mxu0 %v2707
    %2908 = vmatmul.mubr.f32.gmra.mxu0 %v2577
    %v2909 = vpop.f32.mrf.mxu0
    %v2910 = vadd.f32 0.0, %v2909
    %v2911 = vpop.f32.mrf.mxu0
    %v2912 = vadd.f32 0.0, %v2911
    %2913 = vmatprep.mubr.f32.mxu0 %v2710
    %2914 = vmatmul.mubr.f32.gmra.mxu0 %v2579
    %v2915 = vpop.f32.mrf.mxu0
    %v2916 = vadd.f32 0.0, %v2915
    %v2917 = vpop.f32.mrf.mxu0
    %v2918 = vadd.f32 0.0, %v2917
    %2919 = vmatprep.mubr.f32.mxu0 %v2713
    %2920 = vmatmul.mubr.f32.gmra.mxu0 %v2581
    %v2921 = vpop.f32.mrf.mxu0
    %v2922 = vadd.f32 0.0, %v2921
    %v2923 = vpop.f32.mrf.mxu0
    %v2924 = vadd.f32 0.0, %v2923
    %2925 = vmatprep.mubr.f32.mxu0 %v2716
    %2926 = vmatmul.mubr.f32.gmra.mxu0 %v2583
    %v2927 = vpop.f32.mrf.mxu0
    %v2928 = vadd.f32 0.0, %v2927
    %v2929 = vpop.f32.mrf.mxu0
    %v2930 = vadd.f32 0.0, %v2929
    %2931 = vdwg.mxu0
    %v2932 = vld [vmem:[%s7] sm:$0xff]
    %v2933 = vld [vmem:[%s7 + $0x8] sm:$0xff]
    %v2934 = vld [vmem:[%s7 + $0x10] sm:$0xff]
    %v2935 = vld [vmem:[%s7 + $0x18] sm:$0xff]
    %v2936 = vld [vmem:[%s7 + $0x20] sm:$0xff]
    %v2937 = vld [vmem:[%s7 + $0x28] sm:$0xff]
    %v2938 = vld [vmem:[%s7 + $0x30] sm:$0xff]
    %v2939 = vld [vmem:[%s7 + $0x38] sm:$0xff]
    %v2940 = vld [vmem:[%s7 + $0x40] sm:$0xff]
    %v2941 = vld [vmem:[%s7 + $0x48] sm:$0xff]
    %v2942 = vld [vmem:[%s7 + $0x50] sm:$0xff]
    %v2943 = vld [vmem:[%s7 + $0x58] sm:$0xff]
    %v2944 = vld [vmem:[%s7 + $0x60] sm:$0xff]
    %v2945 = vld [vmem:[%s7 + $0x68] sm:$0xff]
    %v2947 = vsel %vm83, %v2932, 0
    %v2950 = vsel %vm83, %v2933, 0
    %v2953 = vsel %vm83, %v2934, 0
    %v2956 = vsel %vm83, %v2935, 0
    %v2959 = vsel %vm83, %v2936, 0
    %v2962 = vsel %vm83, %v2937, 0
    %v2965 = vsel %vm83, %v2938, 0
    %v2968 = vsel %vm83, %v2939, 0
    %v2971 = vsel %vm83, %v2940, 0
    %v2974 = vsel %vm83, %v2941, 0
    %v2977 = vsel %vm83, %v2942, 0
    %v2980 = vsel %vm83, %v2943, 0
    %v2983 = vsel %vm83, %v2944, 0
    %v2986 = vsel %vm83, %v2945, 0
    %2988 = vmatprep.subr.mxu0 0.0
    %2989 = vmatpush1.msra.mxu0 0.0
    %2990 = vmatprep.subr.mxu0 0.0
    %2991 = vmatpush1.msra.mxu0 0.0
    %2992 = vmatprep.subr.mxu0 0.0
    %2993 = vmatpush1.msra.mxu0 0.0
    %2994 = vmatprep.subr.mxu0 0.0
    %2995 = vmatpush1.msra.mxu0 0.0
    %2996 = vmatprep.subr.mxu0 0.0
    %2997 = vmatpush1.msra.mxu0 0.0
    %2998 = vmatprep.subr.mxu0 0.0
    %2999 = vmatpush1.msra.mxu0 0.0
    %3000 = vmatprep.subr.mxu0 0.0
    %3001 = vmatpush1.msra.mxu0 0.0
    %3002 = vmatprep.subr.mxu0 0.0
    %3003 = vmatpush1.msra.mxu0 0.0
    %3004 = vmatprep.subr.mxu0 0.0
    %3005 = vmatpush1.msra.mxu0 0.0
    %3006 = vmatprep.subr.mxu0 %v2823
    %3007 = vmatpush1.msra.mxu0 %v2821
    %3008 = vmatprep.subr.mxu0 %v2817
    %3009 = vmatpush1.msra.mxu0 %v2815
    %3010 = vmatprep.subr.mxu0 %v2811
    %3011 = vmatpush1.msra.mxu0 %v2809
    %3012 = vmatprep.subr.mxu0 %v2805
    %3013 = vmatpush1.msra.mxu0 %v2803
    %3014 = vmatprep.subr.mxu0 %v2799
    %3015 = vmatpush1.msra.mxu0 %v2797
    %3016 = vmatprep.subr.mxu0 %v2793
    %3017 = vmatpush1.msra.mxu0 %v2791
    %3018 = vmatprep.subr.mxu0 %v2787
    %3019 = vmatpush1.msra.mxu0 %v2785
    %3020 = vmatprep.subr.mxu0 0.0
    %3021 = vmatpush2.msra.mxu0 0.0
    %3022 = vmatprep.subr.mxu0 0.0
    %3023 = vmatpush2.msra.mxu0 0.0
    %3024 = vmatprep.subr.mxu0 0.0
    %3025 = vmatpush2.msra.mxu0 0.0
    %3026 = vmatprep.subr.mxu0 0.0
    %3027 = vmatpush2.msra.mxu0 0.0
    %3028 = vmatprep.subr.mxu0 0.0
    %3029 = vmatpush2.msra.mxu0 0.0
    %3030 = vmatprep.subr.mxu0 0.0
    %3031 = vmatpush2.msra.mxu0 0.0
    %3032 = vmatprep.subr.mxu0 0.0
    %3033 = vmatpush2.msra.mxu0 0.0
    %3034 = vmatprep.subr.mxu0 0.0
    %3035 = vmatpush2.msra.mxu0 0.0
    %3036 = vmatprep.subr.mxu0 0.0
    %3037 = vmatpush2.msra.mxu0 0.0
    %3038 = vmatprep.subr.mxu0 0.0
    %3039 = vmatpush2.msra.mxu0 0.0
    %3040 = vmatprep.subr.mxu0 0.0
    %3041 = vmatpush2.msra.mxu0 0.0
    %3042 = vmatprep.subr.mxu0 0.0
    %3043 = vmatpush2.msra.mxu0 0.0
    %3044 = vmatprep.subr.mxu0 0.0
    %3045 = vmatpush2.msra.mxu0 0.0
    %3046 = vmatprep.subr.mxu0 0.0
    %3047 = vmatpush2.msra.mxu0 0.0
    %3048 = vmatprep.subr.mxu0 0.0
    %3049 = vmatpush2.msra.mxu0 0.0
    %3050 = vmatprep.subr.mxu0 0.0
    %3051 = vmatpush2.msra.mxu0 0.0
    %3052 = vmatprep.mubr.f32.mxu0 0.0
    %3053 = vmatmul.mubr.f32.gmra.mxu0 %v2947
    %v3054 = vpop.f32.mrf.mxu0
    %v3055 = vadd.f32 0.0, %v3054
    %v3056 = vpop.f32.mrf.mxu0
    %v3057 = vadd.f32 0.0, %v3056
    %3058 = vmatprep.mubr.f32.mxu0 0.0
    %3059 = vmatmul.mubr.f32.gmra.mxu0 %v2950
    %v3060 = vpop.f32.mrf.mxu0
    %v3061 = vadd.f32 0.0, %v3060
    %v3062 = vpop.f32.mrf.mxu0
    %v3063 = vadd.f32 0.0, %v3062
    %3064 = vmatprep.mubr.f32.mxu0 0.0
    %3065 = vmatmul.mubr.f32.gmra.mxu0 %v2953
    %v3066 = vpop.f32.mrf.mxu0
    %v3067 = vadd.f32 0.0, %v3066
    %v3068 = vpop.f32.mrf.mxu0
    %v3069 = vadd.f32 0.0, %v3068
    %3070 = vmatprep.mubr.f32.mxu0 0.0
    %3071 = vmatmul.mubr.f32.gmra.mxu0 %v2956
    %v3072 = vpop.f32.mrf.mxu0
    %v3073 = vadd.f32 0.0, %v3072
    %v3074 = vpop.f32.mrf.mxu0
    %v3075 = vadd.f32 0.0, %v3074
    %3076 = vmatprep.mubr.f32.mxu0 0.0
    %3077 = vmatmul.mubr.f32.gmra.mxu0 %v2959
    %v3078 = vpop.f32.mrf.mxu0
    %v3079 = vadd.f32 0.0, %v3078
    %v3080 = vpop.f32.mrf.mxu0
    %v3081 = vadd.f32 0.0, %v3080
    %3082 = vmatprep.mubr.f32.mxu0 0.0
    %3083 = vmatmul.mubr.f32.gmra.mxu0 %v2962
    %v3084 = vpop.f32.mrf.mxu0
    %v3085 = vadd.f32 0.0, %v3084
    %v3086 = vpop.f32.mrf.mxu0
    %v3087 = vadd.f32 0.0, %v3086
    %3088 = vmatprep.mubr.f32.mxu0 0.0
    %3089 = vmatmul.mubr.f32.gmra.mxu0 %v2965
    %v3090 = vpop.f32.mrf.mxu0
    %v3091 = vadd.f32 0.0, %v3090
    %v3092 = vpop.f32.mrf.mxu0
    %v3093 = vadd.f32 0.0, %v3092
    %3094 = vmatprep.mubr.f32.mxu0 0.0
    %3095 = vmatmul.mubr.f32.gmra.mxu0 %v2968
    %v3096 = vpop.f32.mrf.mxu0
    %v3097 = vadd.f32 0.0, %v3096
    %v3098 = vpop.f32.mrf.mxu0
    %v3099 = vadd.f32 0.0, %v3098
    %3100 = vmatprep.mubr.f32.mxu0 0.0
    %3101 = vmatmul.mubr.f32.gmra.mxu0 %v2971
    %v3102 = vpop.f32.mrf.mxu0
    %v3103 = vadd.f32 0.0, %v3102
    %v3104 = vpop.f32.mrf.mxu0
    %v3105 = vadd.f32 0.0, %v3104
    %3106 = vmatprep.mubr.f32.mxu0 0.0
    %3107 = vmatmul.mubr.f32.gmra.mxu0 %v2974
    %v3108 = vpop.f32.mrf.mxu0
    %v3109 = vadd.f32 0.0, %v3108
    %v3110 = vpop.f32.mrf.mxu0
    %v3111 = vadd.f32 0.0, %v3110
    %3112 = vmatprep.mubr.f32.mxu0 0.0
    %3113 = vmatmul.mubr.f32.gmra.mxu0 %v2977
    %v3114 = vpop.f32.mrf.mxu0
    %v3115 = vadd.f32 0.0, %v3114
    %v3116 = vpop.f32.mrf.mxu0
    %v3117 = vadd.f32 0.0, %v3116
    %3118 = vmatprep.mubr.f32.mxu0 0.0
    %3119 = vmatmul.mubr.f32.gmra.mxu0 %v2980
    %v3120 = vpop.f32.mrf.mxu0
    %v3121 = vadd.f32 0.0, %v3120
    %v3122 = vpop.f32.mrf.mxu0
    %v3123 = vadd.f32 0.0, %v3122
    %3124 = vmatprep.mubr.f32.mxu0 0.0
    %3125 = vmatmul.mubr.f32.gmra.mxu0 %v2983
    %v3126 = vpop.f32.mrf.mxu0
    %v3127 = vadd.f32 0.0, %v3126
    %v3128 = vpop.f32.mrf.mxu0
    %v3129 = vadd.f32 0.0, %v3128
    %3130 = vmatprep.mubr.f32.mxu0 0.0
    %3131 = vmatmul.mubr.f32.gmra.mxu0 %v2986
    %v3132 = vpop.f32.mrf.mxu0
    %v3133 = vadd.f32 0.0, %v3132
    %v3134 = vpop.f32.mrf.mxu0
    %v3135 = vadd.f32 0.0, %v3134
    %3136 = vdwg.mxu0
    %3137 = vmatprep.subr.mxu0 0.0
    %3138 = vmatpush1.msra.mxu0 0.0
    %3139 = vmatprep.subr.mxu0 0.0
    %3140 = vmatpush1.msra.mxu0 0.0
    %3141 = vmatprep.subr.mxu0 0.0
    %3142 = vmatpush1.msra.mxu0 0.0
    %3143 = vmatprep.subr.mxu0 0.0
    %3144 = vmatpush1.msra.mxu0 0.0
    %3145 = vmatprep.subr.mxu0 0.0
    %3146 = vmatpush1.msra.mxu0 0.0
    %3147 = vmatprep.subr.mxu0 0.0
    %3148 = vmatpush1.msra.mxu0 0.0
    %3149 = vmatprep.subr.mxu0 0.0
    %3150 = vmatpush1.msra.mxu0 0.0
    %3151 = vmatprep.subr.mxu0 0.0
    %3152 = vmatpush1.msra.mxu0 0.0
    %3153 = vmatprep.subr.mxu0 0.0
    %3154 = vmatpush1.msra.mxu0 0.0
    %3155 = vmatprep.subr.mxu0 %v2930
    %3156 = vmatpush1.msra.mxu0 %v2928
    %3157 = vmatprep.subr.mxu0 %v2924
    %3158 = vmatpush1.msra.mxu0 %v2922
    %3159 = vmatprep.subr.mxu0 %v2918
    %3160 = vmatpush1.msra.mxu0 %v2916
    %3161 = vmatprep.subr.mxu0 %v2912
    %3162 = vmatpush1.msra.mxu0 %v2910
    %3163 = vmatprep.subr.mxu0 %v2906
    %3164 = vmatpush1.msra.mxu0 %v2904
    %3165 = vmatprep.subr.mxu0 %v2900
    %3166 = vmatpush1.msra.mxu0 %v2898
    %3167 = vmatprep.subr.mxu0 %v2894
    %3168 = vmatpush1.msra.mxu0 %v2892
    %3169 = vmatprep.subr.mxu0 0.0
    %3170 = vmatpush2.msra.mxu0 0.0
    %3171 = vmatprep.subr.mxu0 0.0
    %3172 = vmatpush2.msra.mxu0 0.0
    %3173 = vmatprep.subr.mxu0 0.0
    %3174 = vmatpush2.msra.mxu0 0.0
    %3175 = vmatprep.subr.mxu0 0.0
    %3176 = vmatpush2.msra.mxu0 0.0
    %3177 = vmatprep.subr.mxu0 0.0
    %3178 = vmatpush2.msra.mxu0 0.0
    %3179 = vmatprep.subr.mxu0 0.0
    %3180 = vmatpush2.msra.mxu0 0.0
    %3181 = vmatprep.subr.mxu0 0.0
    %3182 = vmatpush2.msra.mxu0 0.0
    %3183 = vmatprep.subr.mxu0 0.0
    %3184 = vmatpush2.msra.mxu0 0.0
    %3185 = vmatprep.subr.mxu0 0.0
    %3186 = vmatpush2.msra.mxu0 0.0
    %3187 = vmatprep.subr.mxu0 0.0
    %3188 = vmatpush2.msra.mxu0 0.0
    %3189 = vmatprep.subr.mxu0 0.0
    %3190 = vmatpush2.msra.mxu0 0.0
    %3191 = vmatprep.subr.mxu0 0.0
    %3192 = vmatpush2.msra.mxu0 0.0
    %3193 = vmatprep.subr.mxu0 0.0
    %3194 = vmatpush2.msra.mxu0 0.0
    %3195 = vmatprep.subr.mxu0 0.0
    %3196 = vmatpush2.msra.mxu0 0.0
    %3197 = vmatprep.subr.mxu0 0.0
    %3198 = vmatpush2.msra.mxu0 0.0
    %3199 = vmatprep.subr.mxu0 0.0
    %3200 = vmatpush2.msra.mxu0 0.0
    %3201 = vmatprep.mubr.f32.mxu0 0.0
    %3202 = vmatmul.mubr.f32.gmra.mxu0 %v2947
    %v3203 = vpop.f32.mrf.mxu0
    %v3204 = vadd.f32 0.0, %v3203
    %v3205 = vpop.f32.mrf.mxu0
    %v3206 = vadd.f32 0.0, %v3205
    %3207 = vmatprep.mubr.f32.mxu0 0.0
    %3208 = vmatmul.mubr.f32.gmra.mxu0 %v2950
    %v3209 = vpop.f32.mrf.mxu0
    %v3210 = vadd.f32 0.0, %v3209
    %v3211 = vpop.f32.mrf.mxu0
    %v3212 = vadd.f32 0.0, %v3211
    %3213 = vmatprep.mubr.f32.mxu0 0.0
    %3214 = vmatmul.mubr.f32.gmra.mxu0 %v2953
    %v3215 = vpop.f32.mrf.mxu0
    %v3216 = vadd.f32 0.0, %v3215
    %v3217 = vpop.f32.mrf.mxu0
    %v3218 = vadd.f32 0.0, %v3217
    %3219 = vmatprep.mubr.f32.mxu0 0.0
    %3220 = vmatmul.mubr.f32.gmra.mxu0 %v2956
    %v3221 = vpop.f32.mrf.mxu0
    %v3222 = vadd.f32 0.0, %v3221
    %v3223 = vpop.f32.mrf.mxu0
    %v3224 = vadd.f32 0.0, %v3223
    %3225 = vmatprep.mubr.f32.mxu0 0.0
    %3226 = vmatmul.mubr.f32.gmra.mxu0 %v2959
    %v3227 = vpop.f32.mrf.mxu0
    %v3228 = vadd.f32 0.0, %v3227
    %v3229 = vpop.f32.mrf.mxu0
    %v3230 = vadd.f32 0.0, %v3229
    %3231 = vmatprep.mubr.f32.mxu0 0.0
    %3232 = vmatmul.mubr.f32.gmra.mxu0 %v2962
    %v3233 = vpop.f32.mrf.mxu0
    %v3234 = vadd.f32 0.0, %v3233
    %v3235 = vpop.f32.mrf.mxu0
    %v3236 = vadd.f32 0.0, %v3235
    %3237 = vmatprep.mubr.f32.mxu0 0.0
    %3238 = vmatmul.mubr.f32.gmra.mxu0 %v2965
    %v3239 = vpop.f32.mrf.mxu0
    %v3240 = vadd.f32 0.0, %v3239
    %v3241 = vpop.f32.mrf.mxu0
    %v3242 = vadd.f32 0.0, %v3241
    %3243 = vmatprep.mubr.f32.mxu0 0.0
    %3244 = vmatmul.mubr.f32.gmra.mxu0 %v2968
    %v3245 = vpop.f32.mrf.mxu0
    %v3246 = vadd.f32 0.0, %v3245
    %v3247 = vpop.f32.mrf.mxu0
    %v3248 = vadd.f32 0.0, %v3247
    %3249 = vmatprep.mubr.f32.mxu0 0.0
    %3250 = vmatmul.mubr.f32.gmra.mxu0 %v2971
    %v3251 = vpop.f32.mrf.mxu0
    %v3252 = vadd.f32 0.0, %v3251
    %v3253 = vpop.f32.mrf.mxu0
    %v3254 = vadd.f32 0.0, %v3253
    %3255 = vmatprep.mubr.f32.mxu0 0.0
    %3256 = vmatmul.mubr.f32.gmra.mxu0 %v2974
    %v3257 = vpop.f32.mrf.mxu0
    %v3258 = vadd.f32 0.0, %v3257
    %v3259 = vpop.f32.mrf.mxu0
    %v3260 = vadd.f32 0.0, %v3259
    %3261 = vmatprep.mubr.f32.mxu0 0.0
    %3262 = vmatmul.mubr.f32.gmra.mxu0 %v2977
    %v3263 = vpop.f32.mrf.mxu0
    %v3264 = vadd.f32 0.0, %v3263
    %v3265 = vpop.f32.mrf.mxu0
    %v3266 = vadd.f32 0.0, %v3265
    %3267 = vmatprep.mubr.f32.mxu0 0.0
    %3268 = vmatmul.mubr.f32.gmra.mxu0 %v2980
    %v3269 = vpop.f32.mrf.mxu0
    %v3270 = vadd.f32 0.0, %v3269
    %v3271 = vpop.f32.mrf.mxu0
    %v3272 = vadd.f32 0.0, %v3271
    %3273 = vmatprep.mubr.f32.mxu0 0.0
    %3274 = vmatmul.mubr.f32.gmra.mxu0 %v2983
    %v3275 = vpop.f32.mrf.mxu0
    %v3276 = vadd.f32 0.0, %v3275
    %v3277 = vpop.f32.mrf.mxu0
    %v3278 = vadd.f32 0.0, %v3277
    %3279 = vmatprep.mubr.f32.mxu0 0.0
    %3280 = vmatmul.mubr.f32.gmra.mxu0 %v2986
    %v3281 = vpop.f32.mrf.mxu0
    %v3282 = vadd.f32 0.0, %v3281
    %v3283 = vpop.f32.mrf.mxu0
    %v3284 = vadd.f32 0.0, %v3283
    %3285 = vdwg.mxu0
    %v3286 = vld [vmem:[%s8] sm:$0xff]
    %v3287 = vld [vmem:[%s8 + $0x8] sm:$0xff]
    %v3288 = vld [vmem:[%s8 + $0x10] sm:$0xff]
    %v3289 = vld [vmem:[%s8 + $0x18] sm:$0xff]
    %v3290 = vld [vmem:[%s8 + $0x20] sm:$0xff]
    %v3291 = vld [vmem:[%s8 + $0x28] sm:$0xff]
    %v3292 = vld [vmem:[%s8 + $0x30] sm:$0xff]
    %v3293 = vld [vmem:[%s8 + $0x38] sm:$0xff]
    %v3294 = vld [vmem:[%s8 + $0x40] sm:$0xff]
    %v3295 = vld [vmem:[%s8 + $0x48] sm:$0xff]
    %v3296 = vld [vmem:[%s8 + $0x50] sm:$0xff]
    %v3297 = vld [vmem:[%s8 + $0x58] sm:$0xff]
    %v3298 = vld [vmem:[%s8 + $0x60] sm:$0xff]
    %v3299 = vld [vmem:[%s8 + $0x68] sm:$0xff]
    %vm3300 = vcmask 916480
    %v3302 = vsel %vm3300, %v3286, 0
    %v3305 = vsel %vm3300, %v3287, 0
    %v3308 = vsel %vm3300, %v3288, 0
    %v3311 = vsel %vm3300, %v3289, 0
    %v3314 = vsel %vm3300, %v3290, 0
    %v3317 = vsel %vm3300, %v3291, 0
    %v3320 = vsel %vm3300, %v3292, 0
    %v3323 = vsel %vm3300, %v3293, 0
    %v3326 = vsel %vm3300, %v3294, 0
    %v3329 = vsel %vm3300, %v3295, 0
    %v3332 = vsel %vm3300, %v3296, 0
    %v3335 = vsel %vm3300, %v3297, 0
    %v3338 = vsel %vm3300, %v3298, 0
    %v3341 = vsel %vm3300, %v3299, 0
    %3343 = vmatprep.subr.mxu0 0.0
    %3344 = vmatpush1.msra.mxu0 0.0
    %3345 = vmatprep.subr.mxu0 0.0
    %3346 = vmatpush1.msra.mxu0 0.0
    %3347 = vmatprep.subr.mxu0 %v3135
    %3348 = vmatpush1.msra.mxu0 %v3133
    %3349 = vmatprep.subr.mxu0 %v3129
    %3350 = vmatpush1.msra.mxu0 %v3127
    %3351 = vmatprep.subr.mxu0 %v3123
    %3352 = vmatpush1.msra.mxu0 %v3121
    %3353 = vmatprep.subr.mxu0 %v3117
    %3354 = vmatpush1.msra.mxu0 %v3115
    %3355 = vmatprep.subr.mxu0 %v3111
    %3356 = vmatpush1.msra.mxu0 %v3109
    %3357 = vmatprep.subr.mxu0 %v3105
    %3358 = vmatpush1.msra.mxu0 %v3103
    %3359 = vmatprep.subr.mxu0 %v3099
    %3360 = vmatpush1.msra.mxu0 %v3097
    %3361 = vmatprep.subr.mxu0 %v3093
    %3362 = vmatpush1.msra.mxu0 %v3091
    %3363 = vmatprep.subr.mxu0 %v3087
    %3364 = vmatpush1.msra.mxu0 %v3085
    %3365 = vmatprep.subr.mxu0 %v3081
    %3366 = vmatpush1.msra.mxu0 %v3079
    %3367 = vmatprep.subr.mxu0 %v3075
    %3368 = vmatpush1.msra.mxu0 %v3073
    %3369 = vmatprep.subr.mxu0 %v3069
    %3370 = vmatpush1.msra.mxu0 %v3067
    %3371 = vmatprep.subr.mxu0 %v3063
    %3372 = vmatpush1.msra.mxu0 %v3061
    %3373 = vmatprep.subr.mxu0 %v3057
    %3374 = vmatpush1.msra.mxu0 %v3055
    %3375 = vmatprep.subr.mxu0 0.0
    %3376 = vmatpush2.msra.mxu0 0.0
    %3377 = vmatprep.subr.mxu0 0.0
    %3378 = vmatpush2.msra.mxu0 0.0
    %3379 = vmatprep.subr.mxu0 0.0
    %3380 = vmatpush2.msra.mxu0 0.0
    %3381 = vmatprep.subr.mxu0 0.0
    %3382 = vmatpush2.msra.mxu0 0.0
    %3383 = vmatprep.subr.mxu0 0.0
    %3384 = vmatpush2.msra.mxu0 0.0
    %3385 = vmatprep.subr.mxu0 0.0
    %3386 = vmatpush2.msra.mxu0 0.0
    %3387 = vmatprep.subr.mxu0 0.0
    %3388 = vmatpush2.msra.mxu0 0.0
    %3389 = vmatprep.subr.mxu0 0.0
    %3390 = vmatpush2.msra.mxu0 0.0
    %3391 = vmatprep.subr.mxu0 0.0
    %3392 = vmatpush2.msra.mxu0 0.0
    %3393 = vmatprep.subr.mxu0 0.0
    %3394 = vmatpush2.msra.mxu0 0.0
    %3395 = vmatprep.subr.mxu0 0.0
    %3396 = vmatpush2.msra.mxu0 0.0
    %3397 = vmatprep.subr.mxu0 0.0
    %3398 = vmatpush2.msra.mxu0 0.0
    %3399 = vmatprep.subr.mxu0 0.0
    %3400 = vmatpush2.msra.mxu0 0.0
    %3401 = vmatprep.subr.mxu0 0.0
    %3402 = vmatpush2.msra.mxu0 0.0
    %3403 = vmatprep.subr.mxu0 0.0
    %3404 = vmatpush2.msra.mxu0 0.0
    %3405 = vmatprep.subr.mxu0 0.0
    %3406 = vmatpush2.msra.mxu0 0.0
    %3407 = vmatprep.mubr.f32.mxu0 0.0
    %3408 = vmatmul.mubr.f32.gmra.mxu0 %v3302
    %v3409 = vpop.f32.mrf.mxu0
    %v3410 = vadd.f32 0.0, %v3409
    %v3411 = vpop.f32.mrf.mxu0
    %v3412 = vadd.f32 0.0, %v3411
    %3413 = vmatprep.mubr.f32.mxu0 0.0
    %3414 = vmatmul.mubr.f32.gmra.mxu0 %v3305
    %v3415 = vpop.f32.mrf.mxu0
    %v3416 = vadd.f32 0.0, %v3415
    %v3417 = vpop.f32.mrf.mxu0
    %v3418 = vadd.f32 0.0, %v3417
    %3419 = vmatprep.mubr.f32.mxu0 0.0
    %3420 = vmatmul.mubr.f32.gmra.mxu0 %v3308
    %v3421 = vpop.f32.mrf.mxu0
    %v3422 = vadd.f32 0.0, %v3421
    %v3423 = vpop.f32.mrf.mxu0
    %v3424 = vadd.f32 0.0, %v3423
    %3425 = vmatprep.mubr.f32.mxu0 0.0
    %3426 = vmatmul.mubr.f32.gmra.mxu0 %v3311
    %v3427 = vpop.f32.mrf.mxu0
    %v3428 = vadd.f32 0.0, %v3427
    %v3429 = vpop.f32.mrf.mxu0
    %v3430 = vadd.f32 0.0, %v3429
    %3431 = vmatprep.mubr.f32.mxu0 0.0
    %3432 = vmatmul.mubr.f32.gmra.mxu0 %v3314
    %v3433 = vpop.f32.mrf.mxu0
    %v3434 = vadd.f32 0.0, %v3433
    %v3435 = vpop.f32.mrf.mxu0
    %v3436 = vadd.f32 0.0, %v3435
    %3437 = vmatprep.mubr.f32.mxu0 0.0
    %3438 = vmatmul.mubr.f32.gmra.mxu0 %v3317
    %v3439 = vpop.f32.mrf.mxu0
    %v3440 = vadd.f32 0.0, %v3439
    %v3441 = vpop.f32.mrf.mxu0
    %v3442 = vadd.f32 0.0, %v3441
    %3443 = vmatprep.mubr.f32.mxu0 0.0
    %3444 = vmatmul.mubr.f32.gmra.mxu0 %v3320
    %v3445 = vpop.f32.mrf.mxu0
    %v3446 = vadd.f32 0.0, %v3445
    %v3447 = vpop.f32.mrf.mxu0
    %v3448 = vadd.f32 0.0, %v3447
    %3449 = vmatprep.mubr.f32.mxu0 0.0
    %3450 = vmatmul.mubr.f32.gmra.mxu0 %v3323
    %v3451 = vpop.f32.mrf.mxu0
    %v3452 = vadd.f32 0.0, %v3451
    %v3453 = vpop.f32.mrf.mxu0
    %v3454 = vadd.f32 0.0, %v3453
    %3455 = vmatprep.mubr.f32.mxu0 0.0
    %3456 = vmatmul.mubr.f32.gmra.mxu0 %v3326
    %v3457 = vpop.f32.mrf.mxu0
    %v3458 = vadd.f32 0.0, %v3457
    %v3459 = vpop.f32.mrf.mxu0
    %v3460 = vadd.f32 0.0, %v3459
    %3461 = vmatprep.mubr.f32.mxu0 0.0
    %3462 = vmatmul.mubr.f32.gmra.mxu0 %v3329
    %v3463 = vpop.f32.mrf.mxu0
    %v3464 = vadd.f32 0.0, %v3463
    %v3465 = vpop.f32.mrf.mxu0
    %v3466 = vadd.f32 0.0, %v3465
    %3467 = vmatprep.mubr.f32.mxu0 0.0
    %3468 = vmatmul.mubr.f32.gmra.mxu0 %v3332
    %v3469 = vpop.f32.mrf.mxu0
    %v3470 = vadd.f32 0.0, %v3469
    %v3471 = vpop.f32.mrf.mxu0
    %v3472 = vadd.f32 0.0, %v3471
    %3473 = vmatprep.mubr.f32.mxu0 0.0
    %3474 = vmatmul.mubr.f32.gmra.mxu0 %v3335
    %v3475 = vpop.f32.mrf.mxu0
    %v3476 = vadd.f32 0.0, %v3475
    %v3477 = vpop.f32.mrf.mxu0
    %v3478 = vadd.f32 0.0, %v3477
    %3479 = vmatprep.mubr.f32.mxu0 0.0
    %3480 = vmatmul.mubr.f32.gmra.mxu0 %v3338
    %v3481 = vpop.f32.mrf.mxu0
    %v3482 = vadd.f32 0.0, %v3481
    %v3483 = vpop.f32.mrf.mxu0
    %v3484 = vadd.f32 0.0, %v3483
    %3485 = vmatprep.mubr.f32.mxu0 0.0
    %3486 = vmatmul.mubr.f32.gmra.mxu0 %v3341
    %v3487 = vpop.f32.mrf.mxu0
    %v3488 = vadd.f32 0.0, %v3487
    %v3489 = vpop.f32.mrf.mxu0
    %v3490 = vadd.f32 0.0, %v3489
    %3491 = vdwg.mxu0
    %3492 = vmatprep.subr.mxu0 0.0
    %3493 = vmatpush1.msra.mxu0 0.0
    %3494 = vmatprep.subr.mxu0 0.0
    %3495 = vmatpush1.msra.mxu0 0.0
    %3496 = vmatprep.subr.mxu0 %v3284
    %3497 = vmatpush1.msra.mxu0 %v3282
    %3498 = vmatprep.subr.mxu0 %v3278
    %3499 = vmatpush1.msra.mxu0 %v3276
    %3500 = vmatprep.subr.mxu0 %v3272
    %3501 = vmatpush1.msra.mxu0 %v3270
    %3502 = vmatprep.subr.mxu0 %v3266
    %3503 = vmatpush1.msra.mxu0 %v3264
    %3504 = vmatprep.subr.mxu0 %v3260
    %3505 = vmatpush1.msra.mxu0 %v3258
    %3506 = vmatprep.subr.mxu0 %v3254
    %3507 = vmatpush1.msra.mxu0 %v3252
    %3508 = vmatprep.subr.mxu0 %v3248
    %3509 = vmatpush1.msra.mxu0 %v3246
    %3510 = vmatprep.subr.mxu0 %v3242
    %3511 = vmatpush1.msra.mxu0 %v3240
    %3512 = vmatprep.subr.mxu0 %v3236
    %3513 = vmatpush1.msra.mxu0 %v3234
    %3514 = vmatprep.subr.mxu0 %v3230
    %3515 = vmatpush1.msra.mxu0 %v3228
    %3516 = vmatprep.subr.mxu0 %v3224
    %3517 = vmatpush1.msra.mxu0 %v3222
    %3518 = vmatprep.subr.mxu0 %v3218
    %3519 = vmatpush1.msra.mxu0 %v3216
    %3520 = vmatprep.subr.mxu0 %v3212
    %3521 = vmatpush1.msra.mxu0 %v3210
    %3522 = vmatprep.subr.mxu0 %v3206
    %3523 = vmatpush1.msra.mxu0 %v3204
    %3524 = vmatprep.subr.mxu0 0.0
    %3525 = vmatpush2.msra.mxu0 0.0
    %3526 = vmatprep.subr.mxu0 0.0
    %3527 = vmatpush2.msra.mxu0 0.0
    %3528 = vmatprep.subr.mxu0 0.0
    %3529 = vmatpush2.msra.mxu0 0.0
    %3530 = vmatprep.subr.mxu0 0.0
    %3531 = vmatpush2.msra.mxu0 0.0
    %3532 = vmatprep.subr.mxu0 0.0
    %3533 = vmatpush2.msra.mxu0 0.0
    %3534 = vmatprep.subr.mxu0 0.0
    %3535 = vmatpush2.msra.mxu0 0.0
    %3536 = vmatprep.subr.mxu0 0.0
    %3537 = vmatpush2.msra.mxu0 0.0
    %3538 = vmatprep.subr.mxu0 0.0
    %3539 = vmatpush2.msra.mxu0 0.0
    %3540 = vmatprep.subr.mxu0 0.0
    %3541 = vmatpush2.msra.mxu0 0.0
    %3542 = vmatprep.subr.mxu0 0.0
    %3543 = vmatpush2.msra.mxu0 0.0
    %3544 = vmatprep.subr.mxu0 0.0
    %3545 = vmatpush2.msra.mxu0 0.0
    %3546 = vmatprep.subr.mxu0 0.0
    %3547 = vmatpush2.msra.mxu0 0.0
    %3548 = vmatprep.subr.mxu0 0.0
    %3549 = vmatpush2.msra.mxu0 0.0
    %3550 = vmatprep.subr.mxu0 0.0
    %3551 = vmatpush2.msra.mxu0 0.0
    %3552 = vmatprep.subr.mxu0 0.0
    %3553 = vmatpush2.msra.mxu0 0.0
    %3554 = vmatprep.subr.mxu0 0.0
    %3555 = vmatpush2.msra.mxu0 0.0
    %3556 = vmatprep.mubr.f32.mxu0 0.0
    %3557 = vmatmul.mubr.f32.gmra.mxu0 %v3302
    %v3558 = vpop.f32.mrf.mxu0
    %v3559 = vadd.f32 0.0, %v3558
    %v3560 = vpop.f32.mrf.mxu0
    %v3561 = vadd.f32 0.0, %v3560
    %3562 = vmatprep.mubr.f32.mxu0 0.0
    %3563 = vmatmul.mubr.f32.gmra.mxu0 %v3305
    %v3564 = vpop.f32.mrf.mxu0
    %v3565 = vadd.f32 0.0, %v3564
    %v3566 = vpop.f32.mrf.mxu0
    %v3567 = vadd.f32 0.0, %v3566
    %3568 = vmatprep.mubr.f32.mxu0 0.0
    %3569 = vmatmul.mubr.f32.gmra.mxu0 %v3308
    %v3570 = vpop.f32.mrf.mxu0
    %v3571 = vadd.f32 0.0, %v3570
    %v3572 = vpop.f32.mrf.mxu0
    %v3573 = vadd.f32 0.0, %v3572
    %3574 = vmatprep.mubr.f32.mxu0 0.0
    %3575 = vmatmul.mubr.f32.gmra.mxu0 %v3311
    %v3576 = vpop.f32.mrf.mxu0
    %v3577 = vadd.f32 0.0, %v3576
    %v3578 = vpop.f32.mrf.mxu0
    %v3579 = vadd.f32 0.0, %v3578
    %3580 = vmatprep.mubr.f32.mxu0 0.0
    %3581 = vmatmul.mubr.f32.gmra.mxu0 %v3314
    %v3582 = vpop.f32.mrf.mxu0
    %v3583 = vadd.f32 0.0, %v3582
    %v3584 = vpop.f32.mrf.mxu0
    %v3585 = vadd.f32 0.0, %v3584
    %3586 = vmatprep.mubr.f32.mxu0 0.0
    %3587 = vmatmul.mubr.f32.gmra.mxu0 %v3317
    %v3588 = vpop.f32.mrf.mxu0
    %v3589 = vadd.f32 0.0, %v3588
    %v3590 = vpop.f32.mrf.mxu0
    %v3591 = vadd.f32 0.0, %v3590
    %3592 = vmatprep.mubr.f32.mxu0 0.0
    %3593 = vmatmul.mubr.f32.gmra.mxu0 %v3320
    %v3594 = vpop.f32.mrf.mxu0
    %v3595 = vadd.f32 0.0, %v3594
    %v3596 = vpop.f32.mrf.mxu0
    %v3597 = vadd.f32 0.0, %v3596
    %3598 = vmatprep.mubr.f32.mxu0 0.0
    %3599 = vmatmul.mubr.f32.gmra.mxu0 %v3323
    %v3600 = vpop.f32.mrf.mxu0
    %v3601 = vadd.f32 0.0, %v3600
    %v3602 = vpop.f32.mrf.mxu0
    %v3603 = vadd.f32 0.0, %v3602
    %3604 = vmatprep.mubr.f32.mxu0 0.0
    %3605 = vmatmul.mubr.f32.gmra.mxu0 %v3326
    %v3606 = vpop.f32.mrf.mxu0
    %v3607 = vadd.f32 0.0, %v3606
    %v3608 = vpop.f32.mrf.mxu0
    %v3609 = vadd.f32 0.0, %v3608
    %3610 = vmatprep.mubr.f32.mxu0 0.0
    %3611 = vmatmul.mubr.f32.gmra.mxu0 %v3329
    %v3612 = vpop.f32.mrf.mxu0
    %v3613 = vadd.f32 0.0, %v3612
    %v3614 = vpop.f32.mrf.mxu0
    %v3615 = vadd.f32 0.0, %v3614
    %3616 = vmatprep.mubr.f32.mxu0 0.0
    %3617 = vmatmul.mubr.f32.gmra.mxu0 %v3332
    %v3618 = vpop.f32.mrf.mxu0
    %v3619 = vadd.f32 0.0, %v3618
    %v3620 = vpop.f32.mrf.mxu0
    %v3621 = vadd.f32 0.0, %v3620
    %3622 = vmatprep.mubr.f32.mxu0 0.0
    %3623 = vmatmul.mubr.f32.gmra.mxu0 %v3335
    %v3624 = vpop.f32.mrf.mxu0
    %v3625 = vadd.f32 0.0, %v3624
    %v3626 = vpop.f32.mrf.mxu0
    %v3627 = vadd.f32 0.0, %v3626
    %3628 = vmatprep.mubr.f32.mxu0 0.0
    %3629 = vmatmul.mubr.f32.gmra.mxu0 %v3338
    %v3630 = vpop.f32.mrf.mxu0
    %v3631 = vadd.f32 0.0, %v3630
    %v3632 = vpop.f32.mrf.mxu0
    %v3633 = vadd.f32 0.0, %v3632
    %3634 = vmatprep.mubr.f32.mxu0 0.0
    %3635 = vmatmul.mubr.f32.gmra.mxu0 %v3341
    %v3636 = vpop.f32.mrf.mxu0
    %v3637 = vadd.f32 0.0, %v3636
    %v3638 = vpop.f32.mrf.mxu0
    %v3639 = vadd.f32 0.0, %v3638
    %3640 = vdwg.mxu0
    %v3641 = vld [vmem:[%s9] sm:$0xff]
    %v3642 = vld [vmem:[%s9 + $0x8] sm:$0xff]
    %v3643 = vld [vmem:[%s9 + $0x10] sm:$0xff]
    %v3644 = vld [vmem:[%s9 + $0x18] sm:$0xff]
    %v3645 = vld [vmem:[%s9 + $0x20] sm:$0xff]
    %v3646 = vld [vmem:[%s9 + $0x28] sm:$0xff]
    %v3647 = vld [vmem:[%s9 + $0x30] sm:$0xff]
    %v3648 = vld [vmem:[%s9 + $0x38] sm:$0xff]
    %v3649 = vld [vmem:[%s9 + $0x40] sm:$0xff]
    %v3650 = vld [vmem:[%s9 + $0x48] sm:$0xff]
    %v3651 = vld [vmem:[%s9 + $0x50] sm:$0xff]
    %v3652 = vld [vmem:[%s9 + $0x58] sm:$0xff]
    %v3653 = vld [vmem:[%s9 + $0x60] sm:$0xff]
    %v3654 = vld [vmem:[%s9 + $0x68] sm:$0xff]
    %v3655 = vld [vmem:[%s9 + $0x70] sm:$0xff]
    %v3656 = vld [vmem:[%s9 + $0x78] sm:$0xff]
    %v3657 = vld [vmem:[%s9 + $0x80] sm:$0xff]
    %v3658 = vld [vmem:[%s9 + $0x88] sm:$0xff]
    %v3659 = vld [vmem:[%s9 + $0x90] sm:$0xff]
    %v3660 = vld [vmem:[%s9 + $0x98] sm:$0xff]
    %v3661 = vld [vmem:[%s9 + $0xa0] sm:$0xff]
    %v3662 = vld [vmem:[%s9 + $0xa8] sm:$0xff]
    %v3663 = vld [vmem:[%s9 + $0xb0] sm:$0xff]
    %v3664 = vld [vmem:[%s9 + $0xb8] sm:$0xff]
    %v3665 = vld [vmem:[%s9 + $0xc0] sm:$0xff]
    %v3666 = vld [vmem:[%s9 + $0xc8] sm:$0xff]
    %v3667 = vld [vmem:[%s9 + $0xd0] sm:$0xff]
    %v3668 = vld [vmem:[%s9 + $0xd8] sm:$0xff]
    %v3669 = vld [vmem:[%s9 + $0xe0] sm:$0xff]
    %v3670 = vld [vmem:[%s9 + $0xe8] sm:$0xff]
    %v3671 = vld [vmem:[%s9 + $0xf0] sm:$0xff]
    %v3672 = vld [vmem:[%s9 + $0xf8] sm:$0xff]
    %v3673 = vld [vmem:[%s9 + $0x100] sm:$0xff]
    %v3674 = vld [vmem:[%s9 + $0x108] sm:$0xff]
    %v3675 = vld [vmem:[%s9 + $0x110] sm:$0xff]
    %v3676 = vld [vmem:[%s9 + $0x118] sm:$0xff]
    %v3677 = vld [vmem:[%s9 + $0x120] sm:$0xff]
    %v3678 = vld [vmem:[%s9 + $0x128] sm:$0xff]
    %v3679 = vld [vmem:[%s9 + $0x130] sm:$0xff]
    %v3680 = vld [vmem:[%s9 + $0x138] sm:$0xff]
    %v3681 = vld [vmem:[%s9 + $0x140] sm:$0xff]
    %v3682 = vld [vmem:[%s9 + $0x148] sm:$0xff]
    %v3683 = vld [vmem:[%s9 + $0x150] sm:$0xff]
    %v3684 = vld [vmem:[%s9 + $0x158] sm:$0xff]
    %v3685 = vld [vmem:[%s9 + $0x160] sm:$0xff]
    %v3686 = vld [vmem:[%s9 + $0x168] sm:$0xff]
    %v3687 = vld [vmem:[%s9 + $0x170] sm:$0xff]
    %v3688 = vld [vmem:[%s9 + $0x178] sm:$0xff]
    %v3689 = vld [vmem:[%s9 + $0x180] sm:$0xff]
    %v3690 = vld [vmem:[%s9 + $0x188] sm:$0xff]
    %v3691 = vld [vmem:[%s9 + $0x190] sm:$0xff]
    %v3692 = vld [vmem:[%s9 + $0x198] sm:$0xff]
    %v3693 = vld [vmem:[%s9 + $0x1a0] sm:$0xff]
    %v3694 = vld [vmem:[%s9 + $0x1a8] sm:$0xff]
    %v3695 = vld [vmem:[%s9 + $0x1b0] sm:$0xff]
    %v3696 = vld [vmem:[%s9 + $0x1b8] sm:$0xff]
    %v3697 = vld [vmem:[%s9 + $0x1c0] sm:$0xff]
    %v3698 = vld [vmem:[%s9 + $0x1c8] sm:$0xff]
    %v3699 = vld [vmem:[%s9 + $0x1d0] sm:$0xff]
    %v3700 = vld [vmem:[%s9 + $0x1d8] sm:$0xff]
    %v3701 = vld [vmem:[%s9 + $0x1e0] sm:$0xff]
    %v3702 = vld [vmem:[%s9 + $0x1e8] sm:$0xff]
    %v3703 = vld [vmem:[%s9 + $0x1f0] sm:$0xff]
    %v3704 = vld [vmem:[%s9 + $0x1f8] sm:$0xff]
    %v3705 = vld [vmem:[%s9 + $0x200] sm:$0xff]
    %v3706 = vld [vmem:[%s9 + $0x208] sm:$0xff]
    %v3707 = vld [vmem:[%s9 + $0x210] sm:$0xff]
    %v3708 = vld [vmem:[%s9 + $0x218] sm:$0xff]
    %v3709 = vld [vmem:[%s9 + $0x220] sm:$0xff]
    %v3710 = vld [vmem:[%s9 + $0x228] sm:$0xff]
    %v3711 = vld [vmem:[%s9 + $0x230] sm:$0xff]
    %v3712 = vld [vmem:[%s9 + $0x238] sm:$0xff]
    %v3713 = vld [vmem:[%s9 + $0x240] sm:$0xff]
    %v3714 = vld [vmem:[%s9 + $0x248] sm:$0xff]
    %v3715 = vld [vmem:[%s9 + $0x250] sm:$0xff]
    %v3716 = vld [vmem:[%s9 + $0x258] sm:$0xff]
    %v3717 = vld [vmem:[%s9 + $0x260] sm:$0xff]
    %v3718 = vld [vmem:[%s9 + $0x268] sm:$0xff]
    %v3719 = vld [vmem:[%s9 + $0x270] sm:$0xff]
    %v3720 = vld [vmem:[%s9 + $0x278] sm:$0xff]
    %v3721 = vld [vmem:[%s9 + $0x280] sm:$0xff]
    %v3722 = vld [vmem:[%s9 + $0x288] sm:$0xff]
    %v3723 = vld [vmem:[%s9 + $0x290] sm:$0xff]
    %v3724 = vld [vmem:[%s9 + $0x298] sm:$0xff]
    %v3725 = vld [vmem:[%s9 + $0x2a0] sm:$0xff]
    %v3726 = vld [vmem:[%s9 + $0x2a8] sm:$0xff]
    %v3727 = vld [vmem:[%s9 + $0x2b0] sm:$0xff]
    %v3728 = vld [vmem:[%s9 + $0x2b8] sm:$0xff]
    %v3729 = vld [vmem:[%s9 + $0x2c0] sm:$0xff]
    %v3730 = vld [vmem:[%s9 + $0x2c8] sm:$0xff]
    %v3731 = vld [vmem:[%s9 + $0x2d0] sm:$0xff]
    %v3732 = vld [vmem:[%s9 + $0x2d8] sm:$0xff]
    %v3733 = vld [vmem:[%s9 + $0x2e0] sm:$0xff]
    %v3734 = vld [vmem:[%s9 + $0x2e8] sm:$0xff]
    %v3735 = vld [vmem:[%s9 + $0x2f0] sm:$0xff]
    %v3736 = vld [vmem:[%s9 + $0x2f8] sm:$0xff]
    %v3737 = vld [vmem:[%s9 + $0x300] sm:$0xff]
    %v3738 = vld [vmem:[%s9 + $0x308] sm:$0xff]
    %v3739 = vld [vmem:[%s9 + $0x310] sm:$0xff]
    %v3740 = vld [vmem:[%s9 + $0x318] sm:$0xff]
    %v3741 = vld [vmem:[%s9 + $0x320] sm:$0xff]
    %v3742 = vld [vmem:[%s9 + $0x328] sm:$0xff]
    %v3743 = vld [vmem:[%s9 + $0x330] sm:$0xff]
    %v3744 = vld [vmem:[%s9 + $0x338] sm:$0xff]
    %v3745 = vld [vmem:[%s9 + $0x340] sm:$0xff]
    %v3746 = vld [vmem:[%s9 + $0x348] sm:$0xff]
    %v3747 = vld [vmem:[%s9 + $0x350] sm:$0xff]
    %v3748 = vld [vmem:[%s9 + $0x358] sm:$0xff]
    %v3749 = vld [vmem:[%s9 + $0x360] sm:$0xff]
    %v3750 = vld [vmem:[%s9 + $0x368] sm:$0xff]
    %v3751 = vld [vmem:[%s9 + $0x370] sm:$0xff]
    %v3752 = vld [vmem:[%s9 + $0x378] sm:$0xff]
    %s3753 = scalar_lea.vmem %s8, 112
    %v3754 = vld [vmem:[%s3753] sm:$0xff]
    %v3755 = vld [vmem:[%s3753 + $0x8] sm:$0xff]
    %v3756 = vld [vmem:[%s3753 + $0x10] sm:$0xff]
    %v3757 = vld [vmem:[%s3753 + $0x18] sm:$0xff]
    %v3758 = vld [vmem:[%s3753 + $0x20] sm:$0xff]
    %v3759 = vld [vmem:[%s3753 + $0x28] sm:$0xff]
    %v3760 = vld [vmem:[%s3753 + $0x30] sm:$0xff]
    %v3761 = vld [vmem:[%s3753 + $0x38] sm:$0xff]
    %v3762 = vld [vmem:[%s3753 + $0x40] sm:$0xff]
    %v3763 = vld [vmem:[%s3753 + $0x48] sm:$0xff]
    %v3764 = vld [vmem:[%s3753 + $0x50] sm:$0xff]
    %v3765 = vld [vmem:[%s3753 + $0x58] sm:$0xff]
    %v3766 = vld [vmem:[%s3753 + $0x60] sm:$0xff]
    %v3767 = vld [vmem:[%s3753 + $0x68] sm:$0xff]
    %v3769 = vsel %vm3300, %v3754, 0
    %v3772 = vsel %vm3300, %v3755, 0
    %v3775 = vsel %vm3300, %v3756, 0
    %v3778 = vsel %vm3300, %v3757, 0
    %v3781 = vsel %vm3300, %v3758, 0
    %v3784 = vsel %vm3300, %v3759, 0
    %v3787 = vsel %vm3300, %v3760, 0
    %v3790 = vsel %vm3300, %v3761, 0
    %v3793 = vsel %vm3300, %v3762, 0
    %v3796 = vsel %vm3300, %v3763, 0
    %v3799 = vsel %vm3300, %v3764, 0
    %v3802 = vsel %vm3300, %v3765, 0
    %v3805 = vsel %vm3300, %v3766, 0
    %v3808 = vsel %vm3300, %v3767, 0
    %3810 = vmatprep.subr.mxu0 0.0
    %3811 = vmatpush1.msra.mxu0 0.0
    %3812 = vmatprep.subr.mxu0 0.0
    %3813 = vmatpush1.msra.mxu0 0.0
    %3814 = vmatprep.subr.mxu0 %v3135
    %3815 = vmatpush1.msra.mxu0 %v3133
    %3816 = vmatprep.subr.mxu0 %v3129
    %3817 = vmatpush1.msra.mxu0 %v3127
    %3818 = vmatprep.subr.mxu0 %v3123
    %3819 = vmatpush1.msra.mxu0 %v3121
    %3820 = vmatprep.subr.mxu0 %v3117
    %3821 = vmatpush1.msra.mxu0 %v3115
    %3822 = vmatprep.subr.mxu0 %v3111
    %3823 = vmatpush1.msra.mxu0 %v3109
    %3824 = vmatprep.subr.mxu0 %v3105
    %3825 = vmatpush1.msra.mxu0 %v3103
    %3826 = vmatprep.subr.mxu0 %v3099
    %3827 = vmatpush1.msra.mxu0 %v3097
    %3828 = vmatprep.subr.mxu0 %v3093
    %3829 = vmatpush1.msra.mxu0 %v3091
    %3830 = vmatprep.subr.mxu0 %v3087
    %3831 = vmatpush1.msra.mxu0 %v3085
    %3832 = vmatprep.subr.mxu0 %v3081
    %3833 = vmatpush1.msra.mxu0 %v3079
    %3834 = vmatprep.subr.mxu0 %v3075
    %3835 = vmatpush1.msra.mxu0 %v3073
    %3836 = vmatprep.subr.mxu0 %v3069
    %3837 = vmatpush1.msra.mxu0 %v3067
    %3838 = vmatprep.subr.mxu0 %v3063
    %3839 = vmatpush1.msra.mxu0 %v3061
    %3840 = vmatprep.subr.mxu0 %v3057
    %3841 = vmatpush1.msra.mxu0 %v3055
    %3842 = vmatprep.subr.mxu0 0.0
    %3843 = vmatpush2.msra.mxu0 0.0
    %3844 = vmatprep.subr.mxu0 0.0
    %3845 = vmatpush2.msra.mxu0 0.0
    %3846 = vmatprep.subr.mxu0 0.0
    %3847 = vmatpush2.msra.mxu0 0.0
    %3848 = vmatprep.subr.mxu0 0.0
    %3849 = vmatpush2.msra.mxu0 0.0
    %3850 = vmatprep.subr.mxu0 0.0
    %3851 = vmatpush2.msra.mxu0 0.0
    %3852 = vmatprep.subr.mxu0 0.0
    %3853 = vmatpush2.msra.mxu0 0.0
    %3854 = vmatprep.subr.mxu0 0.0
    %3855 = vmatpush2.msra.mxu0 0.0
    %3856 = vmatprep.subr.mxu0 0.0
    %3857 = vmatpush2.msra.mxu0 0.0
    %3858 = vmatprep.subr.mxu0 0.0
    %3859 = vmatpush2.msra.mxu0 0.0
    %3860 = vmatprep.subr.mxu0 0.0
    %3861 = vmatpush2.msra.mxu0 0.0
    %3862 = vmatprep.subr.mxu0 0.0
    %3863 = vmatpush2.msra.mxu0 0.0
    %3864 = vmatprep.subr.mxu0 0.0
    %3865 = vmatpush2.msra.mxu0 0.0
    %3866 = vmatprep.subr.mxu0 0.0
    %3867 = vmatpush2.msra.mxu0 0.0
    %3868 = vmatprep.subr.mxu0 0.0
    %3869 = vmatpush2.msra.mxu0 0.0
    %3870 = vmatprep.subr.mxu0 0.0
    %3871 = vmatpush2.msra.mxu0 0.0
    %3872 = vmatprep.subr.mxu0 0.0
    %3873 = vmatpush2.msra.mxu0 0.0
    %3874 = vmatprep.mubr.f32.mxu0 0.0
    %3875 = vmatmul.mubr.f32.gmra.mxu0 %v3769
    %v3876 = vpop.f32.mrf.mxu0
    %v3877 = vadd.f32 0.0, %v3876
    %v3878 = vpop.f32.mrf.mxu0
    %v3879 = vadd.f32 0.0, %v3878
    %3880 = vmatprep.mubr.f32.mxu0 0.0
    %3881 = vmatmul.mubr.f32.gmra.mxu0 %v3772
    %v3882 = vpop.f32.mrf.mxu0
    %v3883 = vadd.f32 0.0, %v3882
    %v3884 = vpop.f32.mrf.mxu0
    %v3885 = vadd.f32 0.0, %v3884
    %3886 = vmatprep.mubr.f32.mxu0 0.0
    %3887 = vmatmul.mubr.f32.gmra.mxu0 %v3775
    %v3888 = vpop.f32.mrf.mxu0
    %v3889 = vadd.f32 0.0, %v3888
    %v3890 = vpop.f32.mrf.mxu0
    %v3891 = vadd.f32 0.0, %v3890
    %3892 = vmatprep.mubr.f32.mxu0 0.0
    %3893 = vmatmul.mubr.f32.gmra.mxu0 %v3778
    %v3894 = vpop.f32.mrf.mxu0
    %v3895 = vadd.f32 0.0, %v3894
    %v3896 = vpop.f32.mrf.mxu0
    %v3897 = vadd.f32 0.0, %v3896
    %3898 = vmatprep.mubr.f32.mxu0 0.0
    %3899 = vmatmul.mubr.f32.gmra.mxu0 %v3781
    %v3900 = vpop.f32.mrf.mxu0
    %v3901 = vadd.f32 0.0, %v3900
    %v3902 = vpop.f32.mrf.mxu0
    %v3903 = vadd.f32 0.0, %v3902
    %3904 = vmatprep.mubr.f32.mxu0 0.0
    %3905 = vmatmul.mubr.f32.gmra.mxu0 %v3784
    %v3906 = vpop.f32.mrf.mxu0
    %v3907 = vadd.f32 0.0, %v3906
    %v3908 = vpop.f32.mrf.mxu0
    %v3909 = vadd.f32 0.0, %v3908
    %3910 = vmatprep.mubr.f32.mxu0 0.0
    %3911 = vmatmul.mubr.f32.gmra.mxu0 %v3787
    %v3912 = vpop.f32.mrf.mxu0
    %v3913 = vadd.f32 0.0, %v3912
    %v3914 = vpop.f32.mrf.mxu0
    %v3915 = vadd.f32 0.0, %v3914
    %3916 = vmatprep.mubr.f32.mxu0 0.0
    %3917 = vmatmul.mubr.f32.gmra.mxu0 %v3790
    %v3918 = vpop.f32.mrf.mxu0
    %v3919 = vadd.f32 0.0, %v3918
    %v3920 = vpop.f32.mrf.mxu0
    %v3921 = vadd.f32 0.0, %v3920
    %3922 = vmatprep.mubr.f32.mxu0 0.0
    %3923 = vmatmul.mubr.f32.gmra.mxu0 %v3793
    %v3924 = vpop.f32.mrf.mxu0
    %v3925 = vadd.f32 0.0, %v3924
    %v3926 = vpop.f32.mrf.mxu0
    %v3927 = vadd.f32 0.0, %v3926
    %3928 = vmatprep.mubr.f32.mxu0 0.0
    %3929 = vmatmul.mubr.f32.gmra.mxu0 %v3796
    %v3930 = vpop.f32.mrf.mxu0
    %v3931 = vadd.f32 0.0, %v3930
    %v3932 = vpop.f32.mrf.mxu0
    %v3933 = vadd.f32 0.0, %v3932
    %3934 = vmatprep.mubr.f32.mxu0 0.0
    %3935 = vmatmul.mubr.f32.gmra.mxu0 %v3799
    %v3936 = vpop.f32.mrf.mxu0
    %v3937 = vadd.f32 0.0, %v3936
    %v3938 = vpop.f32.mrf.mxu0
    %v3939 = vadd.f32 0.0, %v3938
    %3940 = vmatprep.mubr.f32.mxu0 0.0
    %3941 = vmatmul.mubr.f32.gmra.mxu0 %v3802
    %v3942 = vpop.f32.mrf.mxu0
    %v3943 = vadd.f32 0.0, %v3942
    %v3944 = vpop.f32.mrf.mxu0
    %v3945 = vadd.f32 0.0, %v3944
    %3946 = vmatprep.mubr.f32.mxu0 0.0
    %3947 = vmatmul.mubr.f32.gmra.mxu0 %v3805
    %v3948 = vpop.f32.mrf.mxu0
    %v3949 = vadd.f32 0.0, %v3948
    %v3950 = vpop.f32.mrf.mxu0
    %v3951 = vadd.f32 0.0, %v3950
    %3952 = vmatprep.mubr.f32.mxu0 0.0
    %3953 = vmatmul.mubr.f32.gmra.mxu0 %v3808
    %v3954 = vpop.f32.mrf.mxu0
    %v3955 = vadd.f32 0.0, %v3954
    %v3956 = vpop.f32.mrf.mxu0
    %v3957 = vadd.f32 0.0, %v3956
    %3958 = vdwg.mxu0
    %3959 = vmatprep.subr.mxu0 0.0
    %3960 = vmatpush1.msra.mxu0 0.0
    %3961 = vmatprep.subr.mxu0 0.0
    %3962 = vmatpush1.msra.mxu0 0.0
    %3963 = vmatprep.subr.mxu0 %v3284
    %3964 = vmatpush1.msra.mxu0 %v3282
    %3965 = vmatprep.subr.mxu0 %v3278
    %3966 = vmatpush1.msra.mxu0 %v3276
    %3967 = vmatprep.subr.mxu0 %v3272
    %3968 = vmatpush1.msra.mxu0 %v3270
    %3969 = vmatprep.subr.mxu0 %v3266
    %3970 = vmatpush1.msra.mxu0 %v3264
    %3971 = vmatprep.subr.mxu0 %v3260
    %3972 = vmatpush1.msra.mxu0 %v3258
    %3973 = vmatprep.subr.mxu0 %v3254
    %3974 = vmatpush1.msra.mxu0 %v3252
    %3975 = vmatprep.subr.mxu0 %v3248
    %3976 = vmatpush1.msra.mxu0 %v3246
    %3977 = vmatprep.subr.mxu0 %v3242
    %3978 = vmatpush1.msra.mxu0 %v3240
    %3979 = vmatprep.subr.mxu0 %v3236
    %3980 = vmatpush1.msra.mxu0 %v3234
    %3981 = vmatprep.subr.mxu0 %v3230
    %3982 = vmatpush1.msra.mxu0 %v3228
    %3983 = vmatprep.subr.mxu0 %v3224
    %3984 = vmatpush1.msra.mxu0 %v3222
    %3985 = vmatprep.subr.mxu0 %v3218
    %3986 = vmatpush1.msra.mxu0 %v3216
    %3987 = vmatprep.subr.mxu0 %v3212
    %3988 = vmatpush1.msra.mxu0 %v3210
    %3989 = vmatprep.subr.mxu0 %v3206
    %3990 = vmatpush1.msra.mxu0 %v3204
    %3991 = vmatprep.subr.mxu0 0.0
    %3992 = vmatpush2.msra.mxu0 0.0
    %3993 = vmatprep.subr.mxu0 0.0
    %3994 = vmatpush2.msra.mxu0 0.0
    %3995 = vmatprep.subr.mxu0 0.0
    %3996 = vmatpush2.msra.mxu0 0.0
    %3997 = vmatprep.subr.mxu0 0.0
    %3998 = vmatpush2.msra.mxu0 0.0
    %3999 = vmatprep.subr.mxu0 0.0
    %4000 = vmatpush2.msra.mxu0 0.0
    %4001 = vmatprep.subr.mxu0 0.0
    %4002 = vmatpush2.msra.mxu0 0.0
    %4003 = vmatprep.subr.mxu0 0.0
    %4004 = vmatpush2.msra.mxu0 0.0
    %4005 = vmatprep.subr.mxu0 0.0
    %4006 = vmatpush2.msra.mxu0 0.0
    %4007 = vmatprep.subr.mxu0 0.0
    %4008 = vmatpush2.msra.mxu0 0.0
    %4009 = vmatprep.subr.mxu0 0.0
    %4010 = vmatpush2.msra.mxu0 0.0
    %4011 = vmatprep.subr.mxu0 0.0
    %4012 = vmatpush2.msra.mxu0 0.0
    %4013 = vmatprep.subr.mxu0 0.0
    %4014 = vmatpush2.msra.mxu0 0.0
    %4015 = vmatprep.subr.mxu0 0.0
    %4016 = vmatpush2.msra.mxu0 0.0
    %4017 = vmatprep.subr.mxu0 0.0
    %4018 = vmatpush2.msra.mxu0 0.0
    %4019 = vmatprep.subr.mxu0 0.0
    %4020 = vmatpush2.msra.mxu0 0.0
    %4021 = vmatprep.subr.mxu0 0.0
    %4022 = vmatpush2.msra.mxu0 0.0
    %4023 = vmatprep.mubr.f32.mxu0 0.0
    %4024 = vmatmul.mubr.f32.gmra.mxu0 %v3769
    %v4025 = vpop.f32.mrf.mxu0
    %v4026 = vadd.f32 0.0, %v4025
    %v4027 = vpop.f32.mrf.mxu0
    %v4028 = vadd.f32 0.0, %v4027
    %4029 = vmatprep.mubr.f32.mxu0 0.0
    %4030 = vmatmul.mubr.f32.gmra.mxu0 %v3772
    %v4031 = vpop.f32.mrf.mxu0
    %v4032 = vadd.f32 0.0, %v4031
    %v4033 = vpop.f32.mrf.mxu0
    %v4034 = vadd.f32 0.0, %v4033
    %4035 = vmatprep.mubr.f32.mxu0 0.0
    %4036 = vmatmul.mubr.f32.gmra.mxu0 %v3775
    %v4037 = vpop.f32.mrf.mxu0
    %v4038 = vadd.f32 0.0, %v4037
    %v4039 = vpop.f32.mrf.mxu0
    %v4040 = vadd.f32 0.0, %v4039
    %4041 = vmatprep.mubr.f32.mxu0 0.0
    %4042 = vmatmul.mubr.f32.gmra.mxu0 %v3778
    %v4043 = vpop.f32.mrf.mxu0
    %v4044 = vadd.f32 0.0, %v4043
    %v4045 = vpop.f32.mrf.mxu0
    %v4046 = vadd.f32 0.0, %v4045
    %4047 = vmatprep.mubr.f32.mxu0 0.0
    %4048 = vmatmul.mubr.f32.gmra.mxu0 %v3781
    %v4049 = vpop.f32.mrf.mxu0
    %v4050 = vadd.f32 0.0, %v4049
    %v4051 = vpop.f32.mrf.mxu0
    %v4052 = vadd.f32 0.0, %v4051
    %4053 = vmatprep.mubr.f32.mxu0 0.0
    %4054 = vmatmul.mubr.f32.gmra.mxu0 %v3784
    %v4055 = vpop.f32.mrf.mxu0
    %v4056 = vadd.f32 0.0, %v4055
    %v4057 = vpop.f32.mrf.mxu0
    %v4058 = vadd.f32 0.0, %v4057
    %4059 = vmatprep.mubr.f32.mxu0 0.0
    %4060 = vmatmul.mubr.f32.gmra.mxu0 %v3787
    %v4061 = vpop.f32.mrf.mxu0
    %v4062 = vadd.f32 0.0, %v4061
    %v4063 = vpop.f32.mrf.mxu0
    %v4064 = vadd.f32 0.0, %v4063
    %4065 = vmatprep.mubr.f32.mxu0 0.0
    %4066 = vmatmul.mubr.f32.gmra.mxu0 %v3790
    %v4067 = vpop.f32.mrf.mxu0
    %v4068 = vadd.f32 0.0, %v4067
    %v4069 = vpop.f32.mrf.mxu0
    %v4070 = vadd.f32 0.0, %v4069
    %4071 = vmatprep.mubr.f32.mxu0 0.0
    %4072 = vmatmul.mubr.f32.gmra.mxu0 %v3793
    %v4073 = vpop.f32.mrf.mxu0
    %v4074 = vadd.f32 0.0, %v4073
    %v4075 = vpop.f32.mrf.mxu0
    %v4076 = vadd.f32 0.0, %v4075
    %4077 = vmatprep.mubr.f32.mxu0 0.0
    %4078 = vmatmul.mubr.f32.gmra.mxu0 %v3796
    %v4079 = vpop.f32.mrf.mxu0
    %v4080 = vadd.f32 0.0, %v4079
    %v4081 = vpop.f32.mrf.mxu0
    %v4082 = vadd.f32 0.0, %v4081
    %4083 = vmatprep.mubr.f32.mxu0 0.0
    %4084 = vmatmul.mubr.f32.gmra.mxu0 %v3799
    %v4085 = vpop.f32.mrf.mxu0
    %v4086 = vadd.f32 0.0, %v4085
    %v4087 = vpop.f32.mrf.mxu0
    %v4088 = vadd.f32 0.0, %v4087
    %4089 = vmatprep.mubr.f32.mxu0 0.0
    %4090 = vmatmul.mubr.f32.gmra.mxu0 %v3802
    %v4091 = vpop.f32.mrf.mxu0
    %v4092 = vadd.f32 0.0, %v4091
    %v4093 = vpop.f32.mrf.mxu0
    %v4094 = vadd.f32 0.0, %v4093
    %4095 = vmatprep.mubr.f32.mxu0 0.0
    %4096 = vmatmul.mubr.f32.gmra.mxu0 %v3805
    %v4097 = vpop.f32.mrf.mxu0
    %v4098 = vadd.f32 0.0, %v4097
    %v4099 = vpop.f32.mrf.mxu0
    %v4100 = vadd.f32 0.0, %v4099
    %4101 = vmatprep.mubr.f32.mxu0 0.0
    %4102 = vmatmul.mubr.f32.gmra.mxu0 %v3808
    %v4103 = vpop.f32.mrf.mxu0
    %v4104 = vadd.f32 0.0, %v4103
    %v4105 = vpop.f32.mrf.mxu0
    %v4106 = vadd.f32 0.0, %v4105
    %4107 = vdwg.mxu0
    %s4108 = scalar_lea.vmem %s9, 896
    %v4109 = vld [vmem:[%s4108] sm:$0xff]
    %v4110 = vld [vmem:[%s4108 + $0x8] sm:$0xff]
    %v4111 = vld [vmem:[%s4108 + $0x10] sm:$0xff]
    %v4112 = vld [vmem:[%s4108 + $0x18] sm:$0xff]
    %v4113 = vld [vmem:[%s4108 + $0x20] sm:$0xff]
    %v4114 = vld [vmem:[%s4108 + $0x28] sm:$0xff]
    %v4115 = vld [vmem:[%s4108 + $0x30] sm:$0xff]
    %v4116 = vld [vmem:[%s4108 + $0x38] sm:$0xff]
    %v4117 = vld [vmem:[%s4108 + $0x40] sm:$0xff]
    %v4118 = vld [vmem:[%s4108 + $0x48] sm:$0xff]
    %v4119 = vld [vmem:[%s4108 + $0x50] sm:$0xff]
    %v4120 = vld [vmem:[%s4108 + $0x58] sm:$0xff]
    %v4121 = vld [vmem:[%s4108 + $0x60] sm:$0xff]
    %v4122 = vld [vmem:[%s4108 + $0x68] sm:$0xff]
    %v4123 = vld [vmem:[%s4108 + $0x70] sm:$0xff]
    %v4124 = vld [vmem:[%s4108 + $0x78] sm:$0xff]
    %v4125 = vld [vmem:[%s4108 + $0x80] sm:$0xff]
    %v4126 = vld [vmem:[%s4108 + $0x88] sm:$0xff]
    %v4127 = vld [vmem:[%s4108 + $0x90] sm:$0xff]
    %v4128 = vld [vmem:[%s4108 + $0x98] sm:$0xff]
    %v4129 = vld [vmem:[%s4108 + $0xa0] sm:$0xff]
    %v4130 = vld [vmem:[%s4108 + $0xa8] sm:$0xff]
    %v4131 = vld [vmem:[%s4108 + $0xb0] sm:$0xff]
    %v4132 = vld [vmem:[%s4108 + $0xb8] sm:$0xff]
    %v4133 = vld [vmem:[%s4108 + $0xc0] sm:$0xff]
    %v4134 = vld [vmem:[%s4108 + $0xc8] sm:$0xff]
    %v4135 = vld [vmem:[%s4108 + $0xd0] sm:$0xff]
    %v4136 = vld [vmem:[%s4108 + $0xd8] sm:$0xff]
    %v4137 = vld [vmem:[%s4108 + $0xe0] sm:$0xff]
    %v4138 = vld [vmem:[%s4108 + $0xe8] sm:$0xff]
    %v4139 = vld [vmem:[%s4108 + $0xf0] sm:$0xff]
    %v4140 = vld [vmem:[%s4108 + $0xf8] sm:$0xff]
    %v4141 = vld [vmem:[%s4108 + $0x100] sm:$0xff]
    %v4142 = vld [vmem:[%s4108 + $0x108] sm:$0xff]
    %v4143 = vld [vmem:[%s4108 + $0x110] sm:$0xff]
    %v4144 = vld [vmem:[%s4108 + $0x118] sm:$0xff]
    %v4145 = vld [vmem:[%s4108 + $0x120] sm:$0xff]
    %v4146 = vld [vmem:[%s4108 + $0x128] sm:$0xff]
    %v4147 = vld [vmem:[%s4108 + $0x130] sm:$0xff]
    %v4148 = vld [vmem:[%s4108 + $0x138] sm:$0xff]
    %v4149 = vld [vmem:[%s4108 + $0x140] sm:$0xff]
    %v4150 = vld [vmem:[%s4108 + $0x148] sm:$0xff]
    %v4151 = vld [vmem:[%s4108 + $0x150] sm:$0xff]
    %v4152 = vld [vmem:[%s4108 + $0x158] sm:$0xff]
    %v4153 = vld [vmem:[%s4108 + $0x160] sm:$0xff]
    %v4154 = vld [vmem:[%s4108 + $0x168] sm:$0xff]
    %v4155 = vld [vmem:[%s4108 + $0x170] sm:$0xff]
    %v4156 = vld [vmem:[%s4108 + $0x178] sm:$0xff]
    %v4157 = vld [vmem:[%s4108 + $0x180] sm:$0xff]
    %v4158 = vld [vmem:[%s4108 + $0x188] sm:$0xff]
    %v4159 = vld [vmem:[%s4108 + $0x190] sm:$0xff]
    %v4160 = vld [vmem:[%s4108 + $0x198] sm:$0xff]
    %v4161 = vld [vmem:[%s4108 + $0x1a0] sm:$0xff]
    %v4162 = vld [vmem:[%s4108 + $0x1a8] sm:$0xff]
    %v4163 = vld [vmem:[%s4108 + $0x1b0] sm:$0xff]
    %v4164 = vld [vmem:[%s4108 + $0x1b8] sm:$0xff]
    %v4165 = vld [vmem:[%s4108 + $0x1c0] sm:$0xff]
    %v4166 = vld [vmem:[%s4108 + $0x1c8] sm:$0xff]
    %v4167 = vld [vmem:[%s4108 + $0x1d0] sm:$0xff]
    %v4168 = vld [vmem:[%s4108 + $0x1d8] sm:$0xff]
    %v4169 = vld [vmem:[%s4108 + $0x1e0] sm:$0xff]
    %v4170 = vld [vmem:[%s4108 + $0x1e8] sm:$0xff]
    %v4171 = vld [vmem:[%s4108 + $0x1f0] sm:$0xff]
    %v4172 = vld [vmem:[%s4108 + $0x1f8] sm:$0xff]
    %v4173 = vld [vmem:[%s4108 + $0x200] sm:$0xff]
    %v4174 = vld [vmem:[%s4108 + $0x208] sm:$0xff]
    %v4175 = vld [vmem:[%s4108 + $0x210] sm:$0xff]
    %v4176 = vld [vmem:[%s4108 + $0x218] sm:$0xff]
    %v4177 = vld [vmem:[%s4108 + $0x220] sm:$0xff]
    %v4178 = vld [vmem:[%s4108 + $0x228] sm:$0xff]
    %v4179 = vld [vmem:[%s4108 + $0x230] sm:$0xff]
    %v4180 = vld [vmem:[%s4108 + $0x238] sm:$0xff]
    %v4181 = vld [vmem:[%s4108 + $0x240] sm:$0xff]
    %v4182 = vld [vmem:[%s4108 + $0x248] sm:$0xff]
    %v4183 = vld [vmem:[%s4108 + $0x250] sm:$0xff]
    %v4184 = vld [vmem:[%s4108 + $0x258] sm:$0xff]
    %v4185 = vld [vmem:[%s4108 + $0x260] sm:$0xff]
    %v4186 = vld [vmem:[%s4108 + $0x268] sm:$0xff]
    %v4187 = vld [vmem:[%s4108 + $0x270] sm:$0xff]
    %v4188 = vld [vmem:[%s4108 + $0x278] sm:$0xff]
    %v4189 = vld [vmem:[%s4108 + $0x280] sm:$0xff]
    %v4190 = vld [vmem:[%s4108 + $0x288] sm:$0xff]
    %v4191 = vld [vmem:[%s4108 + $0x290] sm:$0xff]
    %v4192 = vld [vmem:[%s4108 + $0x298] sm:$0xff]
    %v4193 = vld [vmem:[%s4108 + $0x2a0] sm:$0xff]
    %v4194 = vld [vmem:[%s4108 + $0x2a8] sm:$0xff]
    %v4195 = vld [vmem:[%s4108 + $0x2b0] sm:$0xff]
    %v4196 = vld [vmem:[%s4108 + $0x2b8] sm:$0xff]
    %v4197 = vld [vmem:[%s4108 + $0x2c0] sm:$0xff]
    %v4198 = vld [vmem:[%s4108 + $0x2c8] sm:$0xff]
    %v4199 = vld [vmem:[%s4108 + $0x2d0] sm:$0xff]
    %v4200 = vld [vmem:[%s4108 + $0x2d8] sm:$0xff]
    %v4201 = vld [vmem:[%s4108 + $0x2e0] sm:$0xff]
    %v4202 = vld [vmem:[%s4108 + $0x2e8] sm:$0xff]
    %v4203 = vld [vmem:[%s4108 + $0x2f0] sm:$0xff]
    %v4204 = vld [vmem:[%s4108 + $0x2f8] sm:$0xff]
    %v4205 = vld [vmem:[%s4108 + $0x300] sm:$0xff]
    %v4206 = vld [vmem:[%s4108 + $0x308] sm:$0xff]
    %v4207 = vld [vmem:[%s4108 + $0x310] sm:$0xff]
    %v4208 = vld [vmem:[%s4108 + $0x318] sm:$0xff]
    %v4209 = vld [vmem:[%s4108 + $0x320] sm:$0xff]
    %v4210 = vld [vmem:[%s4108 + $0x328] sm:$0xff]
    %v4211 = vld [vmem:[%s4108 + $0x330] sm:$0xff]
    %v4212 = vld [vmem:[%s4108 + $0x338] sm:$0xff]
    %v4213 = vld [vmem:[%s4108 + $0x340] sm:$0xff]
    %v4214 = vld [vmem:[%s4108 + $0x348] sm:$0xff]
    %v4215 = vld [vmem:[%s4108 + $0x350] sm:$0xff]
    %v4216 = vld [vmem:[%s4108 + $0x358] sm:$0xff]
    %v4217 = vld [vmem:[%s4108 + $0x360] sm:$0xff]
    %v4218 = vld [vmem:[%s4108 + $0x368] sm:$0xff]
    %v4219 = vld [vmem:[%s4108 + $0x370] sm:$0xff]
    %v4220 = vld [vmem:[%s4108 + $0x378] sm:$0xff]
    %v4222 = vsel %vm787, %v4028, 0
    %v4225 = vsel %vm787, %v4034, 0
    %v4228 = vsel %vm787, %v4040, 0
    %v4231 = vsel %vm787, %v4046, 0
    %v4234 = vsel %vm787, %v4052, 0
    %v4237 = vsel %vm787, %v4058, 0
    %v4240 = vsel %vm787, %v4064, 0
    %v4243 = vsel %vm787, %v4070, 0
    %v4246 = vsel %vm787, %v4076, 0
    %v4249 = vsel %vm787, %v4082, 0
    %v4252 = vsel %vm787, %v4088, 0
    %v4255 = vsel %vm787, %v4094, 0
    %v4258 = vsel %vm787, %v4100, 0
    %v4261 = vsel %vm787, %v4106, 0
    %4263 = vmatprep.subr.mxu0 %v4140
    %4264 = vmatpush1.msra.mxu0 %v4139
    %4265 = vmatprep.subr.mxu0 %v4138
    %4266 = vmatpush1.msra.mxu0 %v4137
    %4267 = vmatprep.subr.mxu0 %v4136
    %4268 = vmatpush1.msra.mxu0 %v4135
    %4269 = vmatprep.subr.mxu0 %v4134
    %4270 = vmatpush1.msra.mxu0 %v4133
    %4271 = vmatprep.subr.mxu0 %v4132
    %4272 = vmatpush1.msra.mxu0 %v4131
    %4273 = vmatprep.subr.mxu0 %v4130
    %4274 = vmatpush1.msra.mxu0 %v4129
    %4275 = vmatprep.subr.mxu0 %v4128
    %4276 = vmatpush1.msra.mxu0 %v4127
    %4277 = vmatprep.subr.mxu0 %v4126
    %4278 = vmatpush1.msra.mxu0 %v4125
    %4279 = vmatprep.subr.mxu0 %v4124
    %4280 = vmatpush1.msra.mxu0 %v4123
    %4281 = vmatprep.subr.mxu0 %v4122
    %4282 = vmatpush1.msra.mxu0 %v4121
    %4283 = vmatprep.subr.mxu0 %v4120
    %4284 = vmatpush1.msra.mxu0 %v4119
    %4285 = vmatprep.subr.mxu0 %v4118
    %4286 = vmatpush1.msra.mxu0 %v4117
    %4287 = vmatprep.subr.mxu0 %v4116
    %4288 = vmatpush1.msra.mxu0 %v4115
    %4289 = vmatprep.subr.mxu0 %v4114
    %4290 = vmatpush1.msra.mxu0 %v4113
    %4291 = vmatprep.subr.mxu0 %v4112
    %4292 = vmatpush1.msra.mxu0 %v4111
    %4293 = vmatprep.subr.mxu0 %v4110
    %4294 = vmatpush1.msra.mxu0 %v4109
    %4295 = vmatprep.subr.mxu0 %v4172
    %4296 = vmatpush2.msra.mxu0 %v4171
    %4297 = vmatprep.subr.mxu0 %v4170
    %4298 = vmatpush2.msra.mxu0 %v4169
    %4299 = vmatprep.subr.mxu0 %v4168
    %4300 = vmatpush2.msra.mxu0 %v4167
    %4301 = vmatprep.subr.mxu0 %v4166
    %4302 = vmatpush2.msra.mxu0 %v4165
    %4303 = vmatprep.subr.mxu0 %v4164
    %4304 = vmatpush2.msra.mxu0 %v4163
    %4305 = vmatprep.subr.mxu0 %v4162
    %4306 = vmatpush2.msra.mxu0 %v4161
    %4307 = vmatprep.subr.mxu0 %v4160
    %4308 = vmatpush2.msra.mxu0 %v4159
    %4309 = vmatprep.subr.mxu0 %v4158
    %4310 = vmatpush2.msra.mxu0 %v4157
    %4311 = vmatprep.subr.mxu0 %v4156
    %4312 = vmatpush2.msra.mxu0 %v4155
    %4313 = vmatprep.subr.mxu0 %v4154
    %4314 = vmatpush2.msra.mxu0 %v4153
    %4315 = vmatprep.subr.mxu0 %v4152
    %4316 = vmatpush2.msra.mxu0 %v4151
    %4317 = vmatprep.subr.mxu0 %v4150
    %4318 = vmatpush2.msra.mxu0 %v4149
    %4319 = vmatprep.subr.mxu0 %v4148
    %4320 = vmatpush2.msra.mxu0 %v4147
    %4321 = vmatprep.subr.mxu0 %v4146
    %4322 = vmatpush2.msra.mxu0 %v4145
    %4323 = vmatprep.subr.mxu0 %v4144
    %4324 = vmatpush2.msra.mxu0 %v4143
    %4325 = vmatprep.subr.mxu0 %v4142
    %4326 = vmatpush2.msra.mxu0 %v4141
    %4327 = vmatprep.mubr.f32.mxu0 %v3879
    %4328 = vmatmul.mubr.f32.gmra.mxu0 %v3877
    %v4329 = vpop.f32.mrf.mxu0
    %v4330 = vadd.f32 0.0, %v4329
    %v4331 = vpop.f32.mrf.mxu0
    %v4332 = vadd.f32 0.0, %v4331
    %4333 = vmatprep.mubr.f32.mxu0 %v3885
    %4334 = vmatmul.mubr.f32.gmra.mxu0 %v3883
    %v4335 = vpop.f32.mrf.mxu0
    %v4336 = vadd.f32 0.0, %v4335
    %v4337 = vpop.f32.mrf.mxu0
    %v4338 = vadd.f32 0.0, %v4337
    %4339 = vmatprep.mubr.f32.mxu0 %v3891
    %4340 = vmatmul.mubr.f32.gmra.mxu0 %v3889
    %v4341 = vpop.f32.mrf.mxu0
    %v4342 = vadd.f32 0.0, %v4341
    %v4343 = vpop.f32.mrf.mxu0
    %v4344 = vadd.f32 0.0, %v4343
    %4345 = vmatprep.mubr.f32.mxu0 %v3897
    %4346 = vmatmul.mubr.f32.gmra.mxu0 %v3895
    %v4347 = vpop.f32.mrf.mxu0
    %v4348 = vadd.f32 0.0, %v4347
    %v4349 = vpop.f32.mrf.mxu0
    %v4350 = vadd.f32 0.0, %v4349
    %4351 = vmatprep.mubr.f32.mxu0 %v3903
    %4352 = vmatmul.mubr.f32.gmra.mxu0 %v3901
    %v4353 = vpop.f32.mrf.mxu0
    %v4354 = vadd.f32 0.0, %v4353
    %v4355 = vpop.f32.mrf.mxu0
    %v4356 = vadd.f32 0.0, %v4355
    %4357 = vmatprep.mubr.f32.mxu0 %v3909
    %4358 = vmatmul.mubr.f32.gmra.mxu0 %v3907
    %v4359 = vpop.f32.mrf.mxu0
    %v4360 = vadd.f32 0.0, %v4359
    %v4361 = vpop.f32.mrf.mxu0
    %v4362 = vadd.f32 0.0, %v4361
    %4363 = vmatprep.mubr.f32.mxu0 %v3915
    %4364 = vmatmul.mubr.f32.gmra.mxu0 %v3913
    %v4365 = vpop.f32.mrf.mxu0
    %v4366 = vadd.f32 0.0, %v4365
    %v4367 = vpop.f32.mrf.mxu0
    %v4368 = vadd.f32 0.0, %v4367
    %4369 = vmatprep.mubr.f32.mxu0 %v3921
    %4370 = vmatmul.mubr.f32.gmra.mxu0 %v3919
    %v4371 = vpop.f32.mrf.mxu0
    %v4372 = vadd.f32 0.0, %v4371
    %v4373 = vpop.f32.mrf.mxu0
    %v4374 = vadd.f32 0.0, %v4373
    %4375 = vmatprep.mubr.f32.mxu0 %v3927
    %4376 = vmatmul.mubr.f32.gmra.mxu0 %v3925
    %v4377 = vpop.f32.mrf.mxu0
    %v4378 = vadd.f32 0.0, %v4377
    %v4379 = vpop.f32.mrf.mxu0
    %v4380 = vadd.f32 0.0, %v4379
    %4381 = vmatprep.mubr.f32.mxu0 %v3933
    %4382 = vmatmul.mubr.f32.gmra.mxu0 %v3931
    %v4383 = vpop.f32.mrf.mxu0
    %v4384 = vadd.f32 0.0, %v4383
    %v4385 = vpop.f32.mrf.mxu0
    %v4386 = vadd.f32 0.0, %v4385
    %4387 = vmatprep.mubr.f32.mxu0 %v3939
    %4388 = vmatmul.mubr.f32.gmra.mxu0 %v3937
    %v4389 = vpop.f32.mrf.mxu0
    %v4390 = vadd.f32 0.0, %v4389
    %v4391 = vpop.f32.mrf.mxu0
    %v4392 = vadd.f32 0.0, %v4391
    %4393 = vmatprep.mubr.f32.mxu0 %v3945
    %4394 = vmatmul.mubr.f32.gmra.mxu0 %v3943
    %v4395 = vpop.f32.mrf.mxu0
    %v4396 = vadd.f32 0.0, %v4395
    %v4397 = vpop.f32.mrf.mxu0
    %v4398 = vadd.f32 0.0, %v4397
    %4399 = vmatprep.mubr.f32.mxu0 %v3951
    %4400 = vmatmul.mubr.f32.gmra.mxu0 %v3949
    %v4401 = vpop.f32.mrf.mxu0
    %v4402 = vadd.f32 0.0, %v4401
    %v4403 = vpop.f32.mrf.mxu0
    %v4404 = vadd.f32 0.0, %v4403
    %4405 = vmatprep.mubr.f32.mxu0 %v3957
    %4406 = vmatmul.mubr.f32.gmra.mxu0 %v3955
    %v4407 = vpop.f32.mrf.mxu0
    %v4408 = vadd.f32 0.0, %v4407
    %v4409 = vpop.f32.mrf.mxu0
    %v4410 = vadd.f32 0.0, %v4409
    %4411 = vdwg.mxu0
    %4412 = vmatprep.subr.mxu0 %v4204
    %4413 = vmatpush1.msra.mxu0 %v4203
    %4414 = vmatprep.subr.mxu0 %v4202
    %4415 = vmatpush1.msra.mxu0 %v4201
    %4416 = vmatprep.subr.mxu0 %v4200
    %4417 = vmatpush1.msra.mxu0 %v4199
    %4418 = vmatprep.subr.mxu0 %v4198
    %4419 = vmatpush1.msra.mxu0 %v4197
    %4420 = vmatprep.subr.mxu0 %v4196
    %4421 = vmatpush1.msra.mxu0 %v4195
    %4422 = vmatprep.subr.mxu0 %v4194
    %4423 = vmatpush1.msra.mxu0 %v4193
    %4424 = vmatprep.subr.mxu0 %v4192
    %4425 = vmatpush1.msra.mxu0 %v4191
    %4426 = vmatprep.subr.mxu0 %v4190
    %4427 = vmatpush1.msra.mxu0 %v4189
    %4428 = vmatprep.subr.mxu0 %v4188
    %4429 = vmatpush1.msra.mxu0 %v4187
    %4430 = vmatprep.subr.mxu0 %v4186
    %4431 = vmatpush1.msra.mxu0 %v4185
    %4432 = vmatprep.subr.mxu0 %v4184
    %4433 = vmatpush1.msra.mxu0 %v4183
    %4434 = vmatprep.subr.mxu0 %v4182
    %4435 = vmatpush1.msra.mxu0 %v4181
    %4436 = vmatprep.subr.mxu0 %v4180
    %4437 = vmatpush1.msra.mxu0 %v4179
    %4438 = vmatprep.subr.mxu0 %v4178
    %4439 = vmatpush1.msra.mxu0 %v4177
    %4440 = vmatprep.subr.mxu0 %v4176
    %4441 = vmatpush1.msra.mxu0 %v4175
    %4442 = vmatprep.subr.mxu0 %v4174
    %4443 = vmatpush1.msra.mxu0 %v4173
    %4444 = vmatprep.subr.mxu0 0.0
    %4445 = vmatpush2.msra.mxu0 0.0
    %4446 = vmatprep.subr.mxu0 0.0
    %4447 = vmatpush2.msra.mxu0 0.0
    %4448 = vmatprep.subr.mxu0 0.0
    %4449 = vmatpush2.msra.mxu0 0.0
    %4450 = vmatprep.subr.mxu0 0.0
    %4451 = vmatpush2.msra.mxu0 0.0
    %4452 = vmatprep.subr.mxu0 0.0
    %4453 = vmatpush2.msra.mxu0 0.0
    %4454 = vmatprep.subr.mxu0 0.0
    %4455 = vmatpush2.msra.mxu0 0.0
    %4456 = vmatprep.subr.mxu0 0.0
    %4457 = vmatpush2.msra.mxu0 0.0
    %4458 = vmatprep.subr.mxu0 0.0
    %4459 = vmatpush2.msra.mxu0 0.0
    %4460 = vmatprep.subr.mxu0 %v4220
    %4461 = vmatpush2.msra.mxu0 %v4219
    %4462 = vmatprep.subr.mxu0 %v4218
    %4463 = vmatpush2.msra.mxu0 %v4217
    %4464 = vmatprep.subr.mxu0 %v4216
    %4465 = vmatpush2.msra.mxu0 %v4215
    %4466 = vmatprep.subr.mxu0 %v4214
    %4467 = vmatpush2.msra.mxu0 %v4213
    %4468 = vmatprep.subr.mxu0 %v4212
    %4469 = vmatpush2.msra.mxu0 %v4211
    %4470 = vmatprep.subr.mxu0 %v4210
    %4471 = vmatpush2.msra.mxu0 %v4209
    %4472 = vmatprep.subr.mxu0 %v4208
    %4473 = vmatpush2.msra.mxu0 %v4207
    %4474 = vmatprep.subr.mxu0 %v4206
    %4475 = vmatpush2.msra.mxu0 %v4205
    %4476 = vmatprep.mubr.f32.mxu0 %v4222
    %4477 = vmatmul.mubr.f32.gmra.mxu0 %v4026
    %v4478 = vpop.f32.mrf.mxu0
    %v4479 = vadd.f32 %v4330, %v4478
    %v4480 = vpop.f32.mrf.mxu0
    %v4481 = vadd.f32 %v4332, %v4480
    %4482 = vmatprep.mubr.f32.mxu0 %v4225
    %4483 = vmatmul.mubr.f32.gmra.mxu0 %v4032
    %v4484 = vpop.f32.mrf.mxu0
    %v4485 = vadd.f32 %v4336, %v4484
    %v4486 = vpop.f32.mrf.mxu0
    %v4487 = vadd.f32 %v4338, %v4486
    %4488 = vmatprep.mubr.f32.mxu0 %v4228
    %4489 = vmatmul.mubr.f32.gmra.mxu0 %v4038
    %v4490 = vpop.f32.mrf.mxu0
    %v4491 = vadd.f32 %v4342, %v4490
    %v4492 = vpop.f32.mrf.mxu0
    %v4493 = vadd.f32 %v4344, %v4492
    %4494 = vmatprep.mubr.f32.mxu0 %v4231
    %4495 = vmatmul.mubr.f32.gmra.mxu0 %v4044
    %v4496 = vpop.f32.mrf.mxu0
    %v4497 = vadd.f32 %v4348, %v4496
    %v4498 = vpop.f32.mrf.mxu0
    %v4499 = vadd.f32 %v4350, %v4498
    %4500 = vmatprep.mubr.f32.mxu0 %v4234
    %4501 = vmatmul.mubr.f32.gmra.mxu0 %v4050
    %v4502 = vpop.f32.mrf.mxu0
    %v4503 = vadd.f32 %v4354, %v4502
    %v4504 = vpop.f32.mrf.mxu0
    %v4505 = vadd.f32 %v4356, %v4504
    %4506 = vmatprep.mubr.f32.mxu0 %v4237
    %4507 = vmatmul.mubr.f32.gmra.mxu0 %v4056
    %v4508 = vpop.f32.mrf.mxu0
    %v4509 = vadd.f32 %v4360, %v4508
    %v4510 = vpop.f32.mrf.mxu0
    %v4511 = vadd.f32 %v4362, %v4510
    %4512 = vmatprep.mubr.f32.mxu0 %v4240
    %4513 = vmatmul.mubr.f32.gmra.mxu0 %v4062
    %v4514 = vpop.f32.mrf.mxu0
    %v4515 = vadd.f32 %v4366, %v4514
    %v4516 = vpop.f32.mrf.mxu0
    %v4517 = vadd.f32 %v4368, %v4516
    %4518 = vmatprep.mubr.f32.mxu0 %v4243
    %4519 = vmatmul.mubr.f32.gmra.mxu0 %v4068
    %v4520 = vpop.f32.mrf.mxu0
    %v4521 = vadd.f32 %v4372, %v4520
    %v4522 = vpop.f32.mrf.mxu0
    %v4523 = vadd.f32 %v4374, %v4522
    %4524 = vmatprep.mubr.f32.mxu0 %v4246
    %4525 = vmatmul.mubr.f32.gmra.mxu0 %v4074
    %v4526 = vpop.f32.mrf.mxu0
    %v4527 = vadd.f32 %v4378, %v4526
    %v4528 = vpop.f32.mrf.mxu0
    %v4529 = vadd.f32 %v4380, %v4528
    %4530 = vmatprep.mubr.f32.mxu0 %v4249
    %4531 = vmatmul.mubr.f32.gmra.mxu0 %v4080
    %v4532 = vpop.f32.mrf.mxu0
    %v4533 = vadd.f32 %v4384, %v4532
    %v4534 = vpop.f32.mrf.mxu0
    %v4535 = vadd.f32 %v4386, %v4534
    %4536 = vmatprep.mubr.f32.mxu0 %v4252
    %4537 = vmatmul.mubr.f32.gmra.mxu0 %v4086
    %v4538 = vpop.f32.mrf.mxu0
    %v4539 = vadd.f32 %v4390, %v4538
    %v4540 = vpop.f32.mrf.mxu0
    %v4541 = vadd.f32 %v4392, %v4540
    %4542 = vmatprep.mubr.f32.mxu0 %v4255
    %4543 = vmatmul.mubr.f32.gmra.mxu0 %v4092
    %v4544 = vpop.f32.mrf.mxu0
    %v4545 = vadd.f32 %v4396, %v4544
    %v4546 = vpop.f32.mrf.mxu0
    %v4547 = vadd.f32 %v4398, %v4546
    %4548 = vmatprep.mubr.f32.mxu0 %v4258
    %4549 = vmatmul.mubr.f32.gmra.mxu0 %v4098
    %v4550 = vpop.f32.mrf.mxu0
    %v4551 = vadd.f32 %v4402, %v4550
    %v4552 = vpop.f32.mrf.mxu0
    %v4553 = vadd.f32 %v4404, %v4552
    %4554 = vmatprep.mubr.f32.mxu0 %v4261
    %4555 = vmatmul.mubr.f32.gmra.mxu0 %v4104
    %v4556 = vpop.f32.mrf.mxu0
    %v4557 = vadd.f32 %v4408, %v4556
    %v4558 = vpop.f32.mrf.mxu0
    %v4559 = vadd.f32 %v4410, %v4558
    %4560 = vdwg.mxu0
    %v4562 = vsel %vm787, %v3561, 0
    %v4565 = vsel %vm787, %v3567, 0
    %v4568 = vsel %vm787, %v3573, 0
    %v4571 = vsel %vm787, %v3579, 0
    %v4574 = vsel %vm787, %v3585, 0
    %v4577 = vsel %vm787, %v3591, 0
    %v4580 = vsel %vm787, %v3597, 0
    %v4583 = vsel %vm787, %v3603, 0
    %v4586 = vsel %vm787, %v3609, 0
    %v4589 = vsel %vm787, %v3615, 0
    %v4592 = vsel %vm787, %v3621, 0
    %v4595 = vsel %vm787, %v3627, 0
    %v4598 = vsel %vm787, %v3633, 0
    %v4601 = vsel %vm787, %v3639, 0
    %4603 = vmatprep.subr.mxu0 %v3672
    %4604 = vmatpush1.msra.mxu0 %v3671
    %4605 = vmatprep.subr.mxu0 %v3670
    %4606 = vmatpush1.msra.mxu0 %v3669
    %4607 = vmatprep.subr.mxu0 %v3668
    %4608 = vmatpush1.msra.mxu0 %v3667
    %4609 = vmatprep.subr.mxu0 %v3666
    %4610 = vmatpush1.msra.mxu0 %v3665
    %4611 = vmatprep.subr.mxu0 %v3664
    %4612 = vmatpush1.msra.mxu0 %v3663
    %4613 = vmatprep.subr.mxu0 %v3662
    %4614 = vmatpush1.msra.mxu0 %v3661
    %4615 = vmatprep.subr.mxu0 %v3660
    %4616 = vmatpush1.msra.mxu0 %v3659
    %4617 = vmatprep.subr.mxu0 %v3658
    %4618 = vmatpush1.msra.mxu0 %v3657
    %4619 = vmatprep.subr.mxu0 %v3656
    %4620 = vmatpush1.msra.mxu0 %v3655
    %4621 = vmatprep.subr.mxu0 %v3654
    %4622 = vmatpush1.msra.mxu0 %v3653
    %4623 = vmatprep.subr.mxu0 %v3652
    %4624 = vmatpush1.msra.mxu0 %v3651
    %4625 = vmatprep.subr.mxu0 %v3650
    %4626 = vmatpush1.msra.mxu0 %v3649
    %4627 = vmatprep.subr.mxu0 %v3648
    %4628 = vmatpush1.msra.mxu0 %v3647
    %4629 = vmatprep.subr.mxu0 %v3646
    %4630 = vmatpush1.msra.mxu0 %v3645
    %4631 = vmatprep.subr.mxu0 %v3644
    %4632 = vmatpush1.msra.mxu0 %v3643
    %4633 = vmatprep.subr.mxu0 %v3642
    %4634 = vmatpush1.msra.mxu0 %v3641
    %4635 = vmatprep.subr.mxu0 %v3704
    %4636 = vmatpush2.msra.mxu0 %v3703
    %4637 = vmatprep.subr.mxu0 %v3702
    %4638 = vmatpush2.msra.mxu0 %v3701
    %4639 = vmatprep.subr.mxu0 %v3700
    %4640 = vmatpush2.msra.mxu0 %v3699
    %4641 = vmatprep.subr.mxu0 %v3698
    %4642 = vmatpush2.msra.mxu0 %v3697
    %4643 = vmatprep.subr.mxu0 %v3696
    %4644 = vmatpush2.msra.mxu0 %v3695
    %4645 = vmatprep.subr.mxu0 %v3694
    %4646 = vmatpush2.msra.mxu0 %v3693
    %4647 = vmatprep.subr.mxu0 %v3692
    %4648 = vmatpush2.msra.mxu0 %v3691
    %4649 = vmatprep.subr.mxu0 %v3690
    %4650 = vmatpush2.msra.mxu0 %v3689
    %4651 = vmatprep.subr.mxu0 %v3688
    %4652 = vmatpush2.msra.mxu0 %v3687
    %4653 = vmatprep.subr.mxu0 %v3686
    %4654 = vmatpush2.msra.mxu0 %v3685
    %4655 = vmatprep.subr.mxu0 %v3684
    %4656 = vmatpush2.msra.mxu0 %v3683
    %4657 = vmatprep.subr.mxu0 %v3682
    %4658 = vmatpush2.msra.mxu0 %v3681
    %4659 = vmatprep.subr.mxu0 %v3680
    %4660 = vmatpush2.msra.mxu0 %v3679
    %4661 = vmatprep.subr.mxu0 %v3678
    %4662 = vmatpush2.msra.mxu0 %v3677
    %4663 = vmatprep.subr.mxu0 %v3676
    %4664 = vmatpush2.msra.mxu0 %v3675
    %4665 = vmatprep.subr.mxu0 %v3674
    %4666 = vmatpush2.msra.mxu0 %v3673
    %4667 = vmatprep.mubr.f32.mxu0 %v3412
    %4668 = vmatmul.mubr.f32.gmra.mxu0 %v3410
    %v4669 = vpop.f32.mrf.mxu0
    %v4670 = vadd.f32 %v4479, %v4669
    %v4671 = vpop.f32.mrf.mxu0
    %v4672 = vadd.f32 %v4481, %v4671
    %4673 = vmatprep.mubr.f32.mxu0 %v3418
    %4674 = vmatmul.mubr.f32.gmra.mxu0 %v3416
    %v4675 = vpop.f32.mrf.mxu0
    %v4676 = vadd.f32 %v4485, %v4675
    %v4677 = vpop.f32.mrf.mxu0
    %v4678 = vadd.f32 %v4487, %v4677
    %4679 = vmatprep.mubr.f32.mxu0 %v3424
    %4680 = vmatmul.mubr.f32.gmra.mxu0 %v3422
    %v4681 = vpop.f32.mrf.mxu0
    %v4682 = vadd.f32 %v4491, %v4681
    %v4683 = vpop.f32.mrf.mxu0
    %v4684 = vadd.f32 %v4493, %v4683
    %4685 = vmatprep.mubr.f32.mxu0 %v3430
    %4686 = vmatmul.mubr.f32.gmra.mxu0 %v3428
    %v4687 = vpop.f32.mrf.mxu0
    %v4688 = vadd.f32 %v4497, %v4687
    %v4689 = vpop.f32.mrf.mxu0
    %v4690 = vadd.f32 %v4499, %v4689
    %4691 = vmatprep.mubr.f32.mxu0 %v3436
    %4692 = vmatmul.mubr.f32.gmra.mxu0 %v3434
    %v4693 = vpop.f32.mrf.mxu0
    %v4694 = vadd.f32 %v4503, %v4693
    %v4695 = vpop.f32.mrf.mxu0
    %v4696 = vadd.f32 %v4505, %v4695
    %4697 = vmatprep.mubr.f32.mxu0 %v3442
    %4698 = vmatmul.mubr.f32.gmra.mxu0 %v3440
    %v4699 = vpop.f32.mrf.mxu0
    %v4700 = vadd.f32 %v4509, %v4699
    %v4701 = vpop.f32.mrf.mxu0
    %v4702 = vadd.f32 %v4511, %v4701
    %4703 = vmatprep.mubr.f32.mxu0 %v3448
    %4704 = vmatmul.mubr.f32.gmra.mxu0 %v3446
    %v4705 = vpop.f32.mrf.mxu0
    %v4706 = vadd.f32 %v4515, %v4705
    %v4707 = vpop.f32.mrf.mxu0
    %v4708 = vadd.f32 %v4517, %v4707
    %4709 = vmatprep.mubr.f32.mxu0 %v3454
    %4710 = vmatmul.mubr.f32.gmra.mxu0 %v3452
    %v4711 = vpop.f32.mrf.mxu0
    %v4712 = vadd.f32 %v4521, %v4711
    %v4713 = vpop.f32.mrf.mxu0
    %v4714 = vadd.f32 %v4523, %v4713
    %4715 = vmatprep.mubr.f32.mxu0 %v3460
    %4716 = vmatmul.mubr.f32.gmra.mxu0 %v3458
    %v4717 = vpop.f32.mrf.mxu0
    %v4718 = vadd.f32 %v4527, %v4717
    %v4719 = vpop.f32.mrf.mxu0
    %v4720 = vadd.f32 %v4529, %v4719
    %4721 = vmatprep.mubr.f32.mxu0 %v3466
    %4722 = vmatmul.mubr.f32.gmra.mxu0 %v3464
    %v4723 = vpop.f32.mrf.mxu0
    %v4724 = vadd.f32 %v4533, %v4723
    %v4725 = vpop.f32.mrf.mxu0
    %v4726 = vadd.f32 %v4535, %v4725
    %4727 = vmatprep.mubr.f32.mxu0 %v3472
    %4728 = vmatmul.mubr.f32.gmra.mxu0 %v3470
    %v4729 = vpop.f32.mrf.mxu0
    %v4730 = vadd.f32 %v4539, %v4729
    %v4731 = vpop.f32.mrf.mxu0
    %v4732 = vadd.f32 %v4541, %v4731
    %4733 = vmatprep.mubr.f32.mxu0 %v3478
    %4734 = vmatmul.mubr.f32.gmra.mxu0 %v3476
    %v4735 = vpop.f32.mrf.mxu0
    %v4736 = vadd.f32 %v4545, %v4735
    %v4737 = vpop.f32.mrf.mxu0
    %v4738 = vadd.f32 %v4547, %v4737
    %4739 = vmatprep.mubr.f32.mxu0 %v3484
    %4740 = vmatmul.mubr.f32.gmra.mxu0 %v3482
    %v4741 = vpop.f32.mrf.mxu0
    %v4742 = vadd.f32 %v4551, %v4741
    %v4743 = vpop.f32.mrf.mxu0
    %v4744 = vadd.f32 %v4553, %v4743
    %4745 = vmatprep.mubr.f32.mxu0 %v3490
    %4746 = vmatmul.mubr.f32.gmra.mxu0 %v3488
    %v4747 = vpop.f32.mrf.mxu0
    %v4748 = vadd.f32 %v4557, %v4747
    %v4749 = vpop.f32.mrf.mxu0
    %v4750 = vadd.f32 %v4559, %v4749
    %4751 = vdwg.mxu0
    %4752 = vmatprep.subr.mxu0 %v3736
    %4753 = vmatpush1.msra.mxu0 %v3735
    %4754 = vmatprep.subr.mxu0 %v3734
    %4755 = vmatpush1.msra.mxu0 %v3733
    %4756 = vmatprep.subr.mxu0 %v3732
    %4757 = vmatpush1.msra.mxu0 %v3731
    %4758 = vmatprep.subr.mxu0 %v3730
    %4759 = vmatpush1.msra.mxu0 %v3729
    %4760 = vmatprep.subr.mxu0 %v3728
    %4761 = vmatpush1.msra.mxu0 %v3727
    %4762 = vmatprep.subr.mxu0 %v3726
    %4763 = vmatpush1.msra.mxu0 %v3725
    %4764 = vmatprep.subr.mxu0 %v3724
    %4765 = vmatpush1.msra.mxu0 %v3723
    %4766 = vmatprep.subr.mxu0 %v3722
    %4767 = vmatpush1.msra.mxu0 %v3721
    %4768 = vmatprep.subr.mxu0 %v3720
    %4769 = vmatpush1.msra.mxu0 %v3719
    %4770 = vmatprep.subr.mxu0 %v3718
    %4771 = vmatpush1.msra.mxu0 %v3717
    %4772 = vmatprep.subr.mxu0 %v3716
    %4773 = vmatpush1.msra.mxu0 %v3715
    %4774 = vmatprep.subr.mxu0 %v3714
    %4775 = vmatpush1.msra.mxu0 %v3713
    %4776 = vmatprep.subr.mxu0 %v3712
    %4777 = vmatpush1.msra.mxu0 %v3711
    %4778 = vmatprep.subr.mxu0 %v3710
    %4779 = vmatpush1.msra.mxu0 %v3709
    %4780 = vmatprep.subr.mxu0 %v3708
    %4781 = vmatpush1.msra.mxu0 %v3707
    %4782 = vmatprep.subr.mxu0 %v3706
    %4783 = vmatpush1.msra.mxu0 %v3705
    %4784 = vmatprep.subr.mxu0 0.0
    %4785 = vmatpush2.msra.mxu0 0.0
    %4786 = vmatprep.subr.mxu0 0.0
    %4787 = vmatpush2.msra.mxu0 0.0
    %4788 = vmatprep.subr.mxu0 0.0
    %4789 = vmatpush2.msra.mxu0 0.0
    %4790 = vmatprep.subr.mxu0 0.0
    %4791 = vmatpush2.msra.mxu0 0.0
    %4792 = vmatprep.subr.mxu0 0.0
    %4793 = vmatpush2.msra.mxu0 0.0
    %4794 = vmatprep.subr.mxu0 0.0
    %4795 = vmatpush2.msra.mxu0 0.0
    %4796 = vmatprep.subr.mxu0 0.0
    %4797 = vmatpush2.msra.mxu0 0.0
    %4798 = vmatprep.subr.mxu0 0.0
    %4799 = vmatpush2.msra.mxu0 0.0
    %4800 = vmatprep.subr.mxu0 %v3752
    %4801 = vmatpush2.msra.mxu0 %v3751
    %4802 = vmatprep.subr.mxu0 %v3750
    %4803 = vmatpush2.msra.mxu0 %v3749
    %4804 = vmatprep.subr.mxu0 %v3748
    %4805 = vmatpush2.msra.mxu0 %v3747
    %4806 = vmatprep.subr.mxu0 %v3746
    %4807 = vmatpush2.msra.mxu0 %v3745
    %4808 = vmatprep.subr.mxu0 %v3744
    %4809 = vmatpush2.msra.mxu0 %v3743
    %4810 = vmatprep.subr.mxu0 %v3742
    %4811 = vmatpush2.msra.mxu0 %v3741
    %4812 = vmatprep.subr.mxu0 %v3740
    %4813 = vmatpush2.msra.mxu0 %v3739
    %4814 = vmatprep.subr.mxu0 %v3738
    %4815 = vmatpush2.msra.mxu0 %v3737
    %4816 = vmatprep.mubr.f32.mxu0 %v4562
    %4817 = vmatmul.mubr.f32.gmra.mxu0 %v3559
    %v4818 = vpop.f32.mrf.mxu0
    %v4819 = vadd.f32 %v4670, %v4818
    %v4820 = vpop.f32.mrf.mxu0
    %v4821 = vadd.f32 %v4672, %v4820
    %4822 = vmatprep.mubr.f32.mxu0 %v4565
    %4823 = vmatmul.mubr.f32.gmra.mxu0 %v3565
    %v4824 = vpop.f32.mrf.mxu0
    %v4825 = vadd.f32 %v4676, %v4824
    %v4826 = vpop.f32.mrf.mxu0
    %v4827 = vadd.f32 %v4678, %v4826
    %4828 = vmatprep.mubr.f32.mxu0 %v4568
    %4829 = vmatmul.mubr.f32.gmra.mxu0 %v3571
    %v4830 = vpop.f32.mrf.mxu0
    %v4831 = vadd.f32 %v4682, %v4830
    %v4832 = vpop.f32.mrf.mxu0
    %v4833 = vadd.f32 %v4684, %v4832
    %4834 = vmatprep.mubr.f32.mxu0 %v4571
    %4835 = vmatmul.mubr.f32.gmra.mxu0 %v3577
    %v4836 = vpop.f32.mrf.mxu0
    %v4837 = vadd.f32 %v4688, %v4836
    %v4838 = vpop.f32.mrf.mxu0
    %v4839 = vadd.f32 %v4690, %v4838
    %4840 = vmatprep.mubr.f32.mxu0 %v4574
    %4841 = vmatmul.mubr.f32.gmra.mxu0 %v3583
    %v4842 = vpop.f32.mrf.mxu0
    %v4843 = vadd.f32 %v4694, %v4842
    %v4844 = vpop.f32.mrf.mxu0
    %v4845 = vadd.f32 %v4696, %v4844
    %4846 = vmatprep.mubr.f32.mxu0 %v4577
    %4847 = vmatmul.mubr.f32.gmra.mxu0 %v3589
    %v4848 = vpop.f32.mrf.mxu0
    %v4849 = vadd.f32 %v4700, %v4848
    %v4850 = vpop.f32.mrf.mxu0
    %v4851 = vadd.f32 %v4702, %v4850
    %4852 = vmatprep.mubr.f32.mxu0 %v4580
    %4853 = vmatmul.mubr.f32.gmra.mxu0 %v3595
    %v4854 = vpop.f32.mrf.mxu0
    %v4855 = vadd.f32 %v4706, %v4854
    %v4856 = vpop.f32.mrf.mxu0
    %v4857 = vadd.f32 %v4708, %v4856
    %4858 = vmatprep.mubr.f32.mxu0 %v4583
    %4859 = vmatmul.mubr.f32.gmra.mxu0 %v3601
    %v4860 = vpop.f32.mrf.mxu0
    %v4861 = vadd.f32 %v4712, %v4860
    %v4862 = vpop.f32.mrf.mxu0
    %v4863 = vadd.f32 %v4714, %v4862
    %4864 = vmatprep.mubr.f32.mxu0 %v4586
    %4865 = vmatmul.mubr.f32.gmra.mxu0 %v3607
    %v4866 = vpop.f32.mrf.mxu0
    %v4867 = vadd.f32 %v4718, %v4866
    %v4868 = vpop.f32.mrf.mxu0
    %v4869 = vadd.f32 %v4720, %v4868
    %4870 = vmatprep.mubr.f32.mxu0 %v4589
    %4871 = vmatmul.mubr.f32.gmra.mxu0 %v3613
    %v4872 = vpop.f32.mrf.mxu0
    %v4873 = vadd.f32 %v4724, %v4872
    %v4874 = vpop.f32.mrf.mxu0
    %v4875 = vadd.f32 %v4726, %v4874
    %4876 = vmatprep.mubr.f32.mxu0 %v4592
    %4877 = vmatmul.mubr.f32.gmra.mxu0 %v3619
    %v4878 = vpop.f32.mrf.mxu0
    %v4879 = vadd.f32 %v4730, %v4878
    %v4880 = vpop.f32.mrf.mxu0
    %v4881 = vadd.f32 %v4732, %v4880
    %4882 = vmatprep.mubr.f32.mxu0 %v4595
    %4883 = vmatmul.mubr.f32.gmra.mxu0 %v3625
    %v4884 = vpop.f32.mrf.mxu0
    %v4885 = vadd.f32 %v4736, %v4884
    %v4886 = vpop.f32.mrf.mxu0
    %v4887 = vadd.f32 %v4738, %v4886
    %4888 = vmatprep.mubr.f32.mxu0 %v4598
    %4889 = vmatmul.mubr.f32.gmra.mxu0 %v3631
    %v4890 = vpop.f32.mrf.mxu0
    %v4891 = vadd.f32 %v4742, %v4890
    %v4892 = vpop.f32.mrf.mxu0
    %v4893 = vadd.f32 %v4744, %v4892
    %4894 = vmatprep.mubr.f32.mxu0 %v4601
    %4895 = vmatmul.mubr.f32.gmra.mxu0 %v3637
    %v4896 = vpop.f32.mrf.mxu0
    %v4897 = vadd.f32 %v4748, %v4896
    %v4898 = vpop.f32.mrf.mxu0
    %v4899 = vadd.f32 %v4750, %v4898
    %4900 = vdwg.mxu0
    %s4901 = scalar_lea.vmem %s8, 224
    %v4902 = vld [vmem:[%s4901] sm:$0xff]
    %v4903 = vld [vmem:[%s4901 + $0x8] sm:$0xff]
    %v4904 = vld [vmem:[%s4901 + $0x10] sm:$0xff]
    %v4905 = vld [vmem:[%s4901 + $0x18] sm:$0xff]
    %v4906 = vld [vmem:[%s4901 + $0x20] sm:$0xff]
    %v4907 = vld [vmem:[%s4901 + $0x28] sm:$0xff]
    %v4908 = vld [vmem:[%s4901 + $0x30] sm:$0xff]
    %v4909 = vld [vmem:[%s4901 + $0x38] sm:$0xff]
    %v4910 = vld [vmem:[%s4901 + $0x40] sm:$0xff]
    %v4911 = vld [vmem:[%s4901 + $0x48] sm:$0xff]
    %v4912 = vld [vmem:[%s4901 + $0x50] sm:$0xff]
    %v4913 = vld [vmem:[%s4901 + $0x58] sm:$0xff]
    %v4914 = vld [vmem:[%s4901 + $0x60] sm:$0xff]
    %v4915 = vld [vmem:[%s4901 + $0x68] sm:$0xff]
    %v4917 = vsel %vm3300, %v4902, 0
    %v4920 = vsel %vm3300, %v4903, 0
    %v4923 = vsel %vm3300, %v4904, 0
    %v4926 = vsel %vm3300, %v4905, 0
    %v4929 = vsel %vm3300, %v4906, 0
    %v4932 = vsel %vm3300, %v4907, 0
    %v4935 = vsel %vm3300, %v4908, 0
    %v4938 = vsel %vm3300, %v4909, 0
    %v4941 = vsel %vm3300, %v4910, 0
    %v4944 = vsel %vm3300, %v4911, 0
    %v4947 = vsel %vm3300, %v4912, 0
    %v4950 = vsel %vm3300, %v4913, 0
    %v4953 = vsel %vm3300, %v4914, 0
    %v4956 = vsel %vm3300, %v4915, 0
    %4958 = vmatprep.subr.mxu0 0.0
    %4959 = vmatpush1.msra.mxu0 0.0
    %4960 = vmatprep.subr.mxu0 0.0
    %4961 = vmatpush1.msra.mxu0 0.0
    %4962 = vmatprep.subr.mxu0 %v3135
    %4963 = vmatpush1.msra.mxu0 %v3133
    %4964 = vmatprep.subr.mxu0 %v3129
    %4965 = vmatpush1.msra.mxu0 %v3127
    %4966 = vmatprep.subr.mxu0 %v3123
    %4967 = vmatpush1.msra.mxu0 %v3121
    %4968 = vmatprep.subr.mxu0 %v3117
    %4969 = vmatpush1.msra.mxu0 %v3115
    %4970 = vmatprep.subr.mxu0 %v3111
    %4971 = vmatpush1.msra.mxu0 %v3109
    %4972 = vmatprep.subr.mxu0 %v3105
    %4973 = vmatpush1.msra.mxu0 %v3103
    %4974 = vmatprep.subr.mxu0 %v3099
    %4975 = vmatpush1.msra.mxu0 %v3097
    %4976 = vmatprep.subr.mxu0 %v3093
    %4977 = vmatpush1.msra.mxu0 %v3091
    %4978 = vmatprep.subr.mxu0 %v3087
    %4979 = vmatpush1.msra.mxu0 %v3085
    %4980 = vmatprep.subr.mxu0 %v3081
    %4981 = vmatpush1.msra.mxu0 %v3079
    %4982 = vmatprep.subr.mxu0 %v3075
    %4983 = vmatpush1.msra.mxu0 %v3073
    %4984 = vmatprep.subr.mxu0 %v3069
    %4985 = vmatpush1.msra.mxu0 %v3067
    %4986 = vmatprep.subr.mxu0 %v3063
    %4987 = vmatpush1.msra.mxu0 %v3061
    %4988 = vmatprep.subr.mxu0 %v3057
    %4989 = vmatpush1.msra.mxu0 %v3055
    %4990 = vmatprep.subr.mxu0 0.0
    %4991 = vmatpush2.msra.mxu0 0.0
    %4992 = vmatprep.subr.mxu0 0.0
    %4993 = vmatpush2.msra.mxu0 0.0
    %4994 = vmatprep.subr.mxu0 0.0
    %4995 = vmatpush2.msra.mxu0 0.0
    %4996 = vmatprep.subr.mxu0 0.0
    %4997 = vmatpush2.msra.mxu0 0.0
    %4998 = vmatprep.subr.mxu0 0.0
    %4999 = vmatpush2.msra.mxu0 0.0
    %5000 = vmatprep.subr.mxu0 0.0
    %5001 = vmatpush2.msra.mxu0 0.0
    %5002 = vmatprep.subr.mxu0 0.0
    %5003 = vmatpush2.msra.mxu0 0.0
    %5004 = vmatprep.subr.mxu0 0.0
    %5005 = vmatpush2.msra.mxu0 0.0
    %5006 = vmatprep.subr.mxu0 0.0
    %5007 = vmatpush2.msra.mxu0 0.0
    %5008 = vmatprep.subr.mxu0 0.0
    %5009 = vmatpush2.msra.mxu0 0.0
    %5010 = vmatprep.subr.mxu0 0.0
    %5011 = vmatpush2.msra.mxu0 0.0
    %5012 = vmatprep.subr.mxu0 0.0
    %5013 = vmatpush2.msra.mxu0 0.0
    %5014 = vmatprep.subr.mxu0 0.0
    %5015 = vmatpush2.msra.mxu0 0.0
    %5016 = vmatprep.subr.mxu0 0.0
    %5017 = vmatpush2.msra.mxu0 0.0
    %5018 = vmatprep.subr.mxu0 0.0
    %5019 = vmatpush2.msra.mxu0 0.0
    %5020 = vmatprep.subr.mxu0 0.0
    %5021 = vmatpush2.msra.mxu0 0.0
    %5022 = vmatprep.mubr.f32.mxu0 0.0
    %5023 = vmatmul.mubr.f32.gmra.mxu0 %v4917
    %v5024 = vpop.f32.mrf.mxu0
    %v5025 = vadd.f32 0.0, %v5024
    %v5026 = vpop.f32.mrf.mxu0
    %v5027 = vadd.f32 0.0, %v5026
    %5028 = vmatprep.mubr.f32.mxu0 0.0
    %5029 = vmatmul.mubr.f32.gmra.mxu0 %v4920
    %v5030 = vpop.f32.mrf.mxu0
    %v5031 = vadd.f32 0.0, %v5030
    %v5032 = vpop.f32.mrf.mxu0
    %v5033 = vadd.f32 0.0, %v5032
    %5034 = vmatprep.mubr.f32.mxu0 0.0
    %5035 = vmatmul.mubr.f32.gmra.mxu0 %v4923
    %v5036 = vpop.f32.mrf.mxu0
    %v5037 = vadd.f32 0.0, %v5036
    %v5038 = vpop.f32.mrf.mxu0
    %v5039 = vadd.f32 0.0, %v5038
    %5040 = vmatprep.mubr.f32.mxu0 0.0
    %5041 = vmatmul.mubr.f32.gmra.mxu0 %v4926
    %v5042 = vpop.f32.mrf.mxu0
    %v5043 = vadd.f32 0.0, %v5042
    %v5044 = vpop.f32.mrf.mxu0
    %v5045 = vadd.f32 0.0, %v5044
    %5046 = vmatprep.mubr.f32.mxu0 0.0
    %5047 = vmatmul.mubr.f32.gmra.mxu0 %v4929
    %v5048 = vpop.f32.mrf.mxu0
    %v5049 = vadd.f32 0.0, %v5048
    %v5050 = vpop.f32.mrf.mxu0
    %v5051 = vadd.f32 0.0, %v5050
    %5052 = vmatprep.mubr.f32.mxu0 0.0
    %5053 = vmatmul.mubr.f32.gmra.mxu0 %v4932
    %v5054 = vpop.f32.mrf.mxu0
    %v5055 = vadd.f32 0.0, %v5054
    %v5056 = vpop.f32.mrf.mxu0
    %v5057 = vadd.f32 0.0, %v5056
    %5058 = vmatprep.mubr.f32.mxu0 0.0
    %5059 = vmatmul.mubr.f32.gmra.mxu0 %v4935
    %v5060 = vpop.f32.mrf.mxu0
    %v5061 = vadd.f32 0.0, %v5060
    %v5062 = vpop.f32.mrf.mxu0
    %v5063 = vadd.f32 0.0, %v5062
    %5064 = vmatprep.mubr.f32.mxu0 0.0
    %5065 = vmatmul.mubr.f32.gmra.mxu0 %v4938
    %v5066 = vpop.f32.mrf.mxu0
    %v5067 = vadd.f32 0.0, %v5066
    %v5068 = vpop.f32.mrf.mxu0
    %v5069 = vadd.f32 0.0, %v5068
    %5070 = vmatprep.mubr.f32.mxu0 0.0
    %5071 = vmatmul.mubr.f32.gmra.mxu0 %v4941
    %v5072 = vpop.f32.mrf.mxu0
    %v5073 = vadd.f32 0.0, %v5072
    %v5074 = vpop.f32.mrf.mxu0
    %v5075 = vadd.f32 0.0, %v5074
    %5076 = vmatprep.mubr.f32.mxu0 0.0
    %5077 = vmatmul.mubr.f32.gmra.mxu0 %v4944
    %v5078 = vpop.f32.mrf.mxu0
    %v5079 = vadd.f32 0.0, %v5078
    %v5080 = vpop.f32.mrf.mxu0
    %v5081 = vadd.f32 0.0, %v5080
    %5082 = vmatprep.mubr.f32.mxu0 0.0
    %5083 = vmatmul.mubr.f32.gmra.mxu0 %v4947
    %v5084 = vpop.f32.mrf.mxu0
    %v5085 = vadd.f32 0.0, %v5084
    %v5086 = vpop.f32.mrf.mxu0
    %v5087 = vadd.f32 0.0, %v5086
    %5088 = vmatprep.mubr.f32.mxu0 0.0
    %5089 = vmatmul.mubr.f32.gmra.mxu0 %v4950
    %v5090 = vpop.f32.mrf.mxu0
    %v5091 = vadd.f32 0.0, %v5090
    %v5092 = vpop.f32.mrf.mxu0
    %v5093 = vadd.f32 0.0, %v5092
    %5094 = vmatprep.mubr.f32.mxu0 0.0
    %5095 = vmatmul.mubr.f32.gmra.mxu0 %v4953
    %v5096 = vpop.f32.mrf.mxu0
    %v5097 = vadd.f32 0.0, %v5096
    %v5098 = vpop.f32.mrf.mxu0
    %v5099 = vadd.f32 0.0, %v5098
    %5100 = vmatprep.mubr.f32.mxu0 0.0
    %5101 = vmatmul.mubr.f32.gmra.mxu0 %v4956
    %v5102 = vpop.f32.mrf.mxu0
    %v5103 = vadd.f32 0.0, %v5102
    %v5104 = vpop.f32.mrf.mxu0
    %v5105 = vadd.f32 0.0, %v5104
    %5106 = vdwg.mxu0
    %5107 = vmatprep.subr.mxu0 0.0
    %5108 = vmatpush1.msra.mxu0 0.0
    %5109 = vmatprep.subr.mxu0 0.0
    %5110 = vmatpush1.msra.mxu0 0.0
    %5111 = vmatprep.subr.mxu0 %v3284
    %5112 = vmatpush1.msra.mxu0 %v3282
    %5113 = vmatprep.subr.mxu0 %v3278
    %5114 = vmatpush1.msra.mxu0 %v3276
    %5115 = vmatprep.subr.mxu0 %v3272
    %5116 = vmatpush1.msra.mxu0 %v3270
    %5117 = vmatprep.subr.mxu0 %v3266
    %5118 = vmatpush1.msra.mxu0 %v3264
    %5119 = vmatprep.subr.mxu0 %v3260
    %5120 = vmatpush1.msra.mxu0 %v3258
    %5121 = vmatprep.subr.mxu0 %v3254
    %5122 = vmatpush1.msra.mxu0 %v3252
    %5123 = vmatprep.subr.mxu0 %v3248
    %5124 = vmatpush1.msra.mxu0 %v3246
    %5125 = vmatprep.subr.mxu0 %v3242
    %5126 = vmatpush1.msra.mxu0 %v3240
    %5127 = vmatprep.subr.mxu0 %v3236
    %5128 = vmatpush1.msra.mxu0 %v3234
    %5129 = vmatprep.subr.mxu0 %v3230
    %5130 = vmatpush1.msra.mxu0 %v3228
    %5131 = vmatprep.subr.mxu0 %v3224
    %5132 = vmatpush1.msra.mxu0 %v3222
    %5133 = vmatprep.subr.mxu0 %v3218
    %5134 = vmatpush1.msra.mxu0 %v3216
    %5135 = vmatprep.subr.mxu0 %v3212
    %5136 = vmatpush1.msra.mxu0 %v3210
    %5137 = vmatprep.subr.mxu0 %v3206
    %5138 = vmatpush1.msra.mxu0 %v3204
    %5139 = vmatprep.subr.mxu0 0.0
    %5140 = vmatpush2.msra.mxu0 0.0
    %5141 = vmatprep.subr.mxu0 0.0
    %5142 = vmatpush2.msra.mxu0 0.0
    %5143 = vmatprep.subr.mxu0 0.0
    %5144 = vmatpush2.msra.mxu0 0.0
    %5145 = vmatprep.subr.mxu0 0.0
    %5146 = vmatpush2.msra.mxu0 0.0
    %5147 = vmatprep.subr.mxu0 0.0
    %5148 = vmatpush2.msra.mxu0 0.0
    %5149 = vmatprep.subr.mxu0 0.0
    %5150 = vmatpush2.msra.mxu0 0.0
    %5151 = vmatprep.subr.mxu0 0.0
    %5152 = vmatpush2.msra.mxu0 0.0
    %5153 = vmatprep.subr.mxu0 0.0
    %5154 = vmatpush2.msra.mxu0 0.0
    %5155 = vmatprep.subr.mxu0 0.0
    %5156 = vmatpush2.msra.mxu0 0.0
    %5157 = vmatprep.subr.mxu0 0.0
    %5158 = vmatpush2.msra.mxu0 0.0
    %5159 = vmatprep.subr.mxu0 0.0
    %5160 = vmatpush2.msra.mxu0 0.0
    %5161 = vmatprep.subr.mxu0 0.0
    %5162 = vmatpush2.msra.mxu0 0.0
    %5163 = vmatprep.subr.mxu0 0.0
    %5164 = vmatpush2.msra.mxu0 0.0
    %5165 = vmatprep.subr.mxu0 0.0
    %5166 = vmatpush2.msra.mxu0 0.0
    %5167 = vmatprep.subr.mxu0 0.0
    %5168 = vmatpush2.msra.mxu0 0.0
    %5169 = vmatprep.subr.mxu0 0.0
    %5170 = vmatpush2.msra.mxu0 0.0
    %5171 = vmatprep.mubr.f32.mxu0 0.0
    %5172 = vmatmul.mubr.f32.gmra.mxu0 %v4917
    %v5173 = vpop.f32.mrf.mxu0
    %v5174 = vadd.f32 0.0, %v5173
    %v5175 = vpop.f32.mrf.mxu0
    %v5176 = vadd.f32 0.0, %v5175
    %5177 = vmatprep.mubr.f32.mxu0 0.0
    %5178 = vmatmul.mubr.f32.gmra.mxu0 %v4920
    %v5179 = vpop.f32.mrf.mxu0
    %v5180 = vadd.f32 0.0, %v5179
    %v5181 = vpop.f32.mrf.mxu0
    %v5182 = vadd.f32 0.0, %v5181
    %5183 = vmatprep.mubr.f32.mxu0 0.0
    %5184 = vmatmul.mubr.f32.gmra.mxu0 %v4923
    %v5185 = vpop.f32.mrf.mxu0
    %v5186 = vadd.f32 0.0, %v5185
    %v5187 = vpop.f32.mrf.mxu0
    %v5188 = vadd.f32 0.0, %v5187
    %5189 = vmatprep.mubr.f32.mxu0 0.0
    %5190 = vmatmul.mubr.f32.gmra.mxu0 %v4926
    %v5191 = vpop.f32.mrf.mxu0
    %v5192 = vadd.f32 0.0, %v5191
    %v5193 = vpop.f32.mrf.mxu0
    %v5194 = vadd.f32 0.0, %v5193
    %5195 = vmatprep.mubr.f32.mxu0 0.0
    %5196 = vmatmul.mubr.f32.gmra.mxu0 %v4929
    %v5197 = vpop.f32.mrf.mxu0
    %v5198 = vadd.f32 0.0, %v5197
    %v5199 = vpop.f32.mrf.mxu0
    %v5200 = vadd.f32 0.0, %v5199
    %5201 = vmatprep.mubr.f32.mxu0 0.0
    %5202 = vmatmul.mubr.f32.gmra.mxu0 %v4932
    %v5203 = vpop.f32.mrf.mxu0
    %v5204 = vadd.f32 0.0, %v5203
    %v5205 = vpop.f32.mrf.mxu0
    %v5206 = vadd.f32 0.0, %v5205
    %5207 = vmatprep.mubr.f32.mxu0 0.0
    %5208 = vmatmul.mubr.f32.gmra.mxu0 %v4935
    %v5209 = vpop.f32.mrf.mxu0
    %v5210 = vadd.f32 0.0, %v5209
    %v5211 = vpop.f32.mrf.mxu0
    %v5212 = vadd.f32 0.0, %v5211
    %5213 = vmatprep.mubr.f32.mxu0 0.0
    %5214 = vmatmul.mubr.f32.gmra.mxu0 %v4938
    %v5215 = vpop.f32.mrf.mxu0
    %v5216 = vadd.f32 0.0, %v5215
    %v5217 = vpop.f32.mrf.mxu0
    %v5218 = vadd.f32 0.0, %v5217
    %5219 = vmatprep.mubr.f32.mxu0 0.0
    %5220 = vmatmul.mubr.f32.gmra.mxu0 %v4941
    %v5221 = vpop.f32.mrf.mxu0
    %v5222 = vadd.f32 0.0, %v5221
    %v5223 = vpop.f32.mrf.mxu0
    %v5224 = vadd.f32 0.0, %v5223
    %5225 = vmatprep.mubr.f32.mxu0 0.0
    %5226 = vmatmul.mubr.f32.gmra.mxu0 %v4944
    %v5227 = vpop.f32.mrf.mxu0
    %v5228 = vadd.f32 0.0, %v5227
    %v5229 = vpop.f32.mrf.mxu0
    %v5230 = vadd.f32 0.0, %v5229
    %5231 = vmatprep.mubr.f32.mxu0 0.0
    %5232 = vmatmul.mubr.f32.gmra.mxu0 %v4947
    %v5233 = vpop.f32.mrf.mxu0
    %v5234 = vadd.f32 0.0, %v5233
    %v5235 = vpop.f32.mrf.mxu0
    %v5236 = vadd.f32 0.0, %v5235
    %5237 = vmatprep.mubr.f32.mxu0 0.0
    %5238 = vmatmul.mubr.f32.gmra.mxu0 %v4950
    %v5239 = vpop.f32.mrf.mxu0
    %v5240 = vadd.f32 0.0, %v5239
    %v5241 = vpop.f32.mrf.mxu0
    %v5242 = vadd.f32 0.0, %v5241
    %5243 = vmatprep.mubr.f32.mxu0 0.0
    %5244 = vmatmul.mubr.f32.gmra.mxu0 %v4953
    %v5245 = vpop.f32.mrf.mxu0
    %v5246 = vadd.f32 0.0, %v5245
    %v5247 = vpop.f32.mrf.mxu0
    %v5248 = vadd.f32 0.0, %v5247
    %5249 = vmatprep.mubr.f32.mxu0 0.0
    %5250 = vmatmul.mubr.f32.gmra.mxu0 %v4956
    %v5251 = vpop.f32.mrf.mxu0
    %v5252 = vadd.f32 0.0, %v5251
    %v5253 = vpop.f32.mrf.mxu0
    %v5254 = vadd.f32 0.0, %v5253
    %5255 = vdwg.mxu0
    %s5256 = scalar_lea.vmem %s9, 1792
    %v5257 = vld [vmem:[%s5256] sm:$0xff]
    %v5258 = vld [vmem:[%s5256 + $0x8] sm:$0xff]
    %v5259 = vld [vmem:[%s5256 + $0x10] sm:$0xff]
    %v5260 = vld [vmem:[%s5256 + $0x18] sm:$0xff]
    %v5261 = vld [vmem:[%s5256 + $0x20] sm:$0xff]
    %v5262 = vld [vmem:[%s5256 + $0x28] sm:$0xff]
    %v5263 = vld [vmem:[%s5256 + $0x30] sm:$0xff]
    %v5264 = vld [vmem:[%s5256 + $0x38] sm:$0xff]
    %v5265 = vld [vmem:[%s5256 + $0x40] sm:$0xff]
    %v5266 = vld [vmem:[%s5256 + $0x48] sm:$0xff]
    %v5267 = vld [vmem:[%s5256 + $0x50] sm:$0xff]
    %v5268 = vld [vmem:[%s5256 + $0x58] sm:$0xff]
    %v5269 = vld [vmem:[%s5256 + $0x60] sm:$0xff]
    %v5270 = vld [vmem:[%s5256 + $0x68] sm:$0xff]
    %v5271 = vld [vmem:[%s5256 + $0x70] sm:$0xff]
    %v5272 = vld [vmem:[%s5256 + $0x78] sm:$0xff]
    %v5273 = vld [vmem:[%s5256 + $0x80] sm:$0xff]
    %v5274 = vld [vmem:[%s5256 + $0x88] sm:$0xff]
    %v5275 = vld [vmem:[%s5256 + $0x90] sm:$0xff]
    %v5276 = vld [vmem:[%s5256 + $0x98] sm:$0xff]
    %v5277 = vld [vmem:[%s5256 + $0xa0] sm:$0xff]
    %v5278 = vld [vmem:[%s5256 + $0xa8] sm:$0xff]
    %v5279 = vld [vmem:[%s5256 + $0xb0] sm:$0xff]
    %v5280 = vld [vmem:[%s5256 + $0xb8] sm:$0xff]
    %v5281 = vld [vmem:[%s5256 + $0xc0] sm:$0xff]
    %v5282 = vld [vmem:[%s5256 + $0xc8] sm:$0xff]
    %v5283 = vld [vmem:[%s5256 + $0xd0] sm:$0xff]
    %v5284 = vld [vmem:[%s5256 + $0xd8] sm:$0xff]
    %v5285 = vld [vmem:[%s5256 + $0xe0] sm:$0xff]
    %v5286 = vld [vmem:[%s5256 + $0xe8] sm:$0xff]
    %v5287 = vld [vmem:[%s5256 + $0xf0] sm:$0xff]
    %v5288 = vld [vmem:[%s5256 + $0xf8] sm:$0xff]
    %v5289 = vld [vmem:[%s5256 + $0x100] sm:$0xff]
    %v5290 = vld [vmem:[%s5256 + $0x108] sm:$0xff]
    %v5291 = vld [vmem:[%s5256 + $0x110] sm:$0xff]
    %v5292 = vld [vmem:[%s5256 + $0x118] sm:$0xff]
    %v5293 = vld [vmem:[%s5256 + $0x120] sm:$0xff]
    %v5294 = vld [vmem:[%s5256 + $0x128] sm:$0xff]
    %v5295 = vld [vmem:[%s5256 + $0x130] sm:$0xff]
    %v5296 = vld [vmem:[%s5256 + $0x138] sm:$0xff]
    %v5297 = vld [vmem:[%s5256 + $0x140] sm:$0xff]
    %v5298 = vld [vmem:[%s5256 + $0x148] sm:$0xff]
    %v5299 = vld [vmem:[%s5256 + $0x150] sm:$0xff]
    %v5300 = vld [vmem:[%s5256 + $0x158] sm:$0xff]
    %v5301 = vld [vmem:[%s5256 + $0x160] sm:$0xff]
    %v5302 = vld [vmem:[%s5256 + $0x168] sm:$0xff]
    %v5303 = vld [vmem:[%s5256 + $0x170] sm:$0xff]
    %v5304 = vld [vmem:[%s5256 + $0x178] sm:$0xff]
    %v5305 = vld [vmem:[%s5256 + $0x180] sm:$0xff]
    %v5306 = vld [vmem:[%s5256 + $0x188] sm:$0xff]
    %v5307 = vld [vmem:[%s5256 + $0x190] sm:$0xff]
    %v5308 = vld [vmem:[%s5256 + $0x198] sm:$0xff]
    %v5309 = vld [vmem:[%s5256 + $0x1a0] sm:$0xff]
    %v5310 = vld [vmem:[%s5256 + $0x1a8] sm:$0xff]
    %v5311 = vld [vmem:[%s5256 + $0x1b0] sm:$0xff]
    %v5312 = vld [vmem:[%s5256 + $0x1b8] sm:$0xff]
    %v5313 = vld [vmem:[%s5256 + $0x1c0] sm:$0xff]
    %v5314 = vld [vmem:[%s5256 + $0x1c8] sm:$0xff]
    %v5315 = vld [vmem:[%s5256 + $0x1d0] sm:$0xff]
    %v5316 = vld [vmem:[%s5256 + $0x1d8] sm:$0xff]
    %v5317 = vld [vmem:[%s5256 + $0x1e0] sm:$0xff]
    %v5318 = vld [vmem:[%s5256 + $0x1e8] sm:$0xff]
    %v5319 = vld [vmem:[%s5256 + $0x1f0] sm:$0xff]
    %v5320 = vld [vmem:[%s5256 + $0x1f8] sm:$0xff]
    %v5321 = vld [vmem:[%s5256 + $0x200] sm:$0xff]
    %v5322 = vld [vmem:[%s5256 + $0x208] sm:$0xff]
    %v5323 = vld [vmem:[%s5256 + $0x210] sm:$0xff]
    %v5324 = vld [vmem:[%s5256 + $0x218] sm:$0xff]
    %v5325 = vld [vmem:[%s5256 + $0x220] sm:$0xff]
    %v5326 = vld [vmem:[%s5256 + $0x228] sm:$0xff]
    %v5327 = vld [vmem:[%s5256 + $0x230] sm:$0xff]
    %v5328 = vld [vmem:[%s5256 + $0x238] sm:$0xff]
    %v5329 = vld [vmem:[%s5256 + $0x240] sm:$0xff]
    %v5330 = vld [vmem:[%s5256 + $0x248] sm:$0xff]
    %v5331 = vld [vmem:[%s5256 + $0x250] sm:$0xff]
    %v5332 = vld [vmem:[%s5256 + $0x258] sm:$0xff]
    %v5333 = vld [vmem:[%s5256 + $0x260] sm:$0xff]
    %v5334 = vld [vmem:[%s5256 + $0x268] sm:$0xff]
    %v5335 = vld [vmem:[%s5256 + $0x270] sm:$0xff]
    %v5336 = vld [vmem:[%s5256 + $0x278] sm:$0xff]
    %v5337 = vld [vmem:[%s5256 + $0x280] sm:$0xff]
    %v5338 = vld [vmem:[%s5256 + $0x288] sm:$0xff]
    %v5339 = vld [vmem:[%s5256 + $0x290] sm:$0xff]
    %v5340 = vld [vmem:[%s5256 + $0x298] sm:$0xff]
    %v5341 = vld [vmem:[%s5256 + $0x2a0] sm:$0xff]
    %v5342 = vld [vmem:[%s5256 + $0x2a8] sm:$0xff]
    %v5343 = vld [vmem:[%s5256 + $0x2b0] sm:$0xff]
    %v5344 = vld [vmem:[%s5256 + $0x2b8] sm:$0xff]
    %v5345 = vld [vmem:[%s5256 + $0x2c0] sm:$0xff]
    %v5346 = vld [vmem:[%s5256 + $0x2c8] sm:$0xff]
    %v5347 = vld [vmem:[%s5256 + $0x2d0] sm:$0xff]
    %v5348 = vld [vmem:[%s5256 + $0x2d8] sm:$0xff]
    %v5349 = vld [vmem:[%s5256 + $0x2e0] sm:$0xff]
    %v5350 = vld [vmem:[%s5256 + $0x2e8] sm:$0xff]
    %v5351 = vld [vmem:[%s5256 + $0x2f0] sm:$0xff]
    %v5352 = vld [vmem:[%s5256 + $0x2f8] sm:$0xff]
    %v5353 = vld [vmem:[%s5256 + $0x300] sm:$0xff]
    %v5354 = vld [vmem:[%s5256 + $0x308] sm:$0xff]
    %v5355 = vld [vmem:[%s5256 + $0x310] sm:$0xff]
    %v5356 = vld [vmem:[%s5256 + $0x318] sm:$0xff]
    %v5357 = vld [vmem:[%s5256 + $0x320] sm:$0xff]
    %v5358 = vld [vmem:[%s5256 + $0x328] sm:$0xff]
    %v5359 = vld [vmem:[%s5256 + $0x330] sm:$0xff]
    %v5360 = vld [vmem:[%s5256 + $0x338] sm:$0xff]
    %v5361 = vld [vmem:[%s5256 + $0x340] sm:$0xff]
    %v5362 = vld [vmem:[%s5256 + $0x348] sm:$0xff]
    %v5363 = vld [vmem:[%s5256 + $0x350] sm:$0xff]
    %v5364 = vld [vmem:[%s5256 + $0x358] sm:$0xff]
    %v5365 = vld [vmem:[%s5256 + $0x360] sm:$0xff]
    %v5366 = vld [vmem:[%s5256 + $0x368] sm:$0xff]
    %v5367 = vld [vmem:[%s5256 + $0x370] sm:$0xff]
    %v5368 = vld [vmem:[%s5256 + $0x378] sm:$0xff]
    %v5370 = vsel %vm787, %v5176, 0
    %v5373 = vsel %vm787, %v5182, 0
    %v5376 = vsel %vm787, %v5188, 0
    %v5379 = vsel %vm787, %v5194, 0
    %v5382 = vsel %vm787, %v5200, 0
    %v5385 = vsel %vm787, %v5206, 0
    %v5388 = vsel %vm787, %v5212, 0
    %v5391 = vsel %vm787, %v5218, 0
    %v5394 = vsel %vm787, %v5224, 0
    %v5397 = vsel %vm787, %v5230, 0
    %v5400 = vsel %vm787, %v5236, 0
    %v5403 = vsel %vm787, %v5242, 0
    %v5406 = vsel %vm787, %v5248, 0
    %v5409 = vsel %vm787, %v5254, 0
    %5411 = vmatprep.subr.mxu0 %v5288
    %5412 = vmatpush1.msra.mxu0 %v5287
    %5413 = vmatprep.subr.mxu0 %v5286
    %5414 = vmatpush1.msra.mxu0 %v5285
    %5415 = vmatprep.subr.mxu0 %v5284
    %5416 = vmatpush1.msra.mxu0 %v5283
    %5417 = vmatprep.subr.mxu0 %v5282
    %5418 = vmatpush1.msra.mxu0 %v5281
    %5419 = vmatprep.subr.mxu0 %v5280
    %5420 = vmatpush1.msra.mxu0 %v5279
    %5421 = vmatprep.subr.mxu0 %v5278
    %5422 = vmatpush1.msra.mxu0 %v5277
    %5423 = vmatprep.subr.mxu0 %v5276
    %5424 = vmatpush1.msra.mxu0 %v5275
    %5425 = vmatprep.subr.mxu0 %v5274
    %5426 = vmatpush1.msra.mxu0 %v5273
    %5427 = vmatprep.subr.mxu0 %v5272
    %5428 = vmatpush1.msra.mxu0 %v5271
    %5429 = vmatprep.subr.mxu0 %v5270
    %5430 = vmatpush1.msra.mxu0 %v5269
    %5431 = vmatprep.subr.mxu0 %v5268
    %5432 = vmatpush1.msra.mxu0 %v5267
    %5433 = vmatprep.subr.mxu0 %v5266
    %5434 = vmatpush1.msra.mxu0 %v5265
    %5435 = vmatprep.subr.mxu0 %v5264
    %5436 = vmatpush1.msra.mxu0 %v5263
    %5437 = vmatprep.subr.mxu0 %v5262
    %5438 = vmatpush1.msra.mxu0 %v5261
    %5439 = vmatprep.subr.mxu0 %v5260
    %5440 = vmatpush1.msra.mxu0 %v5259
    %5441 = vmatprep.subr.mxu0 %v5258
    %5442 = vmatpush1.msra.mxu0 %v5257
    %5443 = vmatprep.subr.mxu0 %v5320
    %5444 = vmatpush2.msra.mxu0 %v5319
    %5445 = vmatprep.subr.mxu0 %v5318
    %5446 = vmatpush2.msra.mxu0 %v5317
    %5447 = vmatprep.subr.mxu0 %v5316
    %5448 = vmatpush2.msra.mxu0 %v5315
    %5449 = vmatprep.subr.mxu0 %v5314
    %5450 = vmatpush2.msra.mxu0 %v5313
    %5451 = vmatprep.subr.mxu0 %v5312
    %5452 = vmatpush2.msra.mxu0 %v5311
    %5453 = vmatprep.subr.mxu0 %v5310
    %5454 = vmatpush2.msra.mxu0 %v5309
    %5455 = vmatprep.subr.mxu0 %v5308
    %5456 = vmatpush2.msra.mxu0 %v5307
    %5457 = vmatprep.subr.mxu0 %v5306
    %5458 = vmatpush2.msra.mxu0 %v5305
    %5459 = vmatprep.subr.mxu0 %v5304
    %5460 = vmatpush2.msra.mxu0 %v5303
    %5461 = vmatprep.subr.mxu0 %v5302
    %5462 = vmatpush2.msra.mxu0 %v5301
    %5463 = vmatprep.subr.mxu0 %v5300
    %5464 = vmatpush2.msra.mxu0 %v5299
    %5465 = vmatprep.subr.mxu0 %v5298
    %5466 = vmatpush2.msra.mxu0 %v5297
    %5467 = vmatprep.subr.mxu0 %v5296
    %5468 = vmatpush2.msra.mxu0 %v5295
    %5469 = vmatprep.subr.mxu0 %v5294
    %5470 = vmatpush2.msra.mxu0 %v5293
    %5471 = vmatprep.subr.mxu0 %v5292
    %5472 = vmatpush2.msra.mxu0 %v5291
    %5473 = vmatprep.subr.mxu0 %v5290
    %5474 = vmatpush2.msra.mxu0 %v5289
    %5475 = vmatprep.mubr.f32.mxu0 %v5027
    %5476 = vmatmul.mubr.f32.gmra.mxu0 %v5025
    %v5477 = vpop.f32.mrf.mxu0
    %v5478 = vadd.f32 0.0, %v5477
    %v5479 = vpop.f32.mrf.mxu0
    %v5480 = vadd.f32 0.0, %v5479
    %5481 = vmatprep.mubr.f32.mxu0 %v5033
    %5482 = vmatmul.mubr.f32.gmra.mxu0 %v5031
    %v5483 = vpop.f32.mrf.mxu0
    %v5484 = vadd.f32 0.0, %v5483
    %v5485 = vpop.f32.mrf.mxu0
    %v5486 = vadd.f32 0.0, %v5485
    %5487 = vmatprep.mubr.f32.mxu0 %v5039
    %5488 = vmatmul.mubr.f32.gmra.mxu0 %v5037
    %v5489 = vpop.f32.mrf.mxu0
    %v5490 = vadd.f32 0.0, %v5489
    %v5491 = vpop.f32.mrf.mxu0
    %v5492 = vadd.f32 0.0, %v5491
    %5493 = vmatprep.mubr.f32.mxu0 %v5045
    %5494 = vmatmul.mubr.f32.gmra.mxu0 %v5043
    %v5495 = vpop.f32.mrf.mxu0
    %v5496 = vadd.f32 0.0, %v5495
    %v5497 = vpop.f32.mrf.mxu0
    %v5498 = vadd.f32 0.0, %v5497
    %5499 = vmatprep.mubr.f32.mxu0 %v5051
    %5500 = vmatmul.mubr.f32.gmra.mxu0 %v5049
    %v5501 = vpop.f32.mrf.mxu0
    %v5502 = vadd.f32 0.0, %v5501
    %v5503 = vpop.f32.mrf.mxu0
    %v5504 = vadd.f32 0.0, %v5503
    %5505 = vmatprep.mubr.f32.mxu0 %v5057
    %5506 = vmatmul.mubr.f32.gmra.mxu0 %v5055
    %v5507 = vpop.f32.mrf.mxu0
    %v5508 = vadd.f32 0.0, %v5507
    %v5509 = vpop.f32.mrf.mxu0
    %v5510 = vadd.f32 0.0, %v5509
    %5511 = vmatprep.mubr.f32.mxu0 %v5063
    %5512 = vmatmul.mubr.f32.gmra.mxu0 %v5061
    %v5513 = vpop.f32.mrf.mxu0
    %v5514 = vadd.f32 0.0, %v5513
    %v5515 = vpop.f32.mrf.mxu0
    %v5516 = vadd.f32 0.0, %v5515
    %5517 = vmatprep.mubr.f32.mxu0 %v5069
    %5518 = vmatmul.mubr.f32.gmra.mxu0 %v5067
    %v5519 = vpop.f32.mrf.mxu0
    %v5520 = vadd.f32 0.0, %v5519
    %v5521 = vpop.f32.mrf.mxu0
    %v5522 = vadd.f32 0.0, %v5521
    %5523 = vmatprep.mubr.f32.mxu0 %v5075
    %5524 = vmatmul.mubr.f32.gmra.mxu0 %v5073
    %v5525 = vpop.f32.mrf.mxu0
    %v5526 = vadd.f32 0.0, %v5525
    %v5527 = vpop.f32.mrf.mxu0
    %v5528 = vadd.f32 0.0, %v5527
    %5529 = vmatprep.mubr.f32.mxu0 %v5081
    %5530 = vmatmul.mubr.f32.gmra.mxu0 %v5079
    %v5531 = vpop.f32.mrf.mxu0
    %v5532 = vadd.f32 0.0, %v5531
    %v5533 = vpop.f32.mrf.mxu0
    %v5534 = vadd.f32 0.0, %v5533
    %5535 = vmatprep.mubr.f32.mxu0 %v5087
    %5536 = vmatmul.mubr.f32.gmra.mxu0 %v5085
    %v5537 = vpop.f32.mrf.mxu0
    %v5538 = vadd.f32 0.0, %v5537
    %v5539 = vpop.f32.mrf.mxu0
    %v5540 = vadd.f32 0.0, %v5539
    %5541 = vmatprep.mubr.f32.mxu0 %v5093
    %5542 = vmatmul.mubr.f32.gmra.mxu0 %v5091
    %v5543 = vpop.f32.mrf.mxu0
    %v5544 = vadd.f32 0.0, %v5543
    %v5545 = vpop.f32.mrf.mxu0
    %v5546 = vadd.f32 0.0, %v5545
    %5547 = vmatprep.mubr.f32.mxu0 %v5099
    %5548 = vmatmul.mubr.f32.gmra.mxu0 %v5097
    %v5549 = vpop.f32.mrf.mxu0
    %v5550 = vadd.f32 0.0, %v5549
    %v5551 = vpop.f32.mrf.mxu0
    %v5552 = vadd.f32 0.0, %v5551
    %5553 = vmatprep.mubr.f32.mxu0 %v5105
    %5554 = vmatmul.mubr.f32.gmra.mxu0 %v5103
    %v5555 = vpop.f32.mrf.mxu0
    %v5556 = vadd.f32 0.0, %v5555
    %v5557 = vpop.f32.mrf.mxu0
    %v5558 = vadd.f32 0.0, %v5557
    %5559 = vdwg.mxu0
    %5560 = vmatprep.subr.mxu0 %v5352
    %5561 = vmatpush1.msra.mxu0 %v5351
    %5562 = vmatprep.subr.mxu0 %v5350
    %5563 = vmatpush1.msra.mxu0 %v5349
    %5564 = vmatprep.subr.mxu0 %v5348
    %5565 = vmatpush1.msra.mxu0 %v5347
    %5566 = vmatprep.subr.mxu0 %v5346
    %5567 = vmatpush1.msra.mxu0 %v5345
    %5568 = vmatprep.subr.mxu0 %v5344
    %5569 = vmatpush1.msra.mxu0 %v5343
    %5570 = vmatprep.subr.mxu0 %v5342
    %5571 = vmatpush1.msra.mxu0 %v5341
    %5572 = vmatprep.subr.mxu0 %v5340
    %5573 = vmatpush1.msra.mxu0 %v5339
    %5574 = vmatprep.subr.mxu0 %v5338
    %5575 = vmatpush1.msra.mxu0 %v5337
    %5576 = vmatprep.subr.mxu0 %v5336
    %5577 = vmatpush1.msra.mxu0 %v5335
    %5578 = vmatprep.subr.mxu0 %v5334
    %5579 = vmatpush1.msra.mxu0 %v5333
    %5580 = vmatprep.subr.mxu0 %v5332
    %5581 = vmatpush1.msra.mxu0 %v5331
    %5582 = vmatprep.subr.mxu0 %v5330
    %5583 = vmatpush1.msra.mxu0 %v5329
    %5584 = vmatprep.subr.mxu0 %v5328
    %5585 = vmatpush1.msra.mxu0 %v5327
    %5586 = vmatprep.subr.mxu0 %v5326
    %5587 = vmatpush1.msra.mxu0 %v5325
    %5588 = vmatprep.subr.mxu0 %v5324
    %5589 = vmatpush1.msra.mxu0 %v5323
    %5590 = vmatprep.subr.mxu0 %v5322
    %5591 = vmatpush1.msra.mxu0 %v5321
    %5592 = vmatprep.subr.mxu0 0.0
    %5593 = vmatpush2.msra.mxu0 0.0
    %5594 = vmatprep.subr.mxu0 0.0
    %5595 = vmatpush2.msra.mxu0 0.0
    %5596 = vmatprep.subr.mxu0 0.0
    %5597 = vmatpush2.msra.mxu0 0.0
    %5598 = vmatprep.subr.mxu0 0.0
    %5599 = vmatpush2.msra.mxu0 0.0
    %5600 = vmatprep.subr.mxu0 0.0
    %5601 = vmatpush2.msra.mxu0 0.0
    %5602 = vmatprep.subr.mxu0 0.0
    %5603 = vmatpush2.msra.mxu0 0.0
    %5604 = vmatprep.subr.mxu0 0.0
    %5605 = vmatpush2.msra.mxu0 0.0
    %5606 = vmatprep.subr.mxu0 0.0
    %5607 = vmatpush2.msra.mxu0 0.0
    %5608 = vmatprep.subr.mxu0 %v5368
    %5609 = vmatpush2.msra.mxu0 %v5367
    %5610 = vmatprep.subr.mxu0 %v5366
    %5611 = vmatpush2.msra.mxu0 %v5365
    %5612 = vmatprep.subr.mxu0 %v5364
    %5613 = vmatpush2.msra.mxu0 %v5363
    %5614 = vmatprep.subr.mxu0 %v5362
    %5615 = vmatpush2.msra.mxu0 %v5361
    %5616 = vmatprep.subr.mxu0 %v5360
    %5617 = vmatpush2.msra.mxu0 %v5359
    %5618 = vmatprep.subr.mxu0 %v5358
    %5619 = vmatpush2.msra.mxu0 %v5357
    %5620 = vmatprep.subr.mxu0 %v5356
    %5621 = vmatpush2.msra.mxu0 %v5355
    %5622 = vmatprep.subr.mxu0 %v5354
    %5623 = vmatpush2.msra.mxu0 %v5353
    %5624 = vmatprep.mubr.f32.mxu0 %v5370
    %5625 = vmatmul.mubr.f32.gmra.mxu0 %v5174
    %v5626 = vpop.f32.mrf.mxu0
    %v5627 = vadd.f32 %v5478, %v5626
    %v5628 = vpop.f32.mrf.mxu0
    %v5629 = vadd.f32 %v5480, %v5628
    %5630 = vmatprep.mubr.f32.mxu0 %v5373
    %5631 = vmatmul.mubr.f32.gmra.mxu0 %v5180
    %v5632 = vpop.f32.mrf.mxu0
    %v5633 = vadd.f32 %v5484, %v5632
    %v5634 = vpop.f32.mrf.mxu0
    %v5635 = vadd.f32 %v5486, %v5634
    %5636 = vmatprep.mubr.f32.mxu0 %v5376
    %5637 = vmatmul.mubr.f32.gmra.mxu0 %v5186
    %v5638 = vpop.f32.mrf.mxu0
    %v5639 = vadd.f32 %v5490, %v5638
    %v5640 = vpop.f32.mrf.mxu0
    %v5641 = vadd.f32 %v5492, %v5640
    %5642 = vmatprep.mubr.f32.mxu0 %v5379
    %5643 = vmatmul.mubr.f32.gmra.mxu0 %v5192
    %v5644 = vpop.f32.mrf.mxu0
    %v5645 = vadd.f32 %v5496, %v5644
    %v5646 = vpop.f32.mrf.mxu0
    %v5647 = vadd.f32 %v5498, %v5646
    %5648 = vmatprep.mubr.f32.mxu0 %v5382
    %5649 = vmatmul.mubr.f32.gmra.mxu0 %v5198
    %v5650 = vpop.f32.mrf.mxu0
    %v5651 = vadd.f32 %v5502, %v5650
    %v5652 = vpop.f32.mrf.mxu0
    %v5653 = vadd.f32 %v5504, %v5652
    %5654 = vmatprep.mubr.f32.mxu0 %v5385
    %5655 = vmatmul.mubr.f32.gmra.mxu0 %v5204
    %v5656 = vpop.f32.mrf.mxu0
    %v5657 = vadd.f32 %v5508, %v5656
    %v5658 = vpop.f32.mrf.mxu0
    %v5659 = vadd.f32 %v5510, %v5658
    %5660 = vmatprep.mubr.f32.mxu0 %v5388
    %5661 = vmatmul.mubr.f32.gmra.mxu0 %v5210
    %v5662 = vpop.f32.mrf.mxu0
    %v5663 = vadd.f32 %v5514, %v5662
    %v5664 = vpop.f32.mrf.mxu0
    %v5665 = vadd.f32 %v5516, %v5664
    %5666 = vmatprep.mubr.f32.mxu0 %v5391
    %5667 = vmatmul.mubr.f32.gmra.mxu0 %v5216
    %v5668 = vpop.f32.mrf.mxu0
    %v5669 = vadd.f32 %v5520, %v5668
    %v5670 = vpop.f32.mrf.mxu0
    %v5671 = vadd.f32 %v5522, %v5670
    %5672 = vmatprep.mubr.f32.mxu0 %v5394
    %5673 = vmatmul.mubr.f32.gmra.mxu0 %v5222
    %v5674 = vpop.f32.mrf.mxu0
    %v5675 = vadd.f32 %v5526, %v5674
    %v5676 = vpop.f32.mrf.mxu0
    %v5677 = vadd.f32 %v5528, %v5676
    %5678 = vmatprep.mubr.f32.mxu0 %v5397
    %5679 = vmatmul.mubr.f32.gmra.mxu0 %v5228
    %v5680 = vpop.f32.mrf.mxu0
    %v5681 = vadd.f32 %v5532, %v5680
    %v5682 = vpop.f32.mrf.mxu0
    %v5683 = vadd.f32 %v5534, %v5682
    %5684 = vmatprep.mubr.f32.mxu0 %v5400
    %5685 = vmatmul.mubr.f32.gmra.mxu0 %v5234
    %v5686 = vpop.f32.mrf.mxu0
    %v5687 = vadd.f32 %v5538, %v5686
    %v5688 = vpop.f32.mrf.mxu0
    %v5689 = vadd.f32 %v5540, %v5688
    %5690 = vmatprep.mubr.f32.mxu0 %v5403
    %5691 = vmatmul.mubr.f32.gmra.mxu0 %v5240
    %v5692 = vpop.f32.mrf.mxu0
    %v5693 = vadd.f32 %v5544, %v5692
    %v5694 = vpop.f32.mrf.mxu0
    %v5695 = vadd.f32 %v5546, %v5694
    %5696 = vmatprep.mubr.f32.mxu0 %v5406
    %5697 = vmatmul.mubr.f32.gmra.mxu0 %v5246
    %v5698 = vpop.f32.mrf.mxu0
    %v5699 = vadd.f32 %v5550, %v5698
    %v5700 = vpop.f32.mrf.mxu0
    %v5701 = vadd.f32 %v5552, %v5700
    %5702 = vmatprep.mubr.f32.mxu0 %v5409
    %5703 = vmatmul.mubr.f32.gmra.mxu0 %v5252
    %v5704 = vpop.f32.mrf.mxu0
    %v5705 = vadd.f32 %v5556, %v5704
    %v5706 = vpop.f32.mrf.mxu0
    %v5707 = vadd.f32 %v5558, %v5706
    %5708 = vdwg.mxu0
    %v5709 = vadd.f32 %v4819, %v5627
    %v5710 = vadd.f32 %v4821, %v5629
    %v5711 = vadd.f32 %v4825, %v5633
    %v5712 = vadd.f32 %v4827, %v5635
    %v5713 = vadd.f32 %v4831, %v5639
    %v5714 = vadd.f32 %v4833, %v5641
    %v5715 = vadd.f32 %v4837, %v5645
    %v5716 = vadd.f32 %v4839, %v5647
    %v5717 = vadd.f32 %v4843, %v5651
    %v5718 = vadd.f32 %v4845, %v5653
    %v5719 = vadd.f32 %v4849, %v5657
    %v5720 = vadd.f32 %v4851, %v5659
    %v5721 = vadd.f32 %v4855, %v5663
    %v5722 = vadd.f32 %v4857, %v5665
    %v5723 = vadd.f32 %v4861, %v5669
    %v5724 = vadd.f32 %v4863, %v5671
    %v5725 = vadd.f32 %v4867, %v5675
    %v5726 = vadd.f32 %v4869, %v5677
    %v5727 = vadd.f32 %v4873, %v5681
    %v5728 = vadd.f32 %v4875, %v5683
    %v5729 = vadd.f32 %v4879, %v5687
    %v5730 = vadd.f32 %v4881, %v5689
    %v5731 = vadd.f32 %v4885, %v5693
    %v5732 = vadd.f32 %v4887, %v5695
    %v5733 = vadd.f32 %v4891, %v5699
    %v5734 = vadd.f32 %v4893, %v5701
    %v5735 = vadd.f32 %v4897, %v5705
    %v5736 = vadd.f32 %v4899, %v5707
    %v5738 = vsel %vm3300, 0.008928572, 0
    %5740 = vmatprep.subr.mxu0 0.0
    %5741 = vmatpush1.msra.mxu0 0.0
    %5742 = vmatprep.subr.mxu0 0.0
    %5743 = vmatpush1.msra.mxu0 0.0
    %5744 = vmatprep.subr.mxu0 %v5736
    %5745 = vmatpush1.msra.mxu0 %v5735
    %5746 = vmatprep.subr.mxu0 %v5734
    %5747 = vmatpush1.msra.mxu0 %v5733
    %5748 = vmatprep.subr.mxu0 %v5732
    %5749 = vmatpush1.msra.mxu0 %v5731
    %5750 = vmatprep.subr.mxu0 %v5730
    %5751 = vmatpush1.msra.mxu0 %v5729
    %5752 = vmatprep.subr.mxu0 %v5728
    %5753 = vmatpush1.msra.mxu0 %v5727
    %5754 = vmatprep.subr.mxu0 %v5726
    %5755 = vmatpush1.msra.mxu0 %v5725
    %5756 = vmatprep.subr.mxu0 %v5724
    %5757 = vmatpush1.msra.mxu0 %v5723
    %5758 = vmatprep.subr.mxu0 %v5722
    %5759 = vmatpush1.msra.mxu0 %v5721
    %5760 = vmatprep.subr.mxu0 %v5720
    %5761 = vmatpush1.msra.mxu0 %v5719
    %5762 = vmatprep.subr.mxu0 %v5718
    %5763 = vmatpush1.msra.mxu0 %v5717
    %5764 = vmatprep.subr.mxu0 %v5716
    %5765 = vmatpush1.msra.mxu0 %v5715
    %5766 = vmatprep.subr.mxu0 %v5714
    %5767 = vmatpush1.msra.mxu0 %v5713
    %5768 = vmatprep.subr.mxu0 %v5712
    %5769 = vmatpush1.msra.mxu0 %v5711
    %5770 = vmatprep.subr.mxu0 %v5710
    %5771 = vmatpush1.msra.mxu0 %v5709
    %5772 = vmatprep.subr.mxu0 0.0
    %5773 = vmatpush2.msra.mxu0 0.0
    %5774 = vmatprep.subr.mxu0 0.0
    %5775 = vmatpush2.msra.mxu0 0.0
    %5776 = vmatprep.subr.mxu0 0.0
    %5777 = vmatpush2.msra.mxu0 0.0
    %5778 = vmatprep.subr.mxu0 0.0
    %5779 = vmatpush2.msra.mxu0 0.0
    %5780 = vmatprep.subr.mxu0 0.0
    %5781 = vmatpush2.msra.mxu0 0.0
    %5782 = vmatprep.subr.mxu0 0.0
    %5783 = vmatpush2.msra.mxu0 0.0
    %5784 = vmatprep.subr.mxu0 0.0
    %5785 = vmatpush2.msra.mxu0 0.0
    %5786 = vmatprep.subr.mxu0 0.0
    %5787 = vmatpush2.msra.mxu0 0.0
    %5788 = vmatprep.subr.mxu0 0.0
    %5789 = vmatpush2.msra.mxu0 0.0
    %5790 = vmatprep.subr.mxu0 0.0
    %5791 = vmatpush2.msra.mxu0 0.0
    %5792 = vmatprep.subr.mxu0 0.0
    %5793 = vmatpush2.msra.mxu0 0.0
    %5794 = vmatprep.subr.mxu0 0.0
    %5795 = vmatpush2.msra.mxu0 0.0
    %5796 = vmatprep.subr.mxu0 0.0
    %5797 = vmatpush2.msra.mxu0 0.0
    %5798 = vmatprep.subr.mxu0 0.0
    %5799 = vmatpush2.msra.mxu0 0.0
    %5800 = vmatprep.subr.mxu0 0.0
    %5801 = vmatpush2.msra.mxu0 0.0
    %5802 = vmatprep.subr.mxu0 0.0
    %5803 = vmatpush2.msra.mxu0 0.0
    %5804 = vmatprep.mubr.f32.mxu0 0.0
    %5805 = vmatmul.mubr.f32.gmra.mxu0 %v5738
    %v5806 = vpop.f32.mrf.mxu0
    %v5807 = vadd.f32 0.0, %v5806
    %v5808 = vpop.f32.mrf.mxu0
    %v5809 = vadd.f32 0.0, %v5808
    %5810 = vmatprep.mubr.f32.mxu0 0.0
    %5811 = vmatmul.mubr.f32.gmra.mxu0 %v5738
    %v5812 = vpop.f32.mrf.mxu0
    %v5813 = vadd.f32 0.0, %v5812
    %v5814 = vpop.f32.mrf.mxu0
    %v5815 = vadd.f32 0.0, %v5814
    %5816 = vmatprep.mubr.f32.mxu0 0.0
    %5817 = vmatmul.mubr.f32.gmra.mxu0 %v5738
    %v5818 = vpop.f32.mrf.mxu0
    %v5819 = vadd.f32 0.0, %v5818
    %v5820 = vpop.f32.mrf.mxu0
    %v5821 = vadd.f32 0.0, %v5820
    %5822 = vmatprep.mubr.f32.mxu0 0.0
    %5823 = vmatmul.mubr.f32.gmra.mxu0 %v5738
    %v5824 = vpop.f32.mrf.mxu0
    %v5825 = vadd.f32 0.0, %v5824
    %v5826 = vpop.f32.mrf.mxu0
    %v5827 = vadd.f32 0.0, %v5826
    %5828 = vmatprep.mubr.f32.mxu0 0.0
    %5829 = vmatmul.mubr.f32.gmra.mxu0 %v5738
    %v5830 = vpop.f32.mrf.mxu0
    %v5831 = vadd.f32 0.0, %v5830
    %v5832 = vpop.f32.mrf.mxu0
    %v5833 = vadd.f32 0.0, %v5832
    %5834 = vmatprep.mubr.f32.mxu0 0.0
    %5835 = vmatmul.mubr.f32.gmra.mxu0 %v5738
    %v5836 = vpop.f32.mrf.mxu0
    %v5837 = vadd.f32 0.0, %v5836
    %v5838 = vpop.f32.mrf.mxu0
    %v5839 = vadd.f32 0.0, %v5838
    %5840 = vmatprep.mubr.f32.mxu0 0.0
    %5841 = vmatmul.mubr.f32.gmra.mxu0 %v5738
    %v5842 = vpop.f32.mrf.mxu0
    %v5843 = vadd.f32 0.0, %v5842
    %v5844 = vpop.f32.mrf.mxu0
    %v5845 = vadd.f32 0.0, %v5844
    %5846 = vmatprep.mubr.f32.mxu0 0.0
    %5847 = vmatmul.mubr.f32.gmra.mxu0 %v5738
    %v5848 = vpop.f32.mrf.mxu0
    %v5849 = vadd.f32 0.0, %v5848
    %v5850 = vpop.f32.mrf.mxu0
    %v5851 = vadd.f32 0.0, %v5850
    %5852 = vmatprep.mubr.f32.mxu0 0.0
    %5853 = vmatmul.mubr.f32.gmra.mxu0 %v5738
    %v5854 = vpop.f32.mrf.mxu0
    %v5855 = vadd.f32 0.0, %v5854
    %v5856 = vpop.f32.mrf.mxu0
    %v5857 = vadd.f32 0.0, %v5856
    %5858 = vmatprep.mubr.f32.mxu0 0.0
    %5859 = vmatmul.mubr.f32.gmra.mxu0 %v5738
    %v5860 = vpop.f32.mrf.mxu0
    %v5861 = vadd.f32 0.0, %v5860
    %v5862 = vpop.f32.mrf.mxu0
    %v5863 = vadd.f32 0.0, %v5862
    %5864 = vmatprep.mubr.f32.mxu0 0.0
    %5865 = vmatmul.mubr.f32.gmra.mxu0 %v5738
    %v5866 = vpop.f32.mrf.mxu0
    %v5867 = vadd.f32 0.0, %v5866
    %v5868 = vpop.f32.mrf.mxu0
    %v5869 = vadd.f32 0.0, %v5868
    %5870 = vmatprep.mubr.f32.mxu0 0.0
    %5871 = vmatmul.mubr.f32.gmra.mxu0 %v5738
    %v5872 = vpop.f32.mrf.mxu0
    %v5873 = vadd.f32 0.0, %v5872
    %v5874 = vpop.f32.mrf.mxu0
    %v5875 = vadd.f32 0.0, %v5874
    %5876 = vmatprep.mubr.f32.mxu0 0.0
    %5877 = vmatmul.mubr.f32.gmra.mxu0 %v5738
    %v5878 = vpop.f32.mrf.mxu0
    %v5879 = vadd.f32 0.0, %v5878
    %v5880 = vpop.f32.mrf.mxu0
    %v5881 = vadd.f32 0.0, %v5880
    %5882 = vmatprep.mubr.f32.mxu0 0.0
    %5883 = vmatmul.mubr.f32.gmra.mxu0 %v5738
    %v5884 = vpop.f32.mrf.mxu0
    %v5885 = vadd.f32 0.0, %v5884
    %v5886 = vpop.f32.mrf.mxu0
    %v5887 = vadd.f32 0.0, %v5886
    %5888 = vdwg.mxu0
    %v5889 = vld [vmem:[%s10] sm:$0xff]
    %v5890 = vld [vmem:[%s10 + $0x8] sm:$0xff]
    %v5891 = vld [vmem:[%s10 + $0x10] sm:$0xff]
    %v5892 = vld [vmem:[%s10 + $0x18] sm:$0xff]
    %v5893 = vld [vmem:[%s10 + $0x20] sm:$0xff]
    %v5894 = vld [vmem:[%s10 + $0x28] sm:$0xff]
    %v5895 = vld [vmem:[%s10 + $0x30] sm:$0xff]
    %v5896 = vld [vmem:[%s10 + $0x38] sm:$0xff]
    %v5897 = vld [vmem:[%s10 + $0x40] sm:$0xff]
    %v5898 = vld [vmem:[%s10 + $0x48] sm:$0xff]
    %v5899 = vld [vmem:[%s10 + $0x50] sm:$0xff]
    %v5900 = vld [vmem:[%s10 + $0x58] sm:$0xff]
    %v5901 = vld [vmem:[%s10 + $0x60] sm:$0xff]
    %v5902 = vld [vmem:[%s10 + $0x68] sm:$0xff]
    %v5903 = vld [vmem:[%s10 + $0x70] sm:$0xff]
    %v5904 = vld [vmem:[%s10 + $0x78] sm:$0xff]
    %v5905 = vld [vmem:[%s10 + $0x80] sm:$0xff]
    %v5906 = vld [vmem:[%s10 + $0x88] sm:$0xff]
    %v5907 = vld [vmem:[%s10 + $0x90] sm:$0xff]
    %v5908 = vld [vmem:[%s10 + $0x98] sm:$0xff]
    %v5909 = vld [vmem:[%s10 + $0xa0] sm:$0xff]
    %v5910 = vld [vmem:[%s10 + $0xa8] sm:$0xff]
    %v5911 = vld [vmem:[%s10 + $0xb0] sm:$0xff]
    %v5912 = vld [vmem:[%s10 + $0xb8] sm:$0xff]
    %v5913 = vld [vmem:[%s10 + $0xc0] sm:$0xff]
    %v5914 = vld [vmem:[%s10 + $0xc8] sm:$0xff]
    %v5915 = vld [vmem:[%s10 + $0xd0] sm:$0xff]
    %v5916 = vld [vmem:[%s10 + $0xd8] sm:$0xff]
    %v5917 = vld [vmem:[%s10 + $0xe0] sm:$0xff]
    %v5918 = vld [vmem:[%s10 + $0xe8] sm:$0xff]
    %v5919 = vld [vmem:[%s10 + $0xf0] sm:$0xff]
    %v5920 = vld [vmem:[%s10 + $0xf8] sm:$0xff]
    %v5921 = vld [vmem:[%s10 + $0x100] sm:$0xff]
    %v5922 = vld [vmem:[%s10 + $0x108] sm:$0xff]
    %v5923 = vld [vmem:[%s10 + $0x110] sm:$0xff]
    %v5924 = vld [vmem:[%s10 + $0x118] sm:$0xff]
    %v5925 = vld [vmem:[%s10 + $0x120] sm:$0xff]
    %v5926 = vld [vmem:[%s10 + $0x128] sm:$0xff]
    %v5927 = vld [vmem:[%s10 + $0x130] sm:$0xff]
    %v5928 = vld [vmem:[%s10 + $0x138] sm:$0xff]
    %v5929 = vld [vmem:[%s10 + $0x140] sm:$0xff]
    %v5930 = vld [vmem:[%s10 + $0x148] sm:$0xff]
    %v5931 = vld [vmem:[%s10 + $0x150] sm:$0xff]
    %v5932 = vld [vmem:[%s10 + $0x158] sm:$0xff]
    %v5933 = vld [vmem:[%s10 + $0x160] sm:$0xff]
    %v5934 = vld [vmem:[%s10 + $0x168] sm:$0xff]
    %v5935 = vld [vmem:[%s10 + $0x170] sm:$0xff]
    %v5936 = vld [vmem:[%s10 + $0x178] sm:$0xff]
    %v5937 = vld [vmem:[%s10 + $0x180] sm:$0xff]
    %v5938 = vld [vmem:[%s10 + $0x188] sm:$0xff]
    %v5939 = vld [vmem:[%s10 + $0x190] sm:$0xff]
    %v5940 = vld [vmem:[%s10 + $0x198] sm:$0xff]
    %v5941 = vld [vmem:[%s10 + $0x1a0] sm:$0xff]
    %v5942 = vld [vmem:[%s10 + $0x1a8] sm:$0xff]
    %v5943 = vld [vmem:[%s10 + $0x1b0] sm:$0xff]
    %v5944 = vld [vmem:[%s10 + $0x1b8] sm:$0xff]
    %v5946 = vsel %vm2029, %v5809, 0
    %v5949 = vsel %vm2029, %v5815, 0
    %v5952 = vsel %vm2029, %v5821, 0
    %v5955 = vsel %vm2029, %v5827, 0
    %v5958 = vsel %vm2029, %v5833, 0
    %v5961 = vsel %vm2029, %v5839, 0
    %v5964 = vsel %vm2029, %v5845, 0
    %v5967 = vsel %vm2029, %v5851, 0
    %v5970 = vsel %vm2029, %v5857, 0
    %v5973 = vsel %vm2029, %v5863, 0
    %v5976 = vsel %vm2029, %v5869, 0
    %v5979 = vsel %vm2029, %v5875, 0
    %v5982 = vsel %vm2029, %v5881, 0
    %v5985 = vsel %vm2029, %v5887, 0
    %5987 = vmatprep.subr.mxu0 %v5920
    %5988 = vmatpush1.msra.mxu0 %v5919
    %5989 = vmatprep.subr.mxu0 %v5918
    %5990 = vmatpush1.msra.mxu0 %v5917
    %5991 = vmatprep.subr.mxu0 %v5916
    %5992 = vmatpush1.msra.mxu0 %v5915
    %5993 = vmatprep.subr.mxu0 %v5914
    %5994 = vmatpush1.msra.mxu0 %v5913
    %5995 = vmatprep.subr.mxu0 %v5912
    %5996 = vmatpush1.msra.mxu0 %v5911
    %5997 = vmatprep.subr.mxu0 %v5910
    %5998 = vmatpush1.msra.mxu0 %v5909
    %5999 = vmatprep.subr.mxu0 %v5908
    %6000 = vmatpush1.msra.mxu0 %v5907
    %6001 = vmatprep.subr.mxu0 %v5906
    %6002 = vmatpush1.msra.mxu0 %v5905
    %6003 = vmatprep.subr.mxu0 %v5904
    %6004 = vmatpush1.msra.mxu0 %v5903
    %6005 = vmatprep.subr.mxu0 %v5902
    %6006 = vmatpush1.msra.mxu0 %v5901
    %6007 = vmatprep.subr.mxu0 %v5900
    %6008 = vmatpush1.msra.mxu0 %v5899
    %6009 = vmatprep.subr.mxu0 %v5898
    %6010 = vmatpush1.msra.mxu0 %v5897
    %6011 = vmatprep.subr.mxu0 %v5896
    %6012 = vmatpush1.msra.mxu0 %v5895
    %6013 = vmatprep.subr.mxu0 %v5894
    %6014 = vmatpush1.msra.mxu0 %v5893
    %6015 = vmatprep.subr.mxu0 %v5892
    %6016 = vmatpush1.msra.mxu0 %v5891
    %6017 = vmatprep.subr.mxu0 %v5890
    %6018 = vmatpush1.msra.mxu0 %v5889
    %6019 = vmatprep.subr.mxu0 0.0
    %6020 = vmatpush2.msra.mxu0 0.0
    %6021 = vmatprep.subr.mxu0 0.0
    %6022 = vmatpush2.msra.mxu0 0.0
    %6023 = vmatprep.subr.mxu0 0.0
    %6024 = vmatpush2.msra.mxu0 0.0
    %6025 = vmatprep.subr.mxu0 0.0
    %6026 = vmatpush2.msra.mxu0 0.0
    %6027 = vmatprep.subr.mxu0 %v5944
    %6028 = vmatpush2.msra.mxu0 %v5943
    %6029 = vmatprep.subr.mxu0 %v5942
    %6030 = vmatpush2.msra.mxu0 %v5941
    %6031 = vmatprep.subr.mxu0 %v5940
    %6032 = vmatpush2.msra.mxu0 %v5939
    %6033 = vmatprep.subr.mxu0 %v5938
    %6034 = vmatpush2.msra.mxu0 %v5937
    %6035 = vmatprep.subr.mxu0 %v5936
    %6036 = vmatpush2.msra.mxu0 %v5935
    %6037 = vmatprep.subr.mxu0 %v5934
    %6038 = vmatpush2.msra.mxu0 %v5933
    %6039 = vmatprep.subr.mxu0 %v5932
    %6040 = vmatpush2.msra.mxu0 %v5931
    %6041 = vmatprep.subr.mxu0 %v5930
    %6042 = vmatpush2.msra.mxu0 %v5929
    %6043 = vmatprep.subr.mxu0 %v5928
    %6044 = vmatpush2.msra.mxu0 %v5927
    %6045 = vmatprep.subr.mxu0 %v5926
    %6046 = vmatpush2.msra.mxu0 %v5925
    %6047 = vmatprep.subr.mxu0 %v5924
    %6048 = vmatpush2.msra.mxu0 %v5923
    %6049 = vmatprep.subr.mxu0 %v5922
    %6050 = vmatpush2.msra.mxu0 %v5921
    %6051 = vmatprep.mubr.f32.mxu0 %v5946
    %6052 = vmatmul.mubr.f32.gmra.mxu0 %v5807
    %v6053 = vpop.f32.mrf.mxu0
    %v6054 = vadd.f32 0.0, %v6053
    %v6055 = vpop.f32.mrf.mxu0
    %v6056 = vadd.f32 0.0, %v6055
    %6057 = vmatprep.mubr.f32.mxu0 %v5949
    %6058 = vmatmul.mubr.f32.gmra.mxu0 %v5813
    %v6059 = vpop.f32.mrf.mxu0
    %v6060 = vadd.f32 0.0, %v6059
    %v6061 = vpop.f32.mrf.mxu0
    %v6062 = vadd.f32 0.0, %v6061
    %6063 = vmatprep.mubr.f32.mxu0 %v5952
    %6064 = vmatmul.mubr.f32.gmra.mxu0 %v5819
    %v6065 = vpop.f32.mrf.mxu0
    %v6066 = vadd.f32 0.0, %v6065
    %v6067 = vpop.f32.mrf.mxu0
    %v6068 = vadd.f32 0.0, %v6067
    %6069 = vmatprep.mubr.f32.mxu0 %v5955
    %6070 = vmatmul.mubr.f32.gmra.mxu0 %v5825
    %v6071 = vpop.f32.mrf.mxu0
    %v6072 = vadd.f32 0.0, %v6071
    %v6073 = vpop.f32.mrf.mxu0
    %v6074 = vadd.f32 0.0, %v6073
    %6075 = vmatprep.mubr.f32.mxu0 %v5958
    %6076 = vmatmul.mubr.f32.gmra.mxu0 %v5831
    %v6077 = vpop.f32.mrf.mxu0
    %v6078 = vadd.f32 0.0, %v6077
    %v6079 = vpop.f32.mrf.mxu0
    %v6080 = vadd.f32 0.0, %v6079
    %6081 = vmatprep.mubr.f32.mxu0 %v5961
    %6082 = vmatmul.mubr.f32.gmra.mxu0 %v5837
    %v6083 = vpop.f32.mrf.mxu0
    %v6084 = vadd.f32 0.0, %v6083
    %v6085 = vpop.f32.mrf.mxu0
    %v6086 = vadd.f32 0.0, %v6085
    %6087 = vmatprep.mubr.f32.mxu0 %v5964
    %6088 = vmatmul.mubr.f32.gmra.mxu0 %v5843
    %v6089 = vpop.f32.mrf.mxu0
    %v6090 = vadd.f32 0.0, %v6089
    %v6091 = vpop.f32.mrf.mxu0
    %v6092 = vadd.f32 0.0, %v6091
    %6093 = vmatprep.mubr.f32.mxu0 %v5967
    %6094 = vmatmul.mubr.f32.gmra.mxu0 %v5849
    %v6095 = vpop.f32.mrf.mxu0
    %v6096 = vadd.f32 0.0, %v6095
    %v6097 = vpop.f32.mrf.mxu0
    %v6098 = vadd.f32 0.0, %v6097
    %6099 = vmatprep.mubr.f32.mxu0 %v5970
    %6100 = vmatmul.mubr.f32.gmra.mxu0 %v5855
    %v6101 = vpop.f32.mrf.mxu0
    %v6102 = vadd.f32 0.0, %v6101
    %v6103 = vpop.f32.mrf.mxu0
    %v6104 = vadd.f32 0.0, %v6103
    %6105 = vmatprep.mubr.f32.mxu0 %v5973
    %6106 = vmatmul.mubr.f32.gmra.mxu0 %v5861
    %v6107 = vpop.f32.mrf.mxu0
    %v6108 = vadd.f32 0.0, %v6107
    %v6109 = vpop.f32.mrf.mxu0
    %v6110 = vadd.f32 0.0, %v6109
    %6111 = vmatprep.mubr.f32.mxu0 %v5976
    %6112 = vmatmul.mubr.f32.gmra.mxu0 %v5867
    %v6113 = vpop.f32.mrf.mxu0
    %v6114 = vadd.f32 0.0, %v6113
    %v6115 = vpop.f32.mrf.mxu0
    %v6116 = vadd.f32 0.0, %v6115
    %6117 = vmatprep.mubr.f32.mxu0 %v5979
    %6118 = vmatmul.mubr.f32.gmra.mxu0 %v5873
    %v6119 = vpop.f32.mrf.mxu0
    %v6120 = vadd.f32 0.0, %v6119
    %v6121 = vpop.f32.mrf.mxu0
    %v6122 = vadd.f32 0.0, %v6121
    %6123 = vmatprep.mubr.f32.mxu0 %v5982
    %6124 = vmatmul.mubr.f32.gmra.mxu0 %v5879
    %v6125 = vpop.f32.mrf.mxu0
    %v6126 = vadd.f32 0.0, %v6125
    %v6127 = vpop.f32.mrf.mxu0
    %v6128 = vadd.f32 0.0, %v6127
    %6129 = vmatprep.mubr.f32.mxu0 %v5985
    %6130 = vmatmul.mubr.f32.gmra.mxu0 %v5885
    %v6131 = vpop.f32.mrf.mxu0
    %v6132 = vadd.f32 0.0, %v6131
    %v6133 = vpop.f32.mrf.mxu0
    %v6134 = vadd.f32 0.0, %v6133
    %6135 = vdwg.mxu0
    %v6136 = vmul.f32 %v5709, %v5709
    %v6137 = vmul.f32 %v5710, %v5710
    %v6138 = vmul.f32 %v5711, %v5711
    %v6139 = vmul.f32 %v5712, %v5712
    %v6140 = vmul.f32 %v5713, %v5713
    %v6141 = vmul.f32 %v5714, %v5714
    %v6142 = vmul.f32 %v5715, %v5715
    %v6143 = vmul.f32 %v5716, %v5716
    %v6144 = vmul.f32 %v5717, %v5717
    %v6145 = vmul.f32 %v5718, %v5718
    %v6146 = vmul.f32 %v5719, %v5719
    %v6147 = vmul.f32 %v5720, %v5720
    %v6148 = vmul.f32 %v5721, %v5721
    %v6149 = vmul.f32 %v5722, %v5722
    %v6150 = vmul.f32 %v5723, %v5723
    %v6151 = vmul.f32 %v5724, %v5724
    %v6152 = vmul.f32 %v5725, %v5725
    %v6153 = vmul.f32 %v5726, %v5726
    %v6154 = vmul.f32 %v5727, %v5727
    %v6155 = vmul.f32 %v5728, %v5728
    %v6156 = vmul.f32 %v5729, %v5729
    %v6157 = vmul.f32 %v5730, %v5730
    %v6158 = vmul.f32 %v5731, %v5731
    %v6159 = vmul.f32 %v5732, %v5732
    %v6160 = vmul.f32 %v5733, %v5733
    %v6161 = vmul.f32 %v5734, %v5734
    %v6162 = vmul.f32 %v5735, %v5735
    %v6163 = vmul.f32 %v5736, %v5736
    %6164 = vmatprep.subr.mxu0 0.0
    %6165 = vmatpush1.msra.mxu0 0.0
    %6166 = vmatprep.subr.mxu0 0.0
    %6167 = vmatpush1.msra.mxu0 0.0
    %6168 = vmatprep.subr.mxu0 %v6163
    %6169 = vmatpush1.msra.mxu0 %v6162
    %6170 = vmatprep.subr.mxu0 %v6161
    %6171 = vmatpush1.msra.mxu0 %v6160
    %6172 = vmatprep.subr.mxu0 %v6159
    %6173 = vmatpush1.msra.mxu0 %v6158
    %6174 = vmatprep.subr.mxu0 %v6157
    %6175 = vmatpush1.msra.mxu0 %v6156
    %6176 = vmatprep.subr.mxu0 %v6155
    %6177 = vmatpush1.msra.mxu0 %v6154
    %6178 = vmatprep.subr.mxu0 %v6153
    %6179 = vmatpush1.msra.mxu0 %v6152
    %6180 = vmatprep.subr.mxu0 %v6151
    %6181 = vmatpush1.msra.mxu0 %v6150
    %6182 = vmatprep.subr.mxu0 %v6149
    %6183 = vmatpush1.msra.mxu0 %v6148
    %6184 = vmatprep.subr.mxu0 %v6147
    %6185 = vmatpush1.msra.mxu0 %v6146
    %6186 = vmatprep.subr.mxu0 %v6145
    %6187 = vmatpush1.msra.mxu0 %v6144
    %6188 = vmatprep.subr.mxu0 %v6143
    %6189 = vmatpush1.msra.mxu0 %v6142
    %6190 = vmatprep.subr.mxu0 %v6141
    %6191 = vmatpush1.msra.mxu0 %v6140
    %6192 = vmatprep.subr.mxu0 %v6139
    %6193 = vmatpush1.msra.mxu0 %v6138
    %6194 = vmatprep.subr.mxu0 %v6137
    %6195 = vmatpush1.msra.mxu0 %v6136
    %6196 = vmatprep.subr.mxu0 0.0
    %6197 = vmatpush2.msra.mxu0 0.0
    %6198 = vmatprep.subr.mxu0 0.0
    %6199 = vmatpush2.msra.mxu0 0.0
    %6200 = vmatprep.subr.mxu0 0.0
    %6201 = vmatpush2.msra.mxu0 0.0
    %6202 = vmatprep.subr.mxu0 0.0
    %6203 = vmatpush2.msra.mxu0 0.0
    %6204 = vmatprep.subr.mxu0 0.0
    %6205 = vmatpush2.msra.mxu0 0.0
    %6206 = vmatprep.subr.mxu0 0.0
    %6207 = vmatpush2.msra.mxu0 0.0
    %6208 = vmatprep.subr.mxu0 0.0
    %6209 = vmatpush2.msra.mxu0 0.0
    %6210 = vmatprep.subr.mxu0 0.0
    %6211 = vmatpush2.msra.mxu0 0.0
    %6212 = vmatprep.subr.mxu0 0.0
    %6213 = vmatpush2.msra.mxu0 0.0
    %6214 = vmatprep.subr.mxu0 0.0
    %6215 = vmatpush2.msra.mxu0 0.0
    %6216 = vmatprep.subr.mxu0 0.0
    %6217 = vmatpush2.msra.mxu0 0.0
    %6218 = vmatprep.subr.mxu0 0.0
    %6219 = vmatpush2.msra.mxu0 0.0
    %6220 = vmatprep.subr.mxu0 0.0
    %6221 = vmatpush2.msra.mxu0 0.0
    %6222 = vmatprep.subr.mxu0 0.0
    %6223 = vmatpush2.msra.mxu0 0.0
    %6224 = vmatprep.subr.mxu0 0.0
    %6225 = vmatpush2.msra.mxu0 0.0
    %6226 = vmatprep.subr.mxu0 0.0
    %6227 = vmatpush2.msra.mxu0 0.0
    %6228 = vmatprep.mubr.f32.mxu0 0.0
    %6229 = vmatmul.mubr.f32.gmra.mxu0 %v5738
    %v6230 = vpop.f32.mrf.mxu0
    %v6231 = vadd.f32 0.0, %v6230
    %v6232 = vpop.f32.mrf.mxu0
    %v6233 = vadd.f32 0.0, %v6232
    %6234 = vmatprep.mubr.f32.mxu0 0.0
    %6235 = vmatmul.mubr.f32.gmra.mxu0 %v5738
    %v6236 = vpop.f32.mrf.mxu0
    %v6237 = vadd.f32 0.0, %v6236
    %v6238 = vpop.f32.mrf.mxu0
    %v6239 = vadd.f32 0.0, %v6238
    %6240 = vmatprep.mubr.f32.mxu0 0.0
    %6241 = vmatmul.mubr.f32.gmra.mxu0 %v5738
    %v6242 = vpop.f32.mrf.mxu0
    %v6243 = vadd.f32 0.0, %v6242
    %v6244 = vpop.f32.mrf.mxu0
    %v6245 = vadd.f32 0.0, %v6244
    %6246 = vmatprep.mubr.f32.mxu0 0.0
    %6247 = vmatmul.mubr.f32.gmra.mxu0 %v5738
    %v6248 = vpop.f32.mrf.mxu0
    %v6249 = vadd.f32 0.0, %v6248
    %v6250 = vpop.f32.mrf.mxu0
    %v6251 = vadd.f32 0.0, %v6250
    %6252 = vmatprep.mubr.f32.mxu0 0.0
    %6253 = vmatmul.mubr.f32.gmra.mxu0 %v5738
    %v6254 = vpop.f32.mrf.mxu0
    %v6255 = vadd.f32 0.0, %v6254
    %v6256 = vpop.f32.mrf.mxu0
    %v6257 = vadd.f32 0.0, %v6256
    %6258 = vmatprep.mubr.f32.mxu0 0.0
    %6259 = vmatmul.mubr.f32.gmra.mxu0 %v5738
    %v6260 = vpop.f32.mrf.mxu0
    %v6261 = vadd.f32 0.0, %v6260
    %v6262 = vpop.f32.mrf.mxu0
    %v6263 = vadd.f32 0.0, %v6262
    %6264 = vmatprep.mubr.f32.mxu0 0.0
    %6265 = vmatmul.mubr.f32.gmra.mxu0 %v5738
    %v6266 = vpop.f32.mrf.mxu0
    %v6267 = vadd.f32 0.0, %v6266
    %v6268 = vpop.f32.mrf.mxu0
    %v6269 = vadd.f32 0.0, %v6268
    %6270 = vmatprep.mubr.f32.mxu0 0.0
    %6271 = vmatmul.mubr.f32.gmra.mxu0 %v5738
    %v6272 = vpop.f32.mrf.mxu0
    %v6273 = vadd.f32 0.0, %v6272
    %v6274 = vpop.f32.mrf.mxu0
    %v6275 = vadd.f32 0.0, %v6274
    %6276 = vmatprep.mubr.f32.mxu0 0.0
    %6277 = vmatmul.mubr.f32.gmra.mxu0 %v5738
    %v6278 = vpop.f32.mrf.mxu0
    %v6279 = vadd.f32 0.0, %v6278
    %v6280 = vpop.f32.mrf.mxu0
    %v6281 = vadd.f32 0.0, %v6280
    %6282 = vmatprep.mubr.f32.mxu0 0.0
    %6283 = vmatmul.mubr.f32.gmra.mxu0 %v5738
    %v6284 = vpop.f32.mrf.mxu0
    %v6285 = vadd.f32 0.0, %v6284
    %v6286 = vpop.f32.mrf.mxu0
    %v6287 = vadd.f32 0.0, %v6286
    %6288 = vmatprep.mubr.f32.mxu0 0.0
    %6289 = vmatmul.mubr.f32.gmra.mxu0 %v5738
    %v6290 = vpop.f32.mrf.mxu0
    %v6291 = vadd.f32 0.0, %v6290
    %v6292 = vpop.f32.mrf.mxu0
    %v6293 = vadd.f32 0.0, %v6292
    %6294 = vmatprep.mubr.f32.mxu0 0.0
    %6295 = vmatmul.mubr.f32.gmra.mxu0 %v5738
    %v6296 = vpop.f32.mrf.mxu0
    %v6297 = vadd.f32 0.0, %v6296
    %v6298 = vpop.f32.mrf.mxu0
    %v6299 = vadd.f32 0.0, %v6298
    %6300 = vmatprep.mubr.f32.mxu0 0.0
    %6301 = vmatmul.mubr.f32.gmra.mxu0 %v5738
    %v6302 = vpop.f32.mrf.mxu0
    %v6303 = vadd.f32 0.0, %v6302
    %v6304 = vpop.f32.mrf.mxu0
    %v6305 = vadd.f32 0.0, %v6304
    %6306 = vmatprep.mubr.f32.mxu0 0.0
    %6307 = vmatmul.mubr.f32.gmra.mxu0 %v5738
    %v6308 = vpop.f32.mrf.mxu0
    %v6309 = vadd.f32 0.0, %v6308
    %v6310 = vpop.f32.mrf.mxu0
    %v6311 = vadd.f32 0.0, %v6310
    %6312 = vdwg.mxu0
    %v6314 = vsel %vm2029, %v6233, 0
    %v6317 = vsel %vm2029, %v6239, 0
    %v6320 = vsel %vm2029, %v6245, 0
    %v6323 = vsel %vm2029, %v6251, 0
    %v6326 = vsel %vm2029, %v6257, 0
    %v6329 = vsel %vm2029, %v6263, 0
    %v6332 = vsel %vm2029, %v6269, 0
    %v6335 = vsel %vm2029, %v6275, 0
    %v6338 = vsel %vm2029, %v6281, 0
    %v6341 = vsel %vm2029, %v6287, 0
    %v6344 = vsel %vm2029, %v6293, 0
    %v6347 = vsel %vm2029, %v6299, 0
    %v6350 = vsel %vm2029, %v6305, 0
    %v6353 = vsel %vm2029, %v6311, 0
    %6355 = vmatprep.subr.mxu0 %v5920
    %6356 = vmatpush1.msra.mxu0 %v5919
    %6357 = vmatprep.subr.mxu0 %v5918
    %6358 = vmatpush1.msra.mxu0 %v5917
    %6359 = vmatprep.subr.mxu0 %v5916
    %6360 = vmatpush1.msra.mxu0 %v5915
    %6361 = vmatprep.subr.mxu0 %v5914
    %6362 = vmatpush1.msra.mxu0 %v5913
    %6363 = vmatprep.subr.mxu0 %v5912
    %6364 = vmatpush1.msra.mxu0 %v5911
    %6365 = vmatprep.subr.mxu0 %v5910
    %6366 = vmatpush1.msra.mxu0 %v5909
    %6367 = vmatprep.subr.mxu0 %v5908
    %6368 = vmatpush1.msra.mxu0 %v5907
    %6369 = vmatprep.subr.mxu0 %v5906
    %6370 = vmatpush1.msra.mxu0 %v5905
    %6371 = vmatprep.subr.mxu0 %v5904
    %6372 = vmatpush1.msra.mxu0 %v5903
    %6373 = vmatprep.subr.mxu0 %v5902
    %6374 = vmatpush1.msra.mxu0 %v5901
    %6375 = vmatprep.subr.mxu0 %v5900
    %6376 = vmatpush1.msra.mxu0 %v5899
    %6377 = vmatprep.subr.mxu0 %v5898
    %6378 = vmatpush1.msra.mxu0 %v5897
    %6379 = vmatprep.subr.mxu0 %v5896
    %6380 = vmatpush1.msra.mxu0 %v5895
    %6381 = vmatprep.subr.mxu0 %v5894
    %6382 = vmatpush1.msra.mxu0 %v5893
    %6383 = vmatprep.subr.mxu0 %v5892
    %6384 = vmatpush1.msra.mxu0 %v5891
    %6385 = vmatprep.subr.mxu0 %v5890
    %6386 = vmatpush1.msra.mxu0 %v5889
    %6387 = vmatprep.subr.mxu0 0.0
    %6388 = vmatpush2.msra.mxu0 0.0
    %6389 = vmatprep.subr.mxu0 0.0
    %6390 = vmatpush2.msra.mxu0 0.0
    %6391 = vmatprep.subr.mxu0 0.0
    %6392 = vmatpush2.msra.mxu0 0.0
    %6393 = vmatprep.subr.mxu0 0.0
    %6394 = vmatpush2.msra.mxu0 0.0
    %6395 = vmatprep.subr.mxu0 %v5944
    %6396 = vmatpush2.msra.mxu0 %v5943
    %6397 = vmatprep.subr.mxu0 %v5942
    %6398 = vmatpush2.msra.mxu0 %v5941
    %6399 = vmatprep.subr.mxu0 %v5940
    %6400 = vmatpush2.msra.mxu0 %v5939
    %6401 = vmatprep.subr.mxu0 %v5938
    %6402 = vmatpush2.msra.mxu0 %v5937
    %6403 = vmatprep.subr.mxu0 %v5936
    %6404 = vmatpush2.msra.mxu0 %v5935
    %6405 = vmatprep.subr.mxu0 %v5934
    %6406 = vmatpush2.msra.mxu0 %v5933
    %6407 = vmatprep.subr.mxu0 %v5932
    %6408 = vmatpush2.msra.mxu0 %v5931
    %6409 = vmatprep.subr.mxu0 %v5930
    %6410 = vmatpush2.msra.mxu0 %v5929
    %6411 = vmatprep.subr.mxu0 %v5928
    %6412 = vmatpush2.msra.mxu0 %v5927
    %6413 = vmatprep.subr.mxu0 %v5926
    %6414 = vmatpush2.msra.mxu0 %v5925
    %6415 = vmatprep.subr.mxu0 %v5924
    %6416 = vmatpush2.msra.mxu0 %v5923
    %6417 = vmatprep.subr.mxu0 %v5922
    %6418 = vmatpush2.msra.mxu0 %v5921
    %6419 = vmatprep.mubr.f32.mxu0 %v6314
    %6420 = vmatmul.mubr.f32.gmra.mxu0 %v6231
    %v6421 = vpop.f32.mrf.mxu0
    %v6422 = vadd.f32 0.0, %v6421
    %v6423 = vpop.f32.mrf.mxu0
    %v6424 = vadd.f32 0.0, %v6423
    %6425 = vmatprep.mubr.f32.mxu0 %v6317
    %6426 = vmatmul.mubr.f32.gmra.mxu0 %v6237
    %v6427 = vpop.f32.mrf.mxu0
    %v6428 = vadd.f32 0.0, %v6427
    %v6429 = vpop.f32.mrf.mxu0
    %v6430 = vadd.f32 0.0, %v6429
    %6431 = vmatprep.mubr.f32.mxu0 %v6320
    %6432 = vmatmul.mubr.f32.gmra.mxu0 %v6243
    %v6433 = vpop.f32.mrf.mxu0
    %v6434 = vadd.f32 0.0, %v6433
    %v6435 = vpop.f32.mrf.mxu0
    %v6436 = vadd.f32 0.0, %v6435
    %6437 = vmatprep.mubr.f32.mxu0 %v6323
    %6438 = vmatmul.mubr.f32.gmra.mxu0 %v6249
    %v6439 = vpop.f32.mrf.mxu0
    %v6440 = vadd.f32 0.0, %v6439
    %v6441 = vpop.f32.mrf.mxu0
    %v6442 = vadd.f32 0.0, %v6441
    %6443 = vmatprep.mubr.f32.mxu0 %v6326
    %6444 = vmatmul.mubr.f32.gmra.mxu0 %v6255
    %v6445 = vpop.f32.mrf.mxu0
    %v6446 = vadd.f32 0.0, %v6445
    %v6447 = vpop.f32.mrf.mxu0
    %v6448 = vadd.f32 0.0, %v6447
    %6449 = vmatprep.mubr.f32.mxu0 %v6329
    %6450 = vmatmul.mubr.f32.gmra.mxu0 %v6261
    %v6451 = vpop.f32.mrf.mxu0
    %v6452 = vadd.f32 0.0, %v6451
    %v6453 = vpop.f32.mrf.mxu0
    %v6454 = vadd.f32 0.0, %v6453
    %6455 = vmatprep.mubr.f32.mxu0 %v6332
    %6456 = vmatmul.mubr.f32.gmra.mxu0 %v6267
    %v6457 = vpop.f32.mrf.mxu0
    %v6458 = vadd.f32 0.0, %v6457
    %v6459 = vpop.f32.mrf.mxu0
    %v6460 = vadd.f32 0.0, %v6459
    %6461 = vmatprep.mubr.f32.mxu0 %v6335
    %6462 = vmatmul.mubr.f32.gmra.mxu0 %v6273
    %v6463 = vpop.f32.mrf.mxu0
    %v6464 = vadd.f32 0.0, %v6463
    %v6465 = vpop.f32.mrf.mxu0
    %v6466 = vadd.f32 0.0, %v6465
    %6467 = vmatprep.mubr.f32.mxu0 %v6338
    %6468 = vmatmul.mubr.f32.gmra.mxu0 %v6279
    %v6469 = vpop.f32.mrf.mxu0
    %v6470 = vadd.f32 0.0, %v6469
    %v6471 = vpop.f32.mrf.mxu0
    %v6472 = vadd.f32 0.0, %v6471
    %6473 = vmatprep.mubr.f32.mxu0 %v6341
    %6474 = vmatmul.mubr.f32.gmra.mxu0 %v6285
    %v6475 = vpop.f32.mrf.mxu0
    %v6476 = vadd.f32 0.0, %v6475
    %v6477 = vpop.f32.mrf.mxu0
    %v6478 = vadd.f32 0.0, %v6477
    %6479 = vmatprep.mubr.f32.mxu0 %v6344
    %6480 = vmatmul.mubr.f32.gmra.mxu0 %v6291
    %v6481 = vpop.f32.mrf.mxu0
    %v6482 = vadd.f32 0.0, %v6481
    %v6483 = vpop.f32.mrf.mxu0
    %v6484 = vadd.f32 0.0, %v6483
    %6485 = vmatprep.mubr.f32.mxu0 %v6347
    %6486 = vmatmul.mubr.f32.gmra.mxu0 %v6297
    %v6487 = vpop.f32.mrf.mxu0
    %v6488 = vadd.f32 0.0, %v6487
    %v6489 = vpop.f32.mrf.mxu0
    %v6490 = vadd.f32 0.0, %v6489
    %6491 = vmatprep.mubr.f32.mxu0 %v6350
    %6492 = vmatmul.mubr.f32.gmra.mxu0 %v6303
    %v6493 = vpop.f32.mrf.mxu0
    %v6494 = vadd.f32 0.0, %v6493
    %v6495 = vpop.f32.mrf.mxu0
    %v6496 = vadd.f32 0.0, %v6495
    %6497 = vmatprep.mubr.f32.mxu0 %v6353
    %6498 = vmatmul.mubr.f32.gmra.mxu0 %v6309
    %v6499 = vpop.f32.mrf.mxu0
    %v6500 = vadd.f32 0.0, %v6499
    %v6501 = vpop.f32.mrf.mxu0
    %v6502 = vadd.f32 0.0, %v6501
    %6503 = vdwg.mxu0
    %v6504 = vmul.f32 %v6054, %v6054
    %v6505 = vmul.f32 %v6056, %v6056
    %v6506 = vmul.f32 %v6060, %v6060
    %v6507 = vmul.f32 %v6062, %v6062
    %v6508 = vmul.f32 %v6066, %v6066
    %v6509 = vmul.f32 %v6068, %v6068
    %v6510 = vmul.f32 %v6072, %v6072
    %v6511 = vmul.f32 %v6074, %v6074
    %v6512 = vmul.f32 %v6078, %v6078
    %v6513 = vmul.f32 %v6080, %v6080
    %v6514 = vmul.f32 %v6084, %v6084
    %v6515 = vmul.f32 %v6086, %v6086
    %v6516 = vmul.f32 %v6090, %v6090
    %v6517 = vmul.f32 %v6092, %v6092
    %v6518 = vmul.f32 %v6096, %v6096
    %v6519 = vmul.f32 %v6098, %v6098
    %v6520 = vmul.f32 %v6102, %v6102
    %v6521 = vmul.f32 %v6104, %v6104
    %v6522 = vmul.f32 %v6108, %v6108
    %v6523 = vmul.f32 %v6110, %v6110
    %v6524 = vmul.f32 %v6114, %v6114
    %v6525 = vmul.f32 %v6116, %v6116
    %v6526 = vmul.f32 %v6120, %v6120
    %v6527 = vmul.f32 %v6122, %v6122
    %v6528 = vmul.f32 %v6126, %v6126
    %v6529 = vmul.f32 %v6128, %v6128
    %v6530 = vmul.f32 %v6132, %v6132
    %v6531 = vmul.f32 %v6134, %v6134
    %v6532 = vsub.f32 %v6422, %v6504
    %v6533 = vsub.f32 %v6424, %v6505
    %v6534 = vsub.f32 %v6428, %v6506
    %v6535 = vsub.f32 %v6430, %v6507
    %v6536 = vsub.f32 %v6434, %v6508
    %v6537 = vsub.f32 %v6436, %v6509
    %v6538 = vsub.f32 %v6440, %v6510
    %v6539 = vsub.f32 %v6442, %v6511
    %v6540 = vsub.f32 %v6446, %v6512
    %v6541 = vsub.f32 %v6448, %v6513
    %v6542 = vsub.f32 %v6452, %v6514
    %v6543 = vsub.f32 %v6454, %v6515
    %v6544 = vsub.f32 %v6458, %v6516
    %v6545 = vsub.f32 %v6460, %v6517
    %v6546 = vsub.f32 %v6464, %v6518
    %v6547 = vsub.f32 %v6466, %v6519
    %v6548 = vsub.f32 %v6470, %v6520
    %v6549 = vsub.f32 %v6472, %v6521
    %v6550 = vsub.f32 %v6476, %v6522
    %v6551 = vsub.f32 %v6478, %v6523
    %v6552 = vsub.f32 %v6482, %v6524
    %v6553 = vsub.f32 %v6484, %v6525
    %v6554 = vsub.f32 %v6488, %v6526
    %v6555 = vsub.f32 %v6490, %v6527
    %v6556 = vsub.f32 %v6494, %v6528
    %v6557 = vsub.f32 %v6496, %v6529
    %v6558 = vsub.f32 %v6500, %v6530
    %v6559 = vsub.f32 %v6502, %v6531
    %v6560 = vsub.f32 %v5709, %v6054
    %v6561 = vsub.f32 %v5710, %v6056
    %v6562 = vsub.f32 %v5711, %v6060
    %v6563 = vsub.f32 %v5712, %v6062
    %v6564 = vsub.f32 %v5713, %v6066
    %v6565 = vsub.f32 %v5714, %v6068
    %v6566 = vsub.f32 %v5715, %v6072
    %v6567 = vsub.f32 %v5716, %v6074
    %v6568 = vsub.f32 %v5717, %v6078
    %v6569 = vsub.f32 %v5718, %v6080
    %v6570 = vsub.f32 %v5719, %v6084
    %v6571 = vsub.f32 %v5720, %v6086
    %v6572 = vsub.f32 %v5721, %v6090
    %v6573 = vsub.f32 %v5722, %v6092
    %v6574 = vsub.f32 %v5723, %v6096
    %v6575 = vsub.f32 %v5724, %v6098
    %v6576 = vsub.f32 %v5725, %v6102
    %v6577 = vsub.f32 %v5726, %v6104
    %v6578 = vsub.f32 %v5727, %v6108
    %v6579 = vsub.f32 %v5728, %v6110
    %v6580 = vsub.f32 %v5729, %v6114
    %v6581 = vsub.f32 %v5730, %v6116
    %v6582 = vsub.f32 %v5731, %v6120
    %v6583 = vsub.f32 %v5732, %v6122
    %v6584 = vsub.f32 %v5733, %v6126
    %v6585 = vsub.f32 %v5734, %v6128
    %v6586 = vsub.f32 %v5735, %v6132
    %v6587 = vsub.f32 %v5736, %v6134
    %v6588 = vadd.f32 %v6532, 1e-05
    %v6589 = vadd.f32 %v6533, 1e-05
    %v6590 = vadd.f32 %v6534, 1e-05
    %v6591 = vadd.f32 %v6535, 1e-05
    %v6592 = vadd.f32 %v6536, 1e-05
    %v6593 = vadd.f32 %v6537, 1e-05
    %v6594 = vadd.f32 %v6538, 1e-05
    %v6595 = vadd.f32 %v6539, 1e-05
    %v6596 = vadd.f32 %v6540, 1e-05
    %v6597 = vadd.f32 %v6541, 1e-05
    %v6598 = vadd.f32 %v6542, 1e-05
    %v6599 = vadd.f32 %v6543, 1e-05
    %v6600 = vadd.f32 %v6544, 1e-05
    %v6601 = vadd.f32 %v6545, 1e-05
    %v6602 = vadd.f32 %v6546, 1e-05
    %v6603 = vadd.f32 %v6547, 1e-05
    %v6604 = vadd.f32 %v6548, 1e-05
    %v6605 = vadd.f32 %v6549, 1e-05
    %v6606 = vadd.f32 %v6550, 1e-05
    %v6607 = vadd.f32 %v6551, 1e-05
    %v6608 = vadd.f32 %v6552, 1e-05
    %v6609 = vadd.f32 %v6553, 1e-05
    %v6610 = vadd.f32 %v6554, 1e-05
    %v6611 = vadd.f32 %v6555, 1e-05
    %v6612 = vadd.f32 %v6556, 1e-05
    %v6613 = vadd.f32 %v6557, 1e-05
    %v6614 = vadd.f32 %v6558, 1e-05
    %v6615 = vadd.f32 %v6559, 1e-05
    %v6616 = vrsqrt.pop %v6588
    %v6617 = vrsqrt.pop %v6589
    %v6618 = vrsqrt.pop %v6590
    %v6619 = vrsqrt.pop %v6591
    %v6620 = vrsqrt.pop %v6592
    %v6621 = vrsqrt.pop %v6593
    %v6622 = vrsqrt.pop %v6594
    %v6623 = vrsqrt.pop %v6595
    %v6624 = vrsqrt.pop %v6596
    %v6625 = vrsqrt.pop %v6597
    %v6626 = vrsqrt.pop %v6598
    %v6627 = vrsqrt.pop %v6599
    %v6628 = vrsqrt.pop %v6600
    %v6629 = vrsqrt.pop %v6601
    %v6630 = vrsqrt.pop %v6602
    %v6631 = vrsqrt.pop %v6603
    %v6632 = vrsqrt.pop %v6604
    %v6633 = vrsqrt.pop %v6605
    %v6634 = vrsqrt.pop %v6606
    %v6635 = vrsqrt.pop %v6607
    %v6636 = vrsqrt.pop %v6608
    %v6637 = vrsqrt.pop %v6609
    %v6638 = vrsqrt.pop %v6610
    %v6639 = vrsqrt.pop %v6611
    %v6640 = vrsqrt.pop %v6612
    %v6641 = vrsqrt.pop %v6613
    %v6642 = vrsqrt.pop %v6614
    %v6643 = vrsqrt.pop %v6615
    %v6644 = vmul.f32 %v6560, %v6616
    %v6645 = vmul.f32 %v6561, %v6617
    %v6646 = vmul.f32 %v6562, %v6618
    %v6647 = vmul.f32 %v6563, %v6619
    %v6648 = vmul.f32 %v6564, %v6620
    %v6649 = vmul.f32 %v6565, %v6621
    %v6650 = vmul.f32 %v6566, %v6622
    %v6651 = vmul.f32 %v6567, %v6623
    %v6652 = vmul.f32 %v6568, %v6624
    %v6653 = vmul.f32 %v6569, %v6625
    %v6654 = vmul.f32 %v6570, %v6626
    %v6655 = vmul.f32 %v6571, %v6627
    %v6656 = vmul.f32 %v6572, %v6628
    %v6657 = vmul.f32 %v6573, %v6629
    %v6658 = vmul.f32 %v6574, %v6630
    %v6659 = vmul.f32 %v6575, %v6631
    %v6660 = vmul.f32 %v6576, %v6632
    %v6661 = vmul.f32 %v6577, %v6633
    %v6662 = vmul.f32 %v6578, %v6634
    %v6663 = vmul.f32 %v6579, %v6635
    %v6664 = vmul.f32 %v6580, %v6636
    %v6665 = vmul.f32 %v6581, %v6637
    %v6666 = vmul.f32 %v6582, %v6638
    %v6667 = vmul.f32 %v6583, %v6639
    %v6668 = vmul.f32 %v6584, %v6640
    %v6669 = vmul.f32 %v6585, %v6641
    %v6670 = vmul.f32 %v6586, %v6642
    %v6671 = vmul.f32 %v6587, %v6643
    %v6672 = vld [vmem:[%s11] sm:$0x3]
    %v6674 = vlaneseq
    %v6675 = vshrl.u32 %v6674, 7
    %v6676 = vsub.s32 0, %v6675
    %v6677 = vrot.slane %v6672, %v6676
    %v6678 = vlaneseq
    %v6679 = vshrl.u32 %v6678, 7
    %v6680 = vsub.s32 1, %v6679
    %v6681 = vrot.slane %v6672, %v6680
    %v6684 = vmul.f32 %v6644, %v6677
    %v6685 = vmul.f32 %v6645, %v6681
    %v6686 = vmul.f32 %v6646, %v6677
    %v6687 = vmul.f32 %v6647, %v6681
    %v6688 = vmul.f32 %v6648, %v6677
    %v6689 = vmul.f32 %v6649, %v6681
    %v6690 = vmul.f32 %v6650, %v6677
    %v6691 = vmul.f32 %v6651, %v6681
    %v6692 = vmul.f32 %v6652, %v6677
    %v6693 = vmul.f32 %v6653, %v6681
    %v6694 = vmul.f32 %v6654, %v6677
    %v6695 = vmul.f32 %v6655, %v6681
    %v6696 = vmul.f32 %v6656, %v6677
    %v6697 = vmul.f32 %v6657, %v6681
    %v6698 = vmul.f32 %v6658, %v6677
    %v6699 = vmul.f32 %v6659, %v6681
    %v6700 = vmul.f32 %v6660, %v6677
    %v6701 = vmul.f32 %v6661, %v6681
    %v6702 = vmul.f32 %v6662, %v6677
    %v6703 = vmul.f32 %v6663, %v6681
    %v6704 = vmul.f32 %v6664, %v6677
    %v6705 = vmul.f32 %v6665, %v6681
    %v6706 = vmul.f32 %v6666, %v6677
    %v6707 = vmul.f32 %v6667, %v6681
    %v6708 = vmul.f32 %v6668, %v6677
    %v6709 = vmul.f32 %v6669, %v6681
    %v6710 = vmul.f32 %v6670, %v6677
    %v6711 = vmul.f32 %v6671, %v6681
    %v6712 = vld [vmem:[%s12] sm:$0x3]
    %v6714 = vlaneseq
    %v6715 = vshrl.u32 %v6714, 7
    %v6716 = vsub.s32 0, %v6715
    %v6717 = vrot.slane %v6712, %v6716
    %v6718 = vlaneseq
    %v6719 = vshrl.u32 %v6718, 7
    %v6720 = vsub.s32 1, %v6719
    %v6721 = vrot.slane %v6712, %v6720
    %v6724 = vadd.f32 %v6684, %v6717
    %v6725 = vadd.f32 %v6685, %v6721
    %v6726 = vadd.f32 %v6686, %v6717
    %v6727 = vadd.f32 %v6687, %v6721
    %v6728 = vadd.f32 %v6688, %v6717
    %v6729 = vadd.f32 %v6689, %v6721
    %v6730 = vadd.f32 %v6690, %v6717
    %v6731 = vadd.f32 %v6691, %v6721
    %v6732 = vadd.f32 %v6692, %v6717
    %v6733 = vadd.f32 %v6693, %v6721
    %v6734 = vadd.f32 %v6694, %v6717
    %v6735 = vadd.f32 %v6695, %v6721
    %v6736 = vadd.f32 %v6696, %v6717
    %v6737 = vadd.f32 %v6697, %v6721
    %v6738 = vadd.f32 %v6698, %v6717
    %v6739 = vadd.f32 %v6699, %v6721
    %v6740 = vadd.f32 %v6700, %v6717
    %v6741 = vadd.f32 %v6701, %v6721
    %v6742 = vadd.f32 %v6702, %v6717
    %v6743 = vadd.f32 %v6703, %v6721
    %v6744 = vadd.f32 %v6704, %v6717
    %v6745 = vadd.f32 %v6705, %v6721
    %v6746 = vadd.f32 %v6706, %v6717
    %v6747 = vadd.f32 %v6707, %v6721
    %v6748 = vadd.f32 %v6708, %v6717
    %v6749 = vadd.f32 %v6709, %v6721
    %v6750 = vadd.f32 %v6710, %v6717
    %v6751 = vadd.f32 %v6711, %v6721
    %vm6752 = vcmp.gt.f32.partialorder %v6724, 0.0
    %vm6753 = vcmp.gt.f32.partialorder %v6725, 0.0
    %vm6754 = vcmp.gt.f32.partialorder %v6726, 0.0
    %vm6755 = vcmp.gt.f32.partialorder %v6727, 0.0
    %vm6756 = vcmp.gt.f32.partialorder %v6728, 0.0
    %vm6757 = vcmp.gt.f32.partialorder %v6729, 0.0
    %vm6758 = vcmp.gt.f32.partialorder %v6730, 0.0
    %vm6759 = vcmp.gt.f32.partialorder %v6731, 0.0
    %vm6760 = vcmp.gt.f32.partialorder %v6732, 0.0
    %vm6761 = vcmp.gt.f32.partialorder %v6733, 0.0
    %vm6762 = vcmp.gt.f32.partialorder %v6734, 0.0
    %vm6763 = vcmp.gt.f32.partialorder %v6735, 0.0
    %vm6764 = vcmp.gt.f32.partialorder %v6736, 0.0
    %vm6765 = vcmp.gt.f32.partialorder %v6737, 0.0
    %vm6766 = vcmp.gt.f32.partialorder %v6738, 0.0
    %vm6767 = vcmp.gt.f32.partialorder %v6739, 0.0
    %vm6768 = vcmp.gt.f32.partialorder %v6740, 0.0
    %vm6769 = vcmp.gt.f32.partialorder %v6741, 0.0
    %vm6770 = vcmp.gt.f32.partialorder %v6742, 0.0
    %vm6771 = vcmp.gt.f32.partialorder %v6743, 0.0
    %vm6772 = vcmp.gt.f32.partialorder %v6744, 0.0
    %vm6773 = vcmp.gt.f32.partialorder %v6745, 0.0
    %vm6774 = vcmp.gt.f32.partialorder %v6746, 0.0
    %vm6775 = vcmp.gt.f32.partialorder %v6747, 0.0
    %vm6776 = vcmp.gt.f32.partialorder %v6748, 0.0
    %vm6777 = vcmp.gt.f32.partialorder %v6749, 0.0
    %vm6778 = vcmp.gt.f32.partialorder %v6750, 0.0
    %vm6779 = vcmp.gt.f32.partialorder %v6751, 0.0
    %v6780 = vmul.f32 %v6724, 0.2
    %v6781 = vmul.f32 %v6725, 0.2
    %v6782 = vmul.f32 %v6726, 0.2
    %v6783 = vmul.f32 %v6727, 0.2
    %v6784 = vmul.f32 %v6728, 0.2
    %v6785 = vmul.f32 %v6729, 0.2
    %v6786 = vmul.f32 %v6730, 0.2
    %v6787 = vmul.f32 %v6731, 0.2
    %v6788 = vmul.f32 %v6732, 0.2
    %v6789 = vmul.f32 %v6733, 0.2
    %v6790 = vmul.f32 %v6734, 0.2
    %v6791 = vmul.f32 %v6735, 0.2
    %v6792 = vmul.f32 %v6736, 0.2
    %v6793 = vmul.f32 %v6737, 0.2
    %v6794 = vmul.f32 %v6738, 0.2
    %v6795 = vmul.f32 %v6739, 0.2
    %v6796 = vmul.f32 %v6740, 0.2
    %v6797 = vmul.f32 %v6741, 0.2
    %v6798 = vmul.f32 %v6742, 0.2
    %v6799 = vmul.f32 %v6743, 0.2
    %v6800 = vmul.f32 %v6744, 0.2
    %v6801 = vmul.f32 %v6745, 0.2
    %v6802 = vmul.f32 %v6746, 0.2
    %v6803 = vmul.f32 %v6747, 0.2
    %v6804 = vmul.f32 %v6748, 0.2
    %v6805 = vmul.f32 %v6749, 0.2
    %v6806 = vmul.f32 %v6750, 0.2
    %v6807 = vmul.f32 %v6751, 0.2
    %v6808 = vsel %vm6752, %v6724, %v6780
    %v6809 = vsel %vm6753, %v6725, %v6781
    %v6810 = vsel %vm6754, %v6726, %v6782
    %v6811 = vsel %vm6755, %v6727, %v6783
    %v6812 = vsel %vm6756, %v6728, %v6784
    %v6813 = vsel %vm6757, %v6729, %v6785
    %v6814 = vsel %vm6758, %v6730, %v6786
    %v6815 = vsel %vm6759, %v6731, %v6787
    %v6816 = vsel %vm6760, %v6732, %v6788
    %v6817 = vsel %vm6761, %v6733, %v6789
    %v6818 = vsel %vm6762, %v6734, %v6790
    %v6819 = vsel %vm6763, %v6735, %v6791
    %v6820 = vsel %vm6764, %v6736, %v6792
    %v6821 = vsel %vm6765, %v6737, %v6793
    %v6822 = vsel %vm6766, %v6738, %v6794
    %v6823 = vsel %vm6767, %v6739, %v6795
    %v6824 = vsel %vm6768, %v6740, %v6796
    %v6825 = vsel %vm6769, %v6741, %v6797
    %v6826 = vsel %vm6770, %v6742, %v6798
    %v6827 = vsel %vm6771, %v6743, %v6799
    %v6828 = vsel %vm6772, %v6744, %v6800
    %v6829 = vsel %vm6773, %v6745, %v6801
    %v6830 = vsel %vm6774, %v6746, %v6802
    %v6831 = vsel %vm6775, %v6747, %v6803
    %v6832 = vsel %vm6776, %v6748, %v6804
    %v6833 = vsel %vm6777, %v6749, %v6805
    %v6834 = vsel %vm6778, %v6750, %v6806
    %v6835 = vsel %vm6779, %v6751, %v6807
    %6836 = vmatprep.subr.mxu0 0.0
    %6837 = vmatpush1.msra.mxu0 0.0
    %6838 = vmatprep.subr.mxu0 0.0
    %6839 = vmatpush1.msra.mxu0 0.0
    %6840 = vmatprep.subr.mxu0 %v6835
    %6841 = vmatpush1.msra.mxu0 %v6834
    %6842 = vmatprep.subr.mxu0 %v6833
    %6843 = vmatpush1.msra.mxu0 %v6832
    %6844 = vmatprep.subr.mxu0 %v6831
    %6845 = vmatpush1.msra.mxu0 %v6830
    %6846 = vmatprep.subr.mxu0 %v6829
    %6847 = vmatpush1.msra.mxu0 %v6828
    %6848 = vmatprep.subr.mxu0 %v6827
    %6849 = vmatpush1.msra.mxu0 %v6826
    %6850 = vmatprep.subr.mxu0 %v6825
    %6851 = vmatpush1.msra.mxu0 %v6824
    %6852 = vmatprep.subr.mxu0 %v6823
    %6853 = vmatpush1.msra.mxu0 %v6822
    %6854 = vmatprep.subr.mxu0 %v6821
    %6855 = vmatpush1.msra.mxu0 %v6820
    %6856 = vmatprep.subr.mxu0 %v6819
    %6857 = vmatpush1.msra.mxu0 %v6818
    %6858 = vmatprep.subr.mxu0 %v6817
    %6859 = vmatpush1.msra.mxu0 %v6816
    %6860 = vmatprep.subr.mxu0 %v6815
    %6861 = vmatpush1.msra.mxu0 %v6814
    %6862 = vmatprep.subr.mxu0 %v6813
    %6863 = vmatpush1.msra.mxu0 %v6812
    %6864 = vmatprep.subr.mxu0 %v6811
    %6865 = vmatpush1.msra.mxu0 %v6810
    %6866 = vmatprep.subr.mxu0 %v6809
    %6867 = vmatpush1.msra.mxu0 %v6808
    %6868 = vmatprep.subr.mxu0 0.0
    %6869 = vmatpush2.msra.mxu0 0.0
    %6870 = vmatprep.subr.mxu0 0.0
    %6871 = vmatpush2.msra.mxu0 0.0
    %6872 = vmatprep.subr.mxu0 0.0
    %6873 = vmatpush2.msra.mxu0 0.0
    %6874 = vmatprep.subr.mxu0 0.0
    %6875 = vmatpush2.msra.mxu0 0.0
    %6876 = vmatprep.subr.mxu0 0.0
    %6877 = vmatpush2.msra.mxu0 0.0
    %6878 = vmatprep.subr.mxu0 0.0
    %6879 = vmatpush2.msra.mxu0 0.0
    %6880 = vmatprep.subr.mxu0 0.0
    %6881 = vmatpush2.msra.mxu0 0.0
    %6882 = vmatprep.subr.mxu0 0.0
    %6883 = vmatpush2.msra.mxu0 0.0
    %6884 = vmatprep.subr.mxu0 0.0
    %6885 = vmatpush2.msra.mxu0 0.0
    %6886 = vmatprep.subr.mxu0 0.0
    %6887 = vmatpush2.msra.mxu0 0.0
    %6888 = vmatprep.subr.mxu0 0.0
    %6889 = vmatpush2.msra.mxu0 0.0
    %6890 = vmatprep.subr.mxu0 0.0
    %6891 = vmatpush2.msra.mxu0 0.0
    %6892 = vmatprep.subr.mxu0 0.0
    %6893 = vmatpush2.msra.mxu0 0.0
    %6894 = vmatprep.subr.mxu0 0.0
    %6895 = vmatpush2.msra.mxu0 0.0
    %6896 = vmatprep.subr.mxu0 0.0
    %6897 = vmatpush2.msra.mxu0 0.0
    %6898 = vmatprep.subr.mxu0 0.0
    %6899 = vmatpush2.msra.mxu0 0.0
    %6900 = vmatprep.mubr.f32.mxu0 0.0
    %6901 = vmatmul.mubr.f32.gmra.mxu0 %v3302
    %v6902 = vpop.f32.mrf.mxu0
    %v6903 = vadd.f32 0.0, %v6902
    %v6904 = vpop.f32.mrf.mxu0
    %v6905 = vadd.f32 0.0, %v6904
    %6906 = vmatprep.mubr.f32.mxu0 0.0
    %6907 = vmatmul.mubr.f32.gmra.mxu0 %v3305
    %v6908 = vpop.f32.mrf.mxu0
    %v6909 = vadd.f32 0.0, %v6908
    %v6910 = vpop.f32.mrf.mxu0
    %v6911 = vadd.f32 0.0, %v6910
    %6912 = vmatprep.mubr.f32.mxu0 0.0
    %6913 = vmatmul.mubr.f32.gmra.mxu0 %v3308
    %v6914 = vpop.f32.mrf.mxu0
    %v6915 = vadd.f32 0.0, %v6914
    %v6916 = vpop.f32.mrf.mxu0
    %v6917 = vadd.f32 0.0, %v6916
    %6918 = vmatprep.mubr.f32.mxu0 0.0
    %6919 = vmatmul.mubr.f32.gmra.mxu0 %v3311
    %v6920 = vpop.f32.mrf.mxu0
    %v6921 = vadd.f32 0.0, %v6920
    %v6922 = vpop.f32.mrf.mxu0
    %v6923 = vadd.f32 0.0, %v6922
    %6924 = vmatprep.mubr.f32.mxu0 0.0
    %6925 = vmatmul.mubr.f32.gmra.mxu0 %v3314
    %v6926 = vpop.f32.mrf.mxu0
    %v6927 = vadd.f32 0.0, %v6926
    %v6928 = vpop.f32.mrf.mxu0
    %v6929 = vadd.f32 0.0, %v6928
    %6930 = vmatprep.mubr.f32.mxu0 0.0
    %6931 = vmatmul.mubr.f32.gmra.mxu0 %v3317
    %v6932 = vpop.f32.mrf.mxu0
    %v6933 = vadd.f32 0.0, %v6932
    %v6934 = vpop.f32.mrf.mxu0
    %v6935 = vadd.f32 0.0, %v6934
    %6936 = vmatprep.mubr.f32.mxu0 0.0
    %6937 = vmatmul.mubr.f32.gmra.mxu0 %v3320
    %v6938 = vpop.f32.mrf.mxu0
    %v6939 = vadd.f32 0.0, %v6938
    %v6940 = vpop.f32.mrf.mxu0
    %v6941 = vadd.f32 0.0, %v6940
    %6942 = vmatprep.mubr.f32.mxu0 0.0
    %6943 = vmatmul.mubr.f32.gmra.mxu0 %v3323
    %v6944 = vpop.f32.mrf.mxu0
    %v6945 = vadd.f32 0.0, %v6944
    %v6946 = vpop.f32.mrf.mxu0
    %v6947 = vadd.f32 0.0, %v6946
    %6948 = vmatprep.mubr.f32.mxu0 0.0
    %6949 = vmatmul.mubr.f32.gmra.mxu0 %v3326
    %v6950 = vpop.f32.mrf.mxu0
    %v6951 = vadd.f32 0.0, %v6950
    %v6952 = vpop.f32.mrf.mxu0
    %v6953 = vadd.f32 0.0, %v6952
    %6954 = vmatprep.mubr.f32.mxu0 0.0
    %6955 = vmatmul.mubr.f32.gmra.mxu0 %v3329
    %v6956 = vpop.f32.mrf.mxu0
    %v6957 = vadd.f32 0.0, %v6956
    %v6958 = vpop.f32.mrf.mxu0
    %v6959 = vadd.f32 0.0, %v6958
    %6960 = vmatprep.mubr.f32.mxu0 0.0
    %6961 = vmatmul.mubr.f32.gmra.mxu0 %v3332
    %v6962 = vpop.f32.mrf.mxu0
    %v6963 = vadd.f32 0.0, %v6962
    %v6964 = vpop.f32.mrf.mxu0
    %v6965 = vadd.f32 0.0, %v6964
    %6966 = vmatprep.mubr.f32.mxu0 0.0
    %6967 = vmatmul.mubr.f32.gmra.mxu0 %v3335
    %v6968 = vpop.f32.mrf.mxu0
    %v6969 = vadd.f32 0.0, %v6968
    %v6970 = vpop.f32.mrf.mxu0
    %v6971 = vadd.f32 0.0, %v6970
    %6972 = vmatprep.mubr.f32.mxu0 0.0
    %6973 = vmatmul.mubr.f32.gmra.mxu0 %v3338
    %v6974 = vpop.f32.mrf.mxu0
    %v6975 = vadd.f32 0.0, %v6974
    %v6976 = vpop.f32.mrf.mxu0
    %v6977 = vadd.f32 0.0, %v6976
    %6978 = vmatprep.mubr.f32.mxu0 0.0
    %6979 = vmatmul.mubr.f32.gmra.mxu0 %v3341
    %v6980 = vpop.f32.mrf.mxu0
    %v6981 = vadd.f32 0.0, %v6980
    %v6982 = vpop.f32.mrf.mxu0
    %v6983 = vadd.f32 0.0, %v6982
    %6984 = vdwg.mxu0
    %v6985 = vld [vmem:[%s13] sm:$0xff]
    %v6986 = vld [vmem:[%s13 + $0x8] sm:$0xff]
    %v6987 = vld [vmem:[%s13 + $0x10] sm:$0xff]
    %v6988 = vld [vmem:[%s13 + $0x18] sm:$0xff]
    %v6989 = vld [vmem:[%s13 + $0x20] sm:$0xff]
    %v6990 = vld [vmem:[%s13 + $0x28] sm:$0xff]
    %v6991 = vld [vmem:[%s13 + $0x30] sm:$0xff]
    %v6992 = vld [vmem:[%s13 + $0x38] sm:$0xff]
    %v6993 = vld [vmem:[%s13 + $0x40] sm:$0xff]
    %v6994 = vld [vmem:[%s13 + $0x48] sm:$0xff]
    %v6995 = vld [vmem:[%s13 + $0x50] sm:$0xff]
    %v6996 = vld [vmem:[%s13 + $0x58] sm:$0xff]
    %v6997 = vld [vmem:[%s13 + $0x60] sm:$0xff]
    %v6998 = vld [vmem:[%s13 + $0x68] sm:$0xff]
    %v6999 = vld [vmem:[%s13 + $0x70] sm:$0xff]
    %v7000 = vld [vmem:[%s13 + $0x78] sm:$0xff]
    %v7001 = vld [vmem:[%s13 + $0x80] sm:$0xff]
    %v7002 = vld [vmem:[%s13 + $0x88] sm:$0xff]
    %v7003 = vld [vmem:[%s13 + $0x90] sm:$0xff]
    %v7004 = vld [vmem:[%s13 + $0x98] sm:$0xff]
    %v7005 = vld [vmem:[%s13 + $0xa0] sm:$0xff]
    %v7006 = vld [vmem:[%s13 + $0xa8] sm:$0xff]
    %v7007 = vld [vmem:[%s13 + $0xb0] sm:$0xff]
    %v7008 = vld [vmem:[%s13 + $0xb8] sm:$0xff]
    %v7009 = vld [vmem:[%s13 + $0xc0] sm:$0xff]
    %v7010 = vld [vmem:[%s13 + $0xc8] sm:$0xff]
    %v7011 = vld [vmem:[%s13 + $0xd0] sm:$0xff]
    %v7012 = vld [vmem:[%s13 + $0xd8] sm:$0xff]
    %7013 = vmatprep.subr.mxu0 0.0
    %7014 = vmatpush1.msra.mxu0 0.0
    %7015 = vmatprep.subr.mxu0 0.0
    %7016 = vmatpush1.msra.mxu0 0.0
    %7017 = vmatprep.subr.mxu0 %v6835
    %7018 = vmatpush1.msra.mxu0 %v6834
    %7019 = vmatprep.subr.mxu0 %v6833
    %7020 = vmatpush1.msra.mxu0 %v6832
    %7021 = vmatprep.subr.mxu0 %v6831
    %7022 = vmatpush1.msra.mxu0 %v6830
    %7023 = vmatprep.subr.mxu0 %v6829
    %7024 = vmatpush1.msra.mxu0 %v6828
    %7025 = vmatprep.subr.mxu0 %v6827
    %7026 = vmatpush1.msra.mxu0 %v6826
    %7027 = vmatprep.subr.mxu0 %v6825
    %7028 = vmatpush1.msra.mxu0 %v6824
    %7029 = vmatprep.subr.mxu0 %v6823
    %7030 = vmatpush1.msra.mxu0 %v6822
    %7031 = vmatprep.subr.mxu0 %v6821
    %7032 = vmatpush1.msra.mxu0 %v6820
    %7033 = vmatprep.subr.mxu0 %v6819
    %7034 = vmatpush1.msra.mxu0 %v6818
    %7035 = vmatprep.subr.mxu0 %v6817
    %7036 = vmatpush1.msra.mxu0 %v6816
    %7037 = vmatprep.subr.mxu0 %v6815
    %7038 = vmatpush1.msra.mxu0 %v6814
    %7039 = vmatprep.subr.mxu0 %v6813
    %7040 = vmatpush1.msra.mxu0 %v6812
    %7041 = vmatprep.subr.mxu0 %v6811
    %7042 = vmatpush1.msra.mxu0 %v6810
    %7043 = vmatprep.subr.mxu0 %v6809
    %7044 = vmatpush1.msra.mxu0 %v6808
    %7045 = vmatprep.subr.mxu0 0.0
    %7046 = vmatpush2.msra.mxu0 0.0
    %7047 = vmatprep.subr.mxu0 0.0
    %7048 = vmatpush2.msra.mxu0 0.0
    %7049 = vmatprep.subr.mxu0 0.0
    %7050 = vmatpush2.msra.mxu0 0.0
    %7051 = vmatprep.subr.mxu0 0.0
    %7052 = vmatpush2.msra.mxu0 0.0
    %7053 = vmatprep.subr.mxu0 0.0
    %7054 = vmatpush2.msra.mxu0 0.0
    %7055 = vmatprep.subr.mxu0 0.0
    %7056 = vmatpush2.msra.mxu0 0.0
    %7057 = vmatprep.subr.mxu0 0.0
    %7058 = vmatpush2.msra.mxu0 0.0
    %7059 = vmatprep.subr.mxu0 0.0
    %7060 = vmatpush2.msra.mxu0 0.0
    %7061 = vmatprep.subr.mxu0 0.0
    %7062 = vmatpush2.msra.mxu0 0.0
    %7063 = vmatprep.subr.mxu0 0.0
    %7064 = vmatpush2.msra.mxu0 0.0
    %7065 = vmatprep.subr.mxu0 0.0
    %7066 = vmatpush2.msra.mxu0 0.0
    %7067 = vmatprep.subr.mxu0 0.0
    %7068 = vmatpush2.msra.mxu0 0.0
    %7069 = vmatprep.subr.mxu0 0.0
    %7070 = vmatpush2.msra.mxu0 0.0
    %7071 = vmatprep.subr.mxu0 0.0
    %7072 = vmatpush2.msra.mxu0 0.0
    %7073 = vmatprep.subr.mxu0 0.0
    %7074 = vmatpush2.msra.mxu0 0.0
    %7075 = vmatprep.subr.mxu0 0.0
    %7076 = vmatpush2.msra.mxu0 0.0
    %7077 = vmatprep.mubr.f32.mxu0 0.0
    %7078 = vmatmul.mubr.f32.gmra.mxu0 %v3769
    %v7079 = vpop.f32.mrf.mxu0
    %v7080 = vadd.f32 0.0, %v7079
    %v7081 = vpop.f32.mrf.mxu0
    %v7082 = vadd.f32 0.0, %v7081
    %7083 = vmatprep.mubr.f32.mxu0 0.0
    %7084 = vmatmul.mubr.f32.gmra.mxu0 %v3772
    %v7085 = vpop.f32.mrf.mxu0
    %v7086 = vadd.f32 0.0, %v7085
    %v7087 = vpop.f32.mrf.mxu0
    %v7088 = vadd.f32 0.0, %v7087
    %7089 = vmatprep.mubr.f32.mxu0 0.0
    %7090 = vmatmul.mubr.f32.gmra.mxu0 %v3775
    %v7091 = vpop.f32.mrf.mxu0
    %v7092 = vadd.f32 0.0, %v7091
    %v7093 = vpop.f32.mrf.mxu0
    %v7094 = vadd.f32 0.0, %v7093
    %7095 = vmatprep.mubr.f32.mxu0 0.0
    %7096 = vmatmul.mubr.f32.gmra.mxu0 %v3778
    %v7097 = vpop.f32.mrf.mxu0
    %v7098 = vadd.f32 0.0, %v7097
    %v7099 = vpop.f32.mrf.mxu0
    %v7100 = vadd.f32 0.0, %v7099
    %7101 = vmatprep.mubr.f32.mxu0 0.0
    %7102 = vmatmul.mubr.f32.gmra.mxu0 %v3781
    %v7103 = vpop.f32.mrf.mxu0
    %v7104 = vadd.f32 0.0, %v7103
    %v7105 = vpop.f32.mrf.mxu0
    %v7106 = vadd.f32 0.0, %v7105
    %7107 = vmatprep.mubr.f32.mxu0 0.0
    %7108 = vmatmul.mubr.f32.gmra.mxu0 %v3784
    %v7109 = vpop.f32.mrf.mxu0
    %v7110 = vadd.f32 0.0, %v7109
    %v7111 = vpop.f32.mrf.mxu0
    %v7112 = vadd.f32 0.0, %v7111
    %7113 = vmatprep.mubr.f32.mxu0 0.0
    %7114 = vmatmul.mubr.f32.gmra.mxu0 %v3787
    %v7115 = vpop.f32.mrf.mxu0
    %v7116 = vadd.f32 0.0, %v7115
    %v7117 = vpop.f32.mrf.mxu0
    %v7118 = vadd.f32 0.0, %v7117
    %7119 = vmatprep.mubr.f32.mxu0 0.0
    %7120 = vmatmul.mubr.f32.gmra.mxu0 %v3790
    %v7121 = vpop.f32.mrf.mxu0
    %v7122 = vadd.f32 0.0, %v7121
    %v7123 = vpop.f32.mrf.mxu0
    %v7124 = vadd.f32 0.0, %v7123
    %7125 = vmatprep.mubr.f32.mxu0 0.0
    %7126 = vmatmul.mubr.f32.gmra.mxu0 %v3793
    %v7127 = vpop.f32.mrf.mxu0
    %v7128 = vadd.f32 0.0, %v7127
    %v7129 = vpop.f32.mrf.mxu0
    %v7130 = vadd.f32 0.0, %v7129
    %7131 = vmatprep.mubr.f32.mxu0 0.0
    %7132 = vmatmul.mubr.f32.gmra.mxu0 %v3796
    %v7133 = vpop.f32.mrf.mxu0
    %v7134 = vadd.f32 0.0, %v7133
    %v7135 = vpop.f32.mrf.mxu0
    %v7136 = vadd.f32 0.0, %v7135
    %7137 = vmatprep.mubr.f32.mxu0 0.0
    %7138 = vmatmul.mubr.f32.gmra.mxu0 %v3799
    %v7139 = vpop.f32.mrf.mxu0
    %v7140 = vadd.f32 0.0, %v7139
    %v7141 = vpop.f32.mrf.mxu0
    %v7142 = vadd.f32 0.0, %v7141
    %7143 = vmatprep.mubr.f32.mxu0 0.0
    %7144 = vmatmul.mubr.f32.gmra.mxu0 %v3802
    %v7145 = vpop.f32.mrf.mxu0
    %v7146 = vadd.f32 0.0, %v7145
    %v7147 = vpop.f32.mrf.mxu0
    %v7148 = vadd.f32 0.0, %v7147
    %7149 = vmatprep.mubr.f32.mxu0 0.0
    %7150 = vmatmul.mubr.f32.gmra.mxu0 %v3805
    %v7151 = vpop.f32.mrf.mxu0
    %v7152 = vadd.f32 0.0, %v7151
    %v7153 = vpop.f32.mrf.mxu0
    %v7154 = vadd.f32 0.0, %v7153
    %7155 = vmatprep.mubr.f32.mxu0 0.0
    %7156 = vmatmul.mubr.f32.gmra.mxu0 %v3808
    %v7157 = vpop.f32.mrf.mxu0
    %v7158 = vadd.f32 0.0, %v7157
    %v7159 = vpop.f32.mrf.mxu0
    %v7160 = vadd.f32 0.0, %v7159
    %7161 = vdwg.mxu0
    %s7162 = scalar_lea.vmem %s13, 224
    %v7163 = vld [vmem:[%s7162] sm:$0xff]
    %v7164 = vld [vmem:[%s7162 + $0x8] sm:$0xff]
    %v7165 = vld [vmem:[%s7162 + $0x10] sm:$0xff]
    %v7166 = vld [vmem:[%s7162 + $0x18] sm:$0xff]
    %v7167 = vld [vmem:[%s7162 + $0x20] sm:$0xff]
    %v7168 = vld [vmem:[%s7162 + $0x28] sm:$0xff]
    %v7169 = vld [vmem:[%s7162 + $0x30] sm:$0xff]
    %v7170 = vld [vmem:[%s7162 + $0x38] sm:$0xff]
    %v7171 = vld [vmem:[%s7162 + $0x40] sm:$0xff]
    %v7172 = vld [vmem:[%s7162 + $0x48] sm:$0xff]
    %v7173 = vld [vmem:[%s7162 + $0x50] sm:$0xff]
    %v7174 = vld [vmem:[%s7162 + $0x58] sm:$0xff]
    %v7175 = vld [vmem:[%s7162 + $0x60] sm:$0xff]
    %v7176 = vld [vmem:[%s7162 + $0x68] sm:$0xff]
    %v7177 = vld [vmem:[%s7162 + $0x70] sm:$0xff]
    %v7178 = vld [vmem:[%s7162 + $0x78] sm:$0xff]
    %v7179 = vld [vmem:[%s7162 + $0x80] sm:$0xff]
    %v7180 = vld [vmem:[%s7162 + $0x88] sm:$0xff]
    %v7181 = vld [vmem:[%s7162 + $0x90] sm:$0xff]
    %v7182 = vld [vmem:[%s7162 + $0x98] sm:$0xff]
    %v7183 = vld [vmem:[%s7162 + $0xa0] sm:$0xff]
    %v7184 = vld [vmem:[%s7162 + $0xa8] sm:$0xff]
    %v7185 = vld [vmem:[%s7162 + $0xb0] sm:$0xff]
    %v7186 = vld [vmem:[%s7162 + $0xb8] sm:$0xff]
    %v7187 = vld [vmem:[%s7162 + $0xc0] sm:$0xff]
    %v7188 = vld [vmem:[%s7162 + $0xc8] sm:$0xff]
    %v7189 = vld [vmem:[%s7162 + $0xd0] sm:$0xff]
    %v7190 = vld [vmem:[%s7162 + $0xd8] sm:$0xff]
    %v7192 = vsel %vm2029, %v7082, 0
    %v7195 = vsel %vm2029, %v7088, 0
    %v7198 = vsel %vm2029, %v7094, 0
    %v7201 = vsel %vm2029, %v7100, 0
    %v7204 = vsel %vm2029, %v7106, 0
    %v7207 = vsel %vm2029, %v7112, 0
    %v7210 = vsel %vm2029, %v7118, 0
    %v7213 = vsel %vm2029, %v7124, 0
    %v7216 = vsel %vm2029, %v7130, 0
    %v7219 = vsel %vm2029, %v7136, 0
    %v7222 = vsel %vm2029, %v7142, 0
    %v7225 = vsel %vm2029, %v7148, 0
    %v7228 = vsel %vm2029, %v7154, 0
    %v7231 = vsel %vm2029, %v7160, 0
    %7233 = vmatprep.subr.mxu0 0.0
    %7234 = vmatpush1.msra.mxu0 %v7178
    %7235 = vmatprep.subr.mxu0 0.0
    %7236 = vmatpush1.msra.mxu0 %v7177
    %7237 = vmatprep.subr.mxu0 0.0
    %7238 = vmatpush1.msra.mxu0 %v7176
    %7239 = vmatprep.subr.mxu0 0.0
    %7240 = vmatpush1.msra.mxu0 %v7175
    %7241 = vmatprep.subr.mxu0 0.0
    %7242 = vmatpush1.msra.mxu0 %v7174
    %7243 = vmatprep.subr.mxu0 0.0
    %7244 = vmatpush1.msra.mxu0 %v7173
    %7245 = vmatprep.subr.mxu0 0.0
    %7246 = vmatpush1.msra.mxu0 %v7172
    %7247 = vmatprep.subr.mxu0 0.0
    %7248 = vmatpush1.msra.mxu0 %v7171
    %7249 = vmatprep.subr.mxu0 0.0
    %7250 = vmatpush1.msra.mxu0 %v7170
    %7251 = vmatprep.subr.mxu0 0.0
    %7252 = vmatpush1.msra.mxu0 %v7169
    %7253 = vmatprep.subr.mxu0 0.0
    %7254 = vmatpush1.msra.mxu0 %v7168
    %7255 = vmatprep.subr.mxu0 0.0
    %7256 = vmatpush1.msra.mxu0 %v7167
    %7257 = vmatprep.subr.mxu0 0.0
    %7258 = vmatpush1.msra.mxu0 %v7166
    %7259 = vmatprep.subr.mxu0 0.0
    %7260 = vmatpush1.msra.mxu0 %v7165
    %7261 = vmatprep.subr.mxu0 0.0
    %7262 = vmatpush1.msra.mxu0 %v7164
    %7263 = vmatprep.subr.mxu0 0.0
    %7264 = vmatpush1.msra.mxu0 %v7163
    %7265 = vmatprep.subr.mxu0 0.0
    %7266 = vmatpush2.msra.mxu0 0.0
    %7267 = vmatprep.subr.mxu0 0.0
    %7268 = vmatpush2.msra.mxu0 0.0
    %7269 = vmatprep.subr.mxu0 0.0
    %7270 = vmatpush2.msra.mxu0 0.0
    %7271 = vmatprep.subr.mxu0 0.0
    %7272 = vmatpush2.msra.mxu0 0.0
    %7273 = vmatprep.subr.mxu0 0.0
    %7274 = vmatpush2.msra.mxu0 %v7190
    %7275 = vmatprep.subr.mxu0 0.0
    %7276 = vmatpush2.msra.mxu0 %v7189
    %7277 = vmatprep.subr.mxu0 0.0
    %7278 = vmatpush2.msra.mxu0 %v7188
    %7279 = vmatprep.subr.mxu0 0.0
    %7280 = vmatpush2.msra.mxu0 %v7187
    %7281 = vmatprep.subr.mxu0 0.0
    %7282 = vmatpush2.msra.mxu0 %v7186
    %7283 = vmatprep.subr.mxu0 0.0
    %7284 = vmatpush2.msra.mxu0 %v7185
    %7285 = vmatprep.subr.mxu0 0.0
    %7286 = vmatpush2.msra.mxu0 %v7184
    %7287 = vmatprep.subr.mxu0 0.0
    %7288 = vmatpush2.msra.mxu0 %v7183
    %7289 = vmatprep.subr.mxu0 0.0
    %7290 = vmatpush2.msra.mxu0 %v7182
    %7291 = vmatprep.subr.mxu0 0.0
    %7292 = vmatpush2.msra.mxu0 %v7181
    %7293 = vmatprep.subr.mxu0 0.0
    %7294 = vmatpush2.msra.mxu0 %v7180
    %7295 = vmatprep.subr.mxu0 0.0
    %7296 = vmatpush2.msra.mxu0 %v7179
    %7297 = vmatprep.mubr.f32.mxu0 %v7192
    %7298 = vmatmul.mubr.f32.gmra.mxu0 %v7080
    %v7299 = vpop.f32.mrf.mxu0
    %v7300 = vadd.f32 0.0, %v7299
    %v7301 = vpop.f32.mrf.mxu0
    %7302 = vmatprep.mubr.f32.mxu0 %v7195
    %7303 = vmatmul.mubr.f32.gmra.mxu0 %v7086
    %v7304 = vpop.f32.mrf.mxu0
    %v7305 = vadd.f32 0.0, %v7304
    %v7306 = vpop.f32.mrf.mxu0
    %7307 = vmatprep.mubr.f32.mxu0 %v7198
    %7308 = vmatmul.mubr.f32.gmra.mxu0 %v7092
    %v7309 = vpop.f32.mrf.mxu0
    %v7310 = vadd.f32 0.0, %v7309
    %v7311 = vpop.f32.mrf.mxu0
    %7312 = vmatprep.mubr.f32.mxu0 %v7201
    %7313 = vmatmul.mubr.f32.gmra.mxu0 %v7098
    %v7314 = vpop.f32.mrf.mxu0
    %v7315 = vadd.f32 0.0, %v7314
    %v7316 = vpop.f32.mrf.mxu0
    %7317 = vmatprep.mubr.f32.mxu0 %v7204
    %7318 = vmatmul.mubr.f32.gmra.mxu0 %v7104
    %v7319 = vpop.f32.mrf.mxu0
    %v7320 = vadd.f32 0.0, %v7319
    %v7321 = vpop.f32.mrf.mxu0
    %7322 = vmatprep.mubr.f32.mxu0 %v7207
    %7323 = vmatmul.mubr.f32.gmra.mxu0 %v7110
    %v7324 = vpop.f32.mrf.mxu0
    %v7325 = vadd.f32 0.0, %v7324
    %v7326 = vpop.f32.mrf.mxu0
    %7327 = vmatprep.mubr.f32.mxu0 %v7210
    %7328 = vmatmul.mubr.f32.gmra.mxu0 %v7116
    %v7329 = vpop.f32.mrf.mxu0
    %v7330 = vadd.f32 0.0, %v7329
    %v7331 = vpop.f32.mrf.mxu0
    %7332 = vmatprep.mubr.f32.mxu0 %v7213
    %7333 = vmatmul.mubr.f32.gmra.mxu0 %v7122
    %v7334 = vpop.f32.mrf.mxu0
    %v7335 = vadd.f32 0.0, %v7334
    %v7336 = vpop.f32.mrf.mxu0
    %7337 = vmatprep.mubr.f32.mxu0 %v7216
    %7338 = vmatmul.mubr.f32.gmra.mxu0 %v7128
    %v7339 = vpop.f32.mrf.mxu0
    %v7340 = vadd.f32 0.0, %v7339
    %v7341 = vpop.f32.mrf.mxu0
    %7342 = vmatprep.mubr.f32.mxu0 %v7219
    %7343 = vmatmul.mubr.f32.gmra.mxu0 %v7134
    %v7344 = vpop.f32.mrf.mxu0
    %v7345 = vadd.f32 0.0, %v7344
    %v7346 = vpop.f32.mrf.mxu0
    %7347 = vmatprep.mubr.f32.mxu0 %v7222
    %7348 = vmatmul.mubr.f32.gmra.mxu0 %v7140
    %v7349 = vpop.f32.mrf.mxu0
    %v7350 = vadd.f32 0.0, %v7349
    %v7351 = vpop.f32.mrf.mxu0
    %7352 = vmatprep.mubr.f32.mxu0 %v7225
    %7353 = vmatmul.mubr.f32.gmra.mxu0 %v7146
    %v7354 = vpop.f32.mrf.mxu0
    %v7355 = vadd.f32 0.0, %v7354
    %v7356 = vpop.f32.mrf.mxu0
    %7357 = vmatprep.mubr.f32.mxu0 %v7228
    %7358 = vmatmul.mubr.f32.gmra.mxu0 %v7152
    %v7359 = vpop.f32.mrf.mxu0
    %v7360 = vadd.f32 0.0, %v7359
    %v7361 = vpop.f32.mrf.mxu0
    %7362 = vmatprep.mubr.f32.mxu0 %v7231
    %7363 = vmatmul.mubr.f32.gmra.mxu0 %v7158
    %v7364 = vpop.f32.mrf.mxu0
    %v7365 = vadd.f32 0.0, %v7364
    %v7366 = vpop.f32.mrf.mxu0
    %7367 = vdwg.mxu0
    %v7369 = vsel %vm2029, %v6905, 0
    %v7372 = vsel %vm2029, %v6911, 0
    %v7375 = vsel %vm2029, %v6917, 0
    %v7378 = vsel %vm2029, %v6923, 0
    %v7381 = vsel %vm2029, %v6929, 0
    %v7384 = vsel %vm2029, %v6935, 0
    %v7387 = vsel %vm2029, %v6941, 0
    %v7390 = vsel %vm2029, %v6947, 0
    %v7393 = vsel %vm2029, %v6953, 0
    %v7396 = vsel %vm2029, %v6959, 0
    %v7399 = vsel %vm2029, %v6965, 0
    %v7402 = vsel %vm2029, %v6971, 0
    %v7405 = vsel %vm2029, %v6977, 0
    %v7408 = vsel %vm2029, %v6983, 0
    %7410 = vmatprep.subr.mxu0 0.0
    %7411 = vmatpush1.msra.mxu0 %v7000
    %7412 = vmatprep.subr.mxu0 0.0
    %7413 = vmatpush1.msra.mxu0 %v6999
    %7414 = vmatprep.subr.mxu0 0.0
    %7415 = vmatpush1.msra.mxu0 %v6998
    %7416 = vmatprep.subr.mxu0 0.0
    %7417 = vmatpush1.msra.mxu0 %v6997
    %7418 = vmatprep.subr.mxu0 0.0
    %7419 = vmatpush1.msra.mxu0 %v6996
    %7420 = vmatprep.subr.mxu0 0.0
    %7421 = vmatpush1.msra.mxu0 %v6995
    %7422 = vmatprep.subr.mxu0 0.0
    %7423 = vmatpush1.msra.mxu0 %v6994
    %7424 = vmatprep.subr.mxu0 0.0
    %7425 = vmatpush1.msra.mxu0 %v6993
    %7426 = vmatprep.subr.mxu0 0.0
    %7427 = vmatpush1.msra.mxu0 %v6992
    %7428 = vmatprep.subr.mxu0 0.0
    %7429 = vmatpush1.msra.mxu0 %v6991
    %7430 = vmatprep.subr.mxu0 0.0
    %7431 = vmatpush1.msra.mxu0 %v6990
    %7432 = vmatprep.subr.mxu0 0.0
    %7433 = vmatpush1.msra.mxu0 %v6989
    %7434 = vmatprep.subr.mxu0 0.0
    %7435 = vmatpush1.msra.mxu0 %v6988
    %7436 = vmatprep.subr.mxu0 0.0
    %7437 = vmatpush1.msra.mxu0 %v6987
    %7438 = vmatprep.subr.mxu0 0.0
    %7439 = vmatpush1.msra.mxu0 %v6986
    %7440 = vmatprep.subr.mxu0 0.0
    %7441 = vmatpush1.msra.mxu0 %v6985
    %7442 = vmatprep.subr.mxu0 0.0
    %7443 = vmatpush2.msra.mxu0 0.0
    %7444 = vmatprep.subr.mxu0 0.0
    %7445 = vmatpush2.msra.mxu0 0.0
    %7446 = vmatprep.subr.mxu0 0.0
    %7447 = vmatpush2.msra.mxu0 0.0
    %7448 = vmatprep.subr.mxu0 0.0
    %7449 = vmatpush2.msra.mxu0 0.0
    %7450 = vmatprep.subr.mxu0 0.0
    %7451 = vmatpush2.msra.mxu0 %v7012
    %7452 = vmatprep.subr.mxu0 0.0
    %7453 = vmatpush2.msra.mxu0 %v7011
    %7454 = vmatprep.subr.mxu0 0.0
    %7455 = vmatpush2.msra.mxu0 %v7010
    %7456 = vmatprep.subr.mxu0 0.0
    %7457 = vmatpush2.msra.mxu0 %v7009
    %7458 = vmatprep.subr.mxu0 0.0
    %7459 = vmatpush2.msra.mxu0 %v7008
    %7460 = vmatprep.subr.mxu0 0.0
    %7461 = vmatpush2.msra.mxu0 %v7007
    %7462 = vmatprep.subr.mxu0 0.0
    %7463 = vmatpush2.msra.mxu0 %v7006
    %7464 = vmatprep.subr.mxu0 0.0
    %7465 = vmatpush2.msra.mxu0 %v7005
    %7466 = vmatprep.subr.mxu0 0.0
    %7467 = vmatpush2.msra.mxu0 %v7004
    %7468 = vmatprep.subr.mxu0 0.0
    %7469 = vmatpush2.msra.mxu0 %v7003
    %7470 = vmatprep.subr.mxu0 0.0
    %7471 = vmatpush2.msra.mxu0 %v7002
    %7472 = vmatprep.subr.mxu0 0.0
    %7473 = vmatpush2.msra.mxu0 %v7001
    %7474 = vmatprep.mubr.f32.mxu0 %v7369
    %7475 = vmatmul.mubr.f32.gmra.mxu0 %v6903
    %v7476 = vpop.f32.mrf.mxu0
    %v7477 = vadd.f32 %v7300, %v7476
    %v7478 = vpop.f32.mrf.mxu0
    %7479 = vmatprep.mubr.f32.mxu0 %v7372
    %7480 = vmatmul.mubr.f32.gmra.mxu0 %v6909
    %v7481 = vpop.f32.mrf.mxu0
    %v7482 = vadd.f32 %v7305, %v7481
    %v7483 = vpop.f32.mrf.mxu0
    %7484 = vmatprep.mubr.f32.mxu0 %v7375
    %7485 = vmatmul.mubr.f32.gmra.mxu0 %v6915
    %v7486 = vpop.f32.mrf.mxu0
    %v7487 = vadd.f32 %v7310, %v7486
    %v7488 = vpop.f32.mrf.mxu0
    %7489 = vmatprep.mubr.f32.mxu0 %v7378
    %7490 = vmatmul.mubr.f32.gmra.mxu0 %v6921
    %v7491 = vpop.f32.mrf.mxu0
    %v7492 = vadd.f32 %v7315, %v7491
    %v7493 = vpop.f32.mrf.mxu0
    %7494 = vmatprep.mubr.f32.mxu0 %v7381
    %7495 = vmatmul.mubr.f32.gmra.mxu0 %v6927
    %v7496 = vpop.f32.mrf.mxu0
    %v7497 = vadd.f32 %v7320, %v7496
    %v7498 = vpop.f32.mrf.mxu0
    %7499 = vmatprep.mubr.f32.mxu0 %v7384
    %7500 = vmatmul.mubr.f32.gmra.mxu0 %v6933
    %v7501 = vpop.f32.mrf.mxu0
    %v7502 = vadd.f32 %v7325, %v7501
    %v7503 = vpop.f32.mrf.mxu0
    %7504 = vmatprep.mubr.f32.mxu0 %v7387
    %7505 = vmatmul.mubr.f32.gmra.mxu0 %v6939
    %v7506 = vpop.f32.mrf.mxu0
    %v7507 = vadd.f32 %v7330, %v7506
    %v7508 = vpop.f32.mrf.mxu0
    %7509 = vmatprep.mubr.f32.mxu0 %v7390
    %7510 = vmatmul.mubr.f32.gmra.mxu0 %v6945
    %v7511 = vpop.f32.mrf.mxu0
    %v7512 = vadd.f32 %v7335, %v7511
    %v7513 = vpop.f32.mrf.mxu0
    %7514 = vmatprep.mubr.f32.mxu0 %v7393
    %7515 = vmatmul.mubr.f32.gmra.mxu0 %v6951
    %v7516 = vpop.f32.mrf.mxu0
    %v7517 = vadd.f32 %v7340, %v7516
    %v7518 = vpop.f32.mrf.mxu0
    %7519 = vmatprep.mubr.f32.mxu0 %v7396
    %7520 = vmatmul.mubr.f32.gmra.mxu0 %v6957
    %v7521 = vpop.f32.mrf.mxu0
    %v7522 = vadd.f32 %v7345, %v7521
    %v7523 = vpop.f32.mrf.mxu0
    %7524 = vmatprep.mubr.f32.mxu0 %v7399
    %7525 = vmatmul.mubr.f32.gmra.mxu0 %v6963
    %v7526 = vpop.f32.mrf.mxu0
    %v7527 = vadd.f32 %v7350, %v7526
    %v7528 = vpop.f32.mrf.mxu0
    %7529 = vmatprep.mubr.f32.mxu0 %v7402
    %7530 = vmatmul.mubr.f32.gmra.mxu0 %v6969
    %v7531 = vpop.f32.mrf.mxu0
    %v7532 = vadd.f32 %v7355, %v7531
    %v7533 = vpop.f32.mrf.mxu0
    %7534 = vmatprep.mubr.f32.mxu0 %v7405
    %7535 = vmatmul.mubr.f32.gmra.mxu0 %v6975
    %v7536 = vpop.f32.mrf.mxu0
    %v7537 = vadd.f32 %v7360, %v7536
    %v7538 = vpop.f32.mrf.mxu0
    %7539 = vmatprep.mubr.f32.mxu0 %v7408
    %7540 = vmatmul.mubr.f32.gmra.mxu0 %v6981
    %v7541 = vpop.f32.mrf.mxu0
    %v7542 = vadd.f32 %v7365, %v7541
    %v7543 = vpop.f32.mrf.mxu0
    %7544 = vdwg.mxu0
    %7545 = vmatprep.subr.mxu0 0.0
    %7546 = vmatpush1.msra.mxu0 0.0
    %7547 = vmatprep.subr.mxu0 0.0
    %7548 = vmatpush1.msra.mxu0 0.0
    %7549 = vmatprep.subr.mxu0 %v6835
    %7550 = vmatpush1.msra.mxu0 %v6834
    %7551 = vmatprep.subr.mxu0 %v6833
    %7552 = vmatpush1.msra.mxu0 %v6832
    %7553 = vmatprep.subr.mxu0 %v6831
    %7554 = vmatpush1.msra.mxu0 %v6830
    %7555 = vmatprep.subr.mxu0 %v6829
    %7556 = vmatpush1.msra.mxu0 %v6828
    %7557 = vmatprep.subr.mxu0 %v6827
    %7558 = vmatpush1.msra.mxu0 %v6826
    %7559 = vmatprep.subr.mxu0 %v6825
    %7560 = vmatpush1.msra.mxu0 %v6824
    %7561 = vmatprep.subr.mxu0 %v6823
    %7562 = vmatpush1.msra.mxu0 %v6822
    %7563 = vmatprep.subr.mxu0 %v6821
    %7564 = vmatpush1.msra.mxu0 %v6820
    %7565 = vmatprep.subr.mxu0 %v6819
    %7566 = vmatpush1.msra.mxu0 %v6818
    %7567 = vmatprep.subr.mxu0 %v6817
    %7568 = vmatpush1.msra.mxu0 %v6816
    %7569 = vmatprep.subr.mxu0 %v6815
    %7570 = vmatpush1.msra.mxu0 %v6814
    %7571 = vmatprep.subr.mxu0 %v6813
    %7572 = vmatpush1.msra.mxu0 %v6812
    %7573 = vmatprep.subr.mxu0 %v6811
    %7574 = vmatpush1.msra.mxu0 %v6810
    %7575 = vmatprep.subr.mxu0 %v6809
    %7576 = vmatpush1.msra.mxu0 %v6808
    %7577 = vmatprep.subr.mxu0 0.0
    %7578 = vmatpush2.msra.mxu0 0.0
    %7579 = vmatprep.subr.mxu0 0.0
    %7580 = vmatpush2.msra.mxu0 0.0
    %7581 = vmatprep.subr.mxu0 0.0
    %7582 = vmatpush2.msra.mxu0 0.0
    %7583 = vmatprep.subr.mxu0 0.0
    %7584 = vmatpush2.msra.mxu0 0.0
    %7585 = vmatprep.subr.mxu0 0.0
    %7586 = vmatpush2.msra.mxu0 0.0
    %7587 = vmatprep.subr.mxu0 0.0
    %7588 = vmatpush2.msra.mxu0 0.0
    %7589 = vmatprep.subr.mxu0 0.0
    %7590 = vmatpush2.msra.mxu0 0.0
    %7591 = vmatprep.subr.mxu0 0.0
    %7592 = vmatpush2.msra.mxu0 0.0
    %7593 = vmatprep.subr.mxu0 0.0
    %7594 = vmatpush2.msra.mxu0 0.0
    %7595 = vmatprep.subr.mxu0 0.0
    %7596 = vmatpush2.msra.mxu0 0.0
    %7597 = vmatprep.subr.mxu0 0.0
    %7598 = vmatpush2.msra.mxu0 0.0
    %7599 = vmatprep.subr.mxu0 0.0
    %7600 = vmatpush2.msra.mxu0 0.0
    %7601 = vmatprep.subr.mxu0 0.0
    %7602 = vmatpush2.msra.mxu0 0.0
    %7603 = vmatprep.subr.mxu0 0.0
    %7604 = vmatpush2.msra.mxu0 0.0
    %7605 = vmatprep.subr.mxu0 0.0
    %7606 = vmatpush2.msra.mxu0 0.0
    %7607 = vmatprep.subr.mxu0 0.0
    %7608 = vmatpush2.msra.mxu0 0.0
    %7609 = vmatprep.mubr.f32.mxu0 0.0
    %7610 = vmatmul.mubr.f32.gmra.mxu0 %v4917
    %v7611 = vpop.f32.mrf.mxu0
    %v7612 = vadd.f32 0.0, %v7611
    %v7613 = vpop.f32.mrf.mxu0
    %v7614 = vadd.f32 0.0, %v7613
    %7615 = vmatprep.mubr.f32.mxu0 0.0
    %7616 = vmatmul.mubr.f32.gmra.mxu0 %v4920
    %v7617 = vpop.f32.mrf.mxu0
    %v7618 = vadd.f32 0.0, %v7617
    %v7619 = vpop.f32.mrf.mxu0
    %v7620 = vadd.f32 0.0, %v7619
    %7621 = vmatprep.mubr.f32.mxu0 0.0
    %7622 = vmatmul.mubr.f32.gmra.mxu0 %v4923
    %v7623 = vpop.f32.mrf.mxu0
    %v7624 = vadd.f32 0.0, %v7623
    %v7625 = vpop.f32.mrf.mxu0
    %v7626 = vadd.f32 0.0, %v7625
    %7627 = vmatprep.mubr.f32.mxu0 0.0
    %7628 = vmatmul.mubr.f32.gmra.mxu0 %v4926
    %v7629 = vpop.f32.mrf.mxu0
    %v7630 = vadd.f32 0.0, %v7629
    %v7631 = vpop.f32.mrf.mxu0
    %v7632 = vadd.f32 0.0, %v7631
    %7633 = vmatprep.mubr.f32.mxu0 0.0
    %7634 = vmatmul.mubr.f32.gmra.mxu0 %v4929
    %v7635 = vpop.f32.mrf.mxu0
    %v7636 = vadd.f32 0.0, %v7635
    %v7637 = vpop.f32.mrf.mxu0
    %v7638 = vadd.f32 0.0, %v7637
    %7639 = vmatprep.mubr.f32.mxu0 0.0
    %7640 = vmatmul.mubr.f32.gmra.mxu0 %v4932
    %v7641 = vpop.f32.mrf.mxu0
    %v7642 = vadd.f32 0.0, %v7641
    %v7643 = vpop.f32.mrf.mxu0
    %v7644 = vadd.f32 0.0, %v7643
    %7645 = vmatprep.mubr.f32.mxu0 0.0
    %7646 = vmatmul.mubr.f32.gmra.mxu0 %v4935
    %v7647 = vpop.f32.mrf.mxu0
    %v7648 = vadd.f32 0.0, %v7647
    %v7649 = vpop.f32.mrf.mxu0
    %v7650 = vadd.f32 0.0, %v7649
    %7651 = vmatprep.mubr.f32.mxu0 0.0
    %7652 = vmatmul.mubr.f32.gmra.mxu0 %v4938
    %v7653 = vpop.f32.mrf.mxu0
    %v7654 = vadd.f32 0.0, %v7653
    %v7655 = vpop.f32.mrf.mxu0
    %v7656 = vadd.f32 0.0, %v7655
    %7657 = vmatprep.mubr.f32.mxu0 0.0
    %7658 = vmatmul.mubr.f32.gmra.mxu0 %v4941
    %v7659 = vpop.f32.mrf.mxu0
    %v7660 = vadd.f32 0.0, %v7659
    %v7661 = vpop.f32.mrf.mxu0
    %v7662 = vadd.f32 0.0, %v7661
    %7663 = vmatprep.mubr.f32.mxu0 0.0
    %7664 = vmatmul.mubr.f32.gmra.mxu0 %v4944
    %v7665 = vpop.f32.mrf.mxu0
    %v7666 = vadd.f32 0.0, %v7665
    %v7667 = vpop.f32.mrf.mxu0
    %v7668 = vadd.f32 0.0, %v7667
    %7669 = vmatprep.mubr.f32.mxu0 0.0
    %7670 = vmatmul.mubr.f32.gmra.mxu0 %v4947
    %v7671 = vpop.f32.mrf.mxu0
    %v7672 = vadd.f32 0.0, %v7671
    %v7673 = vpop.f32.mrf.mxu0
    %v7674 = vadd.f32 0.0, %v7673
    %7675 = vmatprep.mubr.f32.mxu0 0.0
    %7676 = vmatmul.mubr.f32.gmra.mxu0 %v4950
    %v7677 = vpop.f32.mrf.mxu0
    %v7678 = vadd.f32 0.0, %v7677
    %v7679 = vpop.f32.mrf.mxu0
    %v7680 = vadd.f32 0.0, %v7679
    %7681 = vmatprep.mubr.f32.mxu0 0.0
    %7682 = vmatmul.mubr.f32.gmra.mxu0 %v4953
    %v7683 = vpop.f32.mrf.mxu0
    %v7684 = vadd.f32 0.0, %v7683
    %v7685 = vpop.f32.mrf.mxu0
    %v7686 = vadd.f32 0.0, %v7685
    %7687 = vmatprep.mubr.f32.mxu0 0.0
    %7688 = vmatmul.mubr.f32.gmra.mxu0 %v4956
    %v7689 = vpop.f32.mrf.mxu0
    %v7690 = vadd.f32 0.0, %v7689
    %v7691 = vpop.f32.mrf.mxu0
    %v7692 = vadd.f32 0.0, %v7691
    %7693 = vdwg.mxu0
    %s7694 = scalar_lea.vmem %s13, 448
    %v7695 = vld [vmem:[%s7694] sm:$0xff]
    %v7696 = vld [vmem:[%s7694 + $0x8] sm:$0xff]
    %v7697 = vld [vmem:[%s7694 + $0x10] sm:$0xff]
    %v7698 = vld [vmem:[%s7694 + $0x18] sm:$0xff]
    %v7699 = vld [vmem:[%s7694 + $0x20] sm:$0xff]
    %v7700 = vld [vmem:[%s7694 + $0x28] sm:$0xff]
    %v7701 = vld [vmem:[%s7694 + $0x30] sm:$0xff]
    %v7702 = vld [vmem:[%s7694 + $0x38] sm:$0xff]
    %v7703 = vld [vmem:[%s7694 + $0x40] sm:$0xff]
    %v7704 = vld [vmem:[%s7694 + $0x48] sm:$0xff]
    %v7705 = vld [vmem:[%s7694 + $0x50] sm:$0xff]
    %v7706 = vld [vmem:[%s7694 + $0x58] sm:$0xff]
    %v7707 = vld [vmem:[%s7694 + $0x60] sm:$0xff]
    %v7708 = vld [vmem:[%s7694 + $0x68] sm:$0xff]
    %v7709 = vld [vmem:[%s7694 + $0x70] sm:$0xff]
    %v7710 = vld [vmem:[%s7694 + $0x78] sm:$0xff]
    %v7711 = vld [vmem:[%s7694 + $0x80] sm:$0xff]
    %v7712 = vld [vmem:[%s7694 + $0x88] sm:$0xff]
    %v7713 = vld [vmem:[%s7694 + $0x90] sm:$0xff]
    %v7714 = vld [vmem:[%s7694 + $0x98] sm:$0xff]
    %v7715 = vld [vmem:[%s7694 + $0xa0] sm:$0xff]
    %v7716 = vld [vmem:[%s7694 + $0xa8] sm:$0xff]
    %v7717 = vld [vmem:[%s7694 + $0xb0] sm:$0xff]
    %v7718 = vld [vmem:[%s7694 + $0xb8] sm:$0xff]
    %v7719 = vld [vmem:[%s7694 + $0xc0] sm:$0xff]
    %v7720 = vld [vmem:[%s7694 + $0xc8] sm:$0xff]
    %v7721 = vld [vmem:[%s7694 + $0xd0] sm:$0xff]
    %v7722 = vld [vmem:[%s7694 + $0xd8] sm:$0xff]
    %v7724 = vsel %vm2029, %v7614, 0
    %v7727 = vsel %vm2029, %v7620, 0
    %v7730 = vsel %vm2029, %v7626, 0
    %v7733 = vsel %vm2029, %v7632, 0
    %v7736 = vsel %vm2029, %v7638, 0
    %v7739 = vsel %vm2029, %v7644, 0
    %v7742 = vsel %vm2029, %v7650, 0
    %v7745 = vsel %vm2029, %v7656, 0
    %v7748 = vsel %vm2029, %v7662, 0
    %v7751 = vsel %vm2029, %v7668, 0
    %v7754 = vsel %vm2029, %v7674, 0
    %v7757 = vsel %vm2029, %v7680, 0
    %v7760 = vsel %vm2029, %v7686, 0
    %v7763 = vsel %vm2029, %v7692, 0
    %7765 = vmatprep.subr.mxu0 0.0
    %7766 = vmatpush1.msra.mxu0 %v7710
    %7767 = vmatprep.subr.mxu0 0.0
    %7768 = vmatpush1.msra.mxu0 %v7709
    %7769 = vmatprep.subr.mxu0 0.0
    %7770 = vmatpush1.msra.mxu0 %v7708
    %7771 = vmatprep.subr.mxu0 0.0
    %7772 = vmatpush1.msra.mxu0 %v7707
    %7773 = vmatprep.subr.mxu0 0.0
    %7774 = vmatpush1.msra.mxu0 %v7706
    %7775 = vmatprep.subr.mxu0 0.0
    %7776 = vmatpush1.msra.mxu0 %v7705
    %7777 = vmatprep.subr.mxu0 0.0
    %7778 = vmatpush1.msra.mxu0 %v7704
    %7779 = vmatprep.subr.mxu0 0.0
    %7780 = vmatpush1.msra.mxu0 %v7703
    %7781 = vmatprep.subr.mxu0 0.0
    %7782 = vmatpush1.msra.mxu0 %v7702
    %7783 = vmatprep.subr.mxu0 0.0
    %7784 = vmatpush1.msra.mxu0 %v7701
    %7785 = vmatprep.subr.mxu0 0.0
    %7786 = vmatpush1.msra.mxu0 %v7700
    %7787 = vmatprep.subr.mxu0 0.0
    %7788 = vmatpush1.msra.mxu0 %v7699
    %7789 = vmatprep.subr.mxu0 0.0
    %7790 = vmatpush1.msra.mxu0 %v7698
    %7791 = vmatprep.subr.mxu0 0.0
    %7792 = vmatpush1.msra.mxu0 %v7697
    %7793 = vmatprep.subr.mxu0 0.0
    %7794 = vmatpush1.msra.mxu0 %v7696
    %7795 = vmatprep.subr.mxu0 0.0
    %7796 = vmatpush1.msra.mxu0 %v7695
    %7797 = vmatprep.subr.mxu0 0.0
    %7798 = vmatpush2.msra.mxu0 0.0
    %7799 = vmatprep.subr.mxu0 0.0
    %7800 = vmatpush2.msra.mxu0 0.0
    %7801 = vmatprep.subr.mxu0 0.0
    %7802 = vmatpush2.msra.mxu0 0.0
    %7803 = vmatprep.subr.mxu0 0.0
    %7804 = vmatpush2.msra.mxu0 0.0
    %7805 = vmatprep.subr.mxu0 0.0
    %7806 = vmatpush2.msra.mxu0 %v7722
    %7807 = vmatprep.subr.mxu0 0.0
    %7808 = vmatpush2.msra.mxu0 %v7721
    %7809 = vmatprep.subr.mxu0 0.0
    %7810 = vmatpush2.msra.mxu0 %v7720
    %7811 = vmatprep.subr.mxu0 0.0
    %7812 = vmatpush2.msra.mxu0 %v7719
    %7813 = vmatprep.subr.mxu0 0.0
    %7814 = vmatpush2.msra.mxu0 %v7718
    %7815 = vmatprep.subr.mxu0 0.0
    %7816 = vmatpush2.msra.mxu0 %v7717
    %7817 = vmatprep.subr.mxu0 0.0
    %7818 = vmatpush2.msra.mxu0 %v7716
    %7819 = vmatprep.subr.mxu0 0.0
    %7820 = vmatpush2.msra.mxu0 %v7715
    %7821 = vmatprep.subr.mxu0 0.0
    %7822 = vmatpush2.msra.mxu0 %v7714
    %7823 = vmatprep.subr.mxu0 0.0
    %7824 = vmatpush2.msra.mxu0 %v7713
    %7825 = vmatprep.subr.mxu0 0.0
    %7826 = vmatpush2.msra.mxu0 %v7712
    %7827 = vmatprep.subr.mxu0 0.0
    %7828 = vmatpush2.msra.mxu0 %v7711
    %7829 = vmatprep.mubr.f32.mxu0 %v7724
    %7830 = vmatmul.mubr.f32.gmra.mxu0 %v7612
    %v7831 = vpop.f32.mrf.mxu0
    %v7832 = vadd.f32 0.0, %v7831
    %v7833 = vpop.f32.mrf.mxu0
    %7834 = vmatprep.mubr.f32.mxu0 %v7727
    %7835 = vmatmul.mubr.f32.gmra.mxu0 %v7618
    %v7836 = vpop.f32.mrf.mxu0
    %v7837 = vadd.f32 0.0, %v7836
    %v7838 = vpop.f32.mrf.mxu0
    %7839 = vmatprep.mubr.f32.mxu0 %v7730
    %7840 = vmatmul.mubr.f32.gmra.mxu0 %v7624
    %v7841 = vpop.f32.mrf.mxu0
    %v7842 = vadd.f32 0.0, %v7841
    %v7843 = vpop.f32.mrf.mxu0
    %7844 = vmatprep.mubr.f32.mxu0 %v7733
    %7845 = vmatmul.mubr.f32.gmra.mxu0 %v7630
    %v7846 = vpop.f32.mrf.mxu0
    %v7847 = vadd.f32 0.0, %v7846
    %v7848 = vpop.f32.mrf.mxu0
    %7849 = vmatprep.mubr.f32.mxu0 %v7736
    %7850 = vmatmul.mubr.f32.gmra.mxu0 %v7636
    %v7851 = vpop.f32.mrf.mxu0
    %v7852 = vadd.f32 0.0, %v7851
    %v7853 = vpop.f32.mrf.mxu0
    %7854 = vmatprep.mubr.f32.mxu0 %v7739
    %7855 = vmatmul.mubr.f32.gmra.mxu0 %v7642
    %v7856 = vpop.f32.mrf.mxu0
    %v7857 = vadd.f32 0.0, %v7856
    %v7858 = vpop.f32.mrf.mxu0
    %7859 = vmatprep.mubr.f32.mxu0 %v7742
    %7860 = vmatmul.mubr.f32.gmra.mxu0 %v7648
    %v7861 = vpop.f32.mrf.mxu0
    %v7862 = vadd.f32 0.0, %v7861
    %v7863 = vpop.f32.mrf.mxu0
    %7864 = vmatprep.mubr.f32.mxu0 %v7745
    %7865 = vmatmul.mubr.f32.gmra.mxu0 %v7654
    %v7866 = vpop.f32.mrf.mxu0
    %v7867 = vadd.f32 0.0, %v7866
    %v7868 = vpop.f32.mrf.mxu0
    %7869 = vmatprep.mubr.f32.mxu0 %v7748
    %7870 = vmatmul.mubr.f32.gmra.mxu0 %v7660
    %v7871 = vpop.f32.mrf.mxu0
    %v7872 = vadd.f32 0.0, %v7871
    %v7873 = vpop.f32.mrf.mxu0
    %7874 = vmatprep.mubr.f32.mxu0 %v7751
    %7875 = vmatmul.mubr.f32.gmra.mxu0 %v7666
    %v7876 = vpop.f32.mrf.mxu0
    %v7877 = vadd.f32 0.0, %v7876
    %v7878 = vpop.f32.mrf.mxu0
    %7879 = vmatprep.mubr.f32.mxu0 %v7754
    %7880 = vmatmul.mubr.f32.gmra.mxu0 %v7672
    %v7881 = vpop.f32.mrf.mxu0
    %v7882 = vadd.f32 0.0, %v7881
    %v7883 = vpop.f32.mrf.mxu0
    %7884 = vmatprep.mubr.f32.mxu0 %v7757
    %7885 = vmatmul.mubr.f32.gmra.mxu0 %v7678
    %v7886 = vpop.f32.mrf.mxu0
    %v7887 = vadd.f32 0.0, %v7886
    %v7888 = vpop.f32.mrf.mxu0
    %7889 = vmatprep.mubr.f32.mxu0 %v7760
    %7890 = vmatmul.mubr.f32.gmra.mxu0 %v7684
    %v7891 = vpop.f32.mrf.mxu0
    %v7892 = vadd.f32 0.0, %v7891
    %v7893 = vpop.f32.mrf.mxu0
    %7894 = vmatprep.mubr.f32.mxu0 %v7763
    %7895 = vmatmul.mubr.f32.gmra.mxu0 %v7690
    %v7896 = vpop.f32.mrf.mxu0
    %v7897 = vadd.f32 0.0, %v7896
    %v7898 = vpop.f32.mrf.mxu0
    %7899 = vdwg.mxu0
    %v7900 = vadd.f32 %v7477, %v7832
    %v7901 = vadd.f32 %v7482, %v7837
    %v7902 = vadd.f32 %v7487, %v7842
    %v7903 = vadd.f32 %v7492, %v7847
    %v7904 = vadd.f32 %v7497, %v7852
    %v7905 = vadd.f32 %v7502, %v7857
    %v7906 = vadd.f32 %v7507, %v7862
    %v7907 = vadd.f32 %v7512, %v7867
    %v7908 = vadd.f32 %v7517, %v7872
    %v7909 = vadd.f32 %v7522, %v7877
    %v7910 = vadd.f32 %v7527, %v7882
    %v7911 = vadd.f32 %v7532, %v7887
    %v7912 = vadd.f32 %v7537, %v7892
    %v7913 = vadd.f32 %v7542, %v7897
    %v7914 = vxor.u32 %v7900, 2147483648
    %v7915 = vxor.u32 %v7901, 2147483648
    %v7916 = vxor.u32 %v7902, 2147483648
    %v7917 = vxor.u32 %v7903, 2147483648
    %v7918 = vxor.u32 %v7904, 2147483648
    %v7919 = vxor.u32 %v7905, 2147483648
    %v7920 = vxor.u32 %v7906, 2147483648
    %v7921 = vxor.u32 %v7907, 2147483648
    %v7922 = vxor.u32 %v7908, 2147483648
    %v7923 = vxor.u32 %v7909, 2147483648
    %v7924 = vxor.u32 %v7910, 2147483648
    %v7925 = vxor.u32 %v7911, 2147483648
    %v7926 = vxor.u32 %v7912, 2147483648
    %v7927 = vxor.u32 %v7913, 2147483648
    %v7928 = vmul.f32 %v7914, 1.442695
    %v7929 = vpow.pop %v7928
    %v7930 = vmul.f32 %v7915, 1.442695
    %v7931 = vpow.pop %v7930
    %v7932 = vmul.f32 %v7916, 1.442695
    %v7933 = vpow.pop %v7932
    %v7934 = vmul.f32 %v7917, 1.442695
    %v7935 = vpow.pop %v7934
    %v7936 = vmul.f32 %v7918, 1.442695
    %v7937 = vpow.pop %v7936
    %v7938 = vmul.f32 %v7919, 1.442695
    %v7939 = vpow.pop %v7938
    %v7940 = vmul.f32 %v7920, 1.442695
    %v7941 = vpow.pop %v7940
    %v7942 = vmul.f32 %v7921, 1.442695
    %v7943 = vpow.pop %v7942
    %v7944 = vmul.f32 %v7922, 1.442695
    %v7945 = vpow.pop %v7944
    %v7946 = vmul.f32 %v7923, 1.442695
    %v7947 = vpow.pop %v7946
    %v7948 = vmul.f32 %v7924, 1.442695
    %v7949 = vpow.pop %v7948
    %v7950 = vmul.f32 %v7925, 1.442695
    %v7951 = vpow.pop %v7950
    %v7952 = vmul.f32 %v7926, 1.442695
    %v7953 = vpow.pop %v7952
    %v7954 = vmul.f32 %v7927, 1.442695
    %v7955 = vpow.pop %v7954
    %v7956 = vadd.f32 %v7929, 1.0
    %v7957 = vadd.f32 %v7931, 1.0
    %v7958 = vadd.f32 %v7933, 1.0
    %v7959 = vadd.f32 %v7935, 1.0
    %v7960 = vadd.f32 %v7937, 1.0
    %v7961 = vadd.f32 %v7939, 1.0
    %v7962 = vadd.f32 %v7941, 1.0
    %v7963 = vadd.f32 %v7943, 1.0
    %v7964 = vadd.f32 %v7945, 1.0
    %v7965 = vadd.f32 %v7947, 1.0
    %v7966 = vadd.f32 %v7949, 1.0
    %v7967 = vadd.f32 %v7951, 1.0
    %v7968 = vadd.f32 %v7953, 1.0
    %v7969 = vadd.f32 %v7955, 1.0
    %v7970 = vrcp.pop %v7956
    %v7971 = vmul.f32 1.0, %v7970
    %v7972 = vrcp.pop %v7957
    %v7973 = vmul.f32 1.0, %v7972
    %v7974 = vrcp.pop %v7958
    %v7975 = vmul.f32 1.0, %v7974
    %v7976 = vrcp.pop %v7959
    %v7977 = vmul.f32 1.0, %v7976
    %v7978 = vrcp.pop %v7960
    %v7979 = vmul.f32 1.0, %v7978
    %v7980 = vrcp.pop %v7961
    %v7981 = vmul.f32 1.0, %v7980
    %v7982 = vrcp.pop %v7962
    %v7983 = vmul.f32 1.0, %v7982
    %v7984 = vrcp.pop %v7963
    %v7985 = vmul.f32 1.0, %v7984
    %v7986 = vrcp.pop %v7964
    %v7987 = vmul.f32 1.0, %v7986
    %v7988 = vrcp.pop %v7965
    %v7989 = vmul.f32 1.0, %v7988
    %v7990 = vrcp.pop %v7966
    %v7991 = vmul.f32 1.0, %v7990
    %v7992 = vrcp.pop %v7967
    %v7993 = vmul.f32 1.0, %v7992
    %v7994 = vrcp.pop %v7968
    %v7995 = vmul.f32 1.0, %v7994
    %v7996 = vrcp.pop %v7969
    %v7997 = vmul.f32 1.0, %v7996
    %7998 = vst [vmem:[#allocation2] sm:$0xff] %v7971
    %7999 = vst [vmem:[#allocation2 + $0x8] sm:$0xff] %v7973
    %8000 = vst [vmem:[#allocation2 + $0x10] sm:$0xff] %v7975
    %8001 = vst [vmem:[#allocation2 + $0x18] sm:$0xff] %v7977
    %8002 = vst [vmem:[#allocation2 + $0x20] sm:$0xff] %v7979
    %8003 = vst [vmem:[#allocation2 + $0x28] sm:$0xff] %v7981
    %8004 = vst [vmem:[#allocation2 + $0x30] sm:$0xff] %v7983
    %8005 = vst [vmem:[#allocation2 + $0x38] sm:$0xff] %v7985
    %8006 = vst [vmem:[#allocation2 + $0x40] sm:$0xff] %v7987
    %8007 = vst [vmem:[#allocation2 + $0x48] sm:$0xff] %v7989
    %8008 = vst [vmem:[#allocation2 + $0x50] sm:$0xff] %v7991
    %8009 = vst [vmem:[#allocation2 + $0x58] sm:$0xff] %v7993
    %8010 = vst [vmem:[#allocation2 + $0x60] sm:$0xff] %v7995
    %8011 = vst [vmem:[#allocation2 + $0x68] sm:$0xff] %v7997
    // Predicated region
    $region58: #{px_z_forward.3} parent=1 // pred_check
      _
    $region59: #{px_z_forward.3} parent=1 // pred_check_branch
      %8013 = sbr.rel (0) target = $region61
    $region60: #{px_z_forward.3} parent=1 // pred_region
      %s8015 = ssub.s32 1792, 1792
      %8016 = vsyncadd [#allocation3], %s8015
      %s8017 = sshll.u32 [#allocation2], 4
      %s8018 = int_to_ptr.vmem [resolvable:$true] %s8017
      %8023 = dma.vmem_to_hbm [thread:$0]  %s8018, 1792, %s14, [#allocation3], 128, 128, 8
    $region61: #{px_z_forward.3} parent=1 // pred_fallthru
      _
    // Predicated region
    $region62: #{px_z_forward.3} parent=1 // pred_check
      _
    $region63: #{px_z_forward.3} parent=1 // pred_check_branch
      %8025 = sbr.rel (0) target = $region65
    $region64: #{px_z_forward.3} parent=1 // pred_region
      %8026 = dma.done [#allocation3], 1792
    $region65: #{px_z_forward.3} parent=1 // pred_fallthru
      _
    %8027 = vsyncpa [#allocation3], 1

</llo_original>
